<compile_context>
chip_gen: v7x
topology: tpu7x:2x2x1
jax: 0.10.0
libtpu: 0.0.40
codegen_flags: <defaults>
</compile_context>

<pallas_src>
import functools

import jax
import jax.numpy as jnp
from jax.experimental import pallas as pl
from jax.experimental.pallas import tpu as pltpu


def _vq_kernel(x_ref, cbh_ref, cbl_ref, csq_ref,
               xd_ref, cnt_ref, cls_ref,
               *, m_total: int, block_rows: int):
    """One row-tile of the VQ forward.

    x_ref   : (tm, D)    input vectors
    cbh_ref : (K, D)     codebook, bf16 high plane   (resident across the grid)
    cbl_ref : (K, D)     codebook, bf16 low  plane   (resident across the grid)
    csq_ref : (1, K)     precomputed 0.5 * ||c_k||^2 (f32, resident)
    xd_ref  : (tm, D)    dequantized output rows
    cnt_ref : (1, 1, K)  per-tile code-usage counts
    cls_ref : (1, 1, D)  per-tile per-lane partial sums of (x - x_d)^2
    """
    # Row-validity mask for the (possibly partial) last tile.
    x_raw = x_ref[...].astype(jnp.float32)                       # (tm, D)
    row_id = (jax.lax.broadcasted_iota(jnp.int32, (x_raw.shape[0], 1), 0)
              + pl.program_id(0) * block_rows)
    valid = row_id < m_total                                     # (tm, 1) bool

    # Zero padded rows so every downstream value is well defined; they are
    # additionally masked out of counts/loss and dropped by the bounded store.
    x = jnp.where(valid, x_raw, 0.0)                             # (tm, D) f32
    x_mm = x.astype(jnp.bfloat16)                                # MXU operand

    cbh = cbh_ref[...]                                           # (K, D) bf16
    cbl = cbl_ref[...]                                           # (K, D) bf16
    csq_half = csq_ref[...]                                      # (1, K) f32

    # Distance up to the per-row constant ||x||^2 and a global 0.5 factor
    # (neither affects the argmin):  score_k = 0.5*||c_k||^2 - x . c_k
    # Single bf16 MXU pass, trans-B contraction against the (K, D) codebook.
    xc = jax.lax.dot_general(x_mm, cbh, (((1,), (1,)), ((), ())),
                             preferred_element_type=jnp.float32)  # (tm, K)
    scores = csq_half - xc

    nb_code = scores.shape[-1]
    k_ids = jax.lax.broadcasted_iota(jnp.int32, scores.shape, 1).astype(jnp.float32)

    # First index attaining the row minimum (same tie-break as torch.min).
    min_val = jnp.min(scores, axis=-1, keepdims=True)                    # (tm, 1)
    idx = jnp.min(jnp.where(scores == min_val, k_ids, float(nb_code)),
                  axis=-1, keepdims=True)                                # (tm, 1)
    onehot_b = (k_ids == idx)                                            # (tm, K)
    onehot_mm = onehot_b.astype(jnp.bfloat16)

    # Dequantize as two single-pass bf16 one-hot matmuls (near-exact gather:
    # exact when the codebook is bf16-representable, ~2^-16 relative otherwise).
    xd = (jnp.dot(onehot_mm, cbh, preferred_element_type=jnp.float32)
          + jnp.dot(onehot_mm, cbl, preferred_element_type=jnp.float32))  # (tm, D)
    xd_ref[...] = xd.astype(xd_ref.dtype)

    # Code-usage counts (padded rows excluded).
    counts = jnp.sum(jnp.where(onehot_b & valid, 1.0, 0.0),
                     axis=0, keepdims=True)                              # (1, K)
    cnt_ref[...] = counts.reshape(1, 1, nb_code)

    # Commitment-loss partials: per-lane sums of (x - x_d)^2 over valid rows.
    diff = jnp.where(valid, x - xd, 0.0)
    cls_ref[...] = jnp.sum(diff * diff, axis=0, keepdims=True).reshape(1, 1, -1)


def quantize_ema_forward(x: jax.Array, codebook: jax.Array, *, block_rows: int = 512):
    """Eval-mode QuantizeEMA.forward: returns (x_d, commit_loss, perplexity).

    x:        (N, width, T) with width == code_dim
    codebook: (nb_code, code_dim)
    """
    N, C, T = x.shape
    K, D = codebook.shape
    assert C == D, "width must equal code_dim"

    # preprocess(): (N, C, T) -> (N*T, C)  (permute(0,2,1).contiguous().view(-1, C)).
    xf = jnp.transpose(x, (0, 2, 1)).reshape(N * T, C)
    M = N * T

    # Row-tile size: MXU-filling multiples of 256 (v6e/v7x 2x256x256 MXU; also a
    # multiple of 128 for v5e and of the bf16 packed-sublane granule), and at
    # least 2 grid tiles whenever M >= 512 so v7x's second TensorCore is used.
    MXU_ROWS = 256
    if M < 2 * MXU_ROWS:
        tm = M                                      # tiny input: single tile
    else:
        tm = min(block_rows, M // 2)                # guarantee G >= 2
        tm = max(MXU_ROWS, (tm // MXU_ROWS) * MXU_ROWS)
    G = pl.cdiv(M, tm)

    # Single resident codebook layout (K, D), stored as a bf16 hi/lo split so
    # both matmuls are single-pass bf16 MXU ops while the dequantize gather
    # reconstructs the f32 codebook to ~2^-16 relative accuracy.
    cb_f32 = codebook.astype(jnp.float32)
    cb_hi = cb_f32.astype(jnp.bfloat16)                              # (K, D)
    cb_lo = (cb_f32 - cb_hi.astype(jnp.float32)).astype(jnp.bfloat16)
    csq_half = (0.5 * jnp.sum(cb_f32 * cb_f32, axis=1))[None, :]     # (1, K)

    kernel = functools.partial(_vq_kernel, m_total=M, block_rows=tm)

    itemsize = jnp.dtype(x.dtype).itemsize
    cost = pl.CostEstimate(
        flops=6 * M * D * K,                 # 1 distance pass + 2 dequantize passes
        transcendentals=0,
        bytes_accessed=(2 * M * D * itemsize          # x in, x_d out
                        + 2 * K * D * 2 + K * 4       # resident codebook planes + csq
                        + G * (K + D) * 4),           # per-tile partial outputs
    )

    xd_flat, counts, commit_partial = pl.pallas_call(
        kernel,
        out_shape=(
            jax.ShapeDtypeStruct((M, D), x.dtype),
            jax.ShapeDtypeStruct((G, 1, K), jnp.float32),
            jax.ShapeDtypeStruct((G, 1, D), jnp.float32),
        ),
        grid_spec=pltpu.PrefetchScalarGridSpec(
            num_scalar_prefetch=0,
            grid=(G,),
            in_specs=[
                pl.BlockSpec((tm, D), lambda i: (i, 0)),      # x row tile
                pl.BlockSpec((K, D), lambda i: (0, 0)),       # codebook hi plane (resident)
                pl.BlockSpec((K, D), lambda i: (0, 0)),       # codebook lo plane (resident)
                pl.BlockSpec((1, K), lambda i: (0, 0)),       # 0.5*||c||^2       (resident)
            ],
            out_specs=(
                pl.BlockSpec((tm, D), lambda i: (i, 0)),
                pl.BlockSpec((1, 1, K), lambda i: (i, 0, 0)),
                pl.BlockSpec((1, 1, D), lambda i: (i, 0, 0)),
            ),
        ),
        compiler_params=pltpu.CompilerParams(
            dimension_semantics=("parallel",),
            # Ample for tm<=512, K=D=512 and safe on v7x's 64 MiB VMEM; raise on
            # v5e/v6e (128 MiB) if block_rows is increased.
            vmem_limit_bytes=32 * 1024 * 1024,
        ),
        cost_estimate=cost,
    )(xf, cb_hi, cb_lo, csq_half)

    # Tiny finalization on K-/G-length vectors (not worth a kernel).
    code_count = jnp.sum(counts.reshape(G, K), axis=0)               # (K,)
    prob = code_count / jnp.sum(code_count)
    perplexity = jnp.exp(-jnp.sum(prob * jnp.log(prob + 1e-7)))
    commit_loss = jnp.sum(commit_partial) / (M * D)                  # mse_loss(x, x_d)

    # Straight-through: forward value of x + (x_d - x).detach() is x_d.
    x_d = jnp.transpose(xd_flat.reshape(N, T, C), (0, 2, 1))
    return x_d, commit_loss, perplexity


def _ref_forward(x, codebook):
    """Pure-JAX reference of QuantizeEMA.forward (eval path)."""
    N, C, T = x.shape
    xf = jnp.transpose(x, (0, 2, 1)).reshape(-1, C)
    k_w = codebook.T
    distance = (jnp.sum(xf * xf, axis=-1, keepdims=True)
                - 2.0 * jnp.dot(xf, k_w, precision=jax.lax.Precision.HIGHEST)
                + jnp.sum(k_w * k_w, axis=0, keepdims=True))
    code_idx = jnp.argmin(distance, axis=-1)
    x_d = codebook[code_idx]
    code_count = jnp.zeros((codebook.shape[0],), jnp.float32).at[code_idx].add(1.0)
    prob = code_count / jnp.sum(code_count)
    perplexity = jnp.exp(-jnp.sum(prob * jnp.log(prob + 1e-7)))
    commit_loss = jnp.mean((xf - x_d) ** 2)
    x_out = jnp.transpose(x_d.reshape(N, T, C), (0, 2, 1))
    return x_out, commit_loss, perplexity


if __name__ == "__main__":
    key = jax.random.PRNGKey(0)
    nb_code, code_dim = 512, 512        # module-level defaults in the spec
    N, T = 4, 160                       # M = 640 -> row grid of 3 tiles (256, 256, 128-tail)
    k1, k2, k3 = jax.random.split(key, 3)

    # Codebook values snapped to the bf16 grid so the bf16 hi/lo one-hot gather
    # reproduces codebook rows bit-exactly (test robustness; arbitrary f32
    # codebooks are reconstructed to ~2^-16 relative accuracy).
    codebook = jax.random.normal(k1, (nb_code, code_dim), dtype=jnp.float32)
    codebook = codebook.astype(jnp.bfloat16).astype(jnp.float32)

    # Inputs = perturbed codebook rows -> unambiguous nearest code per row (the
    # bf16 distance matmul can reorder exact ties vs f32 torch.min; documented).
    idx_true = jax.random.randint(k2, (N * T,), 0, nb_code)
    xf0 = codebook[idx_true] + 0.01 * jax.random.normal(
        k3, (N * T, code_dim), dtype=jnp.float32)
    x = jnp.transpose(xf0.reshape(N, T, code_dim), (0, 2, 1))     # (N, width, T)

    x_d, commit_loss, perplexity = quantize_ema_forward(x, codebook)
    x_d, commit_loss, perplexity = jax.block_until_ready((x_d, commit_loss, perplexity))

    xd_ref, commit_ref, perp_ref = _ref_forward(x, codebook)
    assert x_d.shape == x.shape and x_d.dtype == x.dtype
    assert jnp.allclose(x_d, xd_ref, atol=1e-5, rtol=1e-5), "dequantized output mismatch"
    assert jnp.allclose(commit_loss, commit_ref, rtol=1e-3, atol=1e-8), "commit loss mismatch"
    assert jnp.allclose(perplexity, perp_ref, rtol=1e-4, atol=1e-4), "perplexity mismatch"
    print("KERNEL_OK")
</pallas_src>

<mosaic_0001>
module attributes {stable_mosaic.version = 11 : i64} {
  func.func @_vq_kernel(%arg0: i32, %arg1: memref<256x512xf32, #tpu.memory_space<vmem>>, %arg2: memref<512x512xbf16, #tpu.memory_space<vmem>>, %arg3: memref<512x512xbf16, #tpu.memory_space<vmem>>, %arg4: memref<1x512xf32, #tpu.memory_space<vmem>>, %arg5: memref<256x512xf32, #tpu.memory_space<vmem>>, %arg6: memref<1x1x512xf32, #tpu.memory_space<vmem>>, %arg7: memref<1x1x512xf32, #tpu.memory_space<vmem>>) attributes {dimension_semantics = [#tpu.dimension_semantics<parallel>], iteration_bounds = array<i64: 3>, scalar_prefetch = 0 : i64, scratch_operands = 0 : i64, tpu.core_type = #tpu.core_type<tc>, window_params = [{transform_indices = @transform_0, window_bounds = array<i64: 256, 512>}, {pipeline_mode = #tpu.pipeline_mode<synchronous>, transform_indices = @transform_1, window_bounds = array<i64: 512, 512>}, {pipeline_mode = #tpu.pipeline_mode<synchronous>, transform_indices = @transform_2, window_bounds = array<i64: 512, 512>}, {pipeline_mode = #tpu.pipeline_mode<synchronous>, transform_indices = @transform_3, window_bounds = array<i64: 1, 512>}, {transform_indices = @transform_4, window_bounds = array<i64: 256, 512>}, {transform_indices = @transform_5, window_bounds = array<i64: 1, 1, 512>}, {transform_indices = @transform_6, window_bounds = array<i64: 1, 1, 512>}]} {
    %c0 = arith.constant 0 : index
    %c0_0 = arith.constant 0 : index
    %0 = vector.load %arg1[%c0, %c0_0] : memref<256x512xf32, #tpu.memory_space<vmem>>, vector<256x512xf32>
    %1 = tpu.iota {dimensions = array<i32: 0>} : vector<256x1xi32>
    %c256_i32 = arith.constant 256 : i32
    %2 = arith.muli %arg0, %c256_i32 : i32
    %3 = vector.broadcast %2 : i32 to vector<256x1xi32>
    %4 = arith.addi %1, %3 : vector<256x1xi32>
    %c640_i32 = arith.constant 640 : i32
    %5 = vector.broadcast %c640_i32 : i32 to vector<256x1xi32>
    %6 = arith.cmpi slt, %4, %5 : vector<256x1xi32>
    %cst = arith.constant 0.000000e+00 : f32
    %7 = vector.shape_cast %6 : vector<256x1xi1> to vector<256x1xi1>
    %8 = vector.broadcast %7 : vector<256x1xi1> to vector<256x512xi1>
    %9 = vector.broadcast %cst : f32 to vector<256x512xf32>
    %10 = arith.select %8, %0, %9 : vector<256x512xi1>, vector<256x512xf32>
    %11 = arith.truncf %10 : vector<256x512xf32> to vector<256x512xbf16>
    %c0_1 = arith.constant 0 : index
    %c0_2 = arith.constant 0 : index
    %12 = vector.load %arg2[%c0_1, %c0_2] : memref<512x512xbf16, #tpu.memory_space<vmem>>, vector<512x512xbf16>
    %c0_3 = arith.constant 0 : index
    %c0_4 = arith.constant 0 : index
    %13 = vector.load %arg3[%c0_3, %c0_4] : memref<512x512xbf16, #tpu.memory_space<vmem>>, vector<512x512xbf16>
    %c0_5 = arith.constant 0 : index
    %c0_6 = arith.constant 0 : index
    %14 = vector.load %arg4[%c0_5, %c0_6] : memref<1x512xf32, #tpu.memory_space<vmem>>, vector<1x512xf32>
    %cst_7 = arith.constant dense<0.000000e+00> : vector<256x512xf32>
    %15 = tpu.matmul %11, %12, %cst_7 {dimension_numbers = #tpu.dot_dimension_numbers<[1], [1], [0], [0], [0, 0, 1, 0], [], []>} : vector<256x512xbf16>, vector<512x512xbf16>, vector<256x512xf32> -> vector<256x512xf32>
    %16 = vector.broadcast %14 : vector<1x512xf32> to vector<256x512xf32>
    %17 = arith.subf %16, %15 : vector<256x512xf32>
    %18 = tpu.iota {dimensions = array<i32: 1>} : vector<256x512xi32>
    %19 = arith.sitofp %18 : vector<256x512xi32> to vector<256x512xf32>
    %cst_8 = arith.constant dense<0x7F800000> : vector<256xf32>
    %20 = vector.multi_reduction <minimumf>, %17, %cst_8 [1] : vector<256x512xf32> to vector<256xf32>
    %21 = vector.shape_cast %20 : vector<256xf32> to vector<256x1xf32>
    %22 = vector.broadcast %21 : vector<256x1xf32> to vector<256x512xf32>
    %23 = arith.cmpf oeq, %17, %22 : vector<256x512xf32>
    %cst_9 = arith.constant 5.120000e+02 : f32
    %24 = vector.broadcast %cst_9 : f32 to vector<256x512xf32>
    %25 = arith.select %23, %19, %24 : vector<256x512xi1>, vector<256x512xf32>
    %cst_10 = arith.constant dense<0x7F800000> : vector<256xf32>
    %26 = vector.multi_reduction <minimumf>, %25, %cst_10 [1] : vector<256x512xf32> to vector<256xf32>
    %27 = vector.shape_cast %26 : vector<256xf32> to vector<256x1xf32>
    %28 = vector.broadcast %27 : vector<256x1xf32> to vector<256x512xf32>
    %29 = arith.cmpf oeq, %19, %28 : vector<256x512xf32>
    %30 = arith.extui %29 : vector<256x512xi1> to vector<256x512xi32>
    %31 = arith.sitofp %30 : vector<256x512xi32> to vector<256x512xf32>
    %32 = arith.truncf %31 : vector<256x512xf32> to vector<256x512xbf16>
    %cst_11 = arith.constant dense<0.000000e+00> : vector<256x512xf32>
    %33 = tpu.matmul %32, %12, %cst_11 {dimension_numbers = #tpu.dot_dimension_numbers<[1], [0], [0], [1], [0, 0, 1, 1], [], []>} : vector<256x512xbf16>, vector<512x512xbf16>, vector<256x512xf32> -> vector<256x512xf32>
    %cst_12 = arith.constant dense<0.000000e+00> : vector<256x512xf32>
    %34 = tpu.matmul %32, %13, %cst_12 {dimension_numbers = #tpu.dot_dimension_numbers<[1], [0], [0], [1], [0, 0, 1, 1], [], []>} : vector<256x512xbf16>, vector<512x512xbf16>, vector<256x512xf32> -> vector<256x512xf32>
    %35 = arith.addf %33, %34 : vector<256x512xf32>
    %c0_13 = arith.constant 0 : index
    %c0_14 = arith.constant 0 : index
    %36 = vector.load %arg5[%c0_13, %c0_14] : memref<256x512xf32, #tpu.memory_space<vmem>>, vector<256x512xf32>
    tpu.vector_store %arg5[%c0_13, %c0_14], %35 {strides = array<i32>} : memref<256x512xf32, #tpu.memory_space<vmem>>, vector<256x512xf32>,
    %37 = vector.broadcast %6 : vector<256x1xi1> to vector<256x512xi1>
    %38 = arith.andi %29, %37 : vector<256x512xi1>
    %cst_15 = arith.constant 1.000000e+00 : f32
    %cst_16 = arith.constant 0.000000e+00 : f32
    %39 = vector.broadcast %cst_15 : f32 to vector<256x512xf32>
    %40 = vector.broadcast %cst_16 : f32 to vector<256x512xf32>
    %41 = arith.select %38, %39, %40 : vector<256x512xi1>, vector<256x512xf32>
    %cst_17 = arith.constant dense<0.000000e+00> : vector<512xf32>
    %42 = vector.multi_reduction <add>, %41, %cst_17 [0] : vector<256x512xf32> to vector<512xf32>
    %43 = vector.shape_cast %42 : vector<512xf32> to vector<1x512xf32>
    %44 = vector.shape_cast %43 : vector<1x512xf32> to vector<1x1x512xf32>
    %c0_18 = arith.constant 0 : index
    %c0_19 = arith.constant 0 : index
    %c0_20 = arith.constant 0 : index
    %45 = vector.load %arg6[%c0_18, %c0_19, %c0_20] : memref<1x1x512xf32, #tpu.memory_space<vmem>>, vector<1x1x512xf32>
    tpu.vector_store %arg6[%c0_18, %c0_19, %c0_20], %44 {strides = array<i32>} : memref<1x1x512xf32, #tpu.memory_space<vmem>>, vector<1x1x512xf32>,
    %46 = arith.subf %10, %35 : vector<256x512xf32>
    %cst_21 = arith.constant 0.000000e+00 : f32
    %47 = vector.shape_cast %6 : vector<256x1xi1> to vector<256x1xi1>
    %48 = vector.broadcast %47 : vector<256x1xi1> to vector<256x512xi1>
    %49 = vector.broadcast %cst_21 : f32 to vector<256x512xf32>
    %50 = arith.select %48, %46, %49 : vector<256x512xi1>, vector<256x512xf32>
    %51 = arith.mulf %50, %50 : vector<256x512xf32>
    %cst_22 = arith.constant dense<0.000000e+00> : vector<512xf32>
    %52 = vector.multi_reduction <add>, %51, %cst_22 [0] : vector<256x512xf32> to vector<512xf32>
    %53 = vector.shape_cast %52 : vector<512xf32> to vector<1x512xf32>
    %54 = vector.shape_cast %53 : vector<1x512xf32> to vector<1x1x512xf32>
    %c0_23 = arith.constant 0 : index
    %c0_24 = arith.constant 0 : index
    %c0_25 = arith.constant 0 : index
    %55 = vector.load %arg7[%c0_23, %c0_24, %c0_25] : memref<1x1x512xf32, #tpu.memory_space<vmem>>, vector<1x1x512xf32>
    tpu.vector_store %arg7[%c0_23, %c0_24, %c0_25], %54 {strides = array<i32>} : memref<1x1x512xf32, #tpu.memory_space<vmem>>, vector<1x1x512xf32>,
    return
  }
  func.func @transform_0(%arg0: i32) -> (i32, i32) {
    %c0_i32 = arith.constant 0 : i32
    %c0_i32_0 = arith.constant 0 : i32
    return %arg0, %c0_i32 : i32, i32
  }
  func.func @transform_1(%arg0: i32) -> (i32, i32) {
    %c0_i32 = arith.constant 0 : i32
    %c0_i32_0 = arith.constant 0 : i32
    %c0_i32_1 = arith.constant 0 : i32
    return %c0_i32, %c0_i32_0 : i32, i32
  }
  func.func @transform_2(%arg0: i32) -> (i32, i32) {
    %c0_i32 = arith.constant 0 : i32
    %c0_i32_0 = arith.constant 0 : i32
    %c0_i32_1 = arith.constant 0 : i32
    return %c0_i32, %c0_i32_0 : i32, i32
  }
  func.func @transform_3(%arg0: i32) -> (i32, i32) {
    %c0_i32 = arith.constant 0 : i32
    %c0_i32_0 = arith.constant 0 : i32
    %c0_i32_1 = arith.constant 0 : i32
    return %c0_i32, %c0_i32_0 : i32, i32
  }
  func.func @transform_4(%arg0: i32) -> (i32, i32) {
    %c0_i32 = arith.constant 0 : i32
    %c0_i32_0 = arith.constant 0 : i32
    return %arg0, %c0_i32 : i32, i32
  }
  func.func @transform_5(%arg0: i32) -> (i32, i32, i32) {
    %c0_i32 = arith.constant 0 : i32
    %c0_i32_0 = arith.constant 0 : i32
    %c0_i32_1 = arith.constant 0 : i32
    return %arg0, %c0_i32, %c0_i32_0 : i32, i32, i32
  }
  func.func @transform_6(%arg0: i32) -> (i32, i32, i32) {
    %c0_i32 = arith.constant 0 : i32
    %c0_i32_0 = arith.constant 0 : i32
    %c0_i32_1 = arith.constant 0 : i32
    return %arg0, %c0_i32, %c0_i32_0 : i32, i32, i32
  }
}

</mosaic_0001>

<llo_original>
// kernel: tpu_custom_call.1
$region0: #{tpu_custom_call.1}
  #allocation0 [shape = 'u32[]', space=smem, size = 0x4, offset = 0x4, fixed_abs, tag = 'smem constant byte address 0x4 - core index']
  #allocation1 [shape = 'u32[144,128]{1,0:T(1,128)}', space=vmem, size = 0x12000, scoped, tag = 'internal scratch']
  %s0 = inlined_call_operand.hbm [shape: f32[640,512], index: 0, kind: input, shape index: {}]
  %s1 = inlined_call_operand.hbm [shape: bf16[512,512], index: 1, kind: input, shape index: {}]
  %s2 = inlined_call_operand.hbm [shape: bf16[512,512], index: 2, kind: input, shape index: {}]
  %s3 = inlined_call_operand.hbm [shape: f32[1,512], index: 3, kind: input, shape index: {}]
  %s4 = inlined_call_operand.hbm [shape: f32[640,512], index: 4, kind: output, shape index: {0}]
  %s5 = inlined_call_operand.hbm [shape: f32[3,1,512], index: 5, kind: output, shape index: {1}]
  %s6 = inlined_call_operand.hbm [shape: f32[3,1,512], index: 6, kind: output, shape index: {2}]
  %7 = xla_tuple %s4, %s5, %s6
  %s8 = sld [smem:[#allocation0]]
  $region81: #{tpu_custom_call.1} parent=0
    _
  %s10 = ssub.s32 1, %s8
  %s11 = scalar_select 0, %s10, %s8
  $region1: #{tpu_custom_call.1} parent=0
    #allocation2 [shape = 'u8[1048576]{0}', space=vmem, size = 0x100000, scoped, tag = 'input window, operand 0']
    #allocation3 [shape = 's32[2]{0}', space=sflag, size = 0x8, scoped, tag = 'scoped memory for tpu_custom_call.1']
    #allocation4 [shape = 's32[2]{0}', space=sflag, size = 0x8, scoped, tag = 'scoped memory for tpu_custom_call.1']
    #allocation5 [shape = 'u8[524288]{0}', space=vmem, size = 0x80000, scoped, tag = 'input window, operand 1, single buffered']
    #allocation6 [shape = 's32[1]{0}', space=sflag, size = 0x4, scoped, tag = 'scoped memory for tpu_custom_call.1']
    #allocation7 [shape = 'u8[524288]{0}', space=vmem, size = 0x80000, scoped, tag = 'input window, operand 2, single buffered']
    #allocation8 [shape = 'u8[2048]{0}', space=vmem, size = 0x800, scoped, tag = 'input window, operand 3, single buffered']
    #allocation9 [shape = 's32[1]{0}', space=sflag, size = 0x4, scoped, tag = 'scoped memory for tpu_custom_call.1']
    #allocation10 [shape = 'u8[1048576]{0}', space=vmem, size = 0x100000, scoped, tag = 'output window, operand 0']
    #allocation11 [shape = 'u8[4096]{0}', space=vmem, size = 0x1000, scoped, tag = 'output window, operand 1']
    #allocation12 [shape = 's32[2]{0}', space=sflag, size = 0x8, scoped, tag = 'scoped memory for tpu_custom_call.1']
    #allocation13 [shape = 'u8[4096]{0}', space=vmem, size = 0x1000, scoped, tag = 'output window, operand 2']
    %12 = vsyncpa [#allocation3], 0
    %s13 = scalar_lea.sflag [#allocation3], 1
    %14 = vsyncpa %s13, 0
    %15 = vsyncpa [#allocation6], 0
    %16 = vsyncpa [#allocation9], 0
    %17 = vsyncpa [#allocation4], 0
    %s18 = scalar_lea.sflag [#allocation4], 1
    %19 = vsyncpa %s18, 0
    %20 = vsyncpa [#allocation12], 0
    %s21 = scalar_lea.sflag [#allocation12], 1
    %22 = vsyncpa %s21, 0
    loop: start=0, step=1, limit=5
    $region2: #{tpu_custom_call.1} parent=1 // loop_pre_header
      _
    $region3: #{tpu_custom_call.1} parent=1 // loop_header
      %s24 = sphi 0, %s28
      %p25 = scmp.ge.s32.totalorder %s24, 5
      %s34 = sphi 0, %s36
      %s37 = sphi 0, %s34
      %s38 = sphi 0, %s37
      %s54 = sphi 0, %s38
      %s58 = sphi 0, %s58
      %s60 = sphi 0, %s58
      %s61 = sphi 0, %s60
      %s75 = sphi 0, %s61
      %s79 = sphi 0, %s79
      %s81 = sphi 0, %s79
      %s82 = sphi 0, %s81
      %s96 = sphi 0, %s82
      %s100 = sphi 0, %s100
      %s102 = sphi 0, %s100
      %s103 = sphi 0, %s102
      %s117 = sphi 0, %s103
      %s123 = sphi 0, %s125
      %s126 = sphi 0, %s123
      %s127 = sphi 0, %s126
      %s143 = sphi 0, %s127
      %s149 = sphi 0, %s151
      %s152 = sphi 0, %s149
      %s153 = sphi 0, %s152
      %s169 = sphi 0, %s153
      %s175 = sphi 0, %s177
      %s178 = sphi 0, %s175
      %s179 = sphi 0, %s178
      %s195 = sphi 0, %s179
    $region4: #{tpu_custom_call.1} parent=1 // loop_header_branch
      %27 = sbr.rel (%p25) target = $region8
    $region5: #{tpu_custom_call.1} parent=1 // loop_body
      %s29 = ssub.s32 %s24, 1
      %s30 = ssub.s32 %s24, 2
      %s31 = sadd.s32 %s24, 1
      %s32 = ssub.s32 %s24, %s31
      %p33 = scmp.eq.s32.totalorder %s32, 0
      %s35 = sadd.s32 %s34, 1
      %s36 = scalar_select %p33, %s34, %s35
      %p39 = pneg %p33
      %p40 = scmp.eq.s32.totalorder %s24, 2
      %p41 = por %p39, %p40
      %p42 = scmp.ne.s32.totalorder %s34, %s37
      %p43 = scmp.eq.s32.totalorder %s24, 0
      %p44 = por %p42, %p43
      %p45 = scmp.ne.s32.totalorder %s34, %s37
      %p46 = scmp.eq.s32.totalorder %s29, 2
      %p47 = por %p45, %p46
      %p48 = scmp.ne.s32.totalorder %s37, %s38
      %p49 = scmp.eq.s32.totalorder %s29, 0
      %p50 = por %p48, %p49
      %p51 = scmp.ne.s32.totalorder %s37, %s38
      %p52 = scmp.eq.s32.totalorder %s30, 2
      %p53 = por %p51, %p52
      %p55 = scmp.ne.s32.totalorder %s38, %s54
      %p56 = scmp.eq.s32.totalorder %s30, 0
      %p57 = por %p55, %p56
      %s59 = sadd.s32 %s58, 1
      %p62 = scmp.eq.s32.totalorder %s24, 2
      %p63 = scmp.ne.s32.totalorder %s58, %s60
      %p64 = scmp.eq.s32.totalorder %s24, 0
      %p65 = por %p63, %p64
      %p66 = scmp.ne.s32.totalorder %s58, %s60
      %p67 = scmp.eq.s32.totalorder %s29, 2
      %p68 = por %p66, %p67
      %p69 = scmp.ne.s32.totalorder %s60, %s61
      %p70 = scmp.eq.s32.totalorder %s29, 0
      %p71 = por %p69, %p70
      %p72 = scmp.ne.s32.totalorder %s60, %s61
      %p73 = scmp.eq.s32.totalorder %s30, 2
      %p74 = por %p72, %p73
      %p76 = scmp.ne.s32.totalorder %s61, %s75
      %p77 = scmp.eq.s32.totalorder %s30, 0
      %p78 = por %p76, %p77
      %s80 = sadd.s32 %s79, 1
      %p83 = scmp.eq.s32.totalorder %s24, 2
      %p84 = scmp.ne.s32.totalorder %s79, %s81
      %p85 = scmp.eq.s32.totalorder %s24, 0
      %p86 = por %p84, %p85
      %p87 = scmp.ne.s32.totalorder %s79, %s81
      %p88 = scmp.eq.s32.totalorder %s29, 2
      %p89 = por %p87, %p88
      %p90 = scmp.ne.s32.totalorder %s81, %s82
      %p91 = scmp.eq.s32.totalorder %s29, 0
      %p92 = por %p90, %p91
      %p93 = scmp.ne.s32.totalorder %s81, %s82
      %p94 = scmp.eq.s32.totalorder %s30, 2
      %p95 = por %p93, %p94
      %p97 = scmp.ne.s32.totalorder %s82, %s96
      %p98 = scmp.eq.s32.totalorder %s30, 0
      %p99 = por %p97, %p98
      %s101 = sadd.s32 %s100, 1
      %p104 = scmp.eq.s32.totalorder %s24, 2
      %p105 = scmp.ne.s32.totalorder %s100, %s102
      %p106 = scmp.eq.s32.totalorder %s24, 0
      %p107 = por %p105, %p106
      %p108 = scmp.ne.s32.totalorder %s100, %s102
      %p109 = scmp.eq.s32.totalorder %s29, 2
      %p110 = por %p108, %p109
      %p111 = scmp.ne.s32.totalorder %s102, %s103
      %p112 = scmp.eq.s32.totalorder %s29, 0
      %p113 = por %p111, %p112
      %p114 = scmp.ne.s32.totalorder %s102, %s103
      %p115 = scmp.eq.s32.totalorder %s30, 2
      %p116 = por %p114, %p115
      %p118 = scmp.ne.s32.totalorder %s103, %s117
      %p119 = scmp.eq.s32.totalorder %s30, 0
      %p120 = por %p118, %p119
      %s121 = ssub.s32 %s24, %s31
      %p122 = scmp.eq.s32.totalorder %s121, 0
      %s124 = sadd.s32 %s123, 1
      %s125 = scalar_select %p122, %s123, %s124
      %p128 = pneg %p122
      %p129 = scmp.eq.s32.totalorder %s24, 2
      %p130 = por %p128, %p129
      %p131 = scmp.ne.s32.totalorder %s123, %s126
      %p132 = scmp.eq.s32.totalorder %s24, 0
      %p133 = por %p131, %p132
      %p134 = scmp.ne.s32.totalorder %s123, %s126
      %p135 = scmp.eq.s32.totalorder %s29, 2
      %p136 = por %p134, %p135
      %p137 = scmp.ne.s32.totalorder %s126, %s127
      %p138 = scmp.eq.s32.totalorder %s29, 0
      %p139 = por %p137, %p138
      %p140 = scmp.ne.s32.totalorder %s126, %s127
      %p141 = scmp.eq.s32.totalorder %s30, 2
      %p142 = por %p140, %p141
      %p144 = scmp.ne.s32.totalorder %s127, %s143
      %p145 = scmp.eq.s32.totalorder %s30, 0
      %p146 = por %p144, %p145
      %s147 = ssub.s32 %s24, %s31
      %p148 = scmp.eq.s32.totalorder %s147, 0
      %s150 = sadd.s32 %s149, 1
      %s151 = scalar_select %p148, %s149, %s150
      %p154 = pneg %p148
      %p155 = scmp.eq.s32.totalorder %s24, 2
      %p156 = por %p154, %p155
      %p157 = scmp.ne.s32.totalorder %s149, %s152
      %p158 = scmp.eq.s32.totalorder %s24, 0
      %p159 = por %p157, %p158
      %p160 = scmp.ne.s32.totalorder %s149, %s152
      %p161 = scmp.eq.s32.totalorder %s29, 2
      %p162 = por %p160, %p161
      %p163 = scmp.ne.s32.totalorder %s152, %s153
      %p164 = scmp.eq.s32.totalorder %s29, 0
      %p165 = por %p163, %p164
      %p166 = scmp.ne.s32.totalorder %s152, %s153
      %p167 = scmp.eq.s32.totalorder %s30, 2
      %p168 = por %p166, %p167
      %p170 = scmp.ne.s32.totalorder %s153, %s169
      %p171 = scmp.eq.s32.totalorder %s30, 0
      %p172 = por %p170, %p171
      %s173 = ssub.s32 %s24, %s31
      %p174 = scmp.eq.s32.totalorder %s173, 0
      %s176 = sadd.s32 %s175, 1
      %s177 = scalar_select %p174, %s175, %s176
      %p180 = pneg %p174
      %p181 = scmp.eq.s32.totalorder %s24, 2
      %p182 = por %p180, %p181
      %p183 = scmp.ne.s32.totalorder %s175, %s178
      %p184 = scmp.eq.s32.totalorder %s24, 0
      %p185 = por %p183, %p184
      %p186 = scmp.ne.s32.totalorder %s175, %s178
      %p187 = scmp.eq.s32.totalorder %s29, 2
      %p188 = por %p186, %p187
      %p189 = scmp.ne.s32.totalorder %s178, %s179
      %p190 = scmp.eq.s32.totalorder %s29, 0
      %p191 = por %p189, %p190
      %p192 = scmp.ne.s32.totalorder %s178, %s179
      %p193 = scmp.eq.s32.totalorder %s30, 2
      %p194 = por %p192, %p193
      %p196 = scmp.ne.s32.totalorder %s179, %s195
      %p197 = scmp.eq.s32.totalorder %s30, 0
      %p198 = por %p196, %p197
      %p199 = scmp.le.s32.totalorder 1, %s24
      %p200 = scmp.lt.s32.totalorder %s24, 4
      %p201 = pnand %p199, %p200
      %p202 = pneg %p201
      // Predicated region
      $region9: #{tpu_custom_call.1} parent=5 // pred_check
        _
      $region10: #{tpu_custom_call.1} parent=5 // pred_check_branch
        %204 = sbr.rel (%p201) target = $region12
      $region11: #{tpu_custom_call.1} parent=5 // pred_region
        %s205 = ssub.s32 %s24, 1
        // Predicated region
        $region13: #{tpu_custom_call.1} parent=11 // pred_check
          %p206 = pneg %p71
        $region14: #{tpu_custom_call.1} parent=11 // pred_check_branch
          %208 = sbr.rel (%p206) target = $region16
        $region15: #{tpu_custom_call.1} parent=11 // pred_region
          %s210 = ssub.s32 16384, 16384
          %211 = vsyncadd [#allocation6], %s210
          %s212 = sshll.u32 [#allocation5], 4
          %s213 = int_to_ptr.vmem [resolvable:$true] %s212
          %218 = dma.hbm_to_vmem [thread:$0]  %s1, 16384, %s213, [#allocation6], 256, 256, 16
        $region16: #{tpu_custom_call.1} parent=11 // pred_fallthru
          _
        // Predicated region
        $region17: #{tpu_custom_call.1} parent=11 // pred_check
          %p219 = pneg %p92
        $region18: #{tpu_custom_call.1} parent=11 // pred_check_branch
          %221 = sbr.rel (%p219) target = $region20
        $region19: #{tpu_custom_call.1} parent=11 // pred_region
          %s223 = ssub.s32 16384, 16384
          %224 = vsyncadd [#allocation6], %s223
          %s225 = sshll.u32 [#allocation7], 4
          %s226 = int_to_ptr.vmem [resolvable:$true] %s225
          %231 = dma.hbm_to_vmem [thread:$0]  %s2, 16384, %s226, [#allocation6], 256, 256, 16
        $region20: #{tpu_custom_call.1} parent=11 // pred_fallthru
          _
        // Predicated region
        $region21: #{tpu_custom_call.1} parent=11 // pred_check
          %p232 = pneg %p113
        $region22: #{tpu_custom_call.1} parent=11 // pred_check_branch
          %234 = sbr.rel (%p232) target = $region24
        $region23: #{tpu_custom_call.1} parent=11 // pred_region
          %s236 = ssub.s32 64, 64
          %237 = vsyncadd [#allocation9], %s236
          %s239 = sshll.u32 [#allocation8], 4
          %s240 = int_to_ptr.vmem [resolvable:$true] %s239
          %242 = dma.hbm_to_vmem [thread:$0]  %s3, 64, %s240, [#allocation9]
        $region24: #{tpu_custom_call.1} parent=11 // pred_fallthru
          _
      $region12: #{tpu_custom_call.1} parent=5 // pred_fallthru
        _
      %p243 = scmp.lt.s32.totalorder %s24, 3
      // Predicated region
      $region25: #{tpu_custom_call.1} parent=5 // pred_check
        %p244 = pneg %p243
      $region26: #{tpu_custom_call.1} parent=5 // pred_check_branch
        %246 = sbr.rel (%p244) target = $region28
      $region27: #{tpu_custom_call.1} parent=5 // pred_region
        // Predicated region
        $region29: #{tpu_custom_call.1} parent=27 // pred_check
          %p247 = pneg %p44
        $region30: #{tpu_custom_call.1} parent=27 // pred_check_branch
          %249 = sbr.rel (%p247) target = $region32
        $region31: #{tpu_custom_call.1} parent=27 // pred_region
          %s250 = sand.u32 %s34, 1
          %s251 = scalar_lea.sflag [#allocation3], %s250
          %s252 = sand.u32 %s34, 1
          %s253 = smul.addr %s252, 1024
          %s254 = scalar_lea.vmem [#allocation2], %s253
          %s255 = smul.u32 32, %s24
          %s256 = ssub.s32 80, %s255
          %p257 = scmp.lt.s32.totalorder %s256, 32
          %s258 = scalar_select %p257, %s256, 32
          %s259 = smul.u32 128, %s258
          %s260 = smul.u32 %s259, 4
          %s262 = ssub.s32 16384, %s260
          %263 = vsyncadd %s251, %s262
          %p264 = scmp.ne.s32.totalorder 0, %s260
          %s265 = smul.addr %s255, 4
          %s266 = smul.addr %s265, 128
          %s267 = scalar_lea.hbm %s0, %s266
          %s268 = smul.u32 32, %s258
          %s269 = sshll.u32 %s254, 4
          %s270 = int_to_ptr.vmem [resolvable:$true] %s269
          %s271 = sshll.u32 %s268, 4
          %275 = dma.hbm_to_vmem [thread:$0]  (%p264), %s267, %s271, %s270, %s251, 512, 512, 32
        $region32: #{tpu_custom_call.1} parent=27 // pred_fallthru
          _
      $region28: #{tpu_custom_call.1} parent=5 // pred_fallthru
        _
      %p276 = scmp.le.s32.totalorder 1, %s24
      %p277 = scmp.lt.s32.totalorder %s24, 4
      %p278 = pnand %p276, %p277
      %p279 = pneg %p278
      // Predicated region
      $region33: #{tpu_custom_call.1} parent=5 // pred_check
        _
      $region34: #{tpu_custom_call.1} parent=5 // pred_check_branch
        %281 = sbr.rel (%p278) target = $region36
      $region35: #{tpu_custom_call.1} parent=5 // pred_region
        %s282 = ssub.s32 %s24, 1
        %s283 = sand.u32 %s37, 1
        %s284 = scalar_lea.sflag [#allocation3], %s283
        %s285 = sand.u32 %s37, 1
        %s286 = smul.addr %s285, 1024
        %s287 = scalar_lea.vmem [#allocation2], %s286
        // Predicated region
        $region37: #{tpu_custom_call.1} parent=35 // pred_check
          %p288 = pneg %p50
        $region38: #{tpu_custom_call.1} parent=35 // pred_check_branch
          %290 = sbr.rel (%p288) target = $region40
        $region39: #{tpu_custom_call.1} parent=35 // pred_region
          %291 = dma.done %s284, 16384
        $region40: #{tpu_custom_call.1} parent=35 // pred_fallthru
          _
        // Predicated region
        $region41: #{tpu_custom_call.1} parent=35 // pred_check
          %p292 = pneg %p71
        $region42: #{tpu_custom_call.1} parent=35 // pred_check_branch
          %294 = sbr.rel (%p292) target = $region44
        $region43: #{tpu_custom_call.1} parent=35 // pred_region
          %295 = dma.done [#allocation6], 16384
        $region44: #{tpu_custom_call.1} parent=35 // pred_fallthru
          _
        // Predicated region
        $region45: #{tpu_custom_call.1} parent=35 // pred_check
          %p296 = pneg %p92
        $region46: #{tpu_custom_call.1} parent=35 // pred_check_branch
          %298 = sbr.rel (%p296) target = $region48
        $region47: #{tpu_custom_call.1} parent=35 // pred_region
          %299 = dma.done [#allocation6], 16384
        $region48: #{tpu_custom_call.1} parent=35 // pred_fallthru
          _
        // Predicated region
        $region49: #{tpu_custom_call.1} parent=35 // pred_check
          %p300 = pneg %p113
        $region50: #{tpu_custom_call.1} parent=35 // pred_check_branch
          %302 = sbr.rel (%p300) target = $region52
        $region51: #{tpu_custom_call.1} parent=35 // pred_region
          %303 = dma.done [#allocation9], 64
        $region52: #{tpu_custom_call.1} parent=35 // pred_fallthru
          _
        %s304 = sand.u32 %s37, 1
        %s305 = scalar_lea.sflag [#allocation3], %s304
        %s306 = sand.u32 %s37, 1
        %s307 = smul.addr %s306, 1024
        %s308 = scalar_lea.vmem [#allocation2], %s307
        %p309 = pneg %p50
        %p310 = pneg %p47
        %p311 = pneg %p71
        %p312 = pneg %p68
        %p313 = pneg %p92
        %p314 = pneg %p89
        %p315 = pneg %p113
        %p316 = pneg %p110
        %p317 = pneg %p139
        %p318 = pneg %p136
        %s319 = sand.u32 %s126, 1
        %s320 = scalar_lea.sflag [#allocation4], %s319
        %s321 = sand.u32 %s126, 1
        %s322 = smul.addr %s321, 1024
        %s323 = scalar_lea.vmem [#allocation10], %s322
        %p324 = pneg %p165
        %p325 = pneg %p162
        %s326 = sand.u32 %s29, 1
        %s327 = scalar_lea.sflag [#allocation12], %s326
        %s328 = sand.u32 %s152, 1
        %s329 = smul.addr %s328, 4
        %s330 = scalar_lea.vmem [#allocation11], %s329
        %p331 = pneg %p191
        %p332 = pneg %p188
        %s333 = sand.u32 %s29, 1
        %s334 = scalar_lea.sflag [#allocation12], %s333
        %s335 = sand.u32 %s178, 1
        %s336 = smul.addr %s335, 4
        %s337 = scalar_lea.vmem [#allocation13], %s336
        %s338 = smul.u32 32, %s29
        %s339 = ssub.s32 80, %s338
        %p340 = scmp.lt.s32.totalorder %s339, 32
        %s341 = scalar_select %p340, %s339, 32
        %s342 = smul.u32 128, %s341
        %s343 = smul.u32 %s342, 4
        %s344 = smul.u32 32, %s29
        %s345 = ssub.s32 80, %s344
        %p346 = scmp.lt.s32.totalorder %s345, 32
        %s347 = scalar_select %p346, %s345, 32
        %s348 = smul.u32 128, %s347
        %s349 = smul.u32 %s348, 4
        %v350 = vld [vmem:[%s287] sm:$0xff]
        %v351 = vld [vmem:[%s287 + $0x8] sm:$0xff]
        %v352 = vld [vmem:[%s287 + $0x10] sm:$0xff]
        %v353 = vld [vmem:[%s287 + $0x18] sm:$0xff]
        %v354 = vld [vmem:[%s287 + $0x20] sm:$0xff]
        %v355 = vld [vmem:[%s287 + $0x28] sm:$0xff]
        %v356 = vld [vmem:[%s287 + $0x30] sm:$0xff]
        %v357 = vld [vmem:[%s287 + $0x38] sm:$0xff]
        %v358 = vld [vmem:[%s287 + $0x40] sm:$0xff]
        %v359 = vld [vmem:[%s287 + $0x48] sm:$0xff]
        %v360 = vld [vmem:[%s287 + $0x50] sm:$0xff]
        %v361 = vld [vmem:[%s287 + $0x58] sm:$0xff]
        %v362 = vld [vmem:[%s287 + $0x60] sm:$0xff]
        %v363 = vld [vmem:[%s287 + $0x68] sm:$0xff]
        %v364 = vld [vmem:[%s287 + $0x70] sm:$0xff]
        %v365 = vld [vmem:[%s287 + $0x78] sm:$0xff]
        %v366 = vld [vmem:[%s287 + $0x80] sm:$0xff]
        %v367 = vld [vmem:[%s287 + $0x88] sm:$0xff]
        %v368 = vld [vmem:[%s287 + $0x90] sm:$0xff]
        %v369 = vld [vmem:[%s287 + $0x98] sm:$0xff]
        %v370 = vld [vmem:[%s287 + $0xa0] sm:$0xff]
        %v371 = vld [vmem:[%s287 + $0xa8] sm:$0xff]
        %v372 = vld [vmem:[%s287 + $0xb0] sm:$0xff]
        %v373 = vld [vmem:[%s287 + $0xb8] sm:$0xff]
        %v374 = vld [vmem:[%s287 + $0xc0] sm:$0xff]
        %v375 = vld [vmem:[%s287 + $0xc8] sm:$0xff]
        %v376 = vld [vmem:[%s287 + $0xd0] sm:$0xff]
        %v377 = vld [vmem:[%s287 + $0xd8] sm:$0xff]
        %v378 = vld [vmem:[%s287 + $0xe0] sm:$0xff]
        %v379 = vld [vmem:[%s287 + $0xe8] sm:$0xff]
        %v380 = vld [vmem:[%s287 + $0xf0] sm:$0xff]
        %v381 = vld [vmem:[%s287 + $0xf8] sm:$0xff]
        %v382 = vld [vmem:[%s287 + $0x100] sm:$0xff]
        %v383 = vld [vmem:[%s287 + $0x108] sm:$0xff]
        %v384 = vld [vmem:[%s287 + $0x110] sm:$0xff]
        %v385 = vld [vmem:[%s287 + $0x118] sm:$0xff]
        %v386 = vld [vmem:[%s287 + $0x120] sm:$0xff]
        %v387 = vld [vmem:[%s287 + $0x128] sm:$0xff]
        %v388 = vld [vmem:[%s287 + $0x130] sm:$0xff]
        %v389 = vld [vmem:[%s287 + $0x138] sm:$0xff]
        %v390 = vld [vmem:[%s287 + $0x140] sm:$0xff]
        %v391 = vld [vmem:[%s287 + $0x148] sm:$0xff]
        %v392 = vld [vmem:[%s287 + $0x150] sm:$0xff]
        %v393 = vld [vmem:[%s287 + $0x158] sm:$0xff]
        %v394 = vld [vmem:[%s287 + $0x160] sm:$0xff]
        %v395 = vld [vmem:[%s287 + $0x168] sm:$0xff]
        %v396 = vld [vmem:[%s287 + $0x170] sm:$0xff]
        %v397 = vld [vmem:[%s287 + $0x178] sm:$0xff]
        %v398 = vld [vmem:[%s287 + $0x180] sm:$0xff]
        %v399 = vld [vmem:[%s287 + $0x188] sm:$0xff]
        %v400 = vld [vmem:[%s287 + $0x190] sm:$0xff]
        %v401 = vld [vmem:[%s287 + $0x198] sm:$0xff]
        %v402 = vld [vmem:[%s287 + $0x1a0] sm:$0xff]
        %v403 = vld [vmem:[%s287 + $0x1a8] sm:$0xff]
        %v404 = vld [vmem:[%s287 + $0x1b0] sm:$0xff]
        %v405 = vld [vmem:[%s287 + $0x1b8] sm:$0xff]
        %v406 = vld [vmem:[%s287 + $0x1c0] sm:$0xff]
        %v407 = vld [vmem:[%s287 + $0x1c8] sm:$0xff]
        %v408 = vld [vmem:[%s287 + $0x1d0] sm:$0xff]
        %v409 = vld [vmem:[%s287 + $0x1d8] sm:$0xff]
        %v410 = vld [vmem:[%s287 + $0x1e0] sm:$0xff]
        %v411 = vld [vmem:[%s287 + $0x1e8] sm:$0xff]
        %v412 = vld [vmem:[%s287 + $0x1f0] sm:$0xff]
        %v413 = vld [vmem:[%s287 + $0x1f8] sm:$0xff]
        %v414 = vld [vmem:[%s287 + $0x200] sm:$0xff]
        %v415 = vld [vmem:[%s287 + $0x208] sm:$0xff]
        %v416 = vld [vmem:[%s287 + $0x210] sm:$0xff]
        %v417 = vld [vmem:[%s287 + $0x218] sm:$0xff]
        %v418 = vld [vmem:[%s287 + $0x220] sm:$0xff]
        %v419 = vld [vmem:[%s287 + $0x228] sm:$0xff]
        %v420 = vld [vmem:[%s287 + $0x230] sm:$0xff]
        %v421 = vld [vmem:[%s287 + $0x238] sm:$0xff]
        %v422 = vld [vmem:[%s287 + $0x240] sm:$0xff]
        %v423 = vld [vmem:[%s287 + $0x248] sm:$0xff]
        %v424 = vld [vmem:[%s287 + $0x250] sm:$0xff]
        %v425 = vld [vmem:[%s287 + $0x258] sm:$0xff]
        %v426 = vld [vmem:[%s287 + $0x260] sm:$0xff]
        %v427 = vld [vmem:[%s287 + $0x268] sm:$0xff]
        %v428 = vld [vmem:[%s287 + $0x270] sm:$0xff]
        %v429 = vld [vmem:[%s287 + $0x278] sm:$0xff]
        %v430 = vld [vmem:[%s287 + $0x280] sm:$0xff]
        %v431 = vld [vmem:[%s287 + $0x288] sm:$0xff]
        %v432 = vld [vmem:[%s287 + $0x290] sm:$0xff]
        %v433 = vld [vmem:[%s287 + $0x298] sm:$0xff]
        %v434 = vld [vmem:[%s287 + $0x2a0] sm:$0xff]
        %v435 = vld [vmem:[%s287 + $0x2a8] sm:$0xff]
        %v436 = vld [vmem:[%s287 + $0x2b0] sm:$0xff]
        %v437 = vld [vmem:[%s287 + $0x2b8] sm:$0xff]
        %v438 = vld [vmem:[%s287 + $0x2c0] sm:$0xff]
        %v439 = vld [vmem:[%s287 + $0x2c8] sm:$0xff]
        %v440 = vld [vmem:[%s287 + $0x2d0] sm:$0xff]
        %v441 = vld [vmem:[%s287 + $0x2d8] sm:$0xff]
        %v442 = vld [vmem:[%s287 + $0x2e0] sm:$0xff]
        %v443 = vld [vmem:[%s287 + $0x2e8] sm:$0xff]
        %v444 = vld [vmem:[%s287 + $0x2f0] sm:$0xff]
        %v445 = vld [vmem:[%s287 + $0x2f8] sm:$0xff]
        %v446 = vld [vmem:[%s287 + $0x300] sm:$0xff]
        %v447 = vld [vmem:[%s287 + $0x308] sm:$0xff]
        %v448 = vld [vmem:[%s287 + $0x310] sm:$0xff]
        %v449 = vld [vmem:[%s287 + $0x318] sm:$0xff]
        %v450 = vld [vmem:[%s287 + $0x320] sm:$0xff]
        %v451 = vld [vmem:[%s287 + $0x328] sm:$0xff]
        %v452 = vld [vmem:[%s287 + $0x330] sm:$0xff]
        %v453 = vld [vmem:[%s287 + $0x338] sm:$0xff]
        %v454 = vld [vmem:[%s287 + $0x340] sm:$0xff]
        %v455 = vld [vmem:[%s287 + $0x348] sm:$0xff]
        %v456 = vld [vmem:[%s287 + $0x350] sm:$0xff]
        %v457 = vld [vmem:[%s287 + $0x358] sm:$0xff]
        %v458 = vld [vmem:[%s287 + $0x360] sm:$0xff]
        %v459 = vld [vmem:[%s287 + $0x368] sm:$0xff]
        %v460 = vld [vmem:[%s287 + $0x370] sm:$0xff]
        %v461 = vld [vmem:[%s287 + $0x378] sm:$0xff]
        %v462 = vld [vmem:[%s287 + $0x380] sm:$0xff]
        %v463 = vld [vmem:[%s287 + $0x388] sm:$0xff]
        %v464 = vld [vmem:[%s287 + $0x390] sm:$0xff]
        %v465 = vld [vmem:[%s287 + $0x398] sm:$0xff]
        %v466 = vld [vmem:[%s287 + $0x3a0] sm:$0xff]
        %v467 = vld [vmem:[%s287 + $0x3a8] sm:$0xff]
        %v468 = vld [vmem:[%s287 + $0x3b0] sm:$0xff]
        %v469 = vld [vmem:[%s287 + $0x3b8] sm:$0xff]
        %v470 = vld [vmem:[%s287 + $0x3c0] sm:$0xff]
        %v471 = vld [vmem:[%s287 + $0x3c8] sm:$0xff]
        %v472 = vld [vmem:[%s287 + $0x3d0] sm:$0xff]
        %v473 = vld [vmem:[%s287 + $0x3d8] sm:$0xff]
        %v474 = vld [vmem:[%s287 + $0x3e0] sm:$0xff]
        %v475 = vld [vmem:[%s287 + $0x3e8] sm:$0xff]
        %v476 = vld [vmem:[%s287 + $0x3f0] sm:$0xff]
        %v477 = vld [vmem:[%s287 + $0x3f8] sm:$0xff]
        %v478 = vlaneseq
        %v479 = vshrl.u32 %v478, 7
        %v480 = vadd.s32 %v479, 8
        %v481 = vadd.s32 %v479, 16
        %v482 = vadd.s32 %v479, 24
        %v483 = vadd.s32 %v479, 32
        %v484 = vadd.s32 %v479, 40
        %v485 = vadd.s32 %v479, 48
        %v486 = vadd.s32 %v479, 56
        %v487 = vadd.s32 %v479, 64
        %v488 = vadd.s32 %v479, 72
        %v489 = vadd.s32 %v479, 80
        %v490 = vadd.s32 %v479, 88
        %v491 = vadd.s32 %v479, 96
        %v492 = vadd.s32 %v479, 104
        %v493 = vadd.s32 %v479, 112
        %v494 = vadd.s32 %v479, 120
        %v495 = vadd.s32 %v479, 128
        %v496 = vadd.s32 %v479, 136
        %v497 = vadd.s32 %v479, 144
        %v498 = vadd.s32 %v479, 152
        %v499 = vadd.s32 %v479, 160
        %v500 = vadd.s32 %v479, 168
        %v501 = vadd.s32 %v479, 176
        %v502 = vadd.s32 %v479, 184
        %v503 = vadd.s32 %v479, 192
        %v504 = vadd.s32 %v479, 200
        %v505 = vadd.s32 %v479, 208
        %v506 = vadd.s32 %v479, 216
        %v507 = vadd.s32 %v479, 224
        %v508 = vadd.s32 %v479, 232
        %v509 = vadd.s32 %v479, 240
        %v510 = vadd.s32 %v479, 248
        %s511 = smul.u32 %s29, 256
        %v512 = vstv %s511
        %v513 = vadd.s32 %v479, %v512
        %v514 = vadd.s32 %v480, %v512
        %v515 = vadd.s32 %v481, %v512
        %v516 = vadd.s32 %v482, %v512
        %v517 = vadd.s32 %v483, %v512
        %v518 = vadd.s32 %v484, %v512
        %v519 = vadd.s32 %v485, %v512
        %v520 = vadd.s32 %v486, %v512
        %v521 = vadd.s32 %v487, %v512
        %v522 = vadd.s32 %v488, %v512
        %v523 = vadd.s32 %v489, %v512
        %v524 = vadd.s32 %v490, %v512
        %v525 = vadd.s32 %v491, %v512
        %v526 = vadd.s32 %v492, %v512
        %v527 = vadd.s32 %v493, %v512
        %v528 = vadd.s32 %v494, %v512
        %v529 = vadd.s32 %v495, %v512
        %v530 = vadd.s32 %v496, %v512
        %v531 = vadd.s32 %v497, %v512
        %v532 = vadd.s32 %v498, %v512
        %v533 = vadd.s32 %v499, %v512
        %v534 = vadd.s32 %v500, %v512
        %v535 = vadd.s32 %v501, %v512
        %v536 = vadd.s32 %v502, %v512
        %v537 = vadd.s32 %v503, %v512
        %v538 = vadd.s32 %v504, %v512
        %v539 = vadd.s32 %v505, %v512
        %v540 = vadd.s32 %v506, %v512
        %v541 = vadd.s32 %v507, %v512
        %v542 = vadd.s32 %v508, %v512
        %v543 = vadd.s32 %v509, %v512
        %v544 = vadd.s32 %v510, %v512
        %vm545 = vcmp.lt.s32.totalorder %v513, 640
        %vm546 = vcmp.lt.s32.totalorder %v514, 640
        %vm547 = vcmp.lt.s32.totalorder %v515, 640
        %vm548 = vcmp.lt.s32.totalorder %v516, 640
        %vm549 = vcmp.lt.s32.totalorder %v517, 640
        %vm550 = vcmp.lt.s32.totalorder %v518, 640
        %vm551 = vcmp.lt.s32.totalorder %v519, 640
        %vm552 = vcmp.lt.s32.totalorder %v520, 640
        %vm553 = vcmp.lt.s32.totalorder %v521, 640
        %vm554 = vcmp.lt.s32.totalorder %v522, 640
        %vm555 = vcmp.lt.s32.totalorder %v523, 640
        %vm556 = vcmp.lt.s32.totalorder %v524, 640
        %vm557 = vcmp.lt.s32.totalorder %v525, 640
        %vm558 = vcmp.lt.s32.totalorder %v526, 640
        %vm559 = vcmp.lt.s32.totalorder %v527, 640
        %vm560 = vcmp.lt.s32.totalorder %v528, 640
        %vm561 = vcmp.lt.s32.totalorder %v529, 640
        %vm562 = vcmp.lt.s32.totalorder %v530, 640
        %vm563 = vcmp.lt.s32.totalorder %v531, 640
        %vm564 = vcmp.lt.s32.totalorder %v532, 640
        %vm565 = vcmp.lt.s32.totalorder %v533, 640
        %vm566 = vcmp.lt.s32.totalorder %v534, 640
        %vm567 = vcmp.lt.s32.totalorder %v535, 640
        %vm568 = vcmp.lt.s32.totalorder %v536, 640
        %vm569 = vcmp.lt.s32.totalorder %v537, 640
        %vm570 = vcmp.lt.s32.totalorder %v538, 640
        %vm571 = vcmp.lt.s32.totalorder %v539, 640
        %vm572 = vcmp.lt.s32.totalorder %v540, 640
        %vm573 = vcmp.lt.s32.totalorder %v541, 640
        %vm574 = vcmp.lt.s32.totalorder %v542, 640
        %vm575 = vcmp.lt.s32.totalorder %v543, 640
        %vm576 = vcmp.lt.s32.totalorder %v544, 640
        %v577 = vsel %vm545, 1, 0
        %v578 = vsel %vm546, 1, 0
        %v579 = vsel %vm547, 1, 0
        %v580 = vsel %vm548, 1, 0
        %v581 = vsel %vm549, 1, 0
        %v582 = vsel %vm550, 1, 0
        %v583 = vsel %vm551, 1, 0
        %v584 = vsel %vm552, 1, 0
        %v585 = vsel %vm553, 1, 0
        %v586 = vsel %vm554, 1, 0
        %v587 = vsel %vm555, 1, 0
        %v588 = vsel %vm556, 1, 0
        %v589 = vsel %vm557, 1, 0
        %v590 = vsel %vm558, 1, 0
        %v591 = vsel %vm559, 1, 0
        %v592 = vsel %vm560, 1, 0
        %v593 = vsel %vm561, 1, 0
        %v594 = vsel %vm562, 1, 0
        %v595 = vsel %vm563, 1, 0
        %v596 = vsel %vm564, 1, 0
        %v597 = vsel %vm565, 1, 0
        %v598 = vsel %vm566, 1, 0
        %v599 = vsel %vm567, 1, 0
        %v600 = vsel %vm568, 1, 0
        %v601 = vsel %vm569, 1, 0
        %v602 = vsel %vm570, 1, 0
        %v603 = vsel %vm571, 1, 0
        %v604 = vsel %vm572, 1, 0
        %v605 = vsel %vm573, 1, 0
        %v606 = vsel %vm574, 1, 0
        %v607 = vsel %vm575, 1, 0
        %v608 = vsel %vm576, 1, 0
        %vm609 = vcmp.eq.s32.totalorder %v577, 1
        %vm610 = vcmp.eq.s32.totalorder %v578, 1
        %vm611 = vcmp.eq.s32.totalorder %v579, 1
        %vm612 = vcmp.eq.s32.totalorder %v580, 1
        %vm613 = vcmp.eq.s32.totalorder %v581, 1
        %vm614 = vcmp.eq.s32.totalorder %v582, 1
        %vm615 = vcmp.eq.s32.totalorder %v583, 1
        %vm616 = vcmp.eq.s32.totalorder %v584, 1
        %vm617 = vcmp.eq.s32.totalorder %v585, 1
        %vm618 = vcmp.eq.s32.totalorder %v586, 1
        %vm619 = vcmp.eq.s32.totalorder %v587, 1
        %vm620 = vcmp.eq.s32.totalorder %v588, 1
        %vm621 = vcmp.eq.s32.totalorder %v589, 1
        %vm622 = vcmp.eq.s32.totalorder %v590, 1
        %vm623 = vcmp.eq.s32.totalorder %v591, 1
        %vm624 = vcmp.eq.s32.totalorder %v592, 1
        %vm625 = vcmp.eq.s32.totalorder %v593, 1
        %vm626 = vcmp.eq.s32.totalorder %v594, 1
        %vm627 = vcmp.eq.s32.totalorder %v595, 1
        %vm628 = vcmp.eq.s32.totalorder %v596, 1
        %vm629 = vcmp.eq.s32.totalorder %v597, 1
        %vm630 = vcmp.eq.s32.totalorder %v598, 1
        %vm631 = vcmp.eq.s32.totalorder %v599, 1
        %vm632 = vcmp.eq.s32.totalorder %v600, 1
        %vm633 = vcmp.eq.s32.totalorder %v601, 1
        %vm634 = vcmp.eq.s32.totalorder %v602, 1
        %vm635 = vcmp.eq.s32.totalorder %v603, 1
        %vm636 = vcmp.eq.s32.totalorder %v604, 1
        %vm637 = vcmp.eq.s32.totalorder %v605, 1
        %vm638 = vcmp.eq.s32.totalorder %v606, 1
        %vm639 = vcmp.eq.s32.totalorder %v607, 1
        %vm640 = vcmp.eq.s32.totalorder %v608, 1
        %v641 = vsel %vm609, %v350, 0.0
        %v642 = vsel %vm609, %v351, 0.0
        %v643 = vsel %vm609, %v352, 0.0
        %v644 = vsel %vm609, %v353, 0.0
        %v645 = vsel %vm610, %v354, 0.0
        %v646 = vsel %vm610, %v355, 0.0
        %v647 = vsel %vm610, %v356, 0.0
        %v648 = vsel %vm610, %v357, 0.0
        %v649 = vsel %vm611, %v358, 0.0
        %v650 = vsel %vm611, %v359, 0.0
        %v651 = vsel %vm611, %v360, 0.0
        %v652 = vsel %vm611, %v361, 0.0
        %v653 = vsel %vm612, %v362, 0.0
        %v654 = vsel %vm612, %v363, 0.0
        %v655 = vsel %vm612, %v364, 0.0
        %v656 = vsel %vm612, %v365, 0.0
        %v657 = vsel %vm613, %v366, 0.0
        %v658 = vsel %vm613, %v367, 0.0
        %v659 = vsel %vm613, %v368, 0.0
        %v660 = vsel %vm613, %v369, 0.0
        %v661 = vsel %vm614, %v370, 0.0
        %v662 = vsel %vm614, %v371, 0.0
        %v663 = vsel %vm614, %v372, 0.0
        %v664 = vsel %vm614, %v373, 0.0
        %v665 = vsel %vm615, %v374, 0.0
        %v666 = vsel %vm615, %v375, 0.0
        %v667 = vsel %vm615, %v376, 0.0
        %v668 = vsel %vm615, %v377, 0.0
        %v669 = vsel %vm616, %v378, 0.0
        %v670 = vsel %vm616, %v379, 0.0
        %v671 = vsel %vm616, %v380, 0.0
        %v672 = vsel %vm616, %v381, 0.0
        %v673 = vsel %vm617, %v382, 0.0
        %v674 = vsel %vm617, %v383, 0.0
        %v675 = vsel %vm617, %v384, 0.0
        %v676 = vsel %vm617, %v385, 0.0
        %v677 = vsel %vm618, %v386, 0.0
        %v678 = vsel %vm618, %v387, 0.0
        %v679 = vsel %vm618, %v388, 0.0
        %v680 = vsel %vm618, %v389, 0.0
        %v681 = vsel %vm619, %v390, 0.0
        %v682 = vsel %vm619, %v391, 0.0
        %v683 = vsel %vm619, %v392, 0.0
        %v684 = vsel %vm619, %v393, 0.0
        %v685 = vsel %vm620, %v394, 0.0
        %v686 = vsel %vm620, %v395, 0.0
        %v687 = vsel %vm620, %v396, 0.0
        %v688 = vsel %vm620, %v397, 0.0
        %v689 = vsel %vm621, %v398, 0.0
        %v690 = vsel %vm621, %v399, 0.0
        %v691 = vsel %vm621, %v400, 0.0
        %v692 = vsel %vm621, %v401, 0.0
        %v693 = vsel %vm622, %v402, 0.0
        %v694 = vsel %vm622, %v403, 0.0
        %v695 = vsel %vm622, %v404, 0.0
        %v696 = vsel %vm622, %v405, 0.0
        %v697 = vsel %vm623, %v406, 0.0
        %v698 = vsel %vm623, %v407, 0.0
        %v699 = vsel %vm623, %v408, 0.0
        %v700 = vsel %vm623, %v409, 0.0
        %v701 = vsel %vm624, %v410, 0.0
        %v702 = vsel %vm624, %v411, 0.0
        %v703 = vsel %vm624, %v412, 0.0
        %v704 = vsel %vm624, %v413, 0.0
        %v705 = vsel %vm625, %v414, 0.0
        %v706 = vsel %vm625, %v415, 0.0
        %v707 = vsel %vm625, %v416, 0.0
        %v708 = vsel %vm625, %v417, 0.0
        %v709 = vsel %vm626, %v418, 0.0
        %v710 = vsel %vm626, %v419, 0.0
        %v711 = vsel %vm626, %v420, 0.0
        %v712 = vsel %vm626, %v421, 0.0
        %v713 = vsel %vm627, %v422, 0.0
        %v714 = vsel %vm627, %v423, 0.0
        %v715 = vsel %vm627, %v424, 0.0
        %v716 = vsel %vm627, %v425, 0.0
        %v717 = vsel %vm628, %v426, 0.0
        %v718 = vsel %vm628, %v427, 0.0
        %v719 = vsel %vm628, %v428, 0.0
        %v720 = vsel %vm628, %v429, 0.0
        %v721 = vsel %vm629, %v430, 0.0
        %v722 = vsel %vm629, %v431, 0.0
        %v723 = vsel %vm629, %v432, 0.0
        %v724 = vsel %vm629, %v433, 0.0
        %v725 = vsel %vm630, %v434, 0.0
        %v726 = vsel %vm630, %v435, 0.0
        %v727 = vsel %vm630, %v436, 0.0
        %v728 = vsel %vm630, %v437, 0.0
        %v729 = vsel %vm631, %v438, 0.0
        %v730 = vsel %vm631, %v439, 0.0
        %v731 = vsel %vm631, %v440, 0.0
        %v732 = vsel %vm631, %v441, 0.0
        %v733 = vsel %vm632, %v442, 0.0
        %v734 = vsel %vm632, %v443, 0.0
        %v735 = vsel %vm632, %v444, 0.0
        %v736 = vsel %vm632, %v445, 0.0
        %v737 = vsel %vm633, %v446, 0.0
        %v738 = vsel %vm633, %v447, 0.0
        %v739 = vsel %vm633, %v448, 0.0
        %v740 = vsel %vm633, %v449, 0.0
        %v741 = vsel %vm634, %v450, 0.0
        %v742 = vsel %vm634, %v451, 0.0
        %v743 = vsel %vm634, %v452, 0.0
        %v744 = vsel %vm634, %v453, 0.0
        %v745 = vsel %vm635, %v454, 0.0
        %v746 = vsel %vm635, %v455, 0.0
        %v747 = vsel %vm635, %v456, 0.0
        %v748 = vsel %vm635, %v457, 0.0
        %v749 = vsel %vm636, %v458, 0.0
        %v750 = vsel %vm636, %v459, 0.0
        %v751 = vsel %vm636, %v460, 0.0
        %v752 = vsel %vm636, %v461, 0.0
        %v753 = vsel %vm637, %v462, 0.0
        %v754 = vsel %vm637, %v463, 0.0
        %v755 = vsel %vm637, %v464, 0.0
        %v756 = vsel %vm637, %v465, 0.0
        %v757 = vsel %vm638, %v466, 0.0
        %v758 = vsel %vm638, %v467, 0.0
        %v759 = vsel %vm638, %v468, 0.0
        %v760 = vsel %vm638, %v469, 0.0
        %v761 = vsel %vm639, %v470, 0.0
        %v762 = vsel %vm639, %v471, 0.0
        %v763 = vsel %vm639, %v472, 0.0
        %v764 = vsel %vm639, %v473, 0.0
        %v765 = vsel %vm640, %v474, 0.0
        %v766 = vsel %vm640, %v475, 0.0
        %v767 = vsel %vm640, %v476, 0.0
        %v768 = vsel %vm640, %v477, 0.0
        %v769 = vpack.c.bf16 %v645, %v641
        %v770 = vpack.c.bf16 %v646, %v642
        %v771 = vpack.c.bf16 %v647, %v643
        %v772 = vpack.c.bf16 %v648, %v644
        %v773 = vpack.c.bf16 %v653, %v649
        %v774 = vpack.c.bf16 %v654, %v650
        %v775 = vpack.c.bf16 %v655, %v651
        %v776 = vpack.c.bf16 %v656, %v652
        %v777 = vpack.c.bf16 %v661, %v657
        %v778 = vpack.c.bf16 %v662, %v658
        %v779 = vpack.c.bf16 %v663, %v659
        %v780 = vpack.c.bf16 %v664, %v660
        %v781 = vpack.c.bf16 %v669, %v665
        %v782 = vpack.c.bf16 %v670, %v666
        %v783 = vpack.c.bf16 %v671, %v667
        %v784 = vpack.c.bf16 %v672, %v668
        %v785 = vpack.c.bf16 %v677, %v673
        %v786 = vpack.c.bf16 %v678, %v674
        %v787 = vpack.c.bf16 %v679, %v675
        %v788 = vpack.c.bf16 %v680, %v676
        %v789 = vpack.c.bf16 %v685, %v681
        %v790 = vpack.c.bf16 %v686, %v682
        %v791 = vpack.c.bf16 %v687, %v683
        %v792 = vpack.c.bf16 %v688, %v684
        %v793 = vpack.c.bf16 %v693, %v689
        %v794 = vpack.c.bf16 %v694, %v690
        %v795 = vpack.c.bf16 %v695, %v691
        %v796 = vpack.c.bf16 %v696, %v692
        %v797 = vpack.c.bf16 %v701, %v697
        %v798 = vpack.c.bf16 %v702, %v698
        %v799 = vpack.c.bf16 %v703, %v699
        %v800 = vpack.c.bf16 %v704, %v700
        %v801 = vpack.c.bf16 %v709, %v705
        %v802 = vpack.c.bf16 %v710, %v706
        %v803 = vpack.c.bf16 %v711, %v707
        %v804 = vpack.c.bf16 %v712, %v708
        %v805 = vpack.c.bf16 %v717, %v713
        %v806 = vpack.c.bf16 %v718, %v714
        %v807 = vpack.c.bf16 %v719, %v715
        %v808 = vpack.c.bf16 %v720, %v716
        %v809 = vpack.c.bf16 %v725, %v721
        %v810 = vpack.c.bf16 %v726, %v722
        %v811 = vpack.c.bf16 %v727, %v723
        %v812 = vpack.c.bf16 %v728, %v724
        %v813 = vpack.c.bf16 %v733, %v729
        %v814 = vpack.c.bf16 %v734, %v730
        %v815 = vpack.c.bf16 %v735, %v731
        %v816 = vpack.c.bf16 %v736, %v732
        %v817 = vpack.c.bf16 %v741, %v737
        %v818 = vpack.c.bf16 %v742, %v738
        %v819 = vpack.c.bf16 %v743, %v739
        %v820 = vpack.c.bf16 %v744, %v740
        %v821 = vpack.c.bf16 %v749, %v745
        %v822 = vpack.c.bf16 %v750, %v746
        %v823 = vpack.c.bf16 %v751, %v747
        %v824 = vpack.c.bf16 %v752, %v748
        %v825 = vpack.c.bf16 %v757, %v753
        %v826 = vpack.c.bf16 %v758, %v754
        %v827 = vpack.c.bf16 %v759, %v755
        %v828 = vpack.c.bf16 %v760, %v756
        %v829 = vpack.c.bf16 %v765, %v761
        %v830 = vpack.c.bf16 %v766, %v762
        %v831 = vpack.c.bf16 %v767, %v763
        %v832 = vpack.c.bf16 %v768, %v764
        %v833 = vld [vmem:[#allocation5] sm:$0xff]
        %v834 = vld [vmem:[#allocation5 + $0x8] sm:$0xff]
        %v835 = vld [vmem:[#allocation5 + $0x10] sm:$0xff]
        %v836 = vld [vmem:[#allocation5 + $0x18] sm:$0xff]
        %v837 = vld [vmem:[#allocation5 + $0x20] sm:$0xff]
        %v838 = vld [vmem:[#allocation5 + $0x28] sm:$0xff]
        %v839 = vld [vmem:[#allocation5 + $0x30] sm:$0xff]
        %v840 = vld [vmem:[#allocation5 + $0x38] sm:$0xff]
        %v841 = vld [vmem:[#allocation5 + $0x40] sm:$0xff]
        %v842 = vld [vmem:[#allocation5 + $0x48] sm:$0xff]
        %v843 = vld [vmem:[#allocation5 + $0x50] sm:$0xff]
        %v844 = vld [vmem:[#allocation5 + $0x58] sm:$0xff]
        %v845 = vld [vmem:[#allocation5 + $0x60] sm:$0xff]
        %v846 = vld [vmem:[#allocation5 + $0x68] sm:$0xff]
        %v847 = vld [vmem:[#allocation5 + $0x70] sm:$0xff]
        %v848 = vld [vmem:[#allocation5 + $0x78] sm:$0xff]
        %v849 = vld [vmem:[#allocation5 + $0x80] sm:$0xff]
        %v850 = vld [vmem:[#allocation5 + $0x88] sm:$0xff]
        %v851 = vld [vmem:[#allocation5 + $0x90] sm:$0xff]
        %v852 = vld [vmem:[#allocation5 + $0x98] sm:$0xff]
        %v853 = vld [vmem:[#allocation5 + $0xa0] sm:$0xff]
        %v854 = vld [vmem:[#allocation5 + $0xa8] sm:$0xff]
        %v855 = vld [vmem:[#allocation5 + $0xb0] sm:$0xff]
        %v856 = vld [vmem:[#allocation5 + $0xb8] sm:$0xff]
        %v857 = vld [vmem:[#allocation5 + $0xc0] sm:$0xff]
        %v858 = vld [vmem:[#allocation5 + $0xc8] sm:$0xff]
        %v859 = vld [vmem:[#allocation5 + $0xd0] sm:$0xff]
        %v860 = vld [vmem:[#allocation5 + $0xd8] sm:$0xff]
        %v861 = vld [vmem:[#allocation5 + $0xe0] sm:$0xff]
        %v862 = vld [vmem:[#allocation5 + $0xe8] sm:$0xff]
        %v863 = vld [vmem:[#allocation5 + $0xf0] sm:$0xff]
        %v864 = vld [vmem:[#allocation5 + $0xf8] sm:$0xff]
        %v865 = vld [vmem:[#allocation5 + $0x100] sm:$0xff]
        %v866 = vld [vmem:[#allocation5 + $0x108] sm:$0xff]
        %v867 = vld [vmem:[#allocation5 + $0x110] sm:$0xff]
        %v868 = vld [vmem:[#allocation5 + $0x118] sm:$0xff]
        %v869 = vld [vmem:[#allocation5 + $0x120] sm:$0xff]
        %v870 = vld [vmem:[#allocation5 + $0x128] sm:$0xff]
        %v871 = vld [vmem:[#allocation5 + $0x130] sm:$0xff]
        %v872 = vld [vmem:[#allocation5 + $0x138] sm:$0xff]
        %v873 = vld [vmem:[#allocation5 + $0x140] sm:$0xff]
        %v874 = vld [vmem:[#allocation5 + $0x148] sm:$0xff]
        %v875 = vld [vmem:[#allocation5 + $0x150] sm:$0xff]
        %v876 = vld [vmem:[#allocation5 + $0x158] sm:$0xff]
        %v877 = vld [vmem:[#allocation5 + $0x160] sm:$0xff]
        %v878 = vld [vmem:[#allocation5 + $0x168] sm:$0xff]
        %v879 = vld [vmem:[#allocation5 + $0x170] sm:$0xff]
        %v880 = vld [vmem:[#allocation5 + $0x178] sm:$0xff]
        %v881 = vld [vmem:[#allocation5 + $0x180] sm:$0xff]
        %v882 = vld [vmem:[#allocation5 + $0x188] sm:$0xff]
        %v883 = vld [vmem:[#allocation5 + $0x190] sm:$0xff]
        %v884 = vld [vmem:[#allocation5 + $0x198] sm:$0xff]
        %v885 = vld [vmem:[#allocation5 + $0x1a0] sm:$0xff]
        %v886 = vld [vmem:[#allocation5 + $0x1a8] sm:$0xff]
        %v887 = vld [vmem:[#allocation5 + $0x1b0] sm:$0xff]
        %v888 = vld [vmem:[#allocation5 + $0x1b8] sm:$0xff]
        %v889 = vld [vmem:[#allocation5 + $0x1c0] sm:$0xff]
        %v890 = vld [vmem:[#allocation5 + $0x1c8] sm:$0xff]
        %v891 = vld [vmem:[#allocation5 + $0x1d0] sm:$0xff]
        %v892 = vld [vmem:[#allocation5 + $0x1d8] sm:$0xff]
        %v893 = vld [vmem:[#allocation5 + $0x1e0] sm:$0xff]
        %v894 = vld [vmem:[#allocation5 + $0x1e8] sm:$0xff]
        %v895 = vld [vmem:[#allocation5 + $0x1f0] sm:$0xff]
        %v896 = vld [vmem:[#allocation5 + $0x1f8] sm:$0xff]
        %v897 = vld [vmem:[#allocation5 + $0x200] sm:$0xff]
        %v898 = vld [vmem:[#allocation5 + $0x208] sm:$0xff]
        %v899 = vld [vmem:[#allocation5 + $0x210] sm:$0xff]
        %v900 = vld [vmem:[#allocation5 + $0x218] sm:$0xff]
        %v901 = vld [vmem:[#allocation5 + $0x220] sm:$0xff]
        %v902 = vld [vmem:[#allocation5 + $0x228] sm:$0xff]
        %v903 = vld [vmem:[#allocation5 + $0x230] sm:$0xff]
        %v904 = vld [vmem:[#allocation5 + $0x238] sm:$0xff]
        %v905 = vld [vmem:[#allocation5 + $0x240] sm:$0xff]
        %v906 = vld [vmem:[#allocation5 + $0x248] sm:$0xff]
        %v907 = vld [vmem:[#allocation5 + $0x250] sm:$0xff]
        %v908 = vld [vmem:[#allocation5 + $0x258] sm:$0xff]
        %v909 = vld [vmem:[#allocation5 + $0x260] sm:$0xff]
        %v910 = vld [vmem:[#allocation5 + $0x268] sm:$0xff]
        %v911 = vld [vmem:[#allocation5 + $0x270] sm:$0xff]
        %v912 = vld [vmem:[#allocation5 + $0x278] sm:$0xff]
        %v913 = vld [vmem:[#allocation5 + $0x280] sm:$0xff]
        %v914 = vld [vmem:[#allocation5 + $0x288] sm:$0xff]
        %v915 = vld [vmem:[#allocation5 + $0x290] sm:$0xff]
        %v916 = vld [vmem:[#allocation5 + $0x298] sm:$0xff]
        %v917 = vld [vmem:[#allocation5 + $0x2a0] sm:$0xff]
        %v918 = vld [vmem:[#allocation5 + $0x2a8] sm:$0xff]
        %v919 = vld [vmem:[#allocation5 + $0x2b0] sm:$0xff]
        %v920 = vld [vmem:[#allocation5 + $0x2b8] sm:$0xff]
        %v921 = vld [vmem:[#allocation5 + $0x2c0] sm:$0xff]
        %v922 = vld [vmem:[#allocation5 + $0x2c8] sm:$0xff]
        %v923 = vld [vmem:[#allocation5 + $0x2d0] sm:$0xff]
        %v924 = vld [vmem:[#allocation5 + $0x2d8] sm:$0xff]
        %v925 = vld [vmem:[#allocation5 + $0x2e0] sm:$0xff]
        %v926 = vld [vmem:[#allocation5 + $0x2e8] sm:$0xff]
        %v927 = vld [vmem:[#allocation5 + $0x2f0] sm:$0xff]
        %v928 = vld [vmem:[#allocation5 + $0x2f8] sm:$0xff]
        %v929 = vld [vmem:[#allocation5 + $0x300] sm:$0xff]
        %v930 = vld [vmem:[#allocation5 + $0x308] sm:$0xff]
        %v931 = vld [vmem:[#allocation5 + $0x310] sm:$0xff]
        %v932 = vld [vmem:[#allocation5 + $0x318] sm:$0xff]
        %v933 = vld [vmem:[#allocation5 + $0x320] sm:$0xff]
        %v934 = vld [vmem:[#allocation5 + $0x328] sm:$0xff]
        %v935 = vld [vmem:[#allocation5 + $0x330] sm:$0xff]
        %v936 = vld [vmem:[#allocation5 + $0x338] sm:$0xff]
        %v937 = vld [vmem:[#allocation5 + $0x340] sm:$0xff]
        %v938 = vld [vmem:[#allocation5 + $0x348] sm:$0xff]
        %v939 = vld [vmem:[#allocation5 + $0x350] sm:$0xff]
        %v940 = vld [vmem:[#allocation5 + $0x358] sm:$0xff]
        %v941 = vld [vmem:[#allocation5 + $0x360] sm:$0xff]
        %v942 = vld [vmem:[#allocation5 + $0x368] sm:$0xff]
        %v943 = vld [vmem:[#allocation5 + $0x370] sm:$0xff]
        %v944 = vld [vmem:[#allocation5 + $0x378] sm:$0xff]
        %v945 = vld [vmem:[#allocation5 + $0x380] sm:$0xff]
        %v946 = vld [vmem:[#allocation5 + $0x388] sm:$0xff]
        %v947 = vld [vmem:[#allocation5 + $0x390] sm:$0xff]
        %v948 = vld [vmem:[#allocation5 + $0x398] sm:$0xff]
        %v949 = vld [vmem:[#allocation5 + $0x3a0] sm:$0xff]
        %v950 = vld [vmem:[#allocation5 + $0x3a8] sm:$0xff]
        %v951 = vld [vmem:[#allocation5 + $0x3b0] sm:$0xff]
        %v952 = vld [vmem:[#allocation5 + $0x3b8] sm:$0xff]
        %v953 = vld [vmem:[#allocation5 + $0x3c0] sm:$0xff]
        %v954 = vld [vmem:[#allocation5 + $0x3c8] sm:$0xff]
        %v955 = vld [vmem:[#allocation5 + $0x3d0] sm:$0xff]
        %v956 = vld [vmem:[#allocation5 + $0x3d8] sm:$0xff]
        %v957 = vld [vmem:[#allocation5 + $0x3e0] sm:$0xff]
        %v958 = vld [vmem:[#allocation5 + $0x3e8] sm:$0xff]
        %v959 = vld [vmem:[#allocation5 + $0x3f0] sm:$0xff]
        %v960 = vld [vmem:[#allocation5 + $0x3f8] sm:$0xff]
        %v961 = vld [vmem:[#allocation7] sm:$0xff]
        %v962 = vld [vmem:[#allocation7 + $0x8] sm:$0xff]
        %v963 = vld [vmem:[#allocation7 + $0x10] sm:$0xff]
        %v964 = vld [vmem:[#allocation7 + $0x18] sm:$0xff]
        %v965 = vld [vmem:[#allocation7 + $0x20] sm:$0xff]
        %v966 = vld [vmem:[#allocation7 + $0x28] sm:$0xff]
        %v967 = vld [vmem:[#allocation7 + $0x30] sm:$0xff]
        %v968 = vld [vmem:[#allocation7 + $0x38] sm:$0xff]
        %v969 = vld [vmem:[#allocation7 + $0x40] sm:$0xff]
        %v970 = vld [vmem:[#allocation7 + $0x48] sm:$0xff]
        %v971 = vld [vmem:[#allocation7 + $0x50] sm:$0xff]
        %v972 = vld [vmem:[#allocation7 + $0x58] sm:$0xff]
        %v973 = vld [vmem:[#allocation7 + $0x60] sm:$0xff]
        %v974 = vld [vmem:[#allocation7 + $0x68] sm:$0xff]
        %v975 = vld [vmem:[#allocation7 + $0x70] sm:$0xff]
        %v976 = vld [vmem:[#allocation7 + $0x78] sm:$0xff]
        %v977 = vld [vmem:[#allocation7 + $0x80] sm:$0xff]
        %v978 = vld [vmem:[#allocation7 + $0x88] sm:$0xff]
        %v979 = vld [vmem:[#allocation7 + $0x90] sm:$0xff]
        %v980 = vld [vmem:[#allocation7 + $0x98] sm:$0xff]
        %v981 = vld [vmem:[#allocation7 + $0xa0] sm:$0xff]
        %v982 = vld [vmem:[#allocation7 + $0xa8] sm:$0xff]
        %v983 = vld [vmem:[#allocation7 + $0xb0] sm:$0xff]
        %v984 = vld [vmem:[#allocation7 + $0xb8] sm:$0xff]
        %v985 = vld [vmem:[#allocation7 + $0xc0] sm:$0xff]
        %v986 = vld [vmem:[#allocation7 + $0xc8] sm:$0xff]
        %v987 = vld [vmem:[#allocation7 + $0xd0] sm:$0xff]
        %v988 = vld [vmem:[#allocation7 + $0xd8] sm:$0xff]
        %v989 = vld [vmem:[#allocation7 + $0xe0] sm:$0xff]
        %v990 = vld [vmem:[#allocation7 + $0xe8] sm:$0xff]
        %v991 = vld [vmem:[#allocation7 + $0xf0] sm:$0xff]
        %v992 = vld [vmem:[#allocation7 + $0xf8] sm:$0xff]
        %v993 = vld [vmem:[#allocation7 + $0x100] sm:$0xff]
        %v994 = vld [vmem:[#allocation7 + $0x108] sm:$0xff]
        %v995 = vld [vmem:[#allocation7 + $0x110] sm:$0xff]
        %v996 = vld [vmem:[#allocation7 + $0x118] sm:$0xff]
        %v997 = vld [vmem:[#allocation7 + $0x120] sm:$0xff]
        %v998 = vld [vmem:[#allocation7 + $0x128] sm:$0xff]
        %v999 = vld [vmem:[#allocation7 + $0x130] sm:$0xff]
        %v1000 = vld [vmem:[#allocation7 + $0x138] sm:$0xff]
        %v1001 = vld [vmem:[#allocation7 + $0x140] sm:$0xff]
        %v1002 = vld [vmem:[#allocation7 + $0x148] sm:$0xff]
        %v1003 = vld [vmem:[#allocation7 + $0x150] sm:$0xff]
        %v1004 = vld [vmem:[#allocation7 + $0x158] sm:$0xff]
        %v1005 = vld [vmem:[#allocation7 + $0x160] sm:$0xff]
        %v1006 = vld [vmem:[#allocation7 + $0x168] sm:$0xff]
        %v1007 = vld [vmem:[#allocation7 + $0x170] sm:$0xff]
        %v1008 = vld [vmem:[#allocation7 + $0x178] sm:$0xff]
        %v1009 = vld [vmem:[#allocation7 + $0x180] sm:$0xff]
        %v1010 = vld [vmem:[#allocation7 + $0x188] sm:$0xff]
        %v1011 = vld [vmem:[#allocation7 + $0x190] sm:$0xff]
        %v1012 = vld [vmem:[#allocation7 + $0x198] sm:$0xff]
        %v1013 = vld [vmem:[#allocation7 + $0x1a0] sm:$0xff]
        %v1014 = vld [vmem:[#allocation7 + $0x1a8] sm:$0xff]
        %v1015 = vld [vmem:[#allocation7 + $0x1b0] sm:$0xff]
        %v1016 = vld [vmem:[#allocation7 + $0x1b8] sm:$0xff]
        %v1017 = vld [vmem:[#allocation7 + $0x1c0] sm:$0xff]
        %v1018 = vld [vmem:[#allocation7 + $0x1c8] sm:$0xff]
        %v1019 = vld [vmem:[#allocation7 + $0x1d0] sm:$0xff]
        %v1020 = vld [vmem:[#allocation7 + $0x1d8] sm:$0xff]
        %v1021 = vld [vmem:[#allocation7 + $0x1e0] sm:$0xff]
        %v1022 = vld [vmem:[#allocation7 + $0x1e8] sm:$0xff]
        %v1023 = vld [vmem:[#allocation7 + $0x1f0] sm:$0xff]
        %v1024 = vld [vmem:[#allocation7 + $0x1f8] sm:$0xff]
        %v1025 = vld [vmem:[#allocation7 + $0x200] sm:$0xff]
        %v1026 = vld [vmem:[#allocation7 + $0x208] sm:$0xff]
        %v1027 = vld [vmem:[#allocation7 + $0x210] sm:$0xff]
        %v1028 = vld [vmem:[#allocation7 + $0x218] sm:$0xff]
        %v1029 = vld [vmem:[#allocation7 + $0x220] sm:$0xff]
        %v1030 = vld [vmem:[#allocation7 + $0x228] sm:$0xff]
        %v1031 = vld [vmem:[#allocation7 + $0x230] sm:$0xff]
        %v1032 = vld [vmem:[#allocation7 + $0x238] sm:$0xff]
        %v1033 = vld [vmem:[#allocation7 + $0x240] sm:$0xff]
        %v1034 = vld [vmem:[#allocation7 + $0x248] sm:$0xff]
        %v1035 = vld [vmem:[#allocation7 + $0x250] sm:$0xff]
        %v1036 = vld [vmem:[#allocation7 + $0x258] sm:$0xff]
        %v1037 = vld [vmem:[#allocation7 + $0x260] sm:$0xff]
        %v1038 = vld [vmem:[#allocation7 + $0x268] sm:$0xff]
        %v1039 = vld [vmem:[#allocation7 + $0x270] sm:$0xff]
        %v1040 = vld [vmem:[#allocation7 + $0x278] sm:$0xff]
        %v1041 = vld [vmem:[#allocation7 + $0x280] sm:$0xff]
        %v1042 = vld [vmem:[#allocation7 + $0x288] sm:$0xff]
        %v1043 = vld [vmem:[#allocation7 + $0x290] sm:$0xff]
        %v1044 = vld [vmem:[#allocation7 + $0x298] sm:$0xff]
        %v1045 = vld [vmem:[#allocation7 + $0x2a0] sm:$0xff]
        %v1046 = vld [vmem:[#allocation7 + $0x2a8] sm:$0xff]
        %v1047 = vld [vmem:[#allocation7 + $0x2b0] sm:$0xff]
        %v1048 = vld [vmem:[#allocation7 + $0x2b8] sm:$0xff]
        %v1049 = vld [vmem:[#allocation7 + $0x2c0] sm:$0xff]
        %v1050 = vld [vmem:[#allocation7 + $0x2c8] sm:$0xff]
        %v1051 = vld [vmem:[#allocation7 + $0x2d0] sm:$0xff]
        %v1052 = vld [vmem:[#allocation7 + $0x2d8] sm:$0xff]
        %v1053 = vld [vmem:[#allocation7 + $0x2e0] sm:$0xff]
        %v1054 = vld [vmem:[#allocation7 + $0x2e8] sm:$0xff]
        %v1055 = vld [vmem:[#allocation7 + $0x2f0] sm:$0xff]
        %v1056 = vld [vmem:[#allocation7 + $0x2f8] sm:$0xff]
        %v1057 = vld [vmem:[#allocation7 + $0x300] sm:$0xff]
        %v1058 = vld [vmem:[#allocation7 + $0x308] sm:$0xff]
        %v1059 = vld [vmem:[#allocation7 + $0x310] sm:$0xff]
        %v1060 = vld [vmem:[#allocation7 + $0x318] sm:$0xff]
        %v1061 = vld [vmem:[#allocation7 + $0x320] sm:$0xff]
        %v1062 = vld [vmem:[#allocation7 + $0x328] sm:$0xff]
        %v1063 = vld [vmem:[#allocation7 + $0x330] sm:$0xff]
        %v1064 = vld [vmem:[#allocation7 + $0x338] sm:$0xff]
        %v1065 = vld [vmem:[#allocation7 + $0x340] sm:$0xff]
        %v1066 = vld [vmem:[#allocation7 + $0x348] sm:$0xff]
        %v1067 = vld [vmem:[#allocation7 + $0x350] sm:$0xff]
        %v1068 = vld [vmem:[#allocation7 + $0x358] sm:$0xff]
        %v1069 = vld [vmem:[#allocation7 + $0x360] sm:$0xff]
        %v1070 = vld [vmem:[#allocation7 + $0x368] sm:$0xff]
        %v1071 = vld [vmem:[#allocation7 + $0x370] sm:$0xff]
        %v1072 = vld [vmem:[#allocation7 + $0x378] sm:$0xff]
        %v1073 = vld [vmem:[#allocation7 + $0x380] sm:$0xff]
        %v1074 = vld [vmem:[#allocation7 + $0x388] sm:$0xff]
        %v1075 = vld [vmem:[#allocation7 + $0x390] sm:$0xff]
        %v1076 = vld [vmem:[#allocation7 + $0x398] sm:$0xff]
        %v1077 = vld [vmem:[#allocation7 + $0x3a0] sm:$0xff]
        %v1078 = vld [vmem:[#allocation7 + $0x3a8] sm:$0xff]
        %v1079 = vld [vmem:[#allocation7 + $0x3b0] sm:$0xff]
        %v1080 = vld [vmem:[#allocation7 + $0x3b8] sm:$0xff]
        %v1081 = vld [vmem:[#allocation7 + $0x3c0] sm:$0xff]
        %v1082 = vld [vmem:[#allocation7 + $0x3c8] sm:$0xff]
        %v1083 = vld [vmem:[#allocation7 + $0x3d0] sm:$0xff]
        %v1084 = vld [vmem:[#allocation7 + $0x3d8] sm:$0xff]
        %v1085 = vld [vmem:[#allocation7 + $0x3e0] sm:$0xff]
        %v1086 = vld [vmem:[#allocation7 + $0x3e8] sm:$0xff]
        %v1087 = vld [vmem:[#allocation7 + $0x3f0] sm:$0xff]
        %v1088 = vld [vmem:[#allocation7 + $0x3f8] sm:$0xff]
        %v1089 = vld [vmem:[#allocation8] sm:$0xf]
        %v1218 = vunpack.c.l.b16 %v833
        %v1219 = vunpack.c.h.b16 %v833
        %v1220 = vunpack.c.l.b16 %v834
        %v1221 = vunpack.c.h.b16 %v834
        %v1222 = vunpack.c.l.b16 %v835
        %v1223 = vunpack.c.h.b16 %v835
        %v1224 = vunpack.c.l.b16 %v836
        %v1225 = vunpack.c.h.b16 %v836
        %v1226 = vunpack.c.l.b16 %v837
        %v1227 = vunpack.c.h.b16 %v837
        %v1228 = vunpack.c.l.b16 %v838
        %v1229 = vunpack.c.h.b16 %v838
        %v1230 = vunpack.c.l.b16 %v839
        %v1231 = vunpack.c.h.b16 %v839
        %v1232 = vunpack.c.l.b16 %v840
        %v1233 = vunpack.c.h.b16 %v840
        %v1234 = vunpack.c.l.b16 %v841
        %v1235 = vunpack.c.h.b16 %v841
        %v1236 = vunpack.c.l.b16 %v842
        %v1237 = vunpack.c.h.b16 %v842
        %v1238 = vunpack.c.l.b16 %v843
        %v1239 = vunpack.c.h.b16 %v843
        %v1240 = vunpack.c.l.b16 %v844
        %v1241 = vunpack.c.h.b16 %v844
        %v1242 = vunpack.c.l.b16 %v845
        %v1243 = vunpack.c.h.b16 %v845
        %v1244 = vunpack.c.l.b16 %v846
        %v1245 = vunpack.c.h.b16 %v846
        %v1246 = vunpack.c.l.b16 %v847
        %v1247 = vunpack.c.h.b16 %v847
        %v1248 = vunpack.c.l.b16 %v848
        %v1249 = vunpack.c.h.b16 %v848
        %v1250 = vunpack.c.l.b16 %v849
        %v1251 = vunpack.c.h.b16 %v849
        %v1252 = vunpack.c.l.b16 %v850
        %v1253 = vunpack.c.h.b16 %v850
        %v1254 = vunpack.c.l.b16 %v851
        %v1255 = vunpack.c.h.b16 %v851
        %v1256 = vunpack.c.l.b16 %v852
        %v1257 = vunpack.c.h.b16 %v852
        %v1258 = vunpack.c.l.b16 %v853
        %v1259 = vunpack.c.h.b16 %v853
        %v1260 = vunpack.c.l.b16 %v854
        %v1261 = vunpack.c.h.b16 %v854
        %v1262 = vunpack.c.l.b16 %v855
        %v1263 = vunpack.c.h.b16 %v855
        %v1264 = vunpack.c.l.b16 %v856
        %v1265 = vunpack.c.h.b16 %v856
        %v1266 = vunpack.c.l.b16 %v857
        %v1267 = vunpack.c.h.b16 %v857
        %v1268 = vunpack.c.l.b16 %v858
        %v1269 = vunpack.c.h.b16 %v858
        %v1270 = vunpack.c.l.b16 %v859
        %v1271 = vunpack.c.h.b16 %v859
        %v1272 = vunpack.c.l.b16 %v860
        %v1273 = vunpack.c.h.b16 %v860
        %v1274 = vunpack.c.l.b16 %v861
        %v1275 = vunpack.c.h.b16 %v861
        %v1276 = vunpack.c.l.b16 %v862
        %v1277 = vunpack.c.h.b16 %v862
        %v1278 = vunpack.c.l.b16 %v863
        %v1279 = vunpack.c.h.b16 %v863
        %v1280 = vunpack.c.l.b16 %v864
        %v1281 = vunpack.c.h.b16 %v864
        %v1282 = vunpack.c.l.b16 %v865
        %v1283 = vunpack.c.h.b16 %v865
        %v1284 = vunpack.c.l.b16 %v866
        %v1285 = vunpack.c.h.b16 %v866
        %v1286 = vunpack.c.l.b16 %v867
        %v1287 = vunpack.c.h.b16 %v867
        %v1288 = vunpack.c.l.b16 %v868
        %v1289 = vunpack.c.h.b16 %v868
        %v1290 = vunpack.c.l.b16 %v869
        %v1291 = vunpack.c.h.b16 %v869
        %v1292 = vunpack.c.l.b16 %v870
        %v1293 = vunpack.c.h.b16 %v870
        %v1294 = vunpack.c.l.b16 %v871
        %v1295 = vunpack.c.h.b16 %v871
        %v1296 = vunpack.c.l.b16 %v872
        %v1297 = vunpack.c.h.b16 %v872
        %v1298 = vunpack.c.l.b16 %v873
        %v1299 = vunpack.c.h.b16 %v873
        %v1300 = vunpack.c.l.b16 %v874
        %v1301 = vunpack.c.h.b16 %v874
        %v1302 = vunpack.c.l.b16 %v875
        %v1303 = vunpack.c.h.b16 %v875
        %v1304 = vunpack.c.l.b16 %v876
        %v1305 = vunpack.c.h.b16 %v876
        %v1306 = vunpack.c.l.b16 %v877
        %v1307 = vunpack.c.h.b16 %v877
        %v1308 = vunpack.c.l.b16 %v878
        %v1309 = vunpack.c.h.b16 %v878
        %v1310 = vunpack.c.l.b16 %v879
        %v1311 = vunpack.c.h.b16 %v879
        %v1312 = vunpack.c.l.b16 %v880
        %v1313 = vunpack.c.h.b16 %v880
        %v1314 = vunpack.c.l.b16 %v881
        %v1315 = vunpack.c.h.b16 %v881
        %v1316 = vunpack.c.l.b16 %v882
        %v1317 = vunpack.c.h.b16 %v882
        %v1318 = vunpack.c.l.b16 %v883
        %v1319 = vunpack.c.h.b16 %v883
        %v1320 = vunpack.c.l.b16 %v884
        %v1321 = vunpack.c.h.b16 %v884
        %v1322 = vunpack.c.l.b16 %v885
        %v1323 = vunpack.c.h.b16 %v885
        %v1324 = vunpack.c.l.b16 %v886
        %v1325 = vunpack.c.h.b16 %v886
        %v1326 = vunpack.c.l.b16 %v887
        %v1327 = vunpack.c.h.b16 %v887
        %v1328 = vunpack.c.l.b16 %v888
        %v1329 = vunpack.c.h.b16 %v888
        %v1330 = vunpack.c.l.b16 %v889
        %v1331 = vunpack.c.h.b16 %v889
        %v1332 = vunpack.c.l.b16 %v890
        %v1333 = vunpack.c.h.b16 %v890
        %v1334 = vunpack.c.l.b16 %v891
        %v1335 = vunpack.c.h.b16 %v891
        %v1336 = vunpack.c.l.b16 %v892
        %v1337 = vunpack.c.h.b16 %v892
        %v1338 = vunpack.c.l.b16 %v893
        %v1339 = vunpack.c.h.b16 %v893
        %v1340 = vunpack.c.l.b16 %v894
        %v1341 = vunpack.c.h.b16 %v894
        %v1342 = vunpack.c.l.b16 %v895
        %v1343 = vunpack.c.h.b16 %v895
        %v1344 = vunpack.c.l.b16 %v896
        %v1345 = vunpack.c.h.b16 %v896
        %v1346 = vunpack.c.l.b16 %v897
        %v1347 = vunpack.c.h.b16 %v897
        %v1348 = vunpack.c.l.b16 %v898
        %v1349 = vunpack.c.h.b16 %v898
        %v1350 = vunpack.c.l.b16 %v899
        %v1351 = vunpack.c.h.b16 %v899
        %v1352 = vunpack.c.l.b16 %v900
        %v1353 = vunpack.c.h.b16 %v900
        %v1354 = vunpack.c.l.b16 %v901
        %v1355 = vunpack.c.h.b16 %v901
        %v1356 = vunpack.c.l.b16 %v902
        %v1357 = vunpack.c.h.b16 %v902
        %v1358 = vunpack.c.l.b16 %v903
        %v1359 = vunpack.c.h.b16 %v903
        %v1360 = vunpack.c.l.b16 %v904
        %v1361 = vunpack.c.h.b16 %v904
        %v1362 = vunpack.c.l.b16 %v905
        %v1363 = vunpack.c.h.b16 %v905
        %v1364 = vunpack.c.l.b16 %v906
        %v1365 = vunpack.c.h.b16 %v906
        %v1366 = vunpack.c.l.b16 %v907
        %v1367 = vunpack.c.h.b16 %v907
        %v1368 = vunpack.c.l.b16 %v908
        %v1369 = vunpack.c.h.b16 %v908
        %v1370 = vunpack.c.l.b16 %v909
        %v1371 = vunpack.c.h.b16 %v909
        %v1372 = vunpack.c.l.b16 %v910
        %v1373 = vunpack.c.h.b16 %v910
        %v1374 = vunpack.c.l.b16 %v911
        %v1375 = vunpack.c.h.b16 %v911
        %v1376 = vunpack.c.l.b16 %v912
        %v1377 = vunpack.c.h.b16 %v912
        %v1378 = vunpack.c.l.b16 %v913
        %v1379 = vunpack.c.h.b16 %v913
        %v1380 = vunpack.c.l.b16 %v914
        %v1381 = vunpack.c.h.b16 %v914
        %v1382 = vunpack.c.l.b16 %v915
        %v1383 = vunpack.c.h.b16 %v915
        %v1384 = vunpack.c.l.b16 %v916
        %v1385 = vunpack.c.h.b16 %v916
        %v1386 = vunpack.c.l.b16 %v917
        %v1387 = vunpack.c.h.b16 %v917
        %v1388 = vunpack.c.l.b16 %v918
        %v1389 = vunpack.c.h.b16 %v918
        %v1390 = vunpack.c.l.b16 %v919
        %v1391 = vunpack.c.h.b16 %v919
        %v1392 = vunpack.c.l.b16 %v920
        %v1393 = vunpack.c.h.b16 %v920
        %v1394 = vunpack.c.l.b16 %v921
        %v1395 = vunpack.c.h.b16 %v921
        %v1396 = vunpack.c.l.b16 %v922
        %v1397 = vunpack.c.h.b16 %v922
        %v1398 = vunpack.c.l.b16 %v923
        %v1399 = vunpack.c.h.b16 %v923
        %v1400 = vunpack.c.l.b16 %v924
        %v1401 = vunpack.c.h.b16 %v924
        %v1402 = vunpack.c.l.b16 %v925
        %v1403 = vunpack.c.h.b16 %v925
        %v1404 = vunpack.c.l.b16 %v926
        %v1405 = vunpack.c.h.b16 %v926
        %v1406 = vunpack.c.l.b16 %v927
        %v1407 = vunpack.c.h.b16 %v927
        %v1408 = vunpack.c.l.b16 %v928
        %v1409 = vunpack.c.h.b16 %v928
        %v1410 = vunpack.c.l.b16 %v929
        %v1411 = vunpack.c.h.b16 %v929
        %v1412 = vunpack.c.l.b16 %v930
        %v1413 = vunpack.c.h.b16 %v930
        %v1414 = vunpack.c.l.b16 %v931
        %v1415 = vunpack.c.h.b16 %v931
        %v1416 = vunpack.c.l.b16 %v932
        %v1417 = vunpack.c.h.b16 %v932
        %v1418 = vunpack.c.l.b16 %v933
        %v1419 = vunpack.c.h.b16 %v933
        %v1420 = vunpack.c.l.b16 %v934
        %v1421 = vunpack.c.h.b16 %v934
        %v1422 = vunpack.c.l.b16 %v935
        %v1423 = vunpack.c.h.b16 %v935
        %v1424 = vunpack.c.l.b16 %v936
        %v1425 = vunpack.c.h.b16 %v936
        %v1426 = vunpack.c.l.b16 %v937
        %v1427 = vunpack.c.h.b16 %v937
        %v1428 = vunpack.c.l.b16 %v938
        %v1429 = vunpack.c.h.b16 %v938
        %v1430 = vunpack.c.l.b16 %v939
        %v1431 = vunpack.c.h.b16 %v939
        %v1432 = vunpack.c.l.b16 %v940
        %v1433 = vunpack.c.h.b16 %v940
        %v1434 = vunpack.c.l.b16 %v941
        %v1435 = vunpack.c.h.b16 %v941
        %v1436 = vunpack.c.l.b16 %v942
        %v1437 = vunpack.c.h.b16 %v942
        %v1438 = vunpack.c.l.b16 %v943
        %v1439 = vunpack.c.h.b16 %v943
        %v1440 = vunpack.c.l.b16 %v944
        %v1441 = vunpack.c.h.b16 %v944
        %v1442 = vunpack.c.l.b16 %v945
        %v1443 = vunpack.c.h.b16 %v945
        %v1444 = vunpack.c.l.b16 %v946
        %v1445 = vunpack.c.h.b16 %v946
        %v1446 = vunpack.c.l.b16 %v947
        %v1447 = vunpack.c.h.b16 %v947
        %v1448 = vunpack.c.l.b16 %v948
        %v1449 = vunpack.c.h.b16 %v948
        %v1450 = vunpack.c.l.b16 %v949
        %v1451 = vunpack.c.h.b16 %v949
        %v1452 = vunpack.c.l.b16 %v950
        %v1453 = vunpack.c.h.b16 %v950
        %v1454 = vunpack.c.l.b16 %v951
        %v1455 = vunpack.c.h.b16 %v951
        %v1456 = vunpack.c.l.b16 %v952
        %v1457 = vunpack.c.h.b16 %v952
        %v1458 = vunpack.c.l.b16 %v953
        %v1459 = vunpack.c.h.b16 %v953
        %v1460 = vunpack.c.l.b16 %v954
        %v1461 = vunpack.c.h.b16 %v954
        %v1462 = vunpack.c.l.b16 %v955
        %v1463 = vunpack.c.h.b16 %v955
        %v1464 = vunpack.c.l.b16 %v956
        %v1465 = vunpack.c.h.b16 %v956
        %v1466 = vunpack.c.l.b16 %v957
        %v1467 = vunpack.c.h.b16 %v957
        %v1468 = vunpack.c.l.b16 %v958
        %v1469 = vunpack.c.h.b16 %v958
        %v1470 = vunpack.c.l.b16 %v959
        %v1471 = vunpack.c.h.b16 %v959
        %v1472 = vunpack.c.l.b16 %v960
        %v1473 = vunpack.c.h.b16 %v960
        %v1474 = vpack.c.b16 %v1222, %v1218
        %v1475 = vpack.c.b16 %v1223, %v1219
        %v1476 = vpack.c.b16 %v1224, %v1220
        %v1477 = vpack.c.b16 %v1225, %v1221
        %v1478 = vpack.c.b16 %v1230, %v1226
        %v1479 = vpack.c.b16 %v1231, %v1227
        %v1480 = vpack.c.b16 %v1232, %v1228
        %v1481 = vpack.c.b16 %v1233, %v1229
        %v1482 = vpack.c.b16 %v1238, %v1234
        %v1483 = vpack.c.b16 %v1239, %v1235
        %v1484 = vpack.c.b16 %v1240, %v1236
        %v1485 = vpack.c.b16 %v1241, %v1237
        %v1486 = vpack.c.b16 %v1246, %v1242
        %v1487 = vpack.c.b16 %v1247, %v1243
        %v1488 = vpack.c.b16 %v1248, %v1244
        %v1489 = vpack.c.b16 %v1249, %v1245
        %v1490 = vpack.c.b16 %v1254, %v1250
        %v1491 = vpack.c.b16 %v1255, %v1251
        %v1492 = vpack.c.b16 %v1256, %v1252
        %v1493 = vpack.c.b16 %v1257, %v1253
        %v1494 = vpack.c.b16 %v1262, %v1258
        %v1495 = vpack.c.b16 %v1263, %v1259
        %v1496 = vpack.c.b16 %v1264, %v1260
        %v1497 = vpack.c.b16 %v1265, %v1261
        %v1498 = vpack.c.b16 %v1270, %v1266
        %v1499 = vpack.c.b16 %v1271, %v1267
        %v1500 = vpack.c.b16 %v1272, %v1268
        %v1501 = vpack.c.b16 %v1273, %v1269
        %v1502 = vpack.c.b16 %v1278, %v1274
        %v1503 = vpack.c.b16 %v1279, %v1275
        %v1504 = vpack.c.b16 %v1280, %v1276
        %v1505 = vpack.c.b16 %v1281, %v1277
        %v1506 = vpack.c.b16 %v1286, %v1282
        %v1507 = vpack.c.b16 %v1287, %v1283
        %v1508 = vpack.c.b16 %v1288, %v1284
        %v1509 = vpack.c.b16 %v1289, %v1285
        %v1510 = vpack.c.b16 %v1294, %v1290
        %v1511 = vpack.c.b16 %v1295, %v1291
        %v1512 = vpack.c.b16 %v1296, %v1292
        %v1513 = vpack.c.b16 %v1297, %v1293
        %v1514 = vpack.c.b16 %v1302, %v1298
        %v1515 = vpack.c.b16 %v1303, %v1299
        %v1516 = vpack.c.b16 %v1304, %v1300
        %v1517 = vpack.c.b16 %v1305, %v1301
        %v1518 = vpack.c.b16 %v1310, %v1306
        %v1519 = vpack.c.b16 %v1311, %v1307
        %v1520 = vpack.c.b16 %v1312, %v1308
        %v1521 = vpack.c.b16 %v1313, %v1309
        %v1522 = vpack.c.b16 %v1318, %v1314
        %v1523 = vpack.c.b16 %v1319, %v1315
        %v1524 = vpack.c.b16 %v1320, %v1316
        %v1525 = vpack.c.b16 %v1321, %v1317
        %v1526 = vpack.c.b16 %v1326, %v1322
        %v1527 = vpack.c.b16 %v1327, %v1323
        %v1528 = vpack.c.b16 %v1328, %v1324
        %v1529 = vpack.c.b16 %v1329, %v1325
        %v1530 = vpack.c.b16 %v1334, %v1330
        %v1531 = vpack.c.b16 %v1335, %v1331
        %v1532 = vpack.c.b16 %v1336, %v1332
        %v1533 = vpack.c.b16 %v1337, %v1333
        %v1534 = vpack.c.b16 %v1342, %v1338
        %v1535 = vpack.c.b16 %v1343, %v1339
        %v1536 = vpack.c.b16 %v1344, %v1340
        %v1537 = vpack.c.b16 %v1345, %v1341
        %v1538 = vpack.c.b16 %v1350, %v1346
        %v1539 = vpack.c.b16 %v1351, %v1347
        %v1540 = vpack.c.b16 %v1352, %v1348
        %v1541 = vpack.c.b16 %v1353, %v1349
        %v1542 = vpack.c.b16 %v1358, %v1354
        %v1543 = vpack.c.b16 %v1359, %v1355
        %v1544 = vpack.c.b16 %v1360, %v1356
        %v1545 = vpack.c.b16 %v1361, %v1357
        %v1546 = vpack.c.b16 %v1366, %v1362
        %v1547 = vpack.c.b16 %v1367, %v1363
        %v1548 = vpack.c.b16 %v1368, %v1364
        %v1549 = vpack.c.b16 %v1369, %v1365
        %v1550 = vpack.c.b16 %v1374, %v1370
        %v1551 = vpack.c.b16 %v1375, %v1371
        %v1552 = vpack.c.b16 %v1376, %v1372
        %v1553 = vpack.c.b16 %v1377, %v1373
        %v1554 = vpack.c.b16 %v1382, %v1378
        %v1555 = vpack.c.b16 %v1383, %v1379
        %v1556 = vpack.c.b16 %v1384, %v1380
        %v1557 = vpack.c.b16 %v1385, %v1381
        %v1558 = vpack.c.b16 %v1390, %v1386
        %v1559 = vpack.c.b16 %v1391, %v1387
        %v1560 = vpack.c.b16 %v1392, %v1388
        %v1561 = vpack.c.b16 %v1393, %v1389
        %v1562 = vpack.c.b16 %v1398, %v1394
        %v1563 = vpack.c.b16 %v1399, %v1395
        %v1564 = vpack.c.b16 %v1400, %v1396
        %v1565 = vpack.c.b16 %v1401, %v1397
        %v1566 = vpack.c.b16 %v1406, %v1402
        %v1567 = vpack.c.b16 %v1407, %v1403
        %v1568 = vpack.c.b16 %v1408, %v1404
        %v1569 = vpack.c.b16 %v1409, %v1405
        %v1570 = vpack.c.b16 %v1414, %v1410
        %v1571 = vpack.c.b16 %v1415, %v1411
        %v1572 = vpack.c.b16 %v1416, %v1412
        %v1573 = vpack.c.b16 %v1417, %v1413
        %v1574 = vpack.c.b16 %v1422, %v1418
        %v1575 = vpack.c.b16 %v1423, %v1419
        %v1576 = vpack.c.b16 %v1424, %v1420
        %v1577 = vpack.c.b16 %v1425, %v1421
        %v1578 = vpack.c.b16 %v1430, %v1426
        %v1579 = vpack.c.b16 %v1431, %v1427
        %v1580 = vpack.c.b16 %v1432, %v1428
        %v1581 = vpack.c.b16 %v1433, %v1429
        %v1582 = vpack.c.b16 %v1438, %v1434
        %v1583 = vpack.c.b16 %v1439, %v1435
        %v1584 = vpack.c.b16 %v1440, %v1436
        %v1585 = vpack.c.b16 %v1441, %v1437
        %v1586 = vpack.c.b16 %v1446, %v1442
        %v1587 = vpack.c.b16 %v1447, %v1443
        %v1588 = vpack.c.b16 %v1448, %v1444
        %v1589 = vpack.c.b16 %v1449, %v1445
        %v1590 = vpack.c.b16 %v1454, %v1450
        %v1591 = vpack.c.b16 %v1455, %v1451
        %v1592 = vpack.c.b16 %v1456, %v1452
        %v1593 = vpack.c.b16 %v1457, %v1453
        %v1594 = vpack.c.b16 %v1462, %v1458
        %v1595 = vpack.c.b16 %v1463, %v1459
        %v1596 = vpack.c.b16 %v1464, %v1460
        %v1597 = vpack.c.b16 %v1465, %v1461
        %v1598 = vpack.c.b16 %v1470, %v1466
        %v1599 = vpack.c.b16 %v1471, %v1467
        %v1600 = vpack.c.b16 %v1472, %v1468
        %v1601 = vpack.c.b16 %v1473, %v1469
        %1730 = vmatprep.subr.bf16.mxu0 %v1475
        %1731 = vmatpush1.bf16.xpose.msra.mxu0 %v1474
        %1732 = vmatprep.subr.bf16.mxu0 %v1479
        %1733 = vmatpush1.bf16.xpose.msra.mxu0 %v1478
        %1734 = vmatprep.subr.bf16.mxu0 %v1483
        %1735 = vmatpush1.bf16.xpose.msra.mxu0 %v1482
        %1736 = vmatprep.subr.bf16.mxu0 %v1487
        %1737 = vmatpush1.bf16.xpose.msra.mxu0 %v1486
        %1738 = vmatprep.subr.bf16.mxu0 %v1491
        %1739 = vmatpush1.bf16.xpose.msra.mxu0 %v1490
        %1740 = vmatprep.subr.bf16.mxu0 %v1495
        %1741 = vmatpush1.bf16.xpose.msra.mxu0 %v1494
        %1742 = vmatprep.subr.bf16.mxu0 %v1499
        %1743 = vmatpush1.bf16.xpose.msra.mxu0 %v1498
        %1744 = vmatprep.subr.bf16.mxu0 %v1503
        %1745 = vmatpush1.bf16.xpose.msra.mxu0 %v1502
        %1746 = vmatprep.subr.bf16.mxu0 %v1507
        %1747 = vmatpush1.bf16.xpose.msra.mxu0 %v1506
        %1748 = vmatprep.subr.bf16.mxu0 %v1511
        %1749 = vmatpush1.bf16.xpose.msra.mxu0 %v1510
        %1750 = vmatprep.subr.bf16.mxu0 %v1515
        %1751 = vmatpush1.bf16.xpose.msra.mxu0 %v1514
        %1752 = vmatprep.subr.bf16.mxu0 %v1519
        %1753 = vmatpush1.bf16.xpose.msra.mxu0 %v1518
        %1754 = vmatprep.subr.bf16.mxu0 %v1523
        %1755 = vmatpush1.bf16.xpose.msra.mxu0 %v1522
        %1756 = vmatprep.subr.bf16.mxu0 %v1527
        %1757 = vmatpush1.bf16.xpose.msra.mxu0 %v1526
        %1758 = vmatprep.subr.bf16.mxu0 %v1531
        %1759 = vmatpush1.bf16.xpose.msra.mxu0 %v1530
        %1760 = vmatprep.subr.bf16.mxu0 %v1535
        %1761 = vmatpush1.bf16.xpose.msra.mxu0 %v1534
        %1762 = vmatprep.mubr.bf16.mxu0 %v770
        %1763 = vmatmul.mubr.bf16.gmra.mrb[0].mxu0 %v769
        %v1764 = vpop.f32.mrb[0].mxu0
        %v1765 = vadd.f32 0.0, %v1764
        %v1766 = vpop.f32.mrb[0].mxu0
        %v1767 = vadd.f32 0.0, %v1766
        %v1768 = vpop.f32.mrb[0].mxu0
        %v1769 = vadd.f32 0.0, %v1768
        %v1770 = vpop.f32.mrb[0].mxu0
        %v1771 = vadd.f32 0.0, %v1770
        %1772 = vmatprep.mubr.bf16.mxu0 %v774
        %1773 = vmatmul.mubr.bf16.gmra.mrb[0].mxu0 %v773
        %v1774 = vpop.f32.mrb[0].mxu0
        %v1775 = vadd.f32 0.0, %v1774
        %v1776 = vpop.f32.mrb[0].mxu0
        %v1777 = vadd.f32 0.0, %v1776
        %v1778 = vpop.f32.mrb[0].mxu0
        %v1779 = vadd.f32 0.0, %v1778
        %v1780 = vpop.f32.mrb[0].mxu0
        %v1781 = vadd.f32 0.0, %v1780
        %1782 = vmatprep.mubr.bf16.mxu0 %v778
        %1783 = vmatmul.mubr.bf16.gmra.mrb[0].mxu0 %v777
        %v1784 = vpop.f32.mrb[0].mxu0
        %v1785 = vadd.f32 0.0, %v1784
        %v1786 = vpop.f32.mrb[0].mxu0
        %v1787 = vadd.f32 0.0, %v1786
        %v1788 = vpop.f32.mrb[0].mxu0
        %v1789 = vadd.f32 0.0, %v1788
        %v1790 = vpop.f32.mrb[0].mxu0
        %v1791 = vadd.f32 0.0, %v1790
        %1792 = vmatprep.mubr.bf16.mxu0 %v782
        %1793 = vmatmul.mubr.bf16.gmra.mrb[0].mxu0 %v781
        %v1794 = vpop.f32.mrb[0].mxu0
        %v1795 = vadd.f32 0.0, %v1794
        %v1796 = vpop.f32.mrb[0].mxu0
        %v1797 = vadd.f32 0.0, %v1796
        %v1798 = vpop.f32.mrb[0].mxu0
        %v1799 = vadd.f32 0.0, %v1798
        %v1800 = vpop.f32.mrb[0].mxu0
        %v1801 = vadd.f32 0.0, %v1800
        %1802 = vmatprep.mubr.bf16.mxu0 %v786
        %1803 = vmatmul.mubr.bf16.gmra.mrb[0].mxu0 %v785
        %v1804 = vpop.f32.mrb[0].mxu0
        %v1805 = vadd.f32 0.0, %v1804
        %v1806 = vpop.f32.mrb[0].mxu0
        %v1807 = vadd.f32 0.0, %v1806
        %v1808 = vpop.f32.mrb[0].mxu0
        %v1809 = vadd.f32 0.0, %v1808
        %v1810 = vpop.f32.mrb[0].mxu0
        %v1811 = vadd.f32 0.0, %v1810
        %1812 = vmatprep.mubr.bf16.mxu0 %v790
        %1813 = vmatmul.mubr.bf16.gmra.mrb[0].mxu0 %v789
        %v1814 = vpop.f32.mrb[0].mxu0
        %v1815 = vadd.f32 0.0, %v1814
        %v1816 = vpop.f32.mrb[0].mxu0
        %v1817 = vadd.f32 0.0, %v1816
        %v1818 = vpop.f32.mrb[0].mxu0
        %v1819 = vadd.f32 0.0, %v1818
        %v1820 = vpop.f32.mrb[0].mxu0
        %v1821 = vadd.f32 0.0, %v1820
        %1822 = vmatprep.mubr.bf16.mxu0 %v794
        %1823 = vmatmul.mubr.bf16.gmra.mrb[0].mxu0 %v793
        %v1824 = vpop.f32.mrb[0].mxu0
        %v1825 = vadd.f32 0.0, %v1824
        %v1826 = vpop.f32.mrb[0].mxu0
        %v1827 = vadd.f32 0.0, %v1826
        %v1828 = vpop.f32.mrb[0].mxu0
        %v1829 = vadd.f32 0.0, %v1828
        %v1830 = vpop.f32.mrb[0].mxu0
        %v1831 = vadd.f32 0.0, %v1830
        %1832 = vmatprep.mubr.bf16.mxu0 %v798
        %1833 = vmatmul.mubr.bf16.gmra.mrb[0].mxu0 %v797
        %v1834 = vpop.f32.mrb[0].mxu0
        %v1835 = vadd.f32 0.0, %v1834
        %v1836 = vpop.f32.mrb[0].mxu0
        %v1837 = vadd.f32 0.0, %v1836
        %v1838 = vpop.f32.mrb[0].mxu0
        %v1839 = vadd.f32 0.0, %v1838
        %v1840 = vpop.f32.mrb[0].mxu0
        %v1841 = vadd.f32 0.0, %v1840
        %1842 = vmatprep.mubr.bf16.mxu0 %v802
        %1843 = vmatmul.mubr.bf16.gmra.mrb[0].mxu0 %v801
        %v1844 = vpop.f32.mrb[0].mxu0
        %v1845 = vadd.f32 0.0, %v1844
        %v1846 = vpop.f32.mrb[0].mxu0
        %v1847 = vadd.f32 0.0, %v1846
        %v1848 = vpop.f32.mrb[0].mxu0
        %v1849 = vadd.f32 0.0, %v1848
        %v1850 = vpop.f32.mrb[0].mxu0
        %v1851 = vadd.f32 0.0, %v1850
        %1852 = vmatprep.mubr.bf16.mxu0 %v806
        %1853 = vmatmul.mubr.bf16.gmra.mrb[0].mxu0 %v805
        %v1854 = vpop.f32.mrb[0].mxu0
        %v1855 = vadd.f32 0.0, %v1854
        %v1856 = vpop.f32.mrb[0].mxu0
        %v1857 = vadd.f32 0.0, %v1856
        %v1858 = vpop.f32.mrb[0].mxu0
        %v1859 = vadd.f32 0.0, %v1858
        %v1860 = vpop.f32.mrb[0].mxu0
        %v1861 = vadd.f32 0.0, %v1860
        %1862 = vmatprep.mubr.bf16.mxu0 %v810
        %1863 = vmatmul.mubr.bf16.gmra.mrb[0].mxu0 %v809
        %v1864 = vpop.f32.mrb[0].mxu0
        %v1865 = vadd.f32 0.0, %v1864
        %v1866 = vpop.f32.mrb[0].mxu0
        %v1867 = vadd.f32 0.0, %v1866
        %v1868 = vpop.f32.mrb[0].mxu0
        %v1869 = vadd.f32 0.0, %v1868
        %v1870 = vpop.f32.mrb[0].mxu0
        %v1871 = vadd.f32 0.0, %v1870
        %1872 = vmatprep.mubr.bf16.mxu0 %v814
        %1873 = vmatmul.mubr.bf16.gmra.mrb[0].mxu0 %v813
        %v1874 = vpop.f32.mrb[0].mxu0
        %v1875 = vadd.f32 0.0, %v1874
        %v1876 = vpop.f32.mrb[0].mxu0
        %v1877 = vadd.f32 0.0, %v1876
        %v1878 = vpop.f32.mrb[0].mxu0
        %v1879 = vadd.f32 0.0, %v1878
        %v1880 = vpop.f32.mrb[0].mxu0
        %v1881 = vadd.f32 0.0, %v1880
        %1882 = vmatprep.mubr.bf16.mxu0 %v818
        %1883 = vmatmul.mubr.bf16.gmra.mrb[0].mxu0 %v817
        %v1884 = vpop.f32.mrb[0].mxu0
        %v1885 = vadd.f32 0.0, %v1884
        %v1886 = vpop.f32.mrb[0].mxu0
        %v1887 = vadd.f32 0.0, %v1886
        %v1888 = vpop.f32.mrb[0].mxu0
        %v1889 = vadd.f32 0.0, %v1888
        %v1890 = vpop.f32.mrb[0].mxu0
        %v1891 = vadd.f32 0.0, %v1890
        %1892 = vmatprep.mubr.bf16.mxu0 %v822
        %1893 = vmatmul.mubr.bf16.gmra.mrb[0].mxu0 %v821
        %v1894 = vpop.f32.mrb[0].mxu0
        %v1895 = vadd.f32 0.0, %v1894
        %v1896 = vpop.f32.mrb[0].mxu0
        %v1897 = vadd.f32 0.0, %v1896
        %v1898 = vpop.f32.mrb[0].mxu0
        %v1899 = vadd.f32 0.0, %v1898
        %v1900 = vpop.f32.mrb[0].mxu0
        %v1901 = vadd.f32 0.0, %v1900
        %1902 = vmatprep.mubr.bf16.mxu0 %v826
        %1903 = vmatmul.mubr.bf16.gmra.mrb[0].mxu0 %v825
        %v1904 = vpop.f32.mrb[0].mxu0
        %v1905 = vadd.f32 0.0, %v1904
        %v1906 = vpop.f32.mrb[0].mxu0
        %v1907 = vadd.f32 0.0, %v1906
        %v1908 = vpop.f32.mrb[0].mxu0
        %v1909 = vadd.f32 0.0, %v1908
        %v1910 = vpop.f32.mrb[0].mxu0
        %v1911 = vadd.f32 0.0, %v1910
        %1912 = vmatprep.mubr.bf16.mxu0 %v830
        %1913 = vmatmul.mubr.bf16.gmra.mrb[0].mxu0 %v829
        %v1914 = vpop.f32.mrb[0].mxu0
        %v1915 = vadd.f32 0.0, %v1914
        %v1916 = vpop.f32.mrb[0].mxu0
        %v1917 = vadd.f32 0.0, %v1916
        %v1918 = vpop.f32.mrb[0].mxu0
        %v1919 = vadd.f32 0.0, %v1918
        %v1920 = vpop.f32.mrb[0].mxu0
        %v1921 = vadd.f32 0.0, %v1920
        %1922 = vdwg.mxu0
        %1923 = vmatprep.subr.bf16.mxu0 %v1477
        %1924 = vmatpush1.bf16.xpose.msra.mxu0 %v1476
        %1925 = vmatprep.subr.bf16.mxu0 %v1481
        %1926 = vmatpush1.bf16.xpose.msra.mxu0 %v1480
        %1927 = vmatprep.subr.bf16.mxu0 %v1485
        %1928 = vmatpush1.bf16.xpose.msra.mxu0 %v1484
        %1929 = vmatprep.subr.bf16.mxu0 %v1489
        %1930 = vmatpush1.bf16.xpose.msra.mxu0 %v1488
        %1931 = vmatprep.subr.bf16.mxu0 %v1493
        %1932 = vmatpush1.bf16.xpose.msra.mxu0 %v1492
        %1933 = vmatprep.subr.bf16.mxu0 %v1497
        %1934 = vmatpush1.bf16.xpose.msra.mxu0 %v1496
        %1935 = vmatprep.subr.bf16.mxu0 %v1501
        %1936 = vmatpush1.bf16.xpose.msra.mxu0 %v1500
        %1937 = vmatprep.subr.bf16.mxu0 %v1505
        %1938 = vmatpush1.bf16.xpose.msra.mxu0 %v1504
        %1939 = vmatprep.subr.bf16.mxu0 %v1509
        %1940 = vmatpush1.bf16.xpose.msra.mxu0 %v1508
        %1941 = vmatprep.subr.bf16.mxu0 %v1513
        %1942 = vmatpush1.bf16.xpose.msra.mxu0 %v1512
        %1943 = vmatprep.subr.bf16.mxu0 %v1517
        %1944 = vmatpush1.bf16.xpose.msra.mxu0 %v1516
        %1945 = vmatprep.subr.bf16.mxu0 %v1521
        %1946 = vmatpush1.bf16.xpose.msra.mxu0 %v1520
        %1947 = vmatprep.subr.bf16.mxu0 %v1525
        %1948 = vmatpush1.bf16.xpose.msra.mxu0 %v1524
        %1949 = vmatprep.subr.bf16.mxu0 %v1529
        %1950 = vmatpush1.bf16.xpose.msra.mxu0 %v1528
        %1951 = vmatprep.subr.bf16.mxu0 %v1533
        %1952 = vmatpush1.bf16.xpose.msra.mxu0 %v1532
        %1953 = vmatprep.subr.bf16.mxu0 %v1537
        %1954 = vmatpush1.bf16.xpose.msra.mxu0 %v1536
        %1955 = vmatprep.mubr.bf16.mxu0 %v772
        %1956 = vmatmul.mubr.bf16.gmra.mrb[0].mxu0 %v771
        %v1957 = vpop.f32.mrb[0].mxu0
        %v1958 = vadd.f32 %v1765, %v1957
        %v1959 = vpop.f32.mrb[0].mxu0
        %v1960 = vadd.f32 %v1767, %v1959
        %v1961 = vpop.f32.mrb[0].mxu0
        %v1962 = vadd.f32 %v1769, %v1961
        %v1963 = vpop.f32.mrb[0].mxu0
        %v1964 = vadd.f32 %v1771, %v1963
        %1965 = vmatprep.mubr.bf16.mxu0 %v776
        %1966 = vmatmul.mubr.bf16.gmra.mrb[0].mxu0 %v775
        %v1967 = vpop.f32.mrb[0].mxu0
        %v1968 = vadd.f32 %v1775, %v1967
        %v1969 = vpop.f32.mrb[0].mxu0
        %v1970 = vadd.f32 %v1777, %v1969
        %v1971 = vpop.f32.mrb[0].mxu0
        %v1972 = vadd.f32 %v1779, %v1971
        %v1973 = vpop.f32.mrb[0].mxu0
        %v1974 = vadd.f32 %v1781, %v1973
        %1975 = vmatprep.mubr.bf16.mxu0 %v780
        %1976 = vmatmul.mubr.bf16.gmra.mrb[0].mxu0 %v779
        %v1977 = vpop.f32.mrb[0].mxu0
        %v1978 = vadd.f32 %v1785, %v1977
        %v1979 = vpop.f32.mrb[0].mxu0
        %v1980 = vadd.f32 %v1787, %v1979
        %v1981 = vpop.f32.mrb[0].mxu0
        %v1982 = vadd.f32 %v1789, %v1981
        %v1983 = vpop.f32.mrb[0].mxu0
        %v1984 = vadd.f32 %v1791, %v1983
        %1985 = vmatprep.mubr.bf16.mxu0 %v784
        %1986 = vmatmul.mubr.bf16.gmra.mrb[0].mxu0 %v783
        %v1987 = vpop.f32.mrb[0].mxu0
        %v1988 = vadd.f32 %v1795, %v1987
        %v1989 = vpop.f32.mrb[0].mxu0
        %v1990 = vadd.f32 %v1797, %v1989
        %v1991 = vpop.f32.mrb[0].mxu0
        %v1992 = vadd.f32 %v1799, %v1991
        %v1993 = vpop.f32.mrb[0].mxu0
        %v1994 = vadd.f32 %v1801, %v1993
        %1995 = vmatprep.mubr.bf16.mxu0 %v788
        %1996 = vmatmul.mubr.bf16.gmra.mrb[0].mxu0 %v787
        %v1997 = vpop.f32.mrb[0].mxu0
        %v1998 = vadd.f32 %v1805, %v1997
        %v1999 = vpop.f32.mrb[0].mxu0
        %v2000 = vadd.f32 %v1807, %v1999
        %v2001 = vpop.f32.mrb[0].mxu0
        %v2002 = vadd.f32 %v1809, %v2001
        %v2003 = vpop.f32.mrb[0].mxu0
        %v2004 = vadd.f32 %v1811, %v2003
        %2005 = vmatprep.mubr.bf16.mxu0 %v792
        %2006 = vmatmul.mubr.bf16.gmra.mrb[0].mxu0 %v791
        %v2007 = vpop.f32.mrb[0].mxu0
        %v2008 = vadd.f32 %v1815, %v2007
        %v2009 = vpop.f32.mrb[0].mxu0
        %v2010 = vadd.f32 %v1817, %v2009
        %v2011 = vpop.f32.mrb[0].mxu0
        %v2012 = vadd.f32 %v1819, %v2011
        %v2013 = vpop.f32.mrb[0].mxu0
        %v2014 = vadd.f32 %v1821, %v2013
        %2015 = vmatprep.mubr.bf16.mxu0 %v796
        %2016 = vmatmul.mubr.bf16.gmra.mrb[0].mxu0 %v795
        %v2017 = vpop.f32.mrb[0].mxu0
        %v2018 = vadd.f32 %v1825, %v2017
        %v2019 = vpop.f32.mrb[0].mxu0
        %v2020 = vadd.f32 %v1827, %v2019
        %v2021 = vpop.f32.mrb[0].mxu0
        %v2022 = vadd.f32 %v1829, %v2021
        %v2023 = vpop.f32.mrb[0].mxu0
        %v2024 = vadd.f32 %v1831, %v2023
        %2025 = vmatprep.mubr.bf16.mxu0 %v800
        %2026 = vmatmul.mubr.bf16.gmra.mrb[0].mxu0 %v799
        %v2027 = vpop.f32.mrb[0].mxu0
        %v2028 = vadd.f32 %v1835, %v2027
        %v2029 = vpop.f32.mrb[0].mxu0
        %v2030 = vadd.f32 %v1837, %v2029
        %v2031 = vpop.f32.mrb[0].mxu0
        %v2032 = vadd.f32 %v1839, %v2031
        %v2033 = vpop.f32.mrb[0].mxu0
        %v2034 = vadd.f32 %v1841, %v2033
        %2035 = vmatprep.mubr.bf16.mxu0 %v804
        %2036 = vmatmul.mubr.bf16.gmra.mrb[0].mxu0 %v803
        %v2037 = vpop.f32.mrb[0].mxu0
        %v2038 = vadd.f32 %v1845, %v2037
        %v2039 = vpop.f32.mrb[0].mxu0
        %v2040 = vadd.f32 %v1847, %v2039
        %v2041 = vpop.f32.mrb[0].mxu0
        %v2042 = vadd.f32 %v1849, %v2041
        %v2043 = vpop.f32.mrb[0].mxu0
        %v2044 = vadd.f32 %v1851, %v2043
        %2045 = vmatprep.mubr.bf16.mxu0 %v808
        %2046 = vmatmul.mubr.bf16.gmra.mrb[0].mxu0 %v807
        %v2047 = vpop.f32.mrb[0].mxu0
        %v2048 = vadd.f32 %v1855, %v2047
        %v2049 = vpop.f32.mrb[0].mxu0
        %v2050 = vadd.f32 %v1857, %v2049
        %v2051 = vpop.f32.mrb[0].mxu0
        %v2052 = vadd.f32 %v1859, %v2051
        %v2053 = vpop.f32.mrb[0].mxu0
        %v2054 = vadd.f32 %v1861, %v2053
        %2055 = vmatprep.mubr.bf16.mxu0 %v812
        %2056 = vmatmul.mubr.bf16.gmra.mrb[0].mxu0 %v811
        %v2057 = vpop.f32.mrb[0].mxu0
        %v2058 = vadd.f32 %v1865, %v2057
        %v2059 = vpop.f32.mrb[0].mxu0
        %v2060 = vadd.f32 %v1867, %v2059
        %v2061 = vpop.f32.mrb[0].mxu0
        %v2062 = vadd.f32 %v1869, %v2061
        %v2063 = vpop.f32.mrb[0].mxu0
        %v2064 = vadd.f32 %v1871, %v2063
        %2065 = vmatprep.mubr.bf16.mxu0 %v816
        %2066 = vmatmul.mubr.bf16.gmra.mrb[0].mxu0 %v815
        %v2067 = vpop.f32.mrb[0].mxu0
        %v2068 = vadd.f32 %v1875, %v2067
        %v2069 = vpop.f32.mrb[0].mxu0
        %v2070 = vadd.f32 %v1877, %v2069
        %v2071 = vpop.f32.mrb[0].mxu0
        %v2072 = vadd.f32 %v1879, %v2071
        %v2073 = vpop.f32.mrb[0].mxu0
        %v2074 = vadd.f32 %v1881, %v2073
        %2075 = vmatprep.mubr.bf16.mxu0 %v820
        %2076 = vmatmul.mubr.bf16.gmra.mrb[0].mxu0 %v819
        %v2077 = vpop.f32.mrb[0].mxu0
        %v2078 = vadd.f32 %v1885, %v2077
        %v2079 = vpop.f32.mrb[0].mxu0
        %v2080 = vadd.f32 %v1887, %v2079
        %v2081 = vpop.f32.mrb[0].mxu0
        %v2082 = vadd.f32 %v1889, %v2081
        %v2083 = vpop.f32.mrb[0].mxu0
        %v2084 = vadd.f32 %v1891, %v2083
        %2085 = vmatprep.mubr.bf16.mxu0 %v824
        %2086 = vmatmul.mubr.bf16.gmra.mrb[0].mxu0 %v823
        %v2087 = vpop.f32.mrb[0].mxu0
        %v2088 = vadd.f32 %v1895, %v2087
        %v2089 = vpop.f32.mrb[0].mxu0
        %v2090 = vadd.f32 %v1897, %v2089
        %v2091 = vpop.f32.mrb[0].mxu0
        %v2092 = vadd.f32 %v1899, %v2091
        %v2093 = vpop.f32.mrb[0].mxu0
        %v2094 = vadd.f32 %v1901, %v2093
        %2095 = vmatprep.mubr.bf16.mxu0 %v828
        %2096 = vmatmul.mubr.bf16.gmra.mrb[0].mxu0 %v827
        %v2097 = vpop.f32.mrb[0].mxu0
        %v2098 = vadd.f32 %v1905, %v2097
        %v2099 = vpop.f32.mrb[0].mxu0
        %v2100 = vadd.f32 %v1907, %v2099
        %v2101 = vpop.f32.mrb[0].mxu0
        %v2102 = vadd.f32 %v1909, %v2101
        %v2103 = vpop.f32.mrb[0].mxu0
        %v2104 = vadd.f32 %v1911, %v2103
        %2105 = vmatprep.mubr.bf16.mxu0 %v832
        %2106 = vmatmul.mubr.bf16.gmra.mrb[0].mxu0 %v831
        %v2107 = vpop.f32.mrb[0].mxu0
        %v2108 = vadd.f32 %v1915, %v2107
        %v2109 = vpop.f32.mrb[0].mxu0
        %v2110 = vadd.f32 %v1917, %v2109
        %v2111 = vpop.f32.mrb[0].mxu0
        %v2112 = vadd.f32 %v1919, %v2111
        %v2113 = vpop.f32.mrb[0].mxu0
        %v2114 = vadd.f32 %v1921, %v2113
        %2115 = vdwg.mxu0
        %2116 = vmatprep.subr.bf16.mxu0 %v1539
        %2117 = vmatpush1.bf16.xpose.msra.mxu0 %v1538
        %2118 = vmatprep.subr.bf16.mxu0 %v1543
        %2119 = vmatpush1.bf16.xpose.msra.mxu0 %v1542
        %2120 = vmatprep.subr.bf16.mxu0 %v1547
        %2121 = vmatpush1.bf16.xpose.msra.mxu0 %v1546
        %2122 = vmatprep.subr.bf16.mxu0 %v1551
        %2123 = vmatpush1.bf16.xpose.msra.mxu0 %v1550
        %2124 = vmatprep.subr.bf16.mxu0 %v1555
        %2125 = vmatpush1.bf16.xpose.msra.mxu0 %v1554
        %2126 = vmatprep.subr.bf16.mxu0 %v1559
        %2127 = vmatpush1.bf16.xpose.msra.mxu0 %v1558
        %2128 = vmatprep.subr.bf16.mxu0 %v1563
        %2129 = vmatpush1.bf16.xpose.msra.mxu0 %v1562
        %2130 = vmatprep.subr.bf16.mxu0 %v1567
        %2131 = vmatpush1.bf16.xpose.msra.mxu0 %v1566
        %2132 = vmatprep.subr.bf16.mxu0 %v1571
        %2133 = vmatpush1.bf16.xpose.msra.mxu0 %v1570
        %2134 = vmatprep.subr.bf16.mxu0 %v1575
        %2135 = vmatpush1.bf16.xpose.msra.mxu0 %v1574
        %2136 = vmatprep.subr.bf16.mxu0 %v1579
        %2137 = vmatpush1.bf16.xpose.msra.mxu0 %v1578
        %2138 = vmatprep.subr.bf16.mxu0 %v1583
        %2139 = vmatpush1.bf16.xpose.msra.mxu0 %v1582
        %2140 = vmatprep.subr.bf16.mxu0 %v1587
        %2141 = vmatpush1.bf16.xpose.msra.mxu0 %v1586
        %2142 = vmatprep.subr.bf16.mxu0 %v1591
        %2143 = vmatpush1.bf16.xpose.msra.mxu0 %v1590
        %2144 = vmatprep.subr.bf16.mxu0 %v1595
        %2145 = vmatpush1.bf16.xpose.msra.mxu0 %v1594
        %2146 = vmatprep.subr.bf16.mxu0 %v1599
        %2147 = vmatpush1.bf16.xpose.msra.mxu0 %v1598
        %2148 = vmatprep.mubr.bf16.mxu0 %v770
        %2149 = vmatmul.mubr.bf16.gmra.mrb[0].mxu0 %v769
        %v2150 = vpop.f32.mrb[0].mxu0
        %v2151 = vadd.f32 0.0, %v2150
        %v2152 = vpop.f32.mrb[0].mxu0
        %v2153 = vadd.f32 0.0, %v2152
        %v2154 = vpop.f32.mrb[0].mxu0
        %v2155 = vadd.f32 0.0, %v2154
        %v2156 = vpop.f32.mrb[0].mxu0
        %v2157 = vadd.f32 0.0, %v2156
        %2158 = vmatprep.mubr.bf16.mxu0 %v774
        %2159 = vmatmul.mubr.bf16.gmra.mrb[0].mxu0 %v773
        %v2160 = vpop.f32.mrb[0].mxu0
        %v2161 = vadd.f32 0.0, %v2160
        %v2162 = vpop.f32.mrb[0].mxu0
        %v2163 = vadd.f32 0.0, %v2162
        %v2164 = vpop.f32.mrb[0].mxu0
        %v2165 = vadd.f32 0.0, %v2164
        %v2166 = vpop.f32.mrb[0].mxu0
        %v2167 = vadd.f32 0.0, %v2166
        %2168 = vmatprep.mubr.bf16.mxu0 %v778
        %2169 = vmatmul.mubr.bf16.gmra.mrb[0].mxu0 %v777
        %v2170 = vpop.f32.mrb[0].mxu0
        %v2171 = vadd.f32 0.0, %v2170
        %v2172 = vpop.f32.mrb[0].mxu0
        %v2173 = vadd.f32 0.0, %v2172
        %v2174 = vpop.f32.mrb[0].mxu0
        %v2175 = vadd.f32 0.0, %v2174
        %v2176 = vpop.f32.mrb[0].mxu0
        %v2177 = vadd.f32 0.0, %v2176
        %2178 = vmatprep.mubr.bf16.mxu0 %v782
        %2179 = vmatmul.mubr.bf16.gmra.mrb[0].mxu0 %v781
        %v2180 = vpop.f32.mrb[0].mxu0
        %v2181 = vadd.f32 0.0, %v2180
        %v2182 = vpop.f32.mrb[0].mxu0
        %v2183 = vadd.f32 0.0, %v2182
        %v2184 = vpop.f32.mrb[0].mxu0
        %v2185 = vadd.f32 0.0, %v2184
        %v2186 = vpop.f32.mrb[0].mxu0
        %v2187 = vadd.f32 0.0, %v2186
        %2188 = vmatprep.mubr.bf16.mxu0 %v786
        %2189 = vmatmul.mubr.bf16.gmra.mrb[0].mxu0 %v785
        %v2190 = vpop.f32.mrb[0].mxu0
        %v2191 = vadd.f32 0.0, %v2190
        %v2192 = vpop.f32.mrb[0].mxu0
        %v2193 = vadd.f32 0.0, %v2192
        %v2194 = vpop.f32.mrb[0].mxu0
        %v2195 = vadd.f32 0.0, %v2194
        %v2196 = vpop.f32.mrb[0].mxu0
        %v2197 = vadd.f32 0.0, %v2196
        %2198 = vmatprep.mubr.bf16.mxu0 %v790
        %2199 = vmatmul.mubr.bf16.gmra.mrb[0].mxu0 %v789
        %v2200 = vpop.f32.mrb[0].mxu0
        %v2201 = vadd.f32 0.0, %v2200
        %v2202 = vpop.f32.mrb[0].mxu0
        %v2203 = vadd.f32 0.0, %v2202
        %v2204 = vpop.f32.mrb[0].mxu0
        %v2205 = vadd.f32 0.0, %v2204
        %v2206 = vpop.f32.mrb[0].mxu0
        %v2207 = vadd.f32 0.0, %v2206
        %2208 = vmatprep.mubr.bf16.mxu0 %v794
        %2209 = vmatmul.mubr.bf16.gmra.mrb[0].mxu0 %v793
        %v2210 = vpop.f32.mrb[0].mxu0
        %v2211 = vadd.f32 0.0, %v2210
        %v2212 = vpop.f32.mrb[0].mxu0
        %v2213 = vadd.f32 0.0, %v2212
        %v2214 = vpop.f32.mrb[0].mxu0
        %v2215 = vadd.f32 0.0, %v2214
        %v2216 = vpop.f32.mrb[0].mxu0
        %v2217 = vadd.f32 0.0, %v2216
        %2218 = vmatprep.mubr.bf16.mxu0 %v798
        %2219 = vmatmul.mubr.bf16.gmra.mrb[0].mxu0 %v797
        %v2220 = vpop.f32.mrb[0].mxu0
        %v2221 = vadd.f32 0.0, %v2220
        %v2222 = vpop.f32.mrb[0].mxu0
        %v2223 = vadd.f32 0.0, %v2222
        %v2224 = vpop.f32.mrb[0].mxu0
        %v2225 = vadd.f32 0.0, %v2224
        %v2226 = vpop.f32.mrb[0].mxu0
        %v2227 = vadd.f32 0.0, %v2226
        %2228 = vmatprep.mubr.bf16.mxu0 %v802
        %2229 = vmatmul.mubr.bf16.gmra.mrb[0].mxu0 %v801
        %v2230 = vpop.f32.mrb[0].mxu0
        %v2231 = vadd.f32 0.0, %v2230
        %v2232 = vpop.f32.mrb[0].mxu0
        %v2233 = vadd.f32 0.0, %v2232
        %v2234 = vpop.f32.mrb[0].mxu0
        %v2235 = vadd.f32 0.0, %v2234
        %v2236 = vpop.f32.mrb[0].mxu0
        %v2237 = vadd.f32 0.0, %v2236
        %2238 = vmatprep.mubr.bf16.mxu0 %v806
        %2239 = vmatmul.mubr.bf16.gmra.mrb[0].mxu0 %v805
        %v2240 = vpop.f32.mrb[0].mxu0
        %v2241 = vadd.f32 0.0, %v2240
        %v2242 = vpop.f32.mrb[0].mxu0
        %v2243 = vadd.f32 0.0, %v2242
        %v2244 = vpop.f32.mrb[0].mxu0
        %v2245 = vadd.f32 0.0, %v2244
        %v2246 = vpop.f32.mrb[0].mxu0
        %v2247 = vadd.f32 0.0, %v2246
        %2248 = vmatprep.mubr.bf16.mxu0 %v810
        %2249 = vmatmul.mubr.bf16.gmra.mrb[0].mxu0 %v809
        %v2250 = vpop.f32.mrb[0].mxu0
        %v2251 = vadd.f32 0.0, %v2250
        %v2252 = vpop.f32.mrb[0].mxu0
        %v2253 = vadd.f32 0.0, %v2252
        %v2254 = vpop.f32.mrb[0].mxu0
        %v2255 = vadd.f32 0.0, %v2254
        %v2256 = vpop.f32.mrb[0].mxu0
        %v2257 = vadd.f32 0.0, %v2256
        %2258 = vmatprep.mubr.bf16.mxu0 %v814
        %2259 = vmatmul.mubr.bf16.gmra.mrb[0].mxu0 %v813
        %v2260 = vpop.f32.mrb[0].mxu0
        %v2261 = vadd.f32 0.0, %v2260
        %v2262 = vpop.f32.mrb[0].mxu0
        %v2263 = vadd.f32 0.0, %v2262
        %v2264 = vpop.f32.mrb[0].mxu0
        %v2265 = vadd.f32 0.0, %v2264
        %v2266 = vpop.f32.mrb[0].mxu0
        %v2267 = vadd.f32 0.0, %v2266
        %2268 = vmatprep.mubr.bf16.mxu0 %v818
        %2269 = vmatmul.mubr.bf16.gmra.mrb[0].mxu0 %v817
        %v2270 = vpop.f32.mrb[0].mxu0
        %v2271 = vadd.f32 0.0, %v2270
        %v2272 = vpop.f32.mrb[0].mxu0
        %v2273 = vadd.f32 0.0, %v2272
        %v2274 = vpop.f32.mrb[0].mxu0
        %v2275 = vadd.f32 0.0, %v2274
        %v2276 = vpop.f32.mrb[0].mxu0
        %v2277 = vadd.f32 0.0, %v2276
        %2278 = vmatprep.mubr.bf16.mxu0 %v822
        %2279 = vmatmul.mubr.bf16.gmra.mrb[0].mxu0 %v821
        %v2280 = vpop.f32.mrb[0].mxu0
        %v2281 = vadd.f32 0.0, %v2280
        %v2282 = vpop.f32.mrb[0].mxu0
        %v2283 = vadd.f32 0.0, %v2282
        %v2284 = vpop.f32.mrb[0].mxu0
        %v2285 = vadd.f32 0.0, %v2284
        %v2286 = vpop.f32.mrb[0].mxu0
        %v2287 = vadd.f32 0.0, %v2286
        %2288 = vmatprep.mubr.bf16.mxu0 %v826
        %2289 = vmatmul.mubr.bf16.gmra.mrb[0].mxu0 %v825
        %v2290 = vpop.f32.mrb[0].mxu0
        %v2291 = vadd.f32 0.0, %v2290
        %v2292 = vpop.f32.mrb[0].mxu0
        %v2293 = vadd.f32 0.0, %v2292
        %v2294 = vpop.f32.mrb[0].mxu0
        %v2295 = vadd.f32 0.0, %v2294
        %v2296 = vpop.f32.mrb[0].mxu0
        %v2297 = vadd.f32 0.0, %v2296
        %2298 = vmatprep.mubr.bf16.mxu0 %v830
        %2299 = vmatmul.mubr.bf16.gmra.mrb[0].mxu0 %v829
        %v2300 = vpop.f32.mrb[0].mxu0
        %v2301 = vadd.f32 0.0, %v2300
        %v2302 = vpop.f32.mrb[0].mxu0
        %v2303 = vadd.f32 0.0, %v2302
        %v2304 = vpop.f32.mrb[0].mxu0
        %v2305 = vadd.f32 0.0, %v2304
        %v2306 = vpop.f32.mrb[0].mxu0
        %v2307 = vadd.f32 0.0, %v2306
        %2308 = vdwg.mxu0
        %2309 = vmatprep.subr.bf16.mxu0 %v1541
        %2310 = vmatpush1.bf16.xpose.msra.mxu0 %v1540
        %2311 = vmatprep.subr.bf16.mxu0 %v1545
        %2312 = vmatpush1.bf16.xpose.msra.mxu0 %v1544
        %2313 = vmatprep.subr.bf16.mxu0 %v1549
        %2314 = vmatpush1.bf16.xpose.msra.mxu0 %v1548
        %2315 = vmatprep.subr.bf16.mxu0 %v1553
        %2316 = vmatpush1.bf16.xpose.msra.mxu0 %v1552
        %2317 = vmatprep.subr.bf16.mxu0 %v1557
        %2318 = vmatpush1.bf16.xpose.msra.mxu0 %v1556
        %2319 = vmatprep.subr.bf16.mxu0 %v1561
        %2320 = vmatpush1.bf16.xpose.msra.mxu0 %v1560
        %2321 = vmatprep.subr.bf16.mxu0 %v1565
        %2322 = vmatpush1.bf16.xpose.msra.mxu0 %v1564
        %2323 = vmatprep.subr.bf16.mxu0 %v1569
        %2324 = vmatpush1.bf16.xpose.msra.mxu0 %v1568
        %2325 = vmatprep.subr.bf16.mxu0 %v1573
        %2326 = vmatpush1.bf16.xpose.msra.mxu0 %v1572
        %2327 = vmatprep.subr.bf16.mxu0 %v1577
        %2328 = vmatpush1.bf16.xpose.msra.mxu0 %v1576
        %2329 = vmatprep.subr.bf16.mxu0 %v1581
        %2330 = vmatpush1.bf16.xpose.msra.mxu0 %v1580
        %2331 = vmatprep.subr.bf16.mxu0 %v1585
        %2332 = vmatpush1.bf16.xpose.msra.mxu0 %v1584
        %2333 = vmatprep.subr.bf16.mxu0 %v1589
        %2334 = vmatpush1.bf16.xpose.msra.mxu0 %v1588
        %2335 = vmatprep.subr.bf16.mxu0 %v1593
        %2336 = vmatpush1.bf16.xpose.msra.mxu0 %v1592
        %2337 = vmatprep.subr.bf16.mxu0 %v1597
        %2338 = vmatpush1.bf16.xpose.msra.mxu0 %v1596
        %2339 = vmatprep.subr.bf16.mxu0 %v1601
        %2340 = vmatpush1.bf16.xpose.msra.mxu0 %v1600
        %2341 = vmatprep.mubr.bf16.mxu0 %v772
        %2342 = vmatmul.mubr.bf16.gmra.mrb[0].mxu0 %v771
        %v2343 = vpop.f32.mrb[0].mxu0
        %v2344 = vadd.f32 %v2151, %v2343
        %v2345 = vpop.f32.mrb[0].mxu0
        %v2346 = vadd.f32 %v2153, %v2345
        %v2347 = vpop.f32.mrb[0].mxu0
        %v2348 = vadd.f32 %v2155, %v2347
        %v2349 = vpop.f32.mrb[0].mxu0
        %v2350 = vadd.f32 %v2157, %v2349
        %2351 = vmatprep.mubr.bf16.mxu0 %v776
        %2352 = vmatmul.mubr.bf16.gmra.mrb[0].mxu0 %v775
        %v2353 = vpop.f32.mrb[0].mxu0
        %v2354 = vadd.f32 %v2161, %v2353
        %v2355 = vpop.f32.mrb[0].mxu0
        %v2356 = vadd.f32 %v2163, %v2355
        %v2357 = vpop.f32.mrb[0].mxu0
        %v2358 = vadd.f32 %v2165, %v2357
        %v2359 = vpop.f32.mrb[0].mxu0
        %v2360 = vadd.f32 %v2167, %v2359
        %2361 = vmatprep.mubr.bf16.mxu0 %v780
        %2362 = vmatmul.mubr.bf16.gmra.mrb[0].mxu0 %v779
        %v2363 = vpop.f32.mrb[0].mxu0
        %v2364 = vadd.f32 %v2171, %v2363
        %v2365 = vpop.f32.mrb[0].mxu0
        %v2366 = vadd.f32 %v2173, %v2365
        %v2367 = vpop.f32.mrb[0].mxu0
        %v2368 = vadd.f32 %v2175, %v2367
        %v2369 = vpop.f32.mrb[0].mxu0
        %v2370 = vadd.f32 %v2177, %v2369
        %2371 = vmatprep.mubr.bf16.mxu0 %v784
        %2372 = vmatmul.mubr.bf16.gmra.mrb[0].mxu0 %v783
        %v2373 = vpop.f32.mrb[0].mxu0
        %v2374 = vadd.f32 %v2181, %v2373
        %v2375 = vpop.f32.mrb[0].mxu0
        %v2376 = vadd.f32 %v2183, %v2375
        %v2377 = vpop.f32.mrb[0].mxu0
        %v2378 = vadd.f32 %v2185, %v2377
        %v2379 = vpop.f32.mrb[0].mxu0
        %v2380 = vadd.f32 %v2187, %v2379
        %2381 = vmatprep.mubr.bf16.mxu0 %v788
        %2382 = vmatmul.mubr.bf16.gmra.mrb[0].mxu0 %v787
        %v2383 = vpop.f32.mrb[0].mxu0
        %v2384 = vadd.f32 %v2191, %v2383
        %v2385 = vpop.f32.mrb[0].mxu0
        %v2386 = vadd.f32 %v2193, %v2385
        %v2387 = vpop.f32.mrb[0].mxu0
        %v2388 = vadd.f32 %v2195, %v2387
        %v2389 = vpop.f32.mrb[0].mxu0
        %v2390 = vadd.f32 %v2197, %v2389
        %2391 = vmatprep.mubr.bf16.mxu0 %v792
        %2392 = vmatmul.mubr.bf16.gmra.mrb[0].mxu0 %v791
        %v2393 = vpop.f32.mrb[0].mxu0
        %v2394 = vadd.f32 %v2201, %v2393
        %v2395 = vpop.f32.mrb[0].mxu0
        %v2396 = vadd.f32 %v2203, %v2395
        %v2397 = vpop.f32.mrb[0].mxu0
        %v2398 = vadd.f32 %v2205, %v2397
        %v2399 = vpop.f32.mrb[0].mxu0
        %v2400 = vadd.f32 %v2207, %v2399
        %2401 = vmatprep.mubr.bf16.mxu0 %v796
        %2402 = vmatmul.mubr.bf16.gmra.mrb[0].mxu0 %v795
        %v2403 = vpop.f32.mrb[0].mxu0
        %v2404 = vadd.f32 %v2211, %v2403
        %v2405 = vpop.f32.mrb[0].mxu0
        %v2406 = vadd.f32 %v2213, %v2405
        %v2407 = vpop.f32.mrb[0].mxu0
        %v2408 = vadd.f32 %v2215, %v2407
        %v2409 = vpop.f32.mrb[0].mxu0
        %v2410 = vadd.f32 %v2217, %v2409
        %2411 = vmatprep.mubr.bf16.mxu0 %v800
        %2412 = vmatmul.mubr.bf16.gmra.mrb[0].mxu0 %v799
        %v2413 = vpop.f32.mrb[0].mxu0
        %v2414 = vadd.f32 %v2221, %v2413
        %v2415 = vpop.f32.mrb[0].mxu0
        %v2416 = vadd.f32 %v2223, %v2415
        %v2417 = vpop.f32.mrb[0].mxu0
        %v2418 = vadd.f32 %v2225, %v2417
        %v2419 = vpop.f32.mrb[0].mxu0
        %v2420 = vadd.f32 %v2227, %v2419
        %2421 = vmatprep.mubr.bf16.mxu0 %v804
        %2422 = vmatmul.mubr.bf16.gmra.mrb[0].mxu0 %v803
        %v2423 = vpop.f32.mrb[0].mxu0
        %v2424 = vadd.f32 %v2231, %v2423
        %v2425 = vpop.f32.mrb[0].mxu0
        %v2426 = vadd.f32 %v2233, %v2425
        %v2427 = vpop.f32.mrb[0].mxu0
        %v2428 = vadd.f32 %v2235, %v2427
        %v2429 = vpop.f32.mrb[0].mxu0
        %v2430 = vadd.f32 %v2237, %v2429
        %2431 = vmatprep.mubr.bf16.mxu0 %v808
        %2432 = vmatmul.mubr.bf16.gmra.mrb[0].mxu0 %v807
        %v2433 = vpop.f32.mrb[0].mxu0
        %v2434 = vadd.f32 %v2241, %v2433
        %v2435 = vpop.f32.mrb[0].mxu0
        %v2436 = vadd.f32 %v2243, %v2435
        %v2437 = vpop.f32.mrb[0].mxu0
        %v2438 = vadd.f32 %v2245, %v2437
        %v2439 = vpop.f32.mrb[0].mxu0
        %v2440 = vadd.f32 %v2247, %v2439
        %2441 = vmatprep.mubr.bf16.mxu0 %v812
        %2442 = vmatmul.mubr.bf16.gmra.mrb[0].mxu0 %v811
        %v2443 = vpop.f32.mrb[0].mxu0
        %v2444 = vadd.f32 %v2251, %v2443
        %v2445 = vpop.f32.mrb[0].mxu0
        %v2446 = vadd.f32 %v2253, %v2445
        %v2447 = vpop.f32.mrb[0].mxu0
        %v2448 = vadd.f32 %v2255, %v2447
        %v2449 = vpop.f32.mrb[0].mxu0
        %v2450 = vadd.f32 %v2257, %v2449
        %2451 = vmatprep.mubr.bf16.mxu0 %v816
        %2452 = vmatmul.mubr.bf16.gmra.mrb[0].mxu0 %v815
        %v2453 = vpop.f32.mrb[0].mxu0
        %v2454 = vadd.f32 %v2261, %v2453
        %v2455 = vpop.f32.mrb[0].mxu0
        %v2456 = vadd.f32 %v2263, %v2455
        %v2457 = vpop.f32.mrb[0].mxu0
        %v2458 = vadd.f32 %v2265, %v2457
        %v2459 = vpop.f32.mrb[0].mxu0
        %v2460 = vadd.f32 %v2267, %v2459
        %2461 = vmatprep.mubr.bf16.mxu0 %v820
        %2462 = vmatmul.mubr.bf16.gmra.mrb[0].mxu0 %v819
        %v2463 = vpop.f32.mrb[0].mxu0
        %v2464 = vadd.f32 %v2271, %v2463
        %v2465 = vpop.f32.mrb[0].mxu0
        %v2466 = vadd.f32 %v2273, %v2465
        %v2467 = vpop.f32.mrb[0].mxu0
        %v2468 = vadd.f32 %v2275, %v2467
        %v2469 = vpop.f32.mrb[0].mxu0
        %v2470 = vadd.f32 %v2277, %v2469
        %2471 = vmatprep.mubr.bf16.mxu0 %v824
        %2472 = vmatmul.mubr.bf16.gmra.mrb[0].mxu0 %v823
        %v2473 = vpop.f32.mrb[0].mxu0
        %v2474 = vadd.f32 %v2281, %v2473
        %v2475 = vpop.f32.mrb[0].mxu0
        %v2476 = vadd.f32 %v2283, %v2475
        %v2477 = vpop.f32.mrb[0].mxu0
        %v2478 = vadd.f32 %v2285, %v2477
        %v2479 = vpop.f32.mrb[0].mxu0
        %v2480 = vadd.f32 %v2287, %v2479
        %2481 = vmatprep.mubr.bf16.mxu0 %v828
        %2482 = vmatmul.mubr.bf16.gmra.mrb[0].mxu0 %v827
        %v2483 = vpop.f32.mrb[0].mxu0
        %v2484 = vadd.f32 %v2291, %v2483
        %v2485 = vpop.f32.mrb[0].mxu0
        %v2486 = vadd.f32 %v2293, %v2485
        %v2487 = vpop.f32.mrb[0].mxu0
        %v2488 = vadd.f32 %v2295, %v2487
        %v2489 = vpop.f32.mrb[0].mxu0
        %v2490 = vadd.f32 %v2297, %v2489
        %2491 = vmatprep.mubr.bf16.mxu0 %v832
        %2492 = vmatmul.mubr.bf16.gmra.mrb[0].mxu0 %v831
        %v2493 = vpop.f32.mrb[0].mxu0
        %v2494 = vadd.f32 %v2301, %v2493
        %v2495 = vpop.f32.mrb[0].mxu0
        %v2496 = vadd.f32 %v2303, %v2495
        %v2497 = vpop.f32.mrb[0].mxu0
        %v2498 = vadd.f32 %v2305, %v2497
        %v2499 = vpop.f32.mrb[0].mxu0
        %v2500 = vadd.f32 %v2307, %v2499
        %2501 = vdwg.mxu0
        %v2503 = vlaneseq
        %v2504 = vshrl.u32 %v2503, 7
        %v2505 = vsub.s32 0, %v2504
        %v2506 = vrot.slane %v1089, %v2505
        %v2507 = vlaneseq
        %v2508 = vshrl.u32 %v2507, 7
        %v2509 = vsub.s32 1, %v2508
        %v2510 = vrot.slane %v1089, %v2509
        %v2511 = vlaneseq
        %v2512 = vshrl.u32 %v2511, 7
        %v2513 = vsub.s32 2, %v2512
        %v2514 = vrot.slane %v1089, %v2513
        %v2515 = vlaneseq
        %v2516 = vshrl.u32 %v2515, 7
        %v2517 = vsub.s32 3, %v2516
        %v2518 = vrot.slane %v1089, %v2517
        %v2523 = vsub.f32 %v2506, %v1958
        %v2524 = vsub.f32 %v2510, %v1960
        %v2525 = vsub.f32 %v2514, %v2344
        %v2526 = vsub.f32 %v2518, %v2346
        %v2527 = vsub.f32 %v2506, %v1962
        %v2528 = vsub.f32 %v2510, %v1964
        %v2529 = vsub.f32 %v2514, %v2348
        %v2530 = vsub.f32 %v2518, %v2350
        %v2531 = vsub.f32 %v2506, %v1968
        %v2532 = vsub.f32 %v2510, %v1970
        %v2533 = vsub.f32 %v2514, %v2354
        %v2534 = vsub.f32 %v2518, %v2356
        %v2535 = vsub.f32 %v2506, %v1972
        %v2536 = vsub.f32 %v2510, %v1974
        %v2537 = vsub.f32 %v2514, %v2358
        %v2538 = vsub.f32 %v2518, %v2360
        %v2539 = vsub.f32 %v2506, %v1978
        %v2540 = vsub.f32 %v2510, %v1980
        %v2541 = vsub.f32 %v2514, %v2364
        %v2542 = vsub.f32 %v2518, %v2366
        %v2543 = vsub.f32 %v2506, %v1982
        %v2544 = vsub.f32 %v2510, %v1984
        %v2545 = vsub.f32 %v2514, %v2368
        %v2546 = vsub.f32 %v2518, %v2370
        %v2547 = vsub.f32 %v2506, %v1988
        %v2548 = vsub.f32 %v2510, %v1990
        %v2549 = vsub.f32 %v2514, %v2374
        %v2550 = vsub.f32 %v2518, %v2376
        %v2551 = vsub.f32 %v2506, %v1992
        %v2552 = vsub.f32 %v2510, %v1994
        %v2553 = vsub.f32 %v2514, %v2378
        %v2554 = vsub.f32 %v2518, %v2380
        %v2555 = vsub.f32 %v2506, %v1998
        %v2556 = vsub.f32 %v2510, %v2000
        %v2557 = vsub.f32 %v2514, %v2384
        %v2558 = vsub.f32 %v2518, %v2386
        %v2559 = vsub.f32 %v2506, %v2002
        %v2560 = vsub.f32 %v2510, %v2004
        %v2561 = vsub.f32 %v2514, %v2388
        %v2562 = vsub.f32 %v2518, %v2390
        %v2563 = vsub.f32 %v2506, %v2008
        %v2564 = vsub.f32 %v2510, %v2010
        %v2565 = vsub.f32 %v2514, %v2394
        %v2566 = vsub.f32 %v2518, %v2396
        %v2567 = vsub.f32 %v2506, %v2012
        %v2568 = vsub.f32 %v2510, %v2014
        %v2569 = vsub.f32 %v2514, %v2398
        %v2570 = vsub.f32 %v2518, %v2400
        %v2571 = vsub.f32 %v2506, %v2018
        %v2572 = vsub.f32 %v2510, %v2020
        %v2573 = vsub.f32 %v2514, %v2404
        %v2574 = vsub.f32 %v2518, %v2406
        %v2575 = vsub.f32 %v2506, %v2022
        %v2576 = vsub.f32 %v2510, %v2024
        %v2577 = vsub.f32 %v2514, %v2408
        %v2578 = vsub.f32 %v2518, %v2410
        %v2579 = vsub.f32 %v2506, %v2028
        %v2580 = vsub.f32 %v2510, %v2030
        %v2581 = vsub.f32 %v2514, %v2414
        %v2582 = vsub.f32 %v2518, %v2416
        %v2583 = vsub.f32 %v2506, %v2032
        %v2584 = vsub.f32 %v2510, %v2034
        %v2585 = vsub.f32 %v2514, %v2418
        %v2586 = vsub.f32 %v2518, %v2420
        %v2587 = vsub.f32 %v2506, %v2038
        %v2588 = vsub.f32 %v2510, %v2040
        %v2589 = vsub.f32 %v2514, %v2424
        %v2590 = vsub.f32 %v2518, %v2426
        %v2591 = vsub.f32 %v2506, %v2042
        %v2592 = vsub.f32 %v2510, %v2044
        %v2593 = vsub.f32 %v2514, %v2428
        %v2594 = vsub.f32 %v2518, %v2430
        %v2595 = vsub.f32 %v2506, %v2048
        %v2596 = vsub.f32 %v2510, %v2050
        %v2597 = vsub.f32 %v2514, %v2434
        %v2598 = vsub.f32 %v2518, %v2436
        %v2599 = vsub.f32 %v2506, %v2052
        %v2600 = vsub.f32 %v2510, %v2054
        %v2601 = vsub.f32 %v2514, %v2438
        %v2602 = vsub.f32 %v2518, %v2440
        %v2603 = vsub.f32 %v2506, %v2058
        %v2604 = vsub.f32 %v2510, %v2060
        %v2605 = vsub.f32 %v2514, %v2444
        %v2606 = vsub.f32 %v2518, %v2446
        %v2607 = vsub.f32 %v2506, %v2062
        %v2608 = vsub.f32 %v2510, %v2064
        %v2609 = vsub.f32 %v2514, %v2448
        %v2610 = vsub.f32 %v2518, %v2450
        %v2611 = vsub.f32 %v2506, %v2068
        %v2612 = vsub.f32 %v2510, %v2070
        %v2613 = vsub.f32 %v2514, %v2454
        %v2614 = vsub.f32 %v2518, %v2456
        %v2615 = vsub.f32 %v2506, %v2072
        %v2616 = vsub.f32 %v2510, %v2074
        %v2617 = vsub.f32 %v2514, %v2458
        %v2618 = vsub.f32 %v2518, %v2460
        %v2619 = vsub.f32 %v2506, %v2078
        %v2620 = vsub.f32 %v2510, %v2080
        %v2621 = vsub.f32 %v2514, %v2464
        %v2622 = vsub.f32 %v2518, %v2466
        %v2623 = vsub.f32 %v2506, %v2082
        %v2624 = vsub.f32 %v2510, %v2084
        %v2625 = vsub.f32 %v2514, %v2468
        %v2626 = vsub.f32 %v2518, %v2470
        %v2627 = vsub.f32 %v2506, %v2088
        %v2628 = vsub.f32 %v2510, %v2090
        %v2629 = vsub.f32 %v2514, %v2474
        %v2630 = vsub.f32 %v2518, %v2476
        %v2631 = vsub.f32 %v2506, %v2092
        %v2632 = vsub.f32 %v2510, %v2094
        %v2633 = vsub.f32 %v2514, %v2478
        %v2634 = vsub.f32 %v2518, %v2480
        %v2635 = vsub.f32 %v2506, %v2098
        %v2636 = vsub.f32 %v2510, %v2100
        %v2637 = vsub.f32 %v2514, %v2484
        %v2638 = vsub.f32 %v2518, %v2486
        %v2639 = vsub.f32 %v2506, %v2102
        %v2640 = vsub.f32 %v2510, %v2104
        %v2641 = vsub.f32 %v2514, %v2488
        %v2642 = vsub.f32 %v2518, %v2490
        %v2643 = vsub.f32 %v2506, %v2108
        %v2644 = vsub.f32 %v2510, %v2110
        %v2645 = vsub.f32 %v2514, %v2494
        %v2646 = vsub.f32 %v2518, %v2496
        %v2647 = vsub.f32 %v2506, %v2112
        %v2648 = vsub.f32 %v2510, %v2114
        %v2649 = vsub.f32 %v2514, %v2498
        %v2650 = vsub.f32 %v2518, %v2500
        %v2651 = vlaneseq
        %v2652 = vand.u32 %v2651, 127
        %v2653 = vadd.s32 %v2652, 128
        %v2654 = vadd.s32 %v2652, 256
        %v2655 = vadd.s32 %v2652, 384
        %v2656 = vcvt.s32.f32 %v2652
        %v2657 = vcvt.s32.f32 %v2653
        %v2658 = vcvt.s32.f32 %v2654
        %v2659 = vcvt.s32.f32 %v2655
        %v2660 = vmin.f32 %v2523, %v2524
        %v2661 = vmin.f32 %v2660, %v2525
        %v2662 = vmin.f32 %v2661, %v2526
        %2663 = vmin.xlane.f32.xlu0 %v2662
        %v2664 = vpop.xlane.xlu0 %2663
        %v2665 = vmin.f32 %v2527, %v2528
        %v2666 = vmin.f32 %v2665, %v2529
        %v2667 = vmin.f32 %v2666, %v2530
        %2668 = vmin.xlane.f32.xlu0 %v2667
        %v2669 = vpop.xlane.xlu0 %2668
        %v2670 = vmin.f32 %v2531, %v2532
        %v2671 = vmin.f32 %v2670, %v2533
        %v2672 = vmin.f32 %v2671, %v2534
        %2673 = vmin.xlane.f32.xlu0 %v2672
        %v2674 = vpop.xlane.xlu0 %2673
        %v2675 = vmin.f32 %v2535, %v2536
        %v2676 = vmin.f32 %v2675, %v2537
        %v2677 = vmin.f32 %v2676, %v2538
        %2678 = vmin.xlane.f32.xlu0 %v2677
        %v2679 = vpop.xlane.xlu0 %2678
        %v2680 = vmin.f32 %v2539, %v2540
        %v2681 = vmin.f32 %v2680, %v2541
        %v2682 = vmin.f32 %v2681, %v2542
        %2683 = vmin.xlane.f32.xlu0 %v2682
        %v2684 = vpop.xlane.xlu0 %2683
        %v2685 = vmin.f32 %v2543, %v2544
        %v2686 = vmin.f32 %v2685, %v2545
        %v2687 = vmin.f32 %v2686, %v2546
        %2688 = vmin.xlane.f32.xlu0 %v2687
        %v2689 = vpop.xlane.xlu0 %2688
        %v2690 = vmin.f32 %v2547, %v2548
        %v2691 = vmin.f32 %v2690, %v2549
        %v2692 = vmin.f32 %v2691, %v2550
        %2693 = vmin.xlane.f32.xlu0 %v2692
        %v2694 = vpop.xlane.xlu0 %2693
        %v2695 = vmin.f32 %v2551, %v2552
        %v2696 = vmin.f32 %v2695, %v2553
        %v2697 = vmin.f32 %v2696, %v2554
        %2698 = vmin.xlane.f32.xlu0 %v2697
        %v2699 = vpop.xlane.xlu0 %2698
        %v2700 = vmin.f32 %v2555, %v2556
        %v2701 = vmin.f32 %v2700, %v2557
        %v2702 = vmin.f32 %v2701, %v2558
        %2703 = vmin.xlane.f32.xlu0 %v2702
        %v2704 = vpop.xlane.xlu0 %2703
        %v2705 = vmin.f32 %v2559, %v2560
        %v2706 = vmin.f32 %v2705, %v2561
        %v2707 = vmin.f32 %v2706, %v2562
        %2708 = vmin.xlane.f32.xlu0 %v2707
        %v2709 = vpop.xlane.xlu0 %2708
        %v2710 = vmin.f32 %v2563, %v2564
        %v2711 = vmin.f32 %v2710, %v2565
        %v2712 = vmin.f32 %v2711, %v2566
        %2713 = vmin.xlane.f32.xlu0 %v2712
        %v2714 = vpop.xlane.xlu0 %2713
        %v2715 = vmin.f32 %v2567, %v2568
        %v2716 = vmin.f32 %v2715, %v2569
        %v2717 = vmin.f32 %v2716, %v2570
        %2718 = vmin.xlane.f32.xlu0 %v2717
        %v2719 = vpop.xlane.xlu0 %2718
        %v2720 = vmin.f32 %v2571, %v2572
        %v2721 = vmin.f32 %v2720, %v2573
        %v2722 = vmin.f32 %v2721, %v2574
        %2723 = vmin.xlane.f32.xlu0 %v2722
        %v2724 = vpop.xlane.xlu0 %2723
        %v2725 = vmin.f32 %v2575, %v2576
        %v2726 = vmin.f32 %v2725, %v2577
        %v2727 = vmin.f32 %v2726, %v2578
        %2728 = vmin.xlane.f32.xlu0 %v2727
        %v2729 = vpop.xlane.xlu0 %2728
        %v2730 = vmin.f32 %v2579, %v2580
        %v2731 = vmin.f32 %v2730, %v2581
        %v2732 = vmin.f32 %v2731, %v2582
        %2733 = vmin.xlane.f32.xlu0 %v2732
        %v2734 = vpop.xlane.xlu0 %2733
        %v2735 = vmin.f32 %v2583, %v2584
        %v2736 = vmin.f32 %v2735, %v2585
        %v2737 = vmin.f32 %v2736, %v2586
        %2738 = vmin.xlane.f32.xlu0 %v2737
        %v2739 = vpop.xlane.xlu0 %2738
        %v2740 = vmin.f32 %v2587, %v2588
        %v2741 = vmin.f32 %v2740, %v2589
        %v2742 = vmin.f32 %v2741, %v2590
        %2743 = vmin.xlane.f32.xlu0 %v2742
        %v2744 = vpop.xlane.xlu0 %2743
        %v2745 = vmin.f32 %v2591, %v2592
        %v2746 = vmin.f32 %v2745, %v2593
        %v2747 = vmin.f32 %v2746, %v2594
        %2748 = vmin.xlane.f32.xlu0 %v2747
        %v2749 = vpop.xlane.xlu0 %2748
        %v2750 = vmin.f32 %v2595, %v2596
        %v2751 = vmin.f32 %v2750, %v2597
        %v2752 = vmin.f32 %v2751, %v2598
        %2753 = vmin.xlane.f32.xlu0 %v2752
        %v2754 = vpop.xlane.xlu0 %2753
        %v2755 = vmin.f32 %v2599, %v2600
        %v2756 = vmin.f32 %v2755, %v2601
        %v2757 = vmin.f32 %v2756, %v2602
        %2758 = vmin.xlane.f32.xlu0 %v2757
        %v2759 = vpop.xlane.xlu0 %2758
        %v2760 = vmin.f32 %v2603, %v2604
        %v2761 = vmin.f32 %v2760, %v2605
        %v2762 = vmin.f32 %v2761, %v2606
        %2763 = vmin.xlane.f32.xlu0 %v2762
        %v2764 = vpop.xlane.xlu0 %2763
        %v2765 = vmin.f32 %v2607, %v2608
        %v2766 = vmin.f32 %v2765, %v2609
        %v2767 = vmin.f32 %v2766, %v2610
        %2768 = vmin.xlane.f32.xlu0 %v2767
        %v2769 = vpop.xlane.xlu0 %2768
        %v2770 = vmin.f32 %v2611, %v2612
        %v2771 = vmin.f32 %v2770, %v2613
        %v2772 = vmin.f32 %v2771, %v2614
        %2773 = vmin.xlane.f32.xlu0 %v2772
        %v2774 = vpop.xlane.xlu0 %2773
        %v2775 = vmin.f32 %v2615, %v2616
        %v2776 = vmin.f32 %v2775, %v2617
        %v2777 = vmin.f32 %v2776, %v2618
        %2778 = vmin.xlane.f32.xlu0 %v2777
        %v2779 = vpop.xlane.xlu0 %2778
        %v2780 = vmin.f32 %v2619, %v2620
        %v2781 = vmin.f32 %v2780, %v2621
        %v2782 = vmin.f32 %v2781, %v2622
        %2783 = vmin.xlane.f32.xlu0 %v2782
        %v2784 = vpop.xlane.xlu0 %2783
        %v2785 = vmin.f32 %v2623, %v2624
        %v2786 = vmin.f32 %v2785, %v2625
        %v2787 = vmin.f32 %v2786, %v2626
        %2788 = vmin.xlane.f32.xlu0 %v2787
        %v2789 = vpop.xlane.xlu0 %2788
        %v2790 = vmin.f32 %v2627, %v2628
        %v2791 = vmin.f32 %v2790, %v2629
        %v2792 = vmin.f32 %v2791, %v2630
        %2793 = vmin.xlane.f32.xlu0 %v2792
        %v2794 = vpop.xlane.xlu0 %2793
        %v2795 = vmin.f32 %v2631, %v2632
        %v2796 = vmin.f32 %v2795, %v2633
        %v2797 = vmin.f32 %v2796, %v2634
        %2798 = vmin.xlane.f32.xlu0 %v2797
        %v2799 = vpop.xlane.xlu0 %2798
        %v2800 = vmin.f32 %v2635, %v2636
        %v2801 = vmin.f32 %v2800, %v2637
        %v2802 = vmin.f32 %v2801, %v2638
        %2803 = vmin.xlane.f32.xlu0 %v2802
        %v2804 = vpop.xlane.xlu0 %2803
        %v2805 = vmin.f32 %v2639, %v2640
        %v2806 = vmin.f32 %v2805, %v2641
        %v2807 = vmin.f32 %v2806, %v2642
        %2808 = vmin.xlane.f32.xlu0 %v2807
        %v2809 = vpop.xlane.xlu0 %2808
        %v2810 = vmin.f32 %v2643, %v2644
        %v2811 = vmin.f32 %v2810, %v2645
        %v2812 = vmin.f32 %v2811, %v2646
        %2813 = vmin.xlane.f32.xlu0 %v2812
        %v2814 = vpop.xlane.xlu0 %2813
        %v2815 = vmin.f32 %v2647, %v2648
        %v2816 = vmin.f32 %v2815, %v2649
        %v2817 = vmin.f32 %v2816, %v2650
        %2818 = vmin.xlane.f32.xlu0 %v2817
        %v2819 = vpop.xlane.xlu0 %2818
        %vm2820 = vcmp.eq.f32.partialorder %v2523, %v2664
        %vm2821 = vcmp.eq.f32.partialorder %v2524, %v2664
        %vm2822 = vcmp.eq.f32.partialorder %v2525, %v2664
        %vm2823 = vcmp.eq.f32.partialorder %v2526, %v2664
        %vm2824 = vcmp.eq.f32.partialorder %v2527, %v2669
        %vm2825 = vcmp.eq.f32.partialorder %v2528, %v2669
        %vm2826 = vcmp.eq.f32.partialorder %v2529, %v2669
        %vm2827 = vcmp.eq.f32.partialorder %v2530, %v2669
        %vm2828 = vcmp.eq.f32.partialorder %v2531, %v2674
        %vm2829 = vcmp.eq.f32.partialorder %v2532, %v2674
        %vm2830 = vcmp.eq.f32.partialorder %v2533, %v2674
        %vm2831 = vcmp.eq.f32.partialorder %v2534, %v2674
        %vm2832 = vcmp.eq.f32.partialorder %v2535, %v2679
        %vm2833 = vcmp.eq.f32.partialorder %v2536, %v2679
        %vm2834 = vcmp.eq.f32.partialorder %v2537, %v2679
        %vm2835 = vcmp.eq.f32.partialorder %v2538, %v2679
        %vm2836 = vcmp.eq.f32.partialorder %v2539, %v2684
        %vm2837 = vcmp.eq.f32.partialorder %v2540, %v2684
        %vm2838 = vcmp.eq.f32.partialorder %v2541, %v2684
        %vm2839 = vcmp.eq.f32.partialorder %v2542, %v2684
        %vm2840 = vcmp.eq.f32.partialorder %v2543, %v2689
        %vm2841 = vcmp.eq.f32.partialorder %v2544, %v2689
        %vm2842 = vcmp.eq.f32.partialorder %v2545, %v2689
        %vm2843 = vcmp.eq.f32.partialorder %v2546, %v2689
        %vm2844 = vcmp.eq.f32.partialorder %v2547, %v2694
        %vm2845 = vcmp.eq.f32.partialorder %v2548, %v2694
        %vm2846 = vcmp.eq.f32.partialorder %v2549, %v2694
        %vm2847 = vcmp.eq.f32.partialorder %v2550, %v2694
        %vm2848 = vcmp.eq.f32.partialorder %v2551, %v2699
        %vm2849 = vcmp.eq.f32.partialorder %v2552, %v2699
        %vm2850 = vcmp.eq.f32.partialorder %v2553, %v2699
        %vm2851 = vcmp.eq.f32.partialorder %v2554, %v2699
        %vm2852 = vcmp.eq.f32.partialorder %v2555, %v2704
        %vm2853 = vcmp.eq.f32.partialorder %v2556, %v2704
        %vm2854 = vcmp.eq.f32.partialorder %v2557, %v2704
        %vm2855 = vcmp.eq.f32.partialorder %v2558, %v2704
        %vm2856 = vcmp.eq.f32.partialorder %v2559, %v2709
        %vm2857 = vcmp.eq.f32.partialorder %v2560, %v2709
        %vm2858 = vcmp.eq.f32.partialorder %v2561, %v2709
        %vm2859 = vcmp.eq.f32.partialorder %v2562, %v2709
        %vm2860 = vcmp.eq.f32.partialorder %v2563, %v2714
        %vm2861 = vcmp.eq.f32.partialorder %v2564, %v2714
        %vm2862 = vcmp.eq.f32.partialorder %v2565, %v2714
        %vm2863 = vcmp.eq.f32.partialorder %v2566, %v2714
        %vm2864 = vcmp.eq.f32.partialorder %v2567, %v2719
        %vm2865 = vcmp.eq.f32.partialorder %v2568, %v2719
        %vm2866 = vcmp.eq.f32.partialorder %v2569, %v2719
        %vm2867 = vcmp.eq.f32.partialorder %v2570, %v2719
        %vm2868 = vcmp.eq.f32.partialorder %v2571, %v2724
        %vm2869 = vcmp.eq.f32.partialorder %v2572, %v2724
        %vm2870 = vcmp.eq.f32.partialorder %v2573, %v2724
        %vm2871 = vcmp.eq.f32.partialorder %v2574, %v2724
        %vm2872 = vcmp.eq.f32.partialorder %v2575, %v2729
        %vm2873 = vcmp.eq.f32.partialorder %v2576, %v2729
        %vm2874 = vcmp.eq.f32.partialorder %v2577, %v2729
        %vm2875 = vcmp.eq.f32.partialorder %v2578, %v2729
        %vm2876 = vcmp.eq.f32.partialorder %v2579, %v2734
        %vm2877 = vcmp.eq.f32.partialorder %v2580, %v2734
        %vm2878 = vcmp.eq.f32.partialorder %v2581, %v2734
        %vm2879 = vcmp.eq.f32.partialorder %v2582, %v2734
        %vm2880 = vcmp.eq.f32.partialorder %v2583, %v2739
        %vm2881 = vcmp.eq.f32.partialorder %v2584, %v2739
        %vm2882 = vcmp.eq.f32.partialorder %v2585, %v2739
        %vm2883 = vcmp.eq.f32.partialorder %v2586, %v2739
        %vm2884 = vcmp.eq.f32.partialorder %v2587, %v2744
        %vm2885 = vcmp.eq.f32.partialorder %v2588, %v2744
        %vm2886 = vcmp.eq.f32.partialorder %v2589, %v2744
        %vm2887 = vcmp.eq.f32.partialorder %v2590, %v2744
        %vm2888 = vcmp.eq.f32.partialorder %v2591, %v2749
        %vm2889 = vcmp.eq.f32.partialorder %v2592, %v2749
        %vm2890 = vcmp.eq.f32.partialorder %v2593, %v2749
        %vm2891 = vcmp.eq.f32.partialorder %v2594, %v2749
        %vm2892 = vcmp.eq.f32.partialorder %v2595, %v2754
        %vm2893 = vcmp.eq.f32.partialorder %v2596, %v2754
        %vm2894 = vcmp.eq.f32.partialorder %v2597, %v2754
        %vm2895 = vcmp.eq.f32.partialorder %v2598, %v2754
        %vm2896 = vcmp.eq.f32.partialorder %v2599, %v2759
        %vm2897 = vcmp.eq.f32.partialorder %v2600, %v2759
        %vm2898 = vcmp.eq.f32.partialorder %v2601, %v2759
        %vm2899 = vcmp.eq.f32.partialorder %v2602, %v2759
        %vm2900 = vcmp.eq.f32.partialorder %v2603, %v2764
        %vm2901 = vcmp.eq.f32.partialorder %v2604, %v2764
        %vm2902 = vcmp.eq.f32.partialorder %v2605, %v2764
        %vm2903 = vcmp.eq.f32.partialorder %v2606, %v2764
        %vm2904 = vcmp.eq.f32.partialorder %v2607, %v2769
        %vm2905 = vcmp.eq.f32.partialorder %v2608, %v2769
        %vm2906 = vcmp.eq.f32.partialorder %v2609, %v2769
        %vm2907 = vcmp.eq.f32.partialorder %v2610, %v2769
        %vm2908 = vcmp.eq.f32.partialorder %v2611, %v2774
        %vm2909 = vcmp.eq.f32.partialorder %v2612, %v2774
        %vm2910 = vcmp.eq.f32.partialorder %v2613, %v2774
        %vm2911 = vcmp.eq.f32.partialorder %v2614, %v2774
        %vm2912 = vcmp.eq.f32.partialorder %v2615, %v2779
        %vm2913 = vcmp.eq.f32.partialorder %v2616, %v2779
        %vm2914 = vcmp.eq.f32.partialorder %v2617, %v2779
        %vm2915 = vcmp.eq.f32.partialorder %v2618, %v2779
        %vm2916 = vcmp.eq.f32.partialorder %v2619, %v2784
        %vm2917 = vcmp.eq.f32.partialorder %v2620, %v2784
        %vm2918 = vcmp.eq.f32.partialorder %v2621, %v2784
        %vm2919 = vcmp.eq.f32.partialorder %v2622, %v2784
        %vm2920 = vcmp.eq.f32.partialorder %v2623, %v2789
        %vm2921 = vcmp.eq.f32.partialorder %v2624, %v2789
        %vm2922 = vcmp.eq.f32.partialorder %v2625, %v2789
        %vm2923 = vcmp.eq.f32.partialorder %v2626, %v2789
        %vm2924 = vcmp.eq.f32.partialorder %v2627, %v2794
        %vm2925 = vcmp.eq.f32.partialorder %v2628, %v2794
        %vm2926 = vcmp.eq.f32.partialorder %v2629, %v2794
        %vm2927 = vcmp.eq.f32.partialorder %v2630, %v2794
        %vm2928 = vcmp.eq.f32.partialorder %v2631, %v2799
        %vm2929 = vcmp.eq.f32.partialorder %v2632, %v2799
        %vm2930 = vcmp.eq.f32.partialorder %v2633, %v2799
        %vm2931 = vcmp.eq.f32.partialorder %v2634, %v2799
        %vm2932 = vcmp.eq.f32.partialorder %v2635, %v2804
        %vm2933 = vcmp.eq.f32.partialorder %v2636, %v2804
        %vm2934 = vcmp.eq.f32.partialorder %v2637, %v2804
        %vm2935 = vcmp.eq.f32.partialorder %v2638, %v2804
        %vm2936 = vcmp.eq.f32.partialorder %v2639, %v2809
        %vm2937 = vcmp.eq.f32.partialorder %v2640, %v2809
        %vm2938 = vcmp.eq.f32.partialorder %v2641, %v2809
        %vm2939 = vcmp.eq.f32.partialorder %v2642, %v2809
        %vm2940 = vcmp.eq.f32.partialorder %v2643, %v2814
        %vm2941 = vcmp.eq.f32.partialorder %v2644, %v2814
        %vm2942 = vcmp.eq.f32.partialorder %v2645, %v2814
        %vm2943 = vcmp.eq.f32.partialorder %v2646, %v2814
        %vm2944 = vcmp.eq.f32.partialorder %v2647, %v2819
        %vm2945 = vcmp.eq.f32.partialorder %v2648, %v2819
        %vm2946 = vcmp.eq.f32.partialorder %v2649, %v2819
        %vm2947 = vcmp.eq.f32.partialorder %v2650, %v2819
        %v2948 = vsel %vm2820, %v2656, 512.0
        %v2949 = vsel %vm2821, %v2657, 512.0
        %v2950 = vsel %vm2822, %v2658, 512.0
        %v2951 = vsel %vm2823, %v2659, 512.0
        %v2952 = vsel %vm2824, %v2656, 512.0
        %v2953 = vsel %vm2825, %v2657, 512.0
        %v2954 = vsel %vm2826, %v2658, 512.0
        %v2955 = vsel %vm2827, %v2659, 512.0
        %v2956 = vsel %vm2828, %v2656, 512.0
        %v2957 = vsel %vm2829, %v2657, 512.0
        %v2958 = vsel %vm2830, %v2658, 512.0
        %v2959 = vsel %vm2831, %v2659, 512.0
        %v2960 = vsel %vm2832, %v2656, 512.0
        %v2961 = vsel %vm2833, %v2657, 512.0
        %v2962 = vsel %vm2834, %v2658, 512.0
        %v2963 = vsel %vm2835, %v2659, 512.0
        %v2964 = vsel %vm2836, %v2656, 512.0
        %v2965 = vsel %vm2837, %v2657, 512.0
        %v2966 = vsel %vm2838, %v2658, 512.0
        %v2967 = vsel %vm2839, %v2659, 512.0
        %v2968 = vsel %vm2840, %v2656, 512.0
        %v2969 = vsel %vm2841, %v2657, 512.0
        %v2970 = vsel %vm2842, %v2658, 512.0
        %v2971 = vsel %vm2843, %v2659, 512.0
        %v2972 = vsel %vm2844, %v2656, 512.0
        %v2973 = vsel %vm2845, %v2657, 512.0
        %v2974 = vsel %vm2846, %v2658, 512.0
        %v2975 = vsel %vm2847, %v2659, 512.0
        %v2976 = vsel %vm2848, %v2656, 512.0
        %v2977 = vsel %vm2849, %v2657, 512.0
        %v2978 = vsel %vm2850, %v2658, 512.0
        %v2979 = vsel %vm2851, %v2659, 512.0
        %v2980 = vsel %vm2852, %v2656, 512.0
        %v2981 = vsel %vm2853, %v2657, 512.0
        %v2982 = vsel %vm2854, %v2658, 512.0
        %v2983 = vsel %vm2855, %v2659, 512.0
        %v2984 = vsel %vm2856, %v2656, 512.0
        %v2985 = vsel %vm2857, %v2657, 512.0
        %v2986 = vsel %vm2858, %v2658, 512.0
        %v2987 = vsel %vm2859, %v2659, 512.0
        %v2988 = vsel %vm2860, %v2656, 512.0
        %v2989 = vsel %vm2861, %v2657, 512.0
        %v2990 = vsel %vm2862, %v2658, 512.0
        %v2991 = vsel %vm2863, %v2659, 512.0
        %v2992 = vsel %vm2864, %v2656, 512.0
        %v2993 = vsel %vm2865, %v2657, 512.0
        %v2994 = vsel %vm2866, %v2658, 512.0
        %v2995 = vsel %vm2867, %v2659, 512.0
        %v2996 = vsel %vm2868, %v2656, 512.0
        %v2997 = vsel %vm2869, %v2657, 512.0
        %v2998 = vsel %vm2870, %v2658, 512.0
        %v2999 = vsel %vm2871, %v2659, 512.0
        %v3000 = vsel %vm2872, %v2656, 512.0
        %v3001 = vsel %vm2873, %v2657, 512.0
        %v3002 = vsel %vm2874, %v2658, 512.0
        %v3003 = vsel %vm2875, %v2659, 512.0
        %v3004 = vsel %vm2876, %v2656, 512.0
        %v3005 = vsel %vm2877, %v2657, 512.0
        %v3006 = vsel %vm2878, %v2658, 512.0
        %v3007 = vsel %vm2879, %v2659, 512.0
        %v3008 = vsel %vm2880, %v2656, 512.0
        %v3009 = vsel %vm2881, %v2657, 512.0
        %v3010 = vsel %vm2882, %v2658, 512.0
        %v3011 = vsel %vm2883, %v2659, 512.0
        %v3012 = vsel %vm2884, %v2656, 512.0
        %v3013 = vsel %vm2885, %v2657, 512.0
        %v3014 = vsel %vm2886, %v2658, 512.0
        %v3015 = vsel %vm2887, %v2659, 512.0
        %v3016 = vsel %vm2888, %v2656, 512.0
        %v3017 = vsel %vm2889, %v2657, 512.0
        %v3018 = vsel %vm2890, %v2658, 512.0
        %v3019 = vsel %vm2891, %v2659, 512.0
        %v3020 = vsel %vm2892, %v2656, 512.0
        %v3021 = vsel %vm2893, %v2657, 512.0
        %v3022 = vsel %vm2894, %v2658, 512.0
        %v3023 = vsel %vm2895, %v2659, 512.0
        %v3024 = vsel %vm2896, %v2656, 512.0
        %v3025 = vsel %vm2897, %v2657, 512.0
        %v3026 = vsel %vm2898, %v2658, 512.0
        %v3027 = vsel %vm2899, %v2659, 512.0
        %v3028 = vsel %vm2900, %v2656, 512.0
        %v3029 = vsel %vm2901, %v2657, 512.0
        %v3030 = vsel %vm2902, %v2658, 512.0
        %v3031 = vsel %vm2903, %v2659, 512.0
        %v3032 = vsel %vm2904, %v2656, 512.0
        %v3033 = vsel %vm2905, %v2657, 512.0
        %v3034 = vsel %vm2906, %v2658, 512.0
        %v3035 = vsel %vm2907, %v2659, 512.0
        %v3036 = vsel %vm2908, %v2656, 512.0
        %v3037 = vsel %vm2909, %v2657, 512.0
        %v3038 = vsel %vm2910, %v2658, 512.0
        %v3039 = vsel %vm2911, %v2659, 512.0
        %v3040 = vsel %vm2912, %v2656, 512.0
        %v3041 = vsel %vm2913, %v2657, 512.0
        %v3042 = vsel %vm2914, %v2658, 512.0
        %v3043 = vsel %vm2915, %v2659, 512.0
        %v3044 = vsel %vm2916, %v2656, 512.0
        %v3045 = vsel %vm2917, %v2657, 512.0
        %v3046 = vsel %vm2918, %v2658, 512.0
        %v3047 = vsel %vm2919, %v2659, 512.0
        %v3048 = vsel %vm2920, %v2656, 512.0
        %v3049 = vsel %vm2921, %v2657, 512.0
        %v3050 = vsel %vm2922, %v2658, 512.0
        %v3051 = vsel %vm2923, %v2659, 512.0
        %v3052 = vsel %vm2924, %v2656, 512.0
        %v3053 = vsel %vm2925, %v2657, 512.0
        %v3054 = vsel %vm2926, %v2658, 512.0
        %v3055 = vsel %vm2927, %v2659, 512.0
        %v3056 = vsel %vm2928, %v2656, 512.0
        %v3057 = vsel %vm2929, %v2657, 512.0
        %v3058 = vsel %vm2930, %v2658, 512.0
        %v3059 = vsel %vm2931, %v2659, 512.0
        %v3060 = vsel %vm2932, %v2656, 512.0
        %v3061 = vsel %vm2933, %v2657, 512.0
        %v3062 = vsel %vm2934, %v2658, 512.0
        %v3063 = vsel %vm2935, %v2659, 512.0
        %v3064 = vsel %vm2936, %v2656, 512.0
        %v3065 = vsel %vm2937, %v2657, 512.0
        %v3066 = vsel %vm2938, %v2658, 512.0
        %v3067 = vsel %vm2939, %v2659, 512.0
        %v3068 = vsel %vm2940, %v2656, 512.0
        %v3069 = vsel %vm2941, %v2657, 512.0
        %v3070 = vsel %vm2942, %v2658, 512.0
        %v3071 = vsel %vm2943, %v2659, 512.0
        %v3072 = vsel %vm2944, %v2656, 512.0
        %v3073 = vsel %vm2945, %v2657, 512.0
        %v3074 = vsel %vm2946, %v2658, 512.0
        %v3075 = vsel %vm2947, %v2659, 512.0
        %v3076 = vmin.f32 %v2948, %v2949
        %v3077 = vmin.f32 %v3076, %v2950
        %v3078 = vmin.f32 %v3077, %v2951
        %3079 = vmin.xlane.f32.xlu0 %v3078
        %v3080 = vpop.xlane.xlu0 %3079
        %v3081 = vmin.f32 %v2952, %v2953
        %v3082 = vmin.f32 %v3081, %v2954
        %v3083 = vmin.f32 %v3082, %v2955
        %3084 = vmin.xlane.f32.xlu0 %v3083
        %v3085 = vpop.xlane.xlu0 %3084
        %v3086 = vmin.f32 %v2956, %v2957
        %v3087 = vmin.f32 %v3086, %v2958
        %v3088 = vmin.f32 %v3087, %v2959
        %3089 = vmin.xlane.f32.xlu0 %v3088
        %v3090 = vpop.xlane.xlu0 %3089
        %v3091 = vmin.f32 %v2960, %v2961
        %v3092 = vmin.f32 %v3091, %v2962
        %v3093 = vmin.f32 %v3092, %v2963
        %3094 = vmin.xlane.f32.xlu0 %v3093
        %v3095 = vpop.xlane.xlu0 %3094
        %v3096 = vmin.f32 %v2964, %v2965
        %v3097 = vmin.f32 %v3096, %v2966
        %v3098 = vmin.f32 %v3097, %v2967
        %3099 = vmin.xlane.f32.xlu0 %v3098
        %v3100 = vpop.xlane.xlu0 %3099
        %v3101 = vmin.f32 %v2968, %v2969
        %v3102 = vmin.f32 %v3101, %v2970
        %v3103 = vmin.f32 %v3102, %v2971
        %3104 = vmin.xlane.f32.xlu0 %v3103
        %v3105 = vpop.xlane.xlu0 %3104
        %v3106 = vmin.f32 %v2972, %v2973
        %v3107 = vmin.f32 %v3106, %v2974
        %v3108 = vmin.f32 %v3107, %v2975
        %3109 = vmin.xlane.f32.xlu0 %v3108
        %v3110 = vpop.xlane.xlu0 %3109
        %v3111 = vmin.f32 %v2976, %v2977
        %v3112 = vmin.f32 %v3111, %v2978
        %v3113 = vmin.f32 %v3112, %v2979
        %3114 = vmin.xlane.f32.xlu0 %v3113
        %v3115 = vpop.xlane.xlu0 %3114
        %v3116 = vmin.f32 %v2980, %v2981
        %v3117 = vmin.f32 %v3116, %v2982
        %v3118 = vmin.f32 %v3117, %v2983
        %3119 = vmin.xlane.f32.xlu0 %v3118
        %v3120 = vpop.xlane.xlu0 %3119
        %v3121 = vmin.f32 %v2984, %v2985
        %v3122 = vmin.f32 %v3121, %v2986
        %v3123 = vmin.f32 %v3122, %v2987
        %3124 = vmin.xlane.f32.xlu0 %v3123
        %v3125 = vpop.xlane.xlu0 %3124
        %v3126 = vmin.f32 %v2988, %v2989
        %v3127 = vmin.f32 %v3126, %v2990
        %v3128 = vmin.f32 %v3127, %v2991
        %3129 = vmin.xlane.f32.xlu0 %v3128
        %v3130 = vpop.xlane.xlu0 %3129
        %v3131 = vmin.f32 %v2992, %v2993
        %v3132 = vmin.f32 %v3131, %v2994
        %v3133 = vmin.f32 %v3132, %v2995
        %3134 = vmin.xlane.f32.xlu0 %v3133
        %v3135 = vpop.xlane.xlu0 %3134
        %v3136 = vmin.f32 %v2996, %v2997
        %v3137 = vmin.f32 %v3136, %v2998
        %v3138 = vmin.f32 %v3137, %v2999
        %3139 = vmin.xlane.f32.xlu0 %v3138
        %v3140 = vpop.xlane.xlu0 %3139
        %v3141 = vmin.f32 %v3000, %v3001
        %v3142 = vmin.f32 %v3141, %v3002
        %v3143 = vmin.f32 %v3142, %v3003
        %3144 = vmin.xlane.f32.xlu0 %v3143
        %v3145 = vpop.xlane.xlu0 %3144
        %v3146 = vmin.f32 %v3004, %v3005
        %v3147 = vmin.f32 %v3146, %v3006
        %v3148 = vmin.f32 %v3147, %v3007
        %3149 = vmin.xlane.f32.xlu0 %v3148
        %v3150 = vpop.xlane.xlu0 %3149
        %v3151 = vmin.f32 %v3008, %v3009
        %v3152 = vmin.f32 %v3151, %v3010
        %v3153 = vmin.f32 %v3152, %v3011
        %3154 = vmin.xlane.f32.xlu0 %v3153
        %v3155 = vpop.xlane.xlu0 %3154
        %v3156 = vmin.f32 %v3012, %v3013
        %v3157 = vmin.f32 %v3156, %v3014
        %v3158 = vmin.f32 %v3157, %v3015
        %3159 = vmin.xlane.f32.xlu0 %v3158
        %v3160 = vpop.xlane.xlu0 %3159
        %v3161 = vmin.f32 %v3016, %v3017
        %v3162 = vmin.f32 %v3161, %v3018
        %v3163 = vmin.f32 %v3162, %v3019
        %3164 = vmin.xlane.f32.xlu0 %v3163
        %v3165 = vpop.xlane.xlu0 %3164
        %v3166 = vmin.f32 %v3020, %v3021
        %v3167 = vmin.f32 %v3166, %v3022
        %v3168 = vmin.f32 %v3167, %v3023
        %3169 = vmin.xlane.f32.xlu0 %v3168
        %v3170 = vpop.xlane.xlu0 %3169
        %v3171 = vmin.f32 %v3024, %v3025
        %v3172 = vmin.f32 %v3171, %v3026
        %v3173 = vmin.f32 %v3172, %v3027
        %3174 = vmin.xlane.f32.xlu0 %v3173
        %v3175 = vpop.xlane.xlu0 %3174
        %v3176 = vmin.f32 %v3028, %v3029
        %v3177 = vmin.f32 %v3176, %v3030
        %v3178 = vmin.f32 %v3177, %v3031
        %3179 = vmin.xlane.f32.xlu0 %v3178
        %v3180 = vpop.xlane.xlu0 %3179
        %v3181 = vmin.f32 %v3032, %v3033
        %v3182 = vmin.f32 %v3181, %v3034
        %v3183 = vmin.f32 %v3182, %v3035
        %3184 = vmin.xlane.f32.xlu0 %v3183
        %v3185 = vpop.xlane.xlu0 %3184
        %v3186 = vmin.f32 %v3036, %v3037
        %v3187 = vmin.f32 %v3186, %v3038
        %v3188 = vmin.f32 %v3187, %v3039
        %3189 = vmin.xlane.f32.xlu0 %v3188
        %v3190 = vpop.xlane.xlu0 %3189
        %v3191 = vmin.f32 %v3040, %v3041
        %v3192 = vmin.f32 %v3191, %v3042
        %v3193 = vmin.f32 %v3192, %v3043
        %3194 = vmin.xlane.f32.xlu0 %v3193
        %v3195 = vpop.xlane.xlu0 %3194
        %v3196 = vmin.f32 %v3044, %v3045
        %v3197 = vmin.f32 %v3196, %v3046
        %v3198 = vmin.f32 %v3197, %v3047
        %3199 = vmin.xlane.f32.xlu0 %v3198
        %v3200 = vpop.xlane.xlu0 %3199
        %v3201 = vmin.f32 %v3048, %v3049
        %v3202 = vmin.f32 %v3201, %v3050
        %v3203 = vmin.f32 %v3202, %v3051
        %3204 = vmin.xlane.f32.xlu0 %v3203
        %v3205 = vpop.xlane.xlu0 %3204
        %v3206 = vmin.f32 %v3052, %v3053
        %v3207 = vmin.f32 %v3206, %v3054
        %v3208 = vmin.f32 %v3207, %v3055
        %3209 = vmin.xlane.f32.xlu0 %v3208
        %v3210 = vpop.xlane.xlu0 %3209
        %v3211 = vmin.f32 %v3056, %v3057
        %v3212 = vmin.f32 %v3211, %v3058
        %v3213 = vmin.f32 %v3212, %v3059
        %3214 = vmin.xlane.f32.xlu0 %v3213
        %v3215 = vpop.xlane.xlu0 %3214
        %v3216 = vmin.f32 %v3060, %v3061
        %v3217 = vmin.f32 %v3216, %v3062
        %v3218 = vmin.f32 %v3217, %v3063
        %3219 = vmin.xlane.f32.xlu0 %v3218
        %v3220 = vpop.xlane.xlu0 %3219
        %v3221 = vmin.f32 %v3064, %v3065
        %v3222 = vmin.f32 %v3221, %v3066
        %v3223 = vmin.f32 %v3222, %v3067
        %3224 = vmin.xlane.f32.xlu0 %v3223
        %v3225 = vpop.xlane.xlu0 %3224
        %v3226 = vmin.f32 %v3068, %v3069
        %v3227 = vmin.f32 %v3226, %v3070
        %v3228 = vmin.f32 %v3227, %v3071
        %3229 = vmin.xlane.f32.xlu0 %v3228
        %v3230 = vpop.xlane.xlu0 %3229
        %v3231 = vmin.f32 %v3072, %v3073
        %v3232 = vmin.f32 %v3231, %v3074
        %v3233 = vmin.f32 %v3232, %v3075
        %3234 = vmin.xlane.f32.xlu0 %v3233
        %v3235 = vpop.xlane.xlu0 %3234
        %vm3236 = vcmp.eq.f32.partialorder %v2656, %v3080
        %vm3237 = vcmp.eq.f32.partialorder %v2657, %v3080
        %vm3238 = vcmp.eq.f32.partialorder %v2658, %v3080
        %vm3239 = vcmp.eq.f32.partialorder %v2659, %v3080
        %vm3240 = vcmp.eq.f32.partialorder %v2656, %v3085
        %vm3241 = vcmp.eq.f32.partialorder %v2657, %v3085
        %vm3242 = vcmp.eq.f32.partialorder %v2658, %v3085
        %vm3243 = vcmp.eq.f32.partialorder %v2659, %v3085
        %vm3244 = vcmp.eq.f32.partialorder %v2656, %v3090
        %vm3245 = vcmp.eq.f32.partialorder %v2657, %v3090
        %vm3246 = vcmp.eq.f32.partialorder %v2658, %v3090
        %vm3247 = vcmp.eq.f32.partialorder %v2659, %v3090
        %vm3248 = vcmp.eq.f32.partialorder %v2656, %v3095
        %vm3249 = vcmp.eq.f32.partialorder %v2657, %v3095
        %vm3250 = vcmp.eq.f32.partialorder %v2658, %v3095
        %vm3251 = vcmp.eq.f32.partialorder %v2659, %v3095
        %vm3252 = vcmp.eq.f32.partialorder %v2656, %v3100
        %vm3253 = vcmp.eq.f32.partialorder %v2657, %v3100
        %vm3254 = vcmp.eq.f32.partialorder %v2658, %v3100
        %vm3255 = vcmp.eq.f32.partialorder %v2659, %v3100
        %vm3256 = vcmp.eq.f32.partialorder %v2656, %v3105
        %vm3257 = vcmp.eq.f32.partialorder %v2657, %v3105
        %vm3258 = vcmp.eq.f32.partialorder %v2658, %v3105
        %vm3259 = vcmp.eq.f32.partialorder %v2659, %v3105
        %vm3260 = vcmp.eq.f32.partialorder %v2656, %v3110
        %vm3261 = vcmp.eq.f32.partialorder %v2657, %v3110
        %vm3262 = vcmp.eq.f32.partialorder %v2658, %v3110
        %vm3263 = vcmp.eq.f32.partialorder %v2659, %v3110
        %vm3264 = vcmp.eq.f32.partialorder %v2656, %v3115
        %vm3265 = vcmp.eq.f32.partialorder %v2657, %v3115
        %vm3266 = vcmp.eq.f32.partialorder %v2658, %v3115
        %vm3267 = vcmp.eq.f32.partialorder %v2659, %v3115
        %vm3268 = vcmp.eq.f32.partialorder %v2656, %v3120
        %vm3269 = vcmp.eq.f32.partialorder %v2657, %v3120
        %vm3270 = vcmp.eq.f32.partialorder %v2658, %v3120
        %vm3271 = vcmp.eq.f32.partialorder %v2659, %v3120
        %vm3272 = vcmp.eq.f32.partialorder %v2656, %v3125
        %vm3273 = vcmp.eq.f32.partialorder %v2657, %v3125
        %vm3274 = vcmp.eq.f32.partialorder %v2658, %v3125
        %vm3275 = vcmp.eq.f32.partialorder %v2659, %v3125
        %vm3276 = vcmp.eq.f32.partialorder %v2656, %v3130
        %vm3277 = vcmp.eq.f32.partialorder %v2657, %v3130
        %vm3278 = vcmp.eq.f32.partialorder %v2658, %v3130
        %vm3279 = vcmp.eq.f32.partialorder %v2659, %v3130
        %vm3280 = vcmp.eq.f32.partialorder %v2656, %v3135
        %vm3281 = vcmp.eq.f32.partialorder %v2657, %v3135
        %vm3282 = vcmp.eq.f32.partialorder %v2658, %v3135
        %vm3283 = vcmp.eq.f32.partialorder %v2659, %v3135
        %vm3284 = vcmp.eq.f32.partialorder %v2656, %v3140
        %vm3285 = vcmp.eq.f32.partialorder %v2657, %v3140
        %vm3286 = vcmp.eq.f32.partialorder %v2658, %v3140
        %vm3287 = vcmp.eq.f32.partialorder %v2659, %v3140
        %vm3288 = vcmp.eq.f32.partialorder %v2656, %v3145
        %vm3289 = vcmp.eq.f32.partialorder %v2657, %v3145
        %vm3290 = vcmp.eq.f32.partialorder %v2658, %v3145
        %vm3291 = vcmp.eq.f32.partialorder %v2659, %v3145
        %vm3292 = vcmp.eq.f32.partialorder %v2656, %v3150
        %vm3293 = vcmp.eq.f32.partialorder %v2657, %v3150
        %vm3294 = vcmp.eq.f32.partialorder %v2658, %v3150
        %vm3295 = vcmp.eq.f32.partialorder %v2659, %v3150
        %vm3296 = vcmp.eq.f32.partialorder %v2656, %v3155
        %vm3297 = vcmp.eq.f32.partialorder %v2657, %v3155
        %vm3298 = vcmp.eq.f32.partialorder %v2658, %v3155
        %vm3299 = vcmp.eq.f32.partialorder %v2659, %v3155
        %vm3300 = vcmp.eq.f32.partialorder %v2656, %v3160
        %vm3301 = vcmp.eq.f32.partialorder %v2657, %v3160
        %vm3302 = vcmp.eq.f32.partialorder %v2658, %v3160
        %vm3303 = vcmp.eq.f32.partialorder %v2659, %v3160
        %vm3304 = vcmp.eq.f32.partialorder %v2656, %v3165
        %vm3305 = vcmp.eq.f32.partialorder %v2657, %v3165
        %vm3306 = vcmp.eq.f32.partialorder %v2658, %v3165
        %vm3307 = vcmp.eq.f32.partialorder %v2659, %v3165
        %vm3308 = vcmp.eq.f32.partialorder %v2656, %v3170
        %vm3309 = vcmp.eq.f32.partialorder %v2657, %v3170
        %vm3310 = vcmp.eq.f32.partialorder %v2658, %v3170
        %vm3311 = vcmp.eq.f32.partialorder %v2659, %v3170
        %vm3312 = vcmp.eq.f32.partialorder %v2656, %v3175
        %vm3313 = vcmp.eq.f32.partialorder %v2657, %v3175
        %vm3314 = vcmp.eq.f32.partialorder %v2658, %v3175
        %vm3315 = vcmp.eq.f32.partialorder %v2659, %v3175
        %vm3316 = vcmp.eq.f32.partialorder %v2656, %v3180
        %vm3317 = vcmp.eq.f32.partialorder %v2657, %v3180
        %vm3318 = vcmp.eq.f32.partialorder %v2658, %v3180
        %vm3319 = vcmp.eq.f32.partialorder %v2659, %v3180
        %vm3320 = vcmp.eq.f32.partialorder %v2656, %v3185
        %vm3321 = vcmp.eq.f32.partialorder %v2657, %v3185
        %vm3322 = vcmp.eq.f32.partialorder %v2658, %v3185
        %vm3323 = vcmp.eq.f32.partialorder %v2659, %v3185
        %vm3324 = vcmp.eq.f32.partialorder %v2656, %v3190
        %vm3325 = vcmp.eq.f32.partialorder %v2657, %v3190
        %vm3326 = vcmp.eq.f32.partialorder %v2658, %v3190
        %vm3327 = vcmp.eq.f32.partialorder %v2659, %v3190
        %vm3328 = vcmp.eq.f32.partialorder %v2656, %v3195
        %vm3329 = vcmp.eq.f32.partialorder %v2657, %v3195
        %vm3330 = vcmp.eq.f32.partialorder %v2658, %v3195
        %vm3331 = vcmp.eq.f32.partialorder %v2659, %v3195
        %vm3332 = vcmp.eq.f32.partialorder %v2656, %v3200
        %vm3333 = vcmp.eq.f32.partialorder %v2657, %v3200
        %vm3334 = vcmp.eq.f32.partialorder %v2658, %v3200
        %vm3335 = vcmp.eq.f32.partialorder %v2659, %v3200
        %vm3336 = vcmp.eq.f32.partialorder %v2656, %v3205
        %vm3337 = vcmp.eq.f32.partialorder %v2657, %v3205
        %vm3338 = vcmp.eq.f32.partialorder %v2658, %v3205
        %vm3339 = vcmp.eq.f32.partialorder %v2659, %v3205
        %vm3340 = vcmp.eq.f32.partialorder %v2656, %v3210
        %vm3341 = vcmp.eq.f32.partialorder %v2657, %v3210
        %vm3342 = vcmp.eq.f32.partialorder %v2658, %v3210
        %vm3343 = vcmp.eq.f32.partialorder %v2659, %v3210
        %vm3344 = vcmp.eq.f32.partialorder %v2656, %v3215
        %vm3345 = vcmp.eq.f32.partialorder %v2657, %v3215
        %vm3346 = vcmp.eq.f32.partialorder %v2658, %v3215
        %vm3347 = vcmp.eq.f32.partialorder %v2659, %v3215
        %vm3348 = vcmp.eq.f32.partialorder %v2656, %v3220
        %vm3349 = vcmp.eq.f32.partialorder %v2657, %v3220
        %vm3350 = vcmp.eq.f32.partialorder %v2658, %v3220
        %vm3351 = vcmp.eq.f32.partialorder %v2659, %v3220
        %vm3352 = vcmp.eq.f32.partialorder %v2656, %v3225
        %vm3353 = vcmp.eq.f32.partialorder %v2657, %v3225
        %vm3354 = vcmp.eq.f32.partialorder %v2658, %v3225
        %vm3355 = vcmp.eq.f32.partialorder %v2659, %v3225
        %vm3356 = vcmp.eq.f32.partialorder %v2656, %v3230
        %vm3357 = vcmp.eq.f32.partialorder %v2657, %v3230
        %vm3358 = vcmp.eq.f32.partialorder %v2658, %v3230
        %vm3359 = vcmp.eq.f32.partialorder %v2659, %v3230
        %vm3360 = vcmp.eq.f32.partialorder %v2656, %v3235
        %vm3361 = vcmp.eq.f32.partialorder %v2657, %v3235
        %vm3362 = vcmp.eq.f32.partialorder %v2658, %v3235
        %vm3363 = vcmp.eq.f32.partialorder %v2659, %v3235
        %v3364 = vsel %vm3236, 1, 0
        %v3365 = vsel %vm3237, 1, 0
        %v3366 = vsel %vm3238, 1, 0
        %v3367 = vsel %vm3239, 1, 0
        %v3368 = vsel %vm3240, 1, 0
        %v3369 = vsel %vm3241, 1, 0
        %v3370 = vsel %vm3242, 1, 0
        %v3371 = vsel %vm3243, 1, 0
        %v3372 = vsel %vm3244, 1, 0
        %v3373 = vsel %vm3245, 1, 0
        %v3374 = vsel %vm3246, 1, 0
        %v3375 = vsel %vm3247, 1, 0
        %v3376 = vsel %vm3248, 1, 0
        %v3377 = vsel %vm3249, 1, 0
        %v3378 = vsel %vm3250, 1, 0
        %v3379 = vsel %vm3251, 1, 0
        %v3380 = vsel %vm3252, 1, 0
        %v3381 = vsel %vm3253, 1, 0
        %v3382 = vsel %vm3254, 1, 0
        %v3383 = vsel %vm3255, 1, 0
        %v3384 = vsel %vm3256, 1, 0
        %v3385 = vsel %vm3257, 1, 0
        %v3386 = vsel %vm3258, 1, 0
        %v3387 = vsel %vm3259, 1, 0
        %v3388 = vsel %vm3260, 1, 0
        %v3389 = vsel %vm3261, 1, 0
        %v3390 = vsel %vm3262, 1, 0
        %v3391 = vsel %vm3263, 1, 0
        %v3392 = vsel %vm3264, 1, 0
        %v3393 = vsel %vm3265, 1, 0
        %v3394 = vsel %vm3266, 1, 0
        %v3395 = vsel %vm3267, 1, 0
        %v3396 = vsel %vm3268, 1, 0
        %v3397 = vsel %vm3269, 1, 0
        %v3398 = vsel %vm3270, 1, 0
        %v3399 = vsel %vm3271, 1, 0
        %v3400 = vsel %vm3272, 1, 0
        %v3401 = vsel %vm3273, 1, 0
        %v3402 = vsel %vm3274, 1, 0
        %v3403 = vsel %vm3275, 1, 0
        %v3404 = vsel %vm3276, 1, 0
        %v3405 = vsel %vm3277, 1, 0
        %v3406 = vsel %vm3278, 1, 0
        %v3407 = vsel %vm3279, 1, 0
        %v3408 = vsel %vm3280, 1, 0
        %v3409 = vsel %vm3281, 1, 0
        %v3410 = vsel %vm3282, 1, 0
        %v3411 = vsel %vm3283, 1, 0
        %v3412 = vsel %vm3284, 1, 0
        %v3413 = vsel %vm3285, 1, 0
        %v3414 = vsel %vm3286, 1, 0
        %v3415 = vsel %vm3287, 1, 0
        %v3416 = vsel %vm3288, 1, 0
        %v3417 = vsel %vm3289, 1, 0
        %v3418 = vsel %vm3290, 1, 0
        %v3419 = vsel %vm3291, 1, 0
        %v3420 = vsel %vm3292, 1, 0
        %v3421 = vsel %vm3293, 1, 0
        %v3422 = vsel %vm3294, 1, 0
        %v3423 = vsel %vm3295, 1, 0
        %v3424 = vsel %vm3296, 1, 0
        %v3425 = vsel %vm3297, 1, 0
        %v3426 = vsel %vm3298, 1, 0
        %v3427 = vsel %vm3299, 1, 0
        %v3428 = vsel %vm3300, 1, 0
        %v3429 = vsel %vm3301, 1, 0
        %v3430 = vsel %vm3302, 1, 0
        %v3431 = vsel %vm3303, 1, 0
        %v3432 = vsel %vm3304, 1, 0
        %v3433 = vsel %vm3305, 1, 0
        %v3434 = vsel %vm3306, 1, 0
        %v3435 = vsel %vm3307, 1, 0
        %v3436 = vsel %vm3308, 1, 0
        %v3437 = vsel %vm3309, 1, 0
        %v3438 = vsel %vm3310, 1, 0
        %v3439 = vsel %vm3311, 1, 0
        %v3440 = vsel %vm3312, 1, 0
        %v3441 = vsel %vm3313, 1, 0
        %v3442 = vsel %vm3314, 1, 0
        %v3443 = vsel %vm3315, 1, 0
        %v3444 = vsel %vm3316, 1, 0
        %v3445 = vsel %vm3317, 1, 0
        %v3446 = vsel %vm3318, 1, 0
        %v3447 = vsel %vm3319, 1, 0
        %v3448 = vsel %vm3320, 1, 0
        %v3449 = vsel %vm3321, 1, 0
        %v3450 = vsel %vm3322, 1, 0
        %v3451 = vsel %vm3323, 1, 0
        %v3452 = vsel %vm3324, 1, 0
        %v3453 = vsel %vm3325, 1, 0
        %v3454 = vsel %vm3326, 1, 0
        %v3455 = vsel %vm3327, 1, 0
        %v3456 = vsel %vm3328, 1, 0
        %v3457 = vsel %vm3329, 1, 0
        %v3458 = vsel %vm3330, 1, 0
        %v3459 = vsel %vm3331, 1, 0
        %v3460 = vsel %vm3332, 1, 0
        %v3461 = vsel %vm3333, 1, 0
        %v3462 = vsel %vm3334, 1, 0
        %v3463 = vsel %vm3335, 1, 0
        %v3464 = vsel %vm3336, 1, 0
        %v3465 = vsel %vm3337, 1, 0
        %v3466 = vsel %vm3338, 1, 0
        %v3467 = vsel %vm3339, 1, 0
        %v3468 = vsel %vm3340, 1, 0
        %v3469 = vsel %vm3341, 1, 0
        %v3470 = vsel %vm3342, 1, 0
        %v3471 = vsel %vm3343, 1, 0
        %v3472 = vsel %vm3344, 1, 0
        %v3473 = vsel %vm3345, 1, 0
        %v3474 = vsel %vm3346, 1, 0
        %v3475 = vsel %vm3347, 1, 0
        %v3476 = vsel %vm3348, 1, 0
        %v3477 = vsel %vm3349, 1, 0
        %v3478 = vsel %vm3350, 1, 0
        %v3479 = vsel %vm3351, 1, 0
        %v3480 = vsel %vm3352, 1, 0
        %v3481 = vsel %vm3353, 1, 0
        %v3482 = vsel %vm3354, 1, 0
        %v3483 = vsel %vm3355, 1, 0
        %v3484 = vsel %vm3356, 1, 0
        %v3485 = vsel %vm3357, 1, 0
        %v3486 = vsel %vm3358, 1, 0
        %v3487 = vsel %vm3359, 1, 0
        %v3488 = vsel %vm3360, 1, 0
        %v3489 = vsel %vm3361, 1, 0
        %v3490 = vsel %vm3362, 1, 0
        %v3491 = vsel %vm3363, 1, 0
        %v3492 = vcvt.s32.f32 %v3364
        %v3493 = vcvt.s32.f32 %v3365
        %v3494 = vcvt.s32.f32 %v3366
        %v3495 = vcvt.s32.f32 %v3367
        %v3496 = vcvt.s32.f32 %v3368
        %v3497 = vcvt.s32.f32 %v3369
        %v3498 = vcvt.s32.f32 %v3370
        %v3499 = vcvt.s32.f32 %v3371
        %v3500 = vcvt.s32.f32 %v3372
        %v3501 = vcvt.s32.f32 %v3373
        %v3502 = vcvt.s32.f32 %v3374
        %v3503 = vcvt.s32.f32 %v3375
        %v3504 = vcvt.s32.f32 %v3376
        %v3505 = vcvt.s32.f32 %v3377
        %v3506 = vcvt.s32.f32 %v3378
        %v3507 = vcvt.s32.f32 %v3379
        %v3508 = vcvt.s32.f32 %v3380
        %v3509 = vcvt.s32.f32 %v3381
        %v3510 = vcvt.s32.f32 %v3382
        %v3511 = vcvt.s32.f32 %v3383
        %v3512 = vcvt.s32.f32 %v3384
        %v3513 = vcvt.s32.f32 %v3385
        %v3514 = vcvt.s32.f32 %v3386
        %v3515 = vcvt.s32.f32 %v3387
        %v3516 = vcvt.s32.f32 %v3388
        %v3517 = vcvt.s32.f32 %v3389
        %v3518 = vcvt.s32.f32 %v3390
        %v3519 = vcvt.s32.f32 %v3391
        %v3520 = vcvt.s32.f32 %v3392
        %v3521 = vcvt.s32.f32 %v3393
        %v3522 = vcvt.s32.f32 %v3394
        %v3523 = vcvt.s32.f32 %v3395
        %v3524 = vcvt.s32.f32 %v3396
        %v3525 = vcvt.s32.f32 %v3397
        %v3526 = vcvt.s32.f32 %v3398
        %v3527 = vcvt.s32.f32 %v3399
        %v3528 = vcvt.s32.f32 %v3400
        %v3529 = vcvt.s32.f32 %v3401
        %v3530 = vcvt.s32.f32 %v3402
        %v3531 = vcvt.s32.f32 %v3403
        %v3532 = vcvt.s32.f32 %v3404
        %v3533 = vcvt.s32.f32 %v3405
        %v3534 = vcvt.s32.f32 %v3406
        %v3535 = vcvt.s32.f32 %v3407
        %v3536 = vcvt.s32.f32 %v3408
        %v3537 = vcvt.s32.f32 %v3409
        %v3538 = vcvt.s32.f32 %v3410
        %v3539 = vcvt.s32.f32 %v3411
        %v3540 = vcvt.s32.f32 %v3412
        %v3541 = vcvt.s32.f32 %v3413
        %v3542 = vcvt.s32.f32 %v3414
        %v3543 = vcvt.s32.f32 %v3415
        %v3544 = vcvt.s32.f32 %v3416
        %v3545 = vcvt.s32.f32 %v3417
        %v3546 = vcvt.s32.f32 %v3418
        %v3547 = vcvt.s32.f32 %v3419
        %v3548 = vcvt.s32.f32 %v3420
        %v3549 = vcvt.s32.f32 %v3421
        %v3550 = vcvt.s32.f32 %v3422
        %v3551 = vcvt.s32.f32 %v3423
        %v3552 = vcvt.s32.f32 %v3424
        %v3553 = vcvt.s32.f32 %v3425
        %v3554 = vcvt.s32.f32 %v3426
        %v3555 = vcvt.s32.f32 %v3427
        %v3556 = vcvt.s32.f32 %v3428
        %v3557 = vcvt.s32.f32 %v3429
        %v3558 = vcvt.s32.f32 %v3430
        %v3559 = vcvt.s32.f32 %v3431
        %v3560 = vcvt.s32.f32 %v3432
        %v3561 = vcvt.s32.f32 %v3433
        %v3562 = vcvt.s32.f32 %v3434
        %v3563 = vcvt.s32.f32 %v3435
        %v3564 = vcvt.s32.f32 %v3436
        %v3565 = vcvt.s32.f32 %v3437
        %v3566 = vcvt.s32.f32 %v3438
        %v3567 = vcvt.s32.f32 %v3439
        %v3568 = vcvt.s32.f32 %v3440
        %v3569 = vcvt.s32.f32 %v3441
        %v3570 = vcvt.s32.f32 %v3442
        %v3571 = vcvt.s32.f32 %v3443
        %v3572 = vcvt.s32.f32 %v3444
        %v3573 = vcvt.s32.f32 %v3445
        %v3574 = vcvt.s32.f32 %v3446
        %v3575 = vcvt.s32.f32 %v3447
        %v3576 = vcvt.s32.f32 %v3448
        %v3577 = vcvt.s32.f32 %v3449
        %v3578 = vcvt.s32.f32 %v3450
        %v3579 = vcvt.s32.f32 %v3451
        %v3580 = vcvt.s32.f32 %v3452
        %v3581 = vcvt.s32.f32 %v3453
        %v3582 = vcvt.s32.f32 %v3454
        %v3583 = vcvt.s32.f32 %v3455
        %v3584 = vcvt.s32.f32 %v3456
        %v3585 = vcvt.s32.f32 %v3457
        %v3586 = vcvt.s32.f32 %v3458
        %v3587 = vcvt.s32.f32 %v3459
        %v3588 = vcvt.s32.f32 %v3460
        %v3589 = vcvt.s32.f32 %v3461
        %v3590 = vcvt.s32.f32 %v3462
        %v3591 = vcvt.s32.f32 %v3463
        %v3592 = vcvt.s32.f32 %v3464
        %v3593 = vcvt.s32.f32 %v3465
        %v3594 = vcvt.s32.f32 %v3466
        %v3595 = vcvt.s32.f32 %v3467
        %v3596 = vcvt.s32.f32 %v3468
        %v3597 = vcvt.s32.f32 %v3469
        %v3598 = vcvt.s32.f32 %v3470
        %v3599 = vcvt.s32.f32 %v3471
        %v3600 = vcvt.s32.f32 %v3472
        %v3601 = vcvt.s32.f32 %v3473
        %v3602 = vcvt.s32.f32 %v3474
        %v3603 = vcvt.s32.f32 %v3475
        %v3604 = vcvt.s32.f32 %v3476
        %v3605 = vcvt.s32.f32 %v3477
        %v3606 = vcvt.s32.f32 %v3478
        %v3607 = vcvt.s32.f32 %v3479
        %v3608 = vcvt.s32.f32 %v3480
        %v3609 = vcvt.s32.f32 %v3481
        %v3610 = vcvt.s32.f32 %v3482
        %v3611 = vcvt.s32.f32 %v3483
        %v3612 = vcvt.s32.f32 %v3484
        %v3613 = vcvt.s32.f32 %v3485
        %v3614 = vcvt.s32.f32 %v3486
        %v3615 = vcvt.s32.f32 %v3487
        %v3616 = vcvt.s32.f32 %v3488
        %v3617 = vcvt.s32.f32 %v3489
        %v3618 = vcvt.s32.f32 %v3490
        %v3619 = vcvt.s32.f32 %v3491
        %v3620 = vpack.c.bf16 %v3496, %v3492
        %v3621 = vpack.c.bf16 %v3497, %v3493
        %v3622 = vpack.c.bf16 %v3498, %v3494
        %v3623 = vpack.c.bf16 %v3499, %v3495
        %v3624 = vpack.c.bf16 %v3504, %v3500
        %v3625 = vpack.c.bf16 %v3505, %v3501
        %v3626 = vpack.c.bf16 %v3506, %v3502
        %v3627 = vpack.c.bf16 %v3507, %v3503
        %v3628 = vpack.c.bf16 %v3512, %v3508
        %v3629 = vpack.c.bf16 %v3513, %v3509
        %v3630 = vpack.c.bf16 %v3514, %v3510
        %v3631 = vpack.c.bf16 %v3515, %v3511
        %v3632 = vpack.c.bf16 %v3520, %v3516
        %v3633 = vpack.c.bf16 %v3521, %v3517
        %v3634 = vpack.c.bf16 %v3522, %v3518
        %v3635 = vpack.c.bf16 %v3523, %v3519
        %v3636 = vpack.c.bf16 %v3528, %v3524
        %v3637 = vpack.c.bf16 %v3529, %v3525
        %v3638 = vpack.c.bf16 %v3530, %v3526
        %v3639 = vpack.c.bf16 %v3531, %v3527
        %v3640 = vpack.c.bf16 %v3536, %v3532
        %v3641 = vpack.c.bf16 %v3537, %v3533
        %v3642 = vpack.c.bf16 %v3538, %v3534
        %v3643 = vpack.c.bf16 %v3539, %v3535
        %v3644 = vpack.c.bf16 %v3544, %v3540
        %v3645 = vpack.c.bf16 %v3545, %v3541
        %v3646 = vpack.c.bf16 %v3546, %v3542
        %v3647 = vpack.c.bf16 %v3547, %v3543
        %v3648 = vpack.c.bf16 %v3552, %v3548
        %v3649 = vpack.c.bf16 %v3553, %v3549
        %v3650 = vpack.c.bf16 %v3554, %v3550
        %v3651 = vpack.c.bf16 %v3555, %v3551
        %v3652 = vpack.c.bf16 %v3560, %v3556
        %v3653 = vpack.c.bf16 %v3561, %v3557
        %v3654 = vpack.c.bf16 %v3562, %v3558
        %v3655 = vpack.c.bf16 %v3563, %v3559
        %v3656 = vpack.c.bf16 %v3568, %v3564
        %v3657 = vpack.c.bf16 %v3569, %v3565
        %v3658 = vpack.c.bf16 %v3570, %v3566
        %v3659 = vpack.c.bf16 %v3571, %v3567
        %v3660 = vpack.c.bf16 %v3576, %v3572
        %v3661 = vpack.c.bf16 %v3577, %v3573
        %v3662 = vpack.c.bf16 %v3578, %v3574
        %v3663 = vpack.c.bf16 %v3579, %v3575
        %v3664 = vpack.c.bf16 %v3584, %v3580
        %v3665 = vpack.c.bf16 %v3585, %v3581
        %v3666 = vpack.c.bf16 %v3586, %v3582
        %v3667 = vpack.c.bf16 %v3587, %v3583
        %v3668 = vpack.c.bf16 %v3592, %v3588
        %v3669 = vpack.c.bf16 %v3593, %v3589
        %v3670 = vpack.c.bf16 %v3594, %v3590
        %v3671 = vpack.c.bf16 %v3595, %v3591
        %v3672 = vpack.c.bf16 %v3600, %v3596
        %v3673 = vpack.c.bf16 %v3601, %v3597
        %v3674 = vpack.c.bf16 %v3602, %v3598
        %v3675 = vpack.c.bf16 %v3603, %v3599
        %v3676 = vpack.c.bf16 %v3608, %v3604
        %v3677 = vpack.c.bf16 %v3609, %v3605
        %v3678 = vpack.c.bf16 %v3610, %v3606
        %v3679 = vpack.c.bf16 %v3611, %v3607
        %v3680 = vpack.c.bf16 %v3616, %v3612
        %v3681 = vpack.c.bf16 %v3617, %v3613
        %v3682 = vpack.c.bf16 %v3618, %v3614
        %v3683 = vpack.c.bf16 %v3619, %v3615
        %v3812 = vunpack.c.l.b16 %v961
        %v3813 = vunpack.c.h.b16 %v961
        %v3814 = vunpack.c.l.b16 %v962
        %v3815 = vunpack.c.h.b16 %v962
        %v3816 = vunpack.c.l.b16 %v963
        %v3817 = vunpack.c.h.b16 %v963
        %v3818 = vunpack.c.l.b16 %v964
        %v3819 = vunpack.c.h.b16 %v964
        %v3820 = vunpack.c.l.b16 %v965
        %v3821 = vunpack.c.h.b16 %v965
        %v3822 = vunpack.c.l.b16 %v966
        %v3823 = vunpack.c.h.b16 %v966
        %v3824 = vunpack.c.l.b16 %v967
        %v3825 = vunpack.c.h.b16 %v967
        %v3826 = vunpack.c.l.b16 %v968
        %v3827 = vunpack.c.h.b16 %v968
        %v3828 = vunpack.c.l.b16 %v969
        %v3829 = vunpack.c.h.b16 %v969
        %v3830 = vunpack.c.l.b16 %v970
        %v3831 = vunpack.c.h.b16 %v970
        %v3832 = vunpack.c.l.b16 %v971
        %v3833 = vunpack.c.h.b16 %v971
        %v3834 = vunpack.c.l.b16 %v972
        %v3835 = vunpack.c.h.b16 %v972
        %v3836 = vunpack.c.l.b16 %v973
        %v3837 = vunpack.c.h.b16 %v973
        %v3838 = vunpack.c.l.b16 %v974
        %v3839 = vunpack.c.h.b16 %v974
        %v3840 = vunpack.c.l.b16 %v975
        %v3841 = vunpack.c.h.b16 %v975
        %v3842 = vunpack.c.l.b16 %v976
        %v3843 = vunpack.c.h.b16 %v976
        %v3844 = vunpack.c.l.b16 %v977
        %v3845 = vunpack.c.h.b16 %v977
        %v3846 = vunpack.c.l.b16 %v978
        %v3847 = vunpack.c.h.b16 %v978
        %v3848 = vunpack.c.l.b16 %v979
        %v3849 = vunpack.c.h.b16 %v979
        %v3850 = vunpack.c.l.b16 %v980
        %v3851 = vunpack.c.h.b16 %v980
        %v3852 = vunpack.c.l.b16 %v981
        %v3853 = vunpack.c.h.b16 %v981
        %v3854 = vunpack.c.l.b16 %v982
        %v3855 = vunpack.c.h.b16 %v982
        %v3856 = vunpack.c.l.b16 %v983
        %v3857 = vunpack.c.h.b16 %v983
        %v3858 = vunpack.c.l.b16 %v984
        %v3859 = vunpack.c.h.b16 %v984
        %v3860 = vunpack.c.l.b16 %v985
        %v3861 = vunpack.c.h.b16 %v985
        %v3862 = vunpack.c.l.b16 %v986
        %v3863 = vunpack.c.h.b16 %v986
        %v3864 = vunpack.c.l.b16 %v987
        %v3865 = vunpack.c.h.b16 %v987
        %v3866 = vunpack.c.l.b16 %v988
        %v3867 = vunpack.c.h.b16 %v988
        %v3868 = vunpack.c.l.b16 %v989
        %v3869 = vunpack.c.h.b16 %v989
        %v3870 = vunpack.c.l.b16 %v990
        %v3871 = vunpack.c.h.b16 %v990
        %v3872 = vunpack.c.l.b16 %v991
        %v3873 = vunpack.c.h.b16 %v991
        %v3874 = vunpack.c.l.b16 %v992
        %v3875 = vunpack.c.h.b16 %v992
        %v3876 = vunpack.c.l.b16 %v993
        %v3877 = vunpack.c.h.b16 %v993
        %v3878 = vunpack.c.l.b16 %v994
        %v3879 = vunpack.c.h.b16 %v994
        %v3880 = vunpack.c.l.b16 %v995
        %v3881 = vunpack.c.h.b16 %v995
        %v3882 = vunpack.c.l.b16 %v996
        %v3883 = vunpack.c.h.b16 %v996
        %v3884 = vunpack.c.l.b16 %v997
        %v3885 = vunpack.c.h.b16 %v997
        %v3886 = vunpack.c.l.b16 %v998
        %v3887 = vunpack.c.h.b16 %v998
        %v3888 = vunpack.c.l.b16 %v999
        %v3889 = vunpack.c.h.b16 %v999
        %v3890 = vunpack.c.l.b16 %v1000
        %v3891 = vunpack.c.h.b16 %v1000
        %v3892 = vunpack.c.l.b16 %v1001
        %v3893 = vunpack.c.h.b16 %v1001
        %v3894 = vunpack.c.l.b16 %v1002
        %v3895 = vunpack.c.h.b16 %v1002
        %v3896 = vunpack.c.l.b16 %v1003
        %v3897 = vunpack.c.h.b16 %v1003
        %v3898 = vunpack.c.l.b16 %v1004
        %v3899 = vunpack.c.h.b16 %v1004
        %v3900 = vunpack.c.l.b16 %v1005
        %v3901 = vunpack.c.h.b16 %v1005
        %v3902 = vunpack.c.l.b16 %v1006
        %v3903 = vunpack.c.h.b16 %v1006
        %v3904 = vunpack.c.l.b16 %v1007
        %v3905 = vunpack.c.h.b16 %v1007
        %v3906 = vunpack.c.l.b16 %v1008
        %v3907 = vunpack.c.h.b16 %v1008
        %v3908 = vunpack.c.l.b16 %v1009
        %v3909 = vunpack.c.h.b16 %v1009
        %v3910 = vunpack.c.l.b16 %v1010
        %v3911 = vunpack.c.h.b16 %v1010
        %v3912 = vunpack.c.l.b16 %v1011
        %v3913 = vunpack.c.h.b16 %v1011
        %v3914 = vunpack.c.l.b16 %v1012
        %v3915 = vunpack.c.h.b16 %v1012
        %v3916 = vunpack.c.l.b16 %v1013
        %v3917 = vunpack.c.h.b16 %v1013
        %v3918 = vunpack.c.l.b16 %v1014
        %v3919 = vunpack.c.h.b16 %v1014
        %v3920 = vunpack.c.l.b16 %v1015
        %v3921 = vunpack.c.h.b16 %v1015
        %v3922 = vunpack.c.l.b16 %v1016
        %v3923 = vunpack.c.h.b16 %v1016
        %v3924 = vunpack.c.l.b16 %v1017
        %v3925 = vunpack.c.h.b16 %v1017
        %v3926 = vunpack.c.l.b16 %v1018
        %v3927 = vunpack.c.h.b16 %v1018
        %v3928 = vunpack.c.l.b16 %v1019
        %v3929 = vunpack.c.h.b16 %v1019
        %v3930 = vunpack.c.l.b16 %v1020
        %v3931 = vunpack.c.h.b16 %v1020
        %v3932 = vunpack.c.l.b16 %v1021
        %v3933 = vunpack.c.h.b16 %v1021
        %v3934 = vunpack.c.l.b16 %v1022
        %v3935 = vunpack.c.h.b16 %v1022
        %v3936 = vunpack.c.l.b16 %v1023
        %v3937 = vunpack.c.h.b16 %v1023
        %v3938 = vunpack.c.l.b16 %v1024
        %v3939 = vunpack.c.h.b16 %v1024
        %v3940 = vunpack.c.l.b16 %v1025
        %v3941 = vunpack.c.h.b16 %v1025
        %v3942 = vunpack.c.l.b16 %v1026
        %v3943 = vunpack.c.h.b16 %v1026
        %v3944 = vunpack.c.l.b16 %v1027
        %v3945 = vunpack.c.h.b16 %v1027
        %v3946 = vunpack.c.l.b16 %v1028
        %v3947 = vunpack.c.h.b16 %v1028
        %v3948 = vunpack.c.l.b16 %v1029
        %v3949 = vunpack.c.h.b16 %v1029
        %v3950 = vunpack.c.l.b16 %v1030
        %v3951 = vunpack.c.h.b16 %v1030
        %v3952 = vunpack.c.l.b16 %v1031
        %v3953 = vunpack.c.h.b16 %v1031
        %v3954 = vunpack.c.l.b16 %v1032
        %v3955 = vunpack.c.h.b16 %v1032
        %v3956 = vunpack.c.l.b16 %v1033
        %v3957 = vunpack.c.h.b16 %v1033
        %v3958 = vunpack.c.l.b16 %v1034
        %v3959 = vunpack.c.h.b16 %v1034
        %v3960 = vunpack.c.l.b16 %v1035
        %v3961 = vunpack.c.h.b16 %v1035
        %v3962 = vunpack.c.l.b16 %v1036
        %v3963 = vunpack.c.h.b16 %v1036
        %v3964 = vunpack.c.l.b16 %v1037
        %v3965 = vunpack.c.h.b16 %v1037
        %v3966 = vunpack.c.l.b16 %v1038
        %v3967 = vunpack.c.h.b16 %v1038
        %v3968 = vunpack.c.l.b16 %v1039
        %v3969 = vunpack.c.h.b16 %v1039
        %v3970 = vunpack.c.l.b16 %v1040
        %v3971 = vunpack.c.h.b16 %v1040
        %v3972 = vunpack.c.l.b16 %v1041
        %v3973 = vunpack.c.h.b16 %v1041
        %v3974 = vunpack.c.l.b16 %v1042
        %v3975 = vunpack.c.h.b16 %v1042
        %v3976 = vunpack.c.l.b16 %v1043
        %v3977 = vunpack.c.h.b16 %v1043
        %v3978 = vunpack.c.l.b16 %v1044
        %v3979 = vunpack.c.h.b16 %v1044
        %v3980 = vunpack.c.l.b16 %v1045
        %v3981 = vunpack.c.h.b16 %v1045
        %v3982 = vunpack.c.l.b16 %v1046
        %v3983 = vunpack.c.h.b16 %v1046
        %v3984 = vunpack.c.l.b16 %v1047
        %v3985 = vunpack.c.h.b16 %v1047
        %v3986 = vunpack.c.l.b16 %v1048
        %v3987 = vunpack.c.h.b16 %v1048
        %v3988 = vunpack.c.l.b16 %v1049
        %v3989 = vunpack.c.h.b16 %v1049
        %v3990 = vunpack.c.l.b16 %v1050
        %v3991 = vunpack.c.h.b16 %v1050
        %v3992 = vunpack.c.l.b16 %v1051
        %v3993 = vunpack.c.h.b16 %v1051
        %v3994 = vunpack.c.l.b16 %v1052
        %v3995 = vunpack.c.h.b16 %v1052
        %v3996 = vunpack.c.l.b16 %v1053
        %v3997 = vunpack.c.h.b16 %v1053
        %v3998 = vunpack.c.l.b16 %v1054
        %v3999 = vunpack.c.h.b16 %v1054
        %v4000 = vunpack.c.l.b16 %v1055
        %v4001 = vunpack.c.h.b16 %v1055
        %v4002 = vunpack.c.l.b16 %v1056
        %v4003 = vunpack.c.h.b16 %v1056
        %v4004 = vunpack.c.l.b16 %v1057
        %v4005 = vunpack.c.h.b16 %v1057
        %v4006 = vunpack.c.l.b16 %v1058
        %v4007 = vunpack.c.h.b16 %v1058
        %v4008 = vunpack.c.l.b16 %v1059
        %v4009 = vunpack.c.h.b16 %v1059
        %v4010 = vunpack.c.l.b16 %v1060
        %v4011 = vunpack.c.h.b16 %v1060
        %v4012 = vunpack.c.l.b16 %v1061
        %v4013 = vunpack.c.h.b16 %v1061
        %v4014 = vunpack.c.l.b16 %v1062
        %v4015 = vunpack.c.h.b16 %v1062
        %v4016 = vunpack.c.l.b16 %v1063
        %v4017 = vunpack.c.h.b16 %v1063
        %v4018 = vunpack.c.l.b16 %v1064
        %v4019 = vunpack.c.h.b16 %v1064
        %v4020 = vunpack.c.l.b16 %v1065
        %v4021 = vunpack.c.h.b16 %v1065
        %v4022 = vunpack.c.l.b16 %v1066
        %v4023 = vunpack.c.h.b16 %v1066
        %v4024 = vunpack.c.l.b16 %v1067
        %v4025 = vunpack.c.h.b16 %v1067
        %v4026 = vunpack.c.l.b16 %v1068
        %v4027 = vunpack.c.h.b16 %v1068
        %v4028 = vunpack.c.l.b16 %v1069
        %v4029 = vunpack.c.h.b16 %v1069
        %v4030 = vunpack.c.l.b16 %v1070
        %v4031 = vunpack.c.h.b16 %v1070
        %v4032 = vunpack.c.l.b16 %v1071
        %v4033 = vunpack.c.h.b16 %v1071
        %v4034 = vunpack.c.l.b16 %v1072
        %v4035 = vunpack.c.h.b16 %v1072
        %v4036 = vunpack.c.l.b16 %v1073
        %v4037 = vunpack.c.h.b16 %v1073
        %v4038 = vunpack.c.l.b16 %v1074
        %v4039 = vunpack.c.h.b16 %v1074
        %v4040 = vunpack.c.l.b16 %v1075
        %v4041 = vunpack.c.h.b16 %v1075
        %v4042 = vunpack.c.l.b16 %v1076
        %v4043 = vunpack.c.h.b16 %v1076
        %v4044 = vunpack.c.l.b16 %v1077
        %v4045 = vunpack.c.h.b16 %v1077
        %v4046 = vunpack.c.l.b16 %v1078
        %v4047 = vunpack.c.h.b16 %v1078
        %v4048 = vunpack.c.l.b16 %v1079
        %v4049 = vunpack.c.h.b16 %v1079
        %v4050 = vunpack.c.l.b16 %v1080
        %v4051 = vunpack.c.h.b16 %v1080
        %v4052 = vunpack.c.l.b16 %v1081
        %v4053 = vunpack.c.h.b16 %v1081
        %v4054 = vunpack.c.l.b16 %v1082
        %v4055 = vunpack.c.h.b16 %v1082
        %v4056 = vunpack.c.l.b16 %v1083
        %v4057 = vunpack.c.h.b16 %v1083
        %v4058 = vunpack.c.l.b16 %v1084
        %v4059 = vunpack.c.h.b16 %v1084
        %v4060 = vunpack.c.l.b16 %v1085
        %v4061 = vunpack.c.h.b16 %v1085
        %v4062 = vunpack.c.l.b16 %v1086
        %v4063 = vunpack.c.h.b16 %v1086
        %v4064 = vunpack.c.l.b16 %v1087
        %v4065 = vunpack.c.h.b16 %v1087
        %v4066 = vunpack.c.l.b16 %v1088
        %v4067 = vunpack.c.h.b16 %v1088
        %v4068 = vpack.c.b16 %v3816, %v3812
        %v4069 = vpack.c.b16 %v3817, %v3813
        %v4070 = vpack.c.b16 %v3818, %v3814
        %v4071 = vpack.c.b16 %v3819, %v3815
        %v4072 = vpack.c.b16 %v3824, %v3820
        %v4073 = vpack.c.b16 %v3825, %v3821
        %v4074 = vpack.c.b16 %v3826, %v3822
        %v4075 = vpack.c.b16 %v3827, %v3823
        %v4076 = vpack.c.b16 %v3832, %v3828
        %v4077 = vpack.c.b16 %v3833, %v3829
        %v4078 = vpack.c.b16 %v3834, %v3830
        %v4079 = vpack.c.b16 %v3835, %v3831
        %v4080 = vpack.c.b16 %v3840, %v3836
        %v4081 = vpack.c.b16 %v3841, %v3837
        %v4082 = vpack.c.b16 %v3842, %v3838
        %v4083 = vpack.c.b16 %v3843, %v3839
        %v4084 = vpack.c.b16 %v3848, %v3844
        %v4085 = vpack.c.b16 %v3849, %v3845
        %v4086 = vpack.c.b16 %v3850, %v3846
        %v4087 = vpack.c.b16 %v3851, %v3847
        %v4088 = vpack.c.b16 %v3856, %v3852
        %v4089 = vpack.c.b16 %v3857, %v3853
        %v4090 = vpack.c.b16 %v3858, %v3854
        %v4091 = vpack.c.b16 %v3859, %v3855
        %v4092 = vpack.c.b16 %v3864, %v3860
        %v4093 = vpack.c.b16 %v3865, %v3861
        %v4094 = vpack.c.b16 %v3866, %v3862
        %v4095 = vpack.c.b16 %v3867, %v3863
        %v4096 = vpack.c.b16 %v3872, %v3868
        %v4097 = vpack.c.b16 %v3873, %v3869
        %v4098 = vpack.c.b16 %v3874, %v3870
        %v4099 = vpack.c.b16 %v3875, %v3871
        %v4100 = vpack.c.b16 %v3880, %v3876
        %v4101 = vpack.c.b16 %v3881, %v3877
        %v4102 = vpack.c.b16 %v3882, %v3878
        %v4103 = vpack.c.b16 %v3883, %v3879
        %v4104 = vpack.c.b16 %v3888, %v3884
        %v4105 = vpack.c.b16 %v3889, %v3885
        %v4106 = vpack.c.b16 %v3890, %v3886
        %v4107 = vpack.c.b16 %v3891, %v3887
        %v4108 = vpack.c.b16 %v3896, %v3892
        %v4109 = vpack.c.b16 %v3897, %v3893
        %v4110 = vpack.c.b16 %v3898, %v3894
        %v4111 = vpack.c.b16 %v3899, %v3895
        %v4112 = vpack.c.b16 %v3904, %v3900
        %v4113 = vpack.c.b16 %v3905, %v3901
        %v4114 = vpack.c.b16 %v3906, %v3902
        %v4115 = vpack.c.b16 %v3907, %v3903
        %v4116 = vpack.c.b16 %v3912, %v3908
        %v4117 = vpack.c.b16 %v3913, %v3909
        %v4118 = vpack.c.b16 %v3914, %v3910
        %v4119 = vpack.c.b16 %v3915, %v3911
        %v4120 = vpack.c.b16 %v3920, %v3916
        %v4121 = vpack.c.b16 %v3921, %v3917
        %v4122 = vpack.c.b16 %v3922, %v3918
        %v4123 = vpack.c.b16 %v3923, %v3919
        %v4124 = vpack.c.b16 %v3928, %v3924
        %v4125 = vpack.c.b16 %v3929, %v3925
        %v4126 = vpack.c.b16 %v3930, %v3926
        %v4127 = vpack.c.b16 %v3931, %v3927
        %v4128 = vpack.c.b16 %v3936, %v3932
        %v4129 = vpack.c.b16 %v3937, %v3933
        %v4130 = vpack.c.b16 %v3938, %v3934
        %v4131 = vpack.c.b16 %v3939, %v3935
        %v4132 = vpack.c.b16 %v3944, %v3940
        %v4133 = vpack.c.b16 %v3945, %v3941
        %v4134 = vpack.c.b16 %v3946, %v3942
        %v4135 = vpack.c.b16 %v3947, %v3943
        %v4136 = vpack.c.b16 %v3952, %v3948
        %v4137 = vpack.c.b16 %v3953, %v3949
        %v4138 = vpack.c.b16 %v3954, %v3950
        %v4139 = vpack.c.b16 %v3955, %v3951
        %v4140 = vpack.c.b16 %v3960, %v3956
        %v4141 = vpack.c.b16 %v3961, %v3957
        %v4142 = vpack.c.b16 %v3962, %v3958
        %v4143 = vpack.c.b16 %v3963, %v3959
        %v4144 = vpack.c.b16 %v3968, %v3964
        %v4145 = vpack.c.b16 %v3969, %v3965
        %v4146 = vpack.c.b16 %v3970, %v3966
        %v4147 = vpack.c.b16 %v3971, %v3967
        %v4148 = vpack.c.b16 %v3976, %v3972
        %v4149 = vpack.c.b16 %v3977, %v3973
        %v4150 = vpack.c.b16 %v3978, %v3974
        %v4151 = vpack.c.b16 %v3979, %v3975
        %v4152 = vpack.c.b16 %v3984, %v3980
        %v4153 = vpack.c.b16 %v3985, %v3981
        %v4154 = vpack.c.b16 %v3986, %v3982
        %v4155 = vpack.c.b16 %v3987, %v3983
        %v4156 = vpack.c.b16 %v3992, %v3988
        %v4157 = vpack.c.b16 %v3993, %v3989
        %v4158 = vpack.c.b16 %v3994, %v3990
        %v4159 = vpack.c.b16 %v3995, %v3991
        %v4160 = vpack.c.b16 %v4000, %v3996
        %v4161 = vpack.c.b16 %v4001, %v3997
        %v4162 = vpack.c.b16 %v4002, %v3998
        %v4163 = vpack.c.b16 %v4003, %v3999
        %v4164 = vpack.c.b16 %v4008, %v4004
        %v4165 = vpack.c.b16 %v4009, %v4005
        %v4166 = vpack.c.b16 %v4010, %v4006
        %v4167 = vpack.c.b16 %v4011, %v4007
        %v4168 = vpack.c.b16 %v4016, %v4012
        %v4169 = vpack.c.b16 %v4017, %v4013
        %v4170 = vpack.c.b16 %v4018, %v4014
        %v4171 = vpack.c.b16 %v4019, %v4015
        %v4172 = vpack.c.b16 %v4024, %v4020
        %v4173 = vpack.c.b16 %v4025, %v4021
        %v4174 = vpack.c.b16 %v4026, %v4022
        %v4175 = vpack.c.b16 %v4027, %v4023
        %v4176 = vpack.c.b16 %v4032, %v4028
        %v4177 = vpack.c.b16 %v4033, %v4029
        %v4178 = vpack.c.b16 %v4034, %v4030
        %v4179 = vpack.c.b16 %v4035, %v4031
        %v4180 = vpack.c.b16 %v4040, %v4036
        %v4181 = vpack.c.b16 %v4041, %v4037
        %v4182 = vpack.c.b16 %v4042, %v4038
        %v4183 = vpack.c.b16 %v4043, %v4039
        %v4184 = vpack.c.b16 %v4048, %v4044
        %v4185 = vpack.c.b16 %v4049, %v4045
        %v4186 = vpack.c.b16 %v4050, %v4046
        %v4187 = vpack.c.b16 %v4051, %v4047
        %v4188 = vpack.c.b16 %v4056, %v4052
        %v4189 = vpack.c.b16 %v4057, %v4053
        %v4190 = vpack.c.b16 %v4058, %v4054
        %v4191 = vpack.c.b16 %v4059, %v4055
        %v4192 = vpack.c.b16 %v4064, %v4060
        %v4193 = vpack.c.b16 %v4065, %v4061
        %v4194 = vpack.c.b16 %v4066, %v4062
        %v4195 = vpack.c.b16 %v4067, %v4063
        %4324 = vmatprep.subr.bf16.mxu0 %v4069
        %4325 = vmatpush1.bf16.msra.mxu0 %v4068
        %4326 = vmatprep.subr.bf16.mxu0 %v4073
        %4327 = vmatpush1.bf16.msra.mxu0 %v4072
        %4328 = vmatprep.subr.bf16.mxu0 %v4077
        %4329 = vmatpush1.bf16.msra.mxu0 %v4076
        %4330 = vmatprep.subr.bf16.mxu0 %v4081
        %4331 = vmatpush1.bf16.msra.mxu0 %v4080
        %4332 = vmatprep.subr.bf16.mxu0 %v4085
        %4333 = vmatpush1.bf16.msra.mxu0 %v4084
        %4334 = vmatprep.subr.bf16.mxu0 %v4089
        %4335 = vmatpush1.bf16.msra.mxu0 %v4088
        %4336 = vmatprep.subr.bf16.mxu0 %v4093
        %4337 = vmatpush1.bf16.msra.mxu0 %v4092
        %4338 = vmatprep.subr.bf16.mxu0 %v4097
        %4339 = vmatpush1.bf16.msra.mxu0 %v4096
        %4340 = vmatprep.subr.bf16.mxu0 %v4101
        %4341 = vmatpush1.bf16.msra.mxu0 %v4100
        %4342 = vmatprep.subr.bf16.mxu0 %v4105
        %4343 = vmatpush1.bf16.msra.mxu0 %v4104
        %4344 = vmatprep.subr.bf16.mxu0 %v4109
        %4345 = vmatpush1.bf16.msra.mxu0 %v4108
        %4346 = vmatprep.subr.bf16.mxu0 %v4113
        %4347 = vmatpush1.bf16.msra.mxu0 %v4112
        %4348 = vmatprep.subr.bf16.mxu0 %v4117
        %4349 = vmatpush1.bf16.msra.mxu0 %v4116
        %4350 = vmatprep.subr.bf16.mxu0 %v4121
        %4351 = vmatpush1.bf16.msra.mxu0 %v4120
        %4352 = vmatprep.subr.bf16.mxu0 %v4125
        %4353 = vmatpush1.bf16.msra.mxu0 %v4124
        %4354 = vmatprep.subr.bf16.mxu0 %v4129
        %4355 = vmatpush1.bf16.msra.mxu0 %v4128
        %4356 = vmatprep.mubr.bf16.mxu0 %v3621
        %4357 = vmatmul.mubr.bf16.gmra.mrb[0].mxu0 %v3620
        %v4358 = vpop.f32.mrb[0].mxu0
        %v4359 = vadd.f32 0.0, %v4358
        %v4360 = vpop.f32.mrb[0].mxu0
        %v4361 = vadd.f32 0.0, %v4360
        %v4362 = vpop.f32.mrb[0].mxu0
        %v4363 = vadd.f32 0.0, %v4362
        %v4364 = vpop.f32.mrb[0].mxu0
        %v4365 = vadd.f32 0.0, %v4364
        %4366 = vmatprep.mubr.bf16.mxu0 %v3625
        %4367 = vmatmul.mubr.bf16.gmra.mrb[0].mxu0 %v3624
        %v4368 = vpop.f32.mrb[0].mxu0
        %v4369 = vadd.f32 0.0, %v4368
        %v4370 = vpop.f32.mrb[0].mxu0
        %v4371 = vadd.f32 0.0, %v4370
        %v4372 = vpop.f32.mrb[0].mxu0
        %v4373 = vadd.f32 0.0, %v4372
        %v4374 = vpop.f32.mrb[0].mxu0
        %v4375 = vadd.f32 0.0, %v4374
        %4376 = vmatprep.mubr.bf16.mxu0 %v3629
        %4377 = vmatmul.mubr.bf16.gmra.mrb[0].mxu0 %v3628
        %v4378 = vpop.f32.mrb[0].mxu0
        %v4379 = vadd.f32 0.0, %v4378
        %v4380 = vpop.f32.mrb[0].mxu0
        %v4381 = vadd.f32 0.0, %v4380
        %v4382 = vpop.f32.mrb[0].mxu0
        %v4383 = vadd.f32 0.0, %v4382
        %v4384 = vpop.f32.mrb[0].mxu0
        %v4385 = vadd.f32 0.0, %v4384
        %4386 = vmatprep.mubr.bf16.mxu0 %v3633
        %4387 = vmatmul.mubr.bf16.gmra.mrb[0].mxu0 %v3632
        %v4388 = vpop.f32.mrb[0].mxu0
        %v4389 = vadd.f32 0.0, %v4388
        %v4390 = vpop.f32.mrb[0].mxu0
        %v4391 = vadd.f32 0.0, %v4390
        %v4392 = vpop.f32.mrb[0].mxu0
        %v4393 = vadd.f32 0.0, %v4392
        %v4394 = vpop.f32.mrb[0].mxu0
        %v4395 = vadd.f32 0.0, %v4394
        %4396 = vmatprep.mubr.bf16.mxu0 %v3637
        %4397 = vmatmul.mubr.bf16.gmra.mrb[0].mxu0 %v3636
        %v4398 = vpop.f32.mrb[0].mxu0
        %v4399 = vadd.f32 0.0, %v4398
        %v4400 = vpop.f32.mrb[0].mxu0
        %v4401 = vadd.f32 0.0, %v4400
        %v4402 = vpop.f32.mrb[0].mxu0
        %v4403 = vadd.f32 0.0, %v4402
        %v4404 = vpop.f32.mrb[0].mxu0
        %v4405 = vadd.f32 0.0, %v4404
        %4406 = vmatprep.mubr.bf16.mxu0 %v3641
        %4407 = vmatmul.mubr.bf16.gmra.mrb[0].mxu0 %v3640
        %v4408 = vpop.f32.mrb[0].mxu0
        %v4409 = vadd.f32 0.0, %v4408
        %v4410 = vpop.f32.mrb[0].mxu0
        %v4411 = vadd.f32 0.0, %v4410
        %v4412 = vpop.f32.mrb[0].mxu0
        %v4413 = vadd.f32 0.0, %v4412
        %v4414 = vpop.f32.mrb[0].mxu0
        %v4415 = vadd.f32 0.0, %v4414
        %4416 = vmatprep.mubr.bf16.mxu0 %v3645
        %4417 = vmatmul.mubr.bf16.gmra.mrb[0].mxu0 %v3644
        %v4418 = vpop.f32.mrb[0].mxu0
        %v4419 = vadd.f32 0.0, %v4418
        %v4420 = vpop.f32.mrb[0].mxu0
        %v4421 = vadd.f32 0.0, %v4420
        %v4422 = vpop.f32.mrb[0].mxu0
        %v4423 = vadd.f32 0.0, %v4422
        %v4424 = vpop.f32.mrb[0].mxu0
        %v4425 = vadd.f32 0.0, %v4424
        %4426 = vmatprep.mubr.bf16.mxu0 %v3649
        %4427 = vmatmul.mubr.bf16.gmra.mrb[0].mxu0 %v3648
        %v4428 = vpop.f32.mrb[0].mxu0
        %v4429 = vadd.f32 0.0, %v4428
        %v4430 = vpop.f32.mrb[0].mxu0
        %v4431 = vadd.f32 0.0, %v4430
        %v4432 = vpop.f32.mrb[0].mxu0
        %v4433 = vadd.f32 0.0, %v4432
        %v4434 = vpop.f32.mrb[0].mxu0
        %v4435 = vadd.f32 0.0, %v4434
        %4436 = vmatprep.mubr.bf16.mxu0 %v3653
        %4437 = vmatmul.mubr.bf16.gmra.mrb[0].mxu0 %v3652
        %v4438 = vpop.f32.mrb[0].mxu0
        %v4439 = vadd.f32 0.0, %v4438
        %v4440 = vpop.f32.mrb[0].mxu0
        %v4441 = vadd.f32 0.0, %v4440
        %v4442 = vpop.f32.mrb[0].mxu0
        %v4443 = vadd.f32 0.0, %v4442
        %v4444 = vpop.f32.mrb[0].mxu0
        %v4445 = vadd.f32 0.0, %v4444
        %4446 = vmatprep.mubr.bf16.mxu0 %v3657
        %4447 = vmatmul.mubr.bf16.gmra.mrb[0].mxu0 %v3656
        %v4448 = vpop.f32.mrb[0].mxu0
        %v4449 = vadd.f32 0.0, %v4448
        %v4450 = vpop.f32.mrb[0].mxu0
        %v4451 = vadd.f32 0.0, %v4450
        %v4452 = vpop.f32.mrb[0].mxu0
        %v4453 = vadd.f32 0.0, %v4452
        %v4454 = vpop.f32.mrb[0].mxu0
        %v4455 = vadd.f32 0.0, %v4454
        %4456 = vmatprep.mubr.bf16.mxu0 %v3661
        %4457 = vmatmul.mubr.bf16.gmra.mrb[0].mxu0 %v3660
        %v4458 = vpop.f32.mrb[0].mxu0
        %v4459 = vadd.f32 0.0, %v4458
        %v4460 = vpop.f32.mrb[0].mxu0
        %v4461 = vadd.f32 0.0, %v4460
        %v4462 = vpop.f32.mrb[0].mxu0
        %v4463 = vadd.f32 0.0, %v4462
        %v4464 = vpop.f32.mrb[0].mxu0
        %v4465 = vadd.f32 0.0, %v4464
        %4466 = vmatprep.mubr.bf16.mxu0 %v3665
        %4467 = vmatmul.mubr.bf16.gmra.mrb[0].mxu0 %v3664
        %v4468 = vpop.f32.mrb[0].mxu0
        %v4469 = vadd.f32 0.0, %v4468
        %v4470 = vpop.f32.mrb[0].mxu0
        %v4471 = vadd.f32 0.0, %v4470
        %v4472 = vpop.f32.mrb[0].mxu0
        %v4473 = vadd.f32 0.0, %v4472
        %v4474 = vpop.f32.mrb[0].mxu0
        %v4475 = vadd.f32 0.0, %v4474
        %4476 = vmatprep.mubr.bf16.mxu0 %v3669
        %4477 = vmatmul.mubr.bf16.gmra.mrb[0].mxu0 %v3668
        %v4478 = vpop.f32.mrb[0].mxu0
        %v4479 = vadd.f32 0.0, %v4478
        %v4480 = vpop.f32.mrb[0].mxu0
        %v4481 = vadd.f32 0.0, %v4480
        %v4482 = vpop.f32.mrb[0].mxu0
        %v4483 = vadd.f32 0.0, %v4482
        %v4484 = vpop.f32.mrb[0].mxu0
        %v4485 = vadd.f32 0.0, %v4484
        %4486 = vmatprep.mubr.bf16.mxu0 %v3673
        %4487 = vmatmul.mubr.bf16.gmra.mrb[0].mxu0 %v3672
        %v4488 = vpop.f32.mrb[0].mxu0
        %v4489 = vadd.f32 0.0, %v4488
        %v4490 = vpop.f32.mrb[0].mxu0
        %v4491 = vadd.f32 0.0, %v4490
        %v4492 = vpop.f32.mrb[0].mxu0
        %v4493 = vadd.f32 0.0, %v4492
        %v4494 = vpop.f32.mrb[0].mxu0
        %v4495 = vadd.f32 0.0, %v4494
        %4496 = vmatprep.mubr.bf16.mxu0 %v3677
        %4497 = vmatmul.mubr.bf16.gmra.mrb[0].mxu0 %v3676
        %v4498 = vpop.f32.mrb[0].mxu0
        %v4499 = vadd.f32 0.0, %v4498
        %v4500 = vpop.f32.mrb[0].mxu0
        %v4501 = vadd.f32 0.0, %v4500
        %v4502 = vpop.f32.mrb[0].mxu0
        %v4503 = vadd.f32 0.0, %v4502
        %v4504 = vpop.f32.mrb[0].mxu0
        %v4505 = vadd.f32 0.0, %v4504
        %4506 = vmatprep.mubr.bf16.mxu0 %v3681
        %4507 = vmatmul.mubr.bf16.gmra.mrb[0].mxu0 %v3680
        %v4508 = vpop.f32.mrb[0].mxu0
        %v4509 = vadd.f32 0.0, %v4508
        %v4510 = vpop.f32.mrb[0].mxu0
        %v4511 = vadd.f32 0.0, %v4510
        %v4512 = vpop.f32.mrb[0].mxu0
        %v4513 = vadd.f32 0.0, %v4512
        %v4514 = vpop.f32.mrb[0].mxu0
        %v4515 = vadd.f32 0.0, %v4514
        %4516 = vdwg.mxu0
        %4517 = vmatprep.subr.bf16.mxu0 %v4133
        %4518 = vmatpush1.bf16.msra.mxu0 %v4132
        %4519 = vmatprep.subr.bf16.mxu0 %v4137
        %4520 = vmatpush1.bf16.msra.mxu0 %v4136
        %4521 = vmatprep.subr.bf16.mxu0 %v4141
        %4522 = vmatpush1.bf16.msra.mxu0 %v4140
        %4523 = vmatprep.subr.bf16.mxu0 %v4145
        %4524 = vmatpush1.bf16.msra.mxu0 %v4144
        %4525 = vmatprep.subr.bf16.mxu0 %v4149
        %4526 = vmatpush1.bf16.msra.mxu0 %v4148
        %4527 = vmatprep.subr.bf16.mxu0 %v4153
        %4528 = vmatpush1.bf16.msra.mxu0 %v4152
        %4529 = vmatprep.subr.bf16.mxu0 %v4157
        %4530 = vmatpush1.bf16.msra.mxu0 %v4156
        %4531 = vmatprep.subr.bf16.mxu0 %v4161
        %4532 = vmatpush1.bf16.msra.mxu0 %v4160
        %4533 = vmatprep.subr.bf16.mxu0 %v4165
        %4534 = vmatpush1.bf16.msra.mxu0 %v4164
        %4535 = vmatprep.subr.bf16.mxu0 %v4169
        %4536 = vmatpush1.bf16.msra.mxu0 %v4168
        %4537 = vmatprep.subr.bf16.mxu0 %v4173
        %4538 = vmatpush1.bf16.msra.mxu0 %v4172
        %4539 = vmatprep.subr.bf16.mxu0 %v4177
        %4540 = vmatpush1.bf16.msra.mxu0 %v4176
        %4541 = vmatprep.subr.bf16.mxu0 %v4181
        %4542 = vmatpush1.bf16.msra.mxu0 %v4180
        %4543 = vmatprep.subr.bf16.mxu0 %v4185
        %4544 = vmatpush1.bf16.msra.mxu0 %v4184
        %4545 = vmatprep.subr.bf16.mxu0 %v4189
        %4546 = vmatpush1.bf16.msra.mxu0 %v4188
        %4547 = vmatprep.subr.bf16.mxu0 %v4193
        %4548 = vmatpush1.bf16.msra.mxu0 %v4192
        %4549 = vmatprep.mubr.bf16.mxu0 %v3623
        %4550 = vmatmul.mubr.bf16.gmra.mrb[0].mxu0 %v3622
        %v4551 = vpop.f32.mrb[0].mxu0
        %v4552 = vadd.f32 %v4359, %v4551
        %v4553 = vpop.f32.mrb[0].mxu0
        %v4554 = vadd.f32 %v4361, %v4553
        %v4555 = vpop.f32.mrb[0].mxu0
        %v4556 = vadd.f32 %v4363, %v4555
        %v4557 = vpop.f32.mrb[0].mxu0
        %v4558 = vadd.f32 %v4365, %v4557
        %4559 = vmatprep.mubr.bf16.mxu0 %v3627
        %4560 = vmatmul.mubr.bf16.gmra.mrb[0].mxu0 %v3626
        %v4561 = vpop.f32.mrb[0].mxu0
        %v4562 = vadd.f32 %v4369, %v4561
        %v4563 = vpop.f32.mrb[0].mxu0
        %v4564 = vadd.f32 %v4371, %v4563
        %v4565 = vpop.f32.mrb[0].mxu0
        %v4566 = vadd.f32 %v4373, %v4565
        %v4567 = vpop.f32.mrb[0].mxu0
        %v4568 = vadd.f32 %v4375, %v4567
        %4569 = vmatprep.mubr.bf16.mxu0 %v3631
        %4570 = vmatmul.mubr.bf16.gmra.mrb[0].mxu0 %v3630
        %v4571 = vpop.f32.mrb[0].mxu0
        %v4572 = vadd.f32 %v4379, %v4571
        %v4573 = vpop.f32.mrb[0].mxu0
        %v4574 = vadd.f32 %v4381, %v4573
        %v4575 = vpop.f32.mrb[0].mxu0
        %v4576 = vadd.f32 %v4383, %v4575
        %v4577 = vpop.f32.mrb[0].mxu0
        %v4578 = vadd.f32 %v4385, %v4577
        %4579 = vmatprep.mubr.bf16.mxu0 %v3635
        %4580 = vmatmul.mubr.bf16.gmra.mrb[0].mxu0 %v3634
        %v4581 = vpop.f32.mrb[0].mxu0
        %v4582 = vadd.f32 %v4389, %v4581
        %v4583 = vpop.f32.mrb[0].mxu0
        %v4584 = vadd.f32 %v4391, %v4583
        %v4585 = vpop.f32.mrb[0].mxu0
        %v4586 = vadd.f32 %v4393, %v4585
        %v4587 = vpop.f32.mrb[0].mxu0
        %v4588 = vadd.f32 %v4395, %v4587
        %4589 = vmatprep.mubr.bf16.mxu0 %v3639
        %4590 = vmatmul.mubr.bf16.gmra.mrb[0].mxu0 %v3638
        %v4591 = vpop.f32.mrb[0].mxu0
        %v4592 = vadd.f32 %v4399, %v4591
        %v4593 = vpop.f32.mrb[0].mxu0
        %v4594 = vadd.f32 %v4401, %v4593
        %v4595 = vpop.f32.mrb[0].mxu0
        %v4596 = vadd.f32 %v4403, %v4595
        %v4597 = vpop.f32.mrb[0].mxu0
        %v4598 = vadd.f32 %v4405, %v4597
        %4599 = vmatprep.mubr.bf16.mxu0 %v3643
        %4600 = vmatmul.mubr.bf16.gmra.mrb[0].mxu0 %v3642
        %v4601 = vpop.f32.mrb[0].mxu0
        %v4602 = vadd.f32 %v4409, %v4601
        %v4603 = vpop.f32.mrb[0].mxu0
        %v4604 = vadd.f32 %v4411, %v4603
        %v4605 = vpop.f32.mrb[0].mxu0
        %v4606 = vadd.f32 %v4413, %v4605
        %v4607 = vpop.f32.mrb[0].mxu0
        %v4608 = vadd.f32 %v4415, %v4607
        %4609 = vmatprep.mubr.bf16.mxu0 %v3647
        %4610 = vmatmul.mubr.bf16.gmra.mrb[0].mxu0 %v3646
        %v4611 = vpop.f32.mrb[0].mxu0
        %v4612 = vadd.f32 %v4419, %v4611
        %v4613 = vpop.f32.mrb[0].mxu0
        %v4614 = vadd.f32 %v4421, %v4613
        %v4615 = vpop.f32.mrb[0].mxu0
        %v4616 = vadd.f32 %v4423, %v4615
        %v4617 = vpop.f32.mrb[0].mxu0
        %v4618 = vadd.f32 %v4425, %v4617
        %4619 = vmatprep.mubr.bf16.mxu0 %v3651
        %4620 = vmatmul.mubr.bf16.gmra.mrb[0].mxu0 %v3650
        %v4621 = vpop.f32.mrb[0].mxu0
        %v4622 = vadd.f32 %v4429, %v4621
        %v4623 = vpop.f32.mrb[0].mxu0
        %v4624 = vadd.f32 %v4431, %v4623
        %v4625 = vpop.f32.mrb[0].mxu0
        %v4626 = vadd.f32 %v4433, %v4625
        %v4627 = vpop.f32.mrb[0].mxu0
        %v4628 = vadd.f32 %v4435, %v4627
        %4629 = vmatprep.mubr.bf16.mxu0 %v3655
        %4630 = vmatmul.mubr.bf16.gmra.mrb[0].mxu0 %v3654
        %v4631 = vpop.f32.mrb[0].mxu0
        %v4632 = vadd.f32 %v4439, %v4631
        %v4633 = vpop.f32.mrb[0].mxu0
        %v4634 = vadd.f32 %v4441, %v4633
        %v4635 = vpop.f32.mrb[0].mxu0
        %v4636 = vadd.f32 %v4443, %v4635
        %v4637 = vpop.f32.mrb[0].mxu0
        %v4638 = vadd.f32 %v4445, %v4637
        %4639 = vmatprep.mubr.bf16.mxu0 %v3659
        %4640 = vmatmul.mubr.bf16.gmra.mrb[0].mxu0 %v3658
        %v4641 = vpop.f32.mrb[0].mxu0
        %v4642 = vadd.f32 %v4449, %v4641
        %v4643 = vpop.f32.mrb[0].mxu0
        %v4644 = vadd.f32 %v4451, %v4643
        %v4645 = vpop.f32.mrb[0].mxu0
        %v4646 = vadd.f32 %v4453, %v4645
        %v4647 = vpop.f32.mrb[0].mxu0
        %v4648 = vadd.f32 %v4455, %v4647
        %4649 = vmatprep.mubr.bf16.mxu0 %v3663
        %4650 = vmatmul.mubr.bf16.gmra.mrb[0].mxu0 %v3662
        %v4651 = vpop.f32.mrb[0].mxu0
        %v4652 = vadd.f32 %v4459, %v4651
        %v4653 = vpop.f32.mrb[0].mxu0
        %v4654 = vadd.f32 %v4461, %v4653
        %v4655 = vpop.f32.mrb[0].mxu0
        %v4656 = vadd.f32 %v4463, %v4655
        %v4657 = vpop.f32.mrb[0].mxu0
        %v4658 = vadd.f32 %v4465, %v4657
        %4659 = vmatprep.mubr.bf16.mxu0 %v3667
        %4660 = vmatmul.mubr.bf16.gmra.mrb[0].mxu0 %v3666
        %v4661 = vpop.f32.mrb[0].mxu0
        %v4662 = vadd.f32 %v4469, %v4661
        %v4663 = vpop.f32.mrb[0].mxu0
        %v4664 = vadd.f32 %v4471, %v4663
        %v4665 = vpop.f32.mrb[0].mxu0
        %v4666 = vadd.f32 %v4473, %v4665
        %v4667 = vpop.f32.mrb[0].mxu0
        %v4668 = vadd.f32 %v4475, %v4667
        %4669 = vmatprep.mubr.bf16.mxu0 %v3671
        %4670 = vmatmul.mubr.bf16.gmra.mrb[0].mxu0 %v3670
        %v4671 = vpop.f32.mrb[0].mxu0
        %v4672 = vadd.f32 %v4479, %v4671
        %v4673 = vpop.f32.mrb[0].mxu0
        %v4674 = vadd.f32 %v4481, %v4673
        %v4675 = vpop.f32.mrb[0].mxu0
        %v4676 = vadd.f32 %v4483, %v4675
        %v4677 = vpop.f32.mrb[0].mxu0
        %v4678 = vadd.f32 %v4485, %v4677
        %4679 = vmatprep.mubr.bf16.mxu0 %v3675
        %4680 = vmatmul.mubr.bf16.gmra.mrb[0].mxu0 %v3674
        %v4681 = vpop.f32.mrb[0].mxu0
        %v4682 = vadd.f32 %v4489, %v4681
        %v4683 = vpop.f32.mrb[0].mxu0
        %v4684 = vadd.f32 %v4491, %v4683
        %v4685 = vpop.f32.mrb[0].mxu0
        %v4686 = vadd.f32 %v4493, %v4685
        %v4687 = vpop.f32.mrb[0].mxu0
        %v4688 = vadd.f32 %v4495, %v4687
        %4689 = vmatprep.mubr.bf16.mxu0 %v3679
        %4690 = vmatmul.mubr.bf16.gmra.mrb[0].mxu0 %v3678
        %v4691 = vpop.f32.mrb[0].mxu0
        %v4692 = vadd.f32 %v4499, %v4691
        %v4693 = vpop.f32.mrb[0].mxu0
        %v4694 = vadd.f32 %v4501, %v4693
        %v4695 = vpop.f32.mrb[0].mxu0
        %v4696 = vadd.f32 %v4503, %v4695
        %v4697 = vpop.f32.mrb[0].mxu0
        %v4698 = vadd.f32 %v4505, %v4697
        %4699 = vmatprep.mubr.bf16.mxu0 %v3683
        %4700 = vmatmul.mubr.bf16.gmra.mrb[0].mxu0 %v3682
        %v4701 = vpop.f32.mrb[0].mxu0
        %v4702 = vadd.f32 %v4509, %v4701
        %v4703 = vpop.f32.mrb[0].mxu0
        %v4704 = vadd.f32 %v4511, %v4703
        %v4705 = vpop.f32.mrb[0].mxu0
        %v4706 = vadd.f32 %v4513, %v4705
        %v4707 = vpop.f32.mrb[0].mxu0
        %v4708 = vadd.f32 %v4515, %v4707
        %4709 = vdwg.mxu0
        %4710 = vmatprep.subr.bf16.mxu0 %v4071
        %4711 = vmatpush1.bf16.msra.mxu0 %v4070
        %4712 = vmatprep.subr.bf16.mxu0 %v4075
        %4713 = vmatpush1.bf16.msra.mxu0 %v4074
        %4714 = vmatprep.subr.bf16.mxu0 %v4079
        %4715 = vmatpush1.bf16.msra.mxu0 %v4078
        %4716 = vmatprep.subr.bf16.mxu0 %v4083
        %4717 = vmatpush1.bf16.msra.mxu0 %v4082
        %4718 = vmatprep.subr.bf16.mxu0 %v4087
        %4719 = vmatpush1.bf16.msra.mxu0 %v4086
        %4720 = vmatprep.subr.bf16.mxu0 %v4091
        %4721 = vmatpush1.bf16.msra.mxu0 %v4090
        %4722 = vmatprep.subr.bf16.mxu0 %v4095
        %4723 = vmatpush1.bf16.msra.mxu0 %v4094
        %4724 = vmatprep.subr.bf16.mxu0 %v4099
        %4725 = vmatpush1.bf16.msra.mxu0 %v4098
        %4726 = vmatprep.subr.bf16.mxu0 %v4103
        %4727 = vmatpush1.bf16.msra.mxu0 %v4102
        %4728 = vmatprep.subr.bf16.mxu0 %v4107
        %4729 = vmatpush1.bf16.msra.mxu0 %v4106
        %4730 = vmatprep.subr.bf16.mxu0 %v4111
        %4731 = vmatpush1.bf16.msra.mxu0 %v4110
        %4732 = vmatprep.subr.bf16.mxu0 %v4115
        %4733 = vmatpush1.bf16.msra.mxu0 %v4114
        %4734 = vmatprep.subr.bf16.mxu0 %v4119
        %4735 = vmatpush1.bf16.msra.mxu0 %v4118
        %4736 = vmatprep.subr.bf16.mxu0 %v4123
        %4737 = vmatpush1.bf16.msra.mxu0 %v4122
        %4738 = vmatprep.subr.bf16.mxu0 %v4127
        %4739 = vmatpush1.bf16.msra.mxu0 %v4126
        %4740 = vmatprep.subr.bf16.mxu0 %v4131
        %4741 = vmatpush1.bf16.msra.mxu0 %v4130
        %4742 = vmatprep.mubr.bf16.mxu0 %v3621
        %4743 = vmatmul.mubr.bf16.gmra.mrb[0].mxu0 %v3620
        %v4744 = vpop.f32.mrb[0].mxu0
        %v4745 = vadd.f32 0.0, %v4744
        %v4746 = vpop.f32.mrb[0].mxu0
        %v4747 = vadd.f32 0.0, %v4746
        %v4748 = vpop.f32.mrb[0].mxu0
        %v4749 = vadd.f32 0.0, %v4748
        %v4750 = vpop.f32.mrb[0].mxu0
        %v4751 = vadd.f32 0.0, %v4750
        %4752 = vmatprep.mubr.bf16.mxu0 %v3625
        %4753 = vmatmul.mubr.bf16.gmra.mrb[0].mxu0 %v3624
        %v4754 = vpop.f32.mrb[0].mxu0
        %v4755 = vadd.f32 0.0, %v4754
        %v4756 = vpop.f32.mrb[0].mxu0
        %v4757 = vadd.f32 0.0, %v4756
        %v4758 = vpop.f32.mrb[0].mxu0
        %v4759 = vadd.f32 0.0, %v4758
        %v4760 = vpop.f32.mrb[0].mxu0
        %v4761 = vadd.f32 0.0, %v4760
        %4762 = vmatprep.mubr.bf16.mxu0 %v3629
        %4763 = vmatmul.mubr.bf16.gmra.mrb[0].mxu0 %v3628
        %v4764 = vpop.f32.mrb[0].mxu0
        %v4765 = vadd.f32 0.0, %v4764
        %v4766 = vpop.f32.mrb[0].mxu0
        %v4767 = vadd.f32 0.0, %v4766
        %v4768 = vpop.f32.mrb[0].mxu0
        %v4769 = vadd.f32 0.0, %v4768
        %v4770 = vpop.f32.mrb[0].mxu0
        %v4771 = vadd.f32 0.0, %v4770
        %4772 = vmatprep.mubr.bf16.mxu0 %v3633
        %4773 = vmatmul.mubr.bf16.gmra.mrb[0].mxu0 %v3632
        %v4774 = vpop.f32.mrb[0].mxu0
        %v4775 = vadd.f32 0.0, %v4774
        %v4776 = vpop.f32.mrb[0].mxu0
        %v4777 = vadd.f32 0.0, %v4776
        %v4778 = vpop.f32.mrb[0].mxu0
        %v4779 = vadd.f32 0.0, %v4778
        %v4780 = vpop.f32.mrb[0].mxu0
        %v4781 = vadd.f32 0.0, %v4780
        %4782 = vmatprep.mubr.bf16.mxu0 %v3637
        %4783 = vmatmul.mubr.bf16.gmra.mrb[0].mxu0 %v3636
        %v4784 = vpop.f32.mrb[0].mxu0
        %v4785 = vadd.f32 0.0, %v4784
        %v4786 = vpop.f32.mrb[0].mxu0
        %v4787 = vadd.f32 0.0, %v4786
        %v4788 = vpop.f32.mrb[0].mxu0
        %v4789 = vadd.f32 0.0, %v4788
        %v4790 = vpop.f32.mrb[0].mxu0
        %v4791 = vadd.f32 0.0, %v4790
        %4792 = vmatprep.mubr.bf16.mxu0 %v3641
        %4793 = vmatmul.mubr.bf16.gmra.mrb[0].mxu0 %v3640
        %v4794 = vpop.f32.mrb[0].mxu0
        %v4795 = vadd.f32 0.0, %v4794
        %v4796 = vpop.f32.mrb[0].mxu0
        %v4797 = vadd.f32 0.0, %v4796
        %v4798 = vpop.f32.mrb[0].mxu0
        %v4799 = vadd.f32 0.0, %v4798
        %v4800 = vpop.f32.mrb[0].mxu0
        %v4801 = vadd.f32 0.0, %v4800
        %4802 = vmatprep.mubr.bf16.mxu0 %v3645
        %4803 = vmatmul.mubr.bf16.gmra.mrb[0].mxu0 %v3644
        %v4804 = vpop.f32.mrb[0].mxu0
        %v4805 = vadd.f32 0.0, %v4804
        %v4806 = vpop.f32.mrb[0].mxu0
        %v4807 = vadd.f32 0.0, %v4806
        %v4808 = vpop.f32.mrb[0].mxu0
        %v4809 = vadd.f32 0.0, %v4808
        %v4810 = vpop.f32.mrb[0].mxu0
        %v4811 = vadd.f32 0.0, %v4810
        %4812 = vmatprep.mubr.bf16.mxu0 %v3649
        %4813 = vmatmul.mubr.bf16.gmra.mrb[0].mxu0 %v3648
        %v4814 = vpop.f32.mrb[0].mxu0
        %v4815 = vadd.f32 0.0, %v4814
        %v4816 = vpop.f32.mrb[0].mxu0
        %v4817 = vadd.f32 0.0, %v4816
        %v4818 = vpop.f32.mrb[0].mxu0
        %v4819 = vadd.f32 0.0, %v4818
        %v4820 = vpop.f32.mrb[0].mxu0
        %v4821 = vadd.f32 0.0, %v4820
        %4822 = vmatprep.mubr.bf16.mxu0 %v3653
        %4823 = vmatmul.mubr.bf16.gmra.mrb[0].mxu0 %v3652
        %v4824 = vpop.f32.mrb[0].mxu0
        %v4825 = vadd.f32 0.0, %v4824
        %v4826 = vpop.f32.mrb[0].mxu0
        %v4827 = vadd.f32 0.0, %v4826
        %v4828 = vpop.f32.mrb[0].mxu0
        %v4829 = vadd.f32 0.0, %v4828
        %v4830 = vpop.f32.mrb[0].mxu0
        %v4831 = vadd.f32 0.0, %v4830
        %4832 = vmatprep.mubr.bf16.mxu0 %v3657
        %4833 = vmatmul.mubr.bf16.gmra.mrb[0].mxu0 %v3656
        %v4834 = vpop.f32.mrb[0].mxu0
        %v4835 = vadd.f32 0.0, %v4834
        %v4836 = vpop.f32.mrb[0].mxu0
        %v4837 = vadd.f32 0.0, %v4836
        %v4838 = vpop.f32.mrb[0].mxu0
        %v4839 = vadd.f32 0.0, %v4838
        %v4840 = vpop.f32.mrb[0].mxu0
        %v4841 = vadd.f32 0.0, %v4840
        %4842 = vmatprep.mubr.bf16.mxu0 %v3661
        %4843 = vmatmul.mubr.bf16.gmra.mrb[0].mxu0 %v3660
        %v4844 = vpop.f32.mrb[0].mxu0
        %v4845 = vadd.f32 0.0, %v4844
        %v4846 = vpop.f32.mrb[0].mxu0
        %v4847 = vadd.f32 0.0, %v4846
        %v4848 = vpop.f32.mrb[0].mxu0
        %v4849 = vadd.f32 0.0, %v4848
        %v4850 = vpop.f32.mrb[0].mxu0
        %v4851 = vadd.f32 0.0, %v4850
        %4852 = vmatprep.mubr.bf16.mxu0 %v3665
        %4853 = vmatmul.mubr.bf16.gmra.mrb[0].mxu0 %v3664
        %v4854 = vpop.f32.mrb[0].mxu0
        %v4855 = vadd.f32 0.0, %v4854
        %v4856 = vpop.f32.mrb[0].mxu0
        %v4857 = vadd.f32 0.0, %v4856
        %v4858 = vpop.f32.mrb[0].mxu0
        %v4859 = vadd.f32 0.0, %v4858
        %v4860 = vpop.f32.mrb[0].mxu0
        %v4861 = vadd.f32 0.0, %v4860
        %4862 = vmatprep.mubr.bf16.mxu0 %v3669
        %4863 = vmatmul.mubr.bf16.gmra.mrb[0].mxu0 %v3668
        %v4864 = vpop.f32.mrb[0].mxu0
        %v4865 = vadd.f32 0.0, %v4864
        %v4866 = vpop.f32.mrb[0].mxu0
        %v4867 = vadd.f32 0.0, %v4866
        %v4868 = vpop.f32.mrb[0].mxu0
        %v4869 = vadd.f32 0.0, %v4868
        %v4870 = vpop.f32.mrb[0].mxu0
        %v4871 = vadd.f32 0.0, %v4870
        %4872 = vmatprep.mubr.bf16.mxu0 %v3673
        %4873 = vmatmul.mubr.bf16.gmra.mrb[0].mxu0 %v3672
        %v4874 = vpop.f32.mrb[0].mxu0
        %v4875 = vadd.f32 0.0, %v4874
        %v4876 = vpop.f32.mrb[0].mxu0
        %v4877 = vadd.f32 0.0, %v4876
        %v4878 = vpop.f32.mrb[0].mxu0
        %v4879 = vadd.f32 0.0, %v4878
        %v4880 = vpop.f32.mrb[0].mxu0
        %v4881 = vadd.f32 0.0, %v4880
        %4882 = vmatprep.mubr.bf16.mxu0 %v3677
        %4883 = vmatmul.mubr.bf16.gmra.mrb[0].mxu0 %v3676
        %v4884 = vpop.f32.mrb[0].mxu0
        %v4885 = vadd.f32 0.0, %v4884
        %v4886 = vpop.f32.mrb[0].mxu0
        %v4887 = vadd.f32 0.0, %v4886
        %v4888 = vpop.f32.mrb[0].mxu0
        %v4889 = vadd.f32 0.0, %v4888
        %v4890 = vpop.f32.mrb[0].mxu0
        %v4891 = vadd.f32 0.0, %v4890
        %4892 = vmatprep.mubr.bf16.mxu0 %v3681
        %4893 = vmatmul.mubr.bf16.gmra.mrb[0].mxu0 %v3680
        %v4894 = vpop.f32.mrb[0].mxu0
        %v4895 = vadd.f32 0.0, %v4894
        %v4896 = vpop.f32.mrb[0].mxu0
        %v4897 = vadd.f32 0.0, %v4896
        %v4898 = vpop.f32.mrb[0].mxu0
        %v4899 = vadd.f32 0.0, %v4898
        %v4900 = vpop.f32.mrb[0].mxu0
        %v4901 = vadd.f32 0.0, %v4900
        %4902 = vdwg.mxu0
        %4903 = vmatprep.subr.bf16.mxu0 %v4135
        %4904 = vmatpush1.bf16.msra.mxu0 %v4134
        %4905 = vmatprep.subr.bf16.mxu0 %v4139
        %4906 = vmatpush1.bf16.msra.mxu0 %v4138
        %4907 = vmatprep.subr.bf16.mxu0 %v4143
        %4908 = vmatpush1.bf16.msra.mxu0 %v4142
        %4909 = vmatprep.subr.bf16.mxu0 %v4147
        %4910 = vmatpush1.bf16.msra.mxu0 %v4146
        %4911 = vmatprep.subr.bf16.mxu0 %v4151
        %4912 = vmatpush1.bf16.msra.mxu0 %v4150
        %4913 = vmatprep.subr.bf16.mxu0 %v4155
        %4914 = vmatpush1.bf16.msra.mxu0 %v4154
        %4915 = vmatprep.subr.bf16.mxu0 %v4159
        %4916 = vmatpush1.bf16.msra.mxu0 %v4158
        %4917 = vmatprep.subr.bf16.mxu0 %v4163
        %4918 = vmatpush1.bf16.msra.mxu0 %v4162
        %4919 = vmatprep.subr.bf16.mxu0 %v4167
        %4920 = vmatpush1.bf16.msra.mxu0 %v4166
        %4921 = vmatprep.subr.bf16.mxu0 %v4171
        %4922 = vmatpush1.bf16.msra.mxu0 %v4170
        %4923 = vmatprep.subr.bf16.mxu0 %v4175
        %4924 = vmatpush1.bf16.msra.mxu0 %v4174
        %4925 = vmatprep.subr.bf16.mxu0 %v4179
        %4926 = vmatpush1.bf16.msra.mxu0 %v4178
        %4927 = vmatprep.subr.bf16.mxu0 %v4183
        %4928 = vmatpush1.bf16.msra.mxu0 %v4182
        %4929 = vmatprep.subr.bf16.mxu0 %v4187
        %4930 = vmatpush1.bf16.msra.mxu0 %v4186
        %4931 = vmatprep.subr.bf16.mxu0 %v4191
        %4932 = vmatpush1.bf16.msra.mxu0 %v4190
        %4933 = vmatprep.subr.bf16.mxu0 %v4195
        %4934 = vmatpush1.bf16.msra.mxu0 %v4194
        %4935 = vmatprep.mubr.bf16.mxu0 %v3623
        %4936 = vmatmul.mubr.bf16.gmra.mrb[0].mxu0 %v3622
        %v4937 = vpop.f32.mrb[0].mxu0
        %v4938 = vadd.f32 %v4745, %v4937
        %v4939 = vpop.f32.mrb[0].mxu0
        %v4940 = vadd.f32 %v4747, %v4939
        %v4941 = vpop.f32.mrb[0].mxu0
        %v4942 = vadd.f32 %v4749, %v4941
        %v4943 = vpop.f32.mrb[0].mxu0
        %v4944 = vadd.f32 %v4751, %v4943
        %4945 = vmatprep.mubr.bf16.mxu0 %v3627
        %4946 = vmatmul.mubr.bf16.gmra.mrb[0].mxu0 %v3626
        %v4947 = vpop.f32.mrb[0].mxu0
        %v4948 = vadd.f32 %v4755, %v4947
        %v4949 = vpop.f32.mrb[0].mxu0
        %v4950 = vadd.f32 %v4757, %v4949
        %v4951 = vpop.f32.mrb[0].mxu0
        %v4952 = vadd.f32 %v4759, %v4951
        %v4953 = vpop.f32.mrb[0].mxu0
        %v4954 = vadd.f32 %v4761, %v4953
        %4955 = vmatprep.mubr.bf16.mxu0 %v3631
        %4956 = vmatmul.mubr.bf16.gmra.mrb[0].mxu0 %v3630
        %v4957 = vpop.f32.mrb[0].mxu0
        %v4958 = vadd.f32 %v4765, %v4957
        %v4959 = vpop.f32.mrb[0].mxu0
        %v4960 = vadd.f32 %v4767, %v4959
        %v4961 = vpop.f32.mrb[0].mxu0
        %v4962 = vadd.f32 %v4769, %v4961
        %v4963 = vpop.f32.mrb[0].mxu0
        %v4964 = vadd.f32 %v4771, %v4963
        %4965 = vmatprep.mubr.bf16.mxu0 %v3635
        %4966 = vmatmul.mubr.bf16.gmra.mrb[0].mxu0 %v3634
        %v4967 = vpop.f32.mrb[0].mxu0
        %v4968 = vadd.f32 %v4775, %v4967
        %v4969 = vpop.f32.mrb[0].mxu0
        %v4970 = vadd.f32 %v4777, %v4969
        %v4971 = vpop.f32.mrb[0].mxu0
        %v4972 = vadd.f32 %v4779, %v4971
        %v4973 = vpop.f32.mrb[0].mxu0
        %v4974 = vadd.f32 %v4781, %v4973
        %4975 = vmatprep.mubr.bf16.mxu0 %v3639
        %4976 = vmatmul.mubr.bf16.gmra.mrb[0].mxu0 %v3638
        %v4977 = vpop.f32.mrb[0].mxu0
        %v4978 = vadd.f32 %v4785, %v4977
        %v4979 = vpop.f32.mrb[0].mxu0
        %v4980 = vadd.f32 %v4787, %v4979
        %v4981 = vpop.f32.mrb[0].mxu0
        %v4982 = vadd.f32 %v4789, %v4981
        %v4983 = vpop.f32.mrb[0].mxu0
        %v4984 = vadd.f32 %v4791, %v4983
        %4985 = vmatprep.mubr.bf16.mxu0 %v3643
        %4986 = vmatmul.mubr.bf16.gmra.mrb[0].mxu0 %v3642
        %v4987 = vpop.f32.mrb[0].mxu0
        %v4988 = vadd.f32 %v4795, %v4987
        %v4989 = vpop.f32.mrb[0].mxu0
        %v4990 = vadd.f32 %v4797, %v4989
        %v4991 = vpop.f32.mrb[0].mxu0
        %v4992 = vadd.f32 %v4799, %v4991
        %v4993 = vpop.f32.mrb[0].mxu0
        %v4994 = vadd.f32 %v4801, %v4993
        %4995 = vmatprep.mubr.bf16.mxu0 %v3647
        %4996 = vmatmul.mubr.bf16.gmra.mrb[0].mxu0 %v3646
        %v4997 = vpop.f32.mrb[0].mxu0
        %v4998 = vadd.f32 %v4805, %v4997
        %v4999 = vpop.f32.mrb[0].mxu0
        %v5000 = vadd.f32 %v4807, %v4999
        %v5001 = vpop.f32.mrb[0].mxu0
        %v5002 = vadd.f32 %v4809, %v5001
        %v5003 = vpop.f32.mrb[0].mxu0
        %v5004 = vadd.f32 %v4811, %v5003
        %5005 = vmatprep.mubr.bf16.mxu0 %v3651
        %5006 = vmatmul.mubr.bf16.gmra.mrb[0].mxu0 %v3650
        %v5007 = vpop.f32.mrb[0].mxu0
        %v5008 = vadd.f32 %v4815, %v5007
        %v5009 = vpop.f32.mrb[0].mxu0
        %v5010 = vadd.f32 %v4817, %v5009
        %v5011 = vpop.f32.mrb[0].mxu0
        %v5012 = vadd.f32 %v4819, %v5011
        %v5013 = vpop.f32.mrb[0].mxu0
        %v5014 = vadd.f32 %v4821, %v5013
        %5015 = vmatprep.mubr.bf16.mxu0 %v3655
        %5016 = vmatmul.mubr.bf16.gmra.mrb[0].mxu0 %v3654
        %v5017 = vpop.f32.mrb[0].mxu0
        %v5018 = vadd.f32 %v4825, %v5017
        %v5019 = vpop.f32.mrb[0].mxu0
        %v5020 = vadd.f32 %v4827, %v5019
        %v5021 = vpop.f32.mrb[0].mxu0
        %v5022 = vadd.f32 %v4829, %v5021
        %v5023 = vpop.f32.mrb[0].mxu0
        %v5024 = vadd.f32 %v4831, %v5023
        %5025 = vmatprep.mubr.bf16.mxu0 %v3659
        %5026 = vmatmul.mubr.bf16.gmra.mrb[0].mxu0 %v3658
        %v5027 = vpop.f32.mrb[0].mxu0
        %v5028 = vadd.f32 %v4835, %v5027
        %v5029 = vpop.f32.mrb[0].mxu0
        %v5030 = vadd.f32 %v4837, %v5029
        %v5031 = vpop.f32.mrb[0].mxu0
        %v5032 = vadd.f32 %v4839, %v5031
        %v5033 = vpop.f32.mrb[0].mxu0
        %v5034 = vadd.f32 %v4841, %v5033
        %5035 = vmatprep.mubr.bf16.mxu0 %v3663
        %5036 = vmatmul.mubr.bf16.gmra.mrb[0].mxu0 %v3662
        %v5037 = vpop.f32.mrb[0].mxu0
        %v5038 = vadd.f32 %v4845, %v5037
        %v5039 = vpop.f32.mrb[0].mxu0
        %v5040 = vadd.f32 %v4847, %v5039
        %v5041 = vpop.f32.mrb[0].mxu0
        %v5042 = vadd.f32 %v4849, %v5041
        %v5043 = vpop.f32.mrb[0].mxu0
        %v5044 = vadd.f32 %v4851, %v5043
        %5045 = vmatprep.mubr.bf16.mxu0 %v3667
        %5046 = vmatmul.mubr.bf16.gmra.mrb[0].mxu0 %v3666
        %v5047 = vpop.f32.mrb[0].mxu0
        %v5048 = vadd.f32 %v4855, %v5047
        %v5049 = vpop.f32.mrb[0].mxu0
        %v5050 = vadd.f32 %v4857, %v5049
        %v5051 = vpop.f32.mrb[0].mxu0
        %v5052 = vadd.f32 %v4859, %v5051
        %v5053 = vpop.f32.mrb[0].mxu0
        %v5054 = vadd.f32 %v4861, %v5053
        %5055 = vmatprep.mubr.bf16.mxu0 %v3671
        %5056 = vmatmul.mubr.bf16.gmra.mrb[0].mxu0 %v3670
        %v5057 = vpop.f32.mrb[0].mxu0
        %v5058 = vadd.f32 %v4865, %v5057
        %v5059 = vpop.f32.mrb[0].mxu0
        %v5060 = vadd.f32 %v4867, %v5059
        %v5061 = vpop.f32.mrb[0].mxu0
        %v5062 = vadd.f32 %v4869, %v5061
        %v5063 = vpop.f32.mrb[0].mxu0
        %v5064 = vadd.f32 %v4871, %v5063
        %5065 = vmatprep.mubr.bf16.mxu0 %v3675
        %5066 = vmatmul.mubr.bf16.gmra.mrb[0].mxu0 %v3674
        %v5067 = vpop.f32.mrb[0].mxu0
        %v5068 = vadd.f32 %v4875, %v5067
        %v5069 = vpop.f32.mrb[0].mxu0
        %v5070 = vadd.f32 %v4877, %v5069
        %v5071 = vpop.f32.mrb[0].mxu0
        %v5072 = vadd.f32 %v4879, %v5071
        %v5073 = vpop.f32.mrb[0].mxu0
        %v5074 = vadd.f32 %v4881, %v5073
        %5075 = vmatprep.mubr.bf16.mxu0 %v3679
        %5076 = vmatmul.mubr.bf16.gmra.mrb[0].mxu0 %v3678
        %v5077 = vpop.f32.mrb[0].mxu0
        %v5078 = vadd.f32 %v4885, %v5077
        %v5079 = vpop.f32.mrb[0].mxu0
        %v5080 = vadd.f32 %v4887, %v5079
        %v5081 = vpop.f32.mrb[0].mxu0
        %v5082 = vadd.f32 %v4889, %v5081
        %v5083 = vpop.f32.mrb[0].mxu0
        %v5084 = vadd.f32 %v4891, %v5083
        %5085 = vmatprep.mubr.bf16.mxu0 %v3683
        %5086 = vmatmul.mubr.bf16.gmra.mrb[0].mxu0 %v3682
        %v5087 = vpop.f32.mrb[0].mxu0
        %v5088 = vadd.f32 %v4895, %v5087
        %v5089 = vpop.f32.mrb[0].mxu0
        %v5090 = vadd.f32 %v4897, %v5089
        %v5091 = vpop.f32.mrb[0].mxu0
        %v5092 = vadd.f32 %v4899, %v5091
        %v5093 = vpop.f32.mrb[0].mxu0
        %v5094 = vadd.f32 %v4901, %v5093
        %5095 = vdwg.mxu0
        %5096 = vmatprep.subr.bf16.mxu0 %v1475
        %5097 = vmatpush1.bf16.msra.mxu0 %v1474
        %5098 = vmatprep.subr.bf16.mxu0 %v1479
        %5099 = vmatpush1.bf16.msra.mxu0 %v1478
        %5100 = vmatprep.subr.bf16.mxu0 %v1483
        %5101 = vmatpush1.bf16.msra.mxu0 %v1482
        %5102 = vmatprep.subr.bf16.mxu0 %v1487
        %5103 = vmatpush1.bf16.msra.mxu0 %v1486
        %5104 = vmatprep.subr.bf16.mxu0 %v1491
        %5105 = vmatpush1.bf16.msra.mxu0 %v1490
        %5106 = vmatprep.subr.bf16.mxu0 %v1495
        %5107 = vmatpush1.bf16.msra.mxu0 %v1494
        %5108 = vmatprep.subr.bf16.mxu0 %v1499
        %5109 = vmatpush1.bf16.msra.mxu0 %v1498
        %5110 = vmatprep.subr.bf16.mxu0 %v1503
        %5111 = vmatpush1.bf16.msra.mxu0 %v1502
        %5112 = vmatprep.subr.bf16.mxu0 %v1507
        %5113 = vmatpush1.bf16.msra.mxu0 %v1506
        %5114 = vmatprep.subr.bf16.mxu0 %v1511
        %5115 = vmatpush1.bf16.msra.mxu0 %v1510
        %5116 = vmatprep.subr.bf16.mxu0 %v1515
        %5117 = vmatpush1.bf16.msra.mxu0 %v1514
        %5118 = vmatprep.subr.bf16.mxu0 %v1519
        %5119 = vmatpush1.bf16.msra.mxu0 %v1518
        %5120 = vmatprep.subr.bf16.mxu0 %v1523
        %5121 = vmatpush1.bf16.msra.mxu0 %v1522
        %5122 = vmatprep.subr.bf16.mxu0 %v1527
        %5123 = vmatpush1.bf16.msra.mxu0 %v1526
        %5124 = vmatprep.subr.bf16.mxu0 %v1531
        %5125 = vmatpush1.bf16.msra.mxu0 %v1530
        %5126 = vmatprep.subr.bf16.mxu0 %v1535
        %5127 = vmatpush1.bf16.msra.mxu0 %v1534
        %5128 = vmatprep.mubr.bf16.mxu0 %v3621
        %5129 = vmatmul.mubr.bf16.gmra.mrb[0].mxu0 %v3620
        %v5130 = vpop.f32.mrb[0].mxu0
        %v5131 = vadd.f32 %v4552, %v5130
        %v5132 = vpop.f32.mrb[0].mxu0
        %v5133 = vadd.f32 %v4554, %v5132
        %v5134 = vpop.f32.mrb[0].mxu0
        %v5135 = vadd.f32 %v4556, %v5134
        %v5136 = vpop.f32.mrb[0].mxu0
        %v5137 = vadd.f32 %v4558, %v5136
        %5138 = vmatprep.mubr.bf16.mxu0 %v3625
        %5139 = vmatmul.mubr.bf16.gmra.mrb[0].mxu0 %v3624
        %v5140 = vpop.f32.mrb[0].mxu0
        %v5141 = vadd.f32 %v4562, %v5140
        %v5142 = vpop.f32.mrb[0].mxu0
        %v5143 = vadd.f32 %v4564, %v5142
        %v5144 = vpop.f32.mrb[0].mxu0
        %v5145 = vadd.f32 %v4566, %v5144
        %v5146 = vpop.f32.mrb[0].mxu0
        %v5147 = vadd.f32 %v4568, %v5146
        %5148 = vmatprep.mubr.bf16.mxu0 %v3629
        %5149 = vmatmul.mubr.bf16.gmra.mrb[0].mxu0 %v3628
        %v5150 = vpop.f32.mrb[0].mxu0
        %v5151 = vadd.f32 %v4572, %v5150
        %v5152 = vpop.f32.mrb[0].mxu0
        %v5153 = vadd.f32 %v4574, %v5152
        %v5154 = vpop.f32.mrb[0].mxu0
        %v5155 = vadd.f32 %v4576, %v5154
        %v5156 = vpop.f32.mrb[0].mxu0
        %v5157 = vadd.f32 %v4578, %v5156
        %5158 = vmatprep.mubr.bf16.mxu0 %v3633
        %5159 = vmatmul.mubr.bf16.gmra.mrb[0].mxu0 %v3632
        %v5160 = vpop.f32.mrb[0].mxu0
        %v5161 = vadd.f32 %v4582, %v5160
        %v5162 = vpop.f32.mrb[0].mxu0
        %v5163 = vadd.f32 %v4584, %v5162
        %v5164 = vpop.f32.mrb[0].mxu0
        %v5165 = vadd.f32 %v4586, %v5164
        %v5166 = vpop.f32.mrb[0].mxu0
        %v5167 = vadd.f32 %v4588, %v5166
        %5168 = vmatprep.mubr.bf16.mxu0 %v3637
        %5169 = vmatmul.mubr.bf16.gmra.mrb[0].mxu0 %v3636
        %v5170 = vpop.f32.mrb[0].mxu0
        %v5171 = vadd.f32 %v4592, %v5170
        %v5172 = vpop.f32.mrb[0].mxu0
        %v5173 = vadd.f32 %v4594, %v5172
        %v5174 = vpop.f32.mrb[0].mxu0
        %v5175 = vadd.f32 %v4596, %v5174
        %v5176 = vpop.f32.mrb[0].mxu0
        %v5177 = vadd.f32 %v4598, %v5176
        %5178 = vmatprep.mubr.bf16.mxu0 %v3641
        %5179 = vmatmul.mubr.bf16.gmra.mrb[0].mxu0 %v3640
        %v5180 = vpop.f32.mrb[0].mxu0
        %v5181 = vadd.f32 %v4602, %v5180
        %v5182 = vpop.f32.mrb[0].mxu0
        %v5183 = vadd.f32 %v4604, %v5182
        %v5184 = vpop.f32.mrb[0].mxu0
        %v5185 = vadd.f32 %v4606, %v5184
        %v5186 = vpop.f32.mrb[0].mxu0
        %v5187 = vadd.f32 %v4608, %v5186
        %5188 = vmatprep.mubr.bf16.mxu0 %v3645
        %5189 = vmatmul.mubr.bf16.gmra.mrb[0].mxu0 %v3644
        %v5190 = vpop.f32.mrb[0].mxu0
        %v5191 = vadd.f32 %v4612, %v5190
        %v5192 = vpop.f32.mrb[0].mxu0
        %v5193 = vadd.f32 %v4614, %v5192
        %v5194 = vpop.f32.mrb[0].mxu0
        %v5195 = vadd.f32 %v4616, %v5194
        %v5196 = vpop.f32.mrb[0].mxu0
        %v5197 = vadd.f32 %v4618, %v5196
        %5198 = vmatprep.mubr.bf16.mxu0 %v3649
        %5199 = vmatmul.mubr.bf16.gmra.mrb[0].mxu0 %v3648
        %v5200 = vpop.f32.mrb[0].mxu0
        %v5201 = vadd.f32 %v4622, %v5200
        %v5202 = vpop.f32.mrb[0].mxu0
        %v5203 = vadd.f32 %v4624, %v5202
        %v5204 = vpop.f32.mrb[0].mxu0
        %v5205 = vadd.f32 %v4626, %v5204
        %v5206 = vpop.f32.mrb[0].mxu0
        %v5207 = vadd.f32 %v4628, %v5206
        %5208 = vmatprep.mubr.bf16.mxu0 %v3653
        %5209 = vmatmul.mubr.bf16.gmra.mrb[0].mxu0 %v3652
        %v5210 = vpop.f32.mrb[0].mxu0
        %v5211 = vadd.f32 %v4632, %v5210
        %v5212 = vpop.f32.mrb[0].mxu0
        %v5213 = vadd.f32 %v4634, %v5212
        %v5214 = vpop.f32.mrb[0].mxu0
        %v5215 = vadd.f32 %v4636, %v5214
        %v5216 = vpop.f32.mrb[0].mxu0
        %v5217 = vadd.f32 %v4638, %v5216
        %5218 = vmatprep.mubr.bf16.mxu0 %v3657
        %5219 = vmatmul.mubr.bf16.gmra.mrb[0].mxu0 %v3656
        %v5220 = vpop.f32.mrb[0].mxu0
        %v5221 = vadd.f32 %v4642, %v5220
        %v5222 = vpop.f32.mrb[0].mxu0
        %v5223 = vadd.f32 %v4644, %v5222
        %v5224 = vpop.f32.mrb[0].mxu0
        %v5225 = vadd.f32 %v4646, %v5224
        %v5226 = vpop.f32.mrb[0].mxu0
        %v5227 = vadd.f32 %v4648, %v5226
        %5228 = vmatprep.mubr.bf16.mxu0 %v3661
        %5229 = vmatmul.mubr.bf16.gmra.mrb[0].mxu0 %v3660
        %v5230 = vpop.f32.mrb[0].mxu0
        %v5231 = vadd.f32 %v4652, %v5230
        %v5232 = vpop.f32.mrb[0].mxu0
        %v5233 = vadd.f32 %v4654, %v5232
        %v5234 = vpop.f32.mrb[0].mxu0
        %v5235 = vadd.f32 %v4656, %v5234
        %v5236 = vpop.f32.mrb[0].mxu0
        %v5237 = vadd.f32 %v4658, %v5236
        %5238 = vmatprep.mubr.bf16.mxu0 %v3665
        %5239 = vmatmul.mubr.bf16.gmra.mrb[0].mxu0 %v3664
        %v5240 = vpop.f32.mrb[0].mxu0
        %v5241 = vadd.f32 %v4662, %v5240
        %v5242 = vpop.f32.mrb[0].mxu0
        %v5243 = vadd.f32 %v4664, %v5242
        %v5244 = vpop.f32.mrb[0].mxu0
        %v5245 = vadd.f32 %v4666, %v5244
        %v5246 = vpop.f32.mrb[0].mxu0
        %v5247 = vadd.f32 %v4668, %v5246
        %5248 = vmatprep.mubr.bf16.mxu0 %v3669
        %5249 = vmatmul.mubr.bf16.gmra.mrb[0].mxu0 %v3668
        %v5250 = vpop.f32.mrb[0].mxu0
        %v5251 = vadd.f32 %v4672, %v5250
        %v5252 = vpop.f32.mrb[0].mxu0
        %v5253 = vadd.f32 %v4674, %v5252
        %v5254 = vpop.f32.mrb[0].mxu0
        %v5255 = vadd.f32 %v4676, %v5254
        %v5256 = vpop.f32.mrb[0].mxu0
        %v5257 = vadd.f32 %v4678, %v5256
        %5258 = vmatprep.mubr.bf16.mxu0 %v3673
        %5259 = vmatmul.mubr.bf16.gmra.mrb[0].mxu0 %v3672
        %v5260 = vpop.f32.mrb[0].mxu0
        %v5261 = vadd.f32 %v4682, %v5260
        %v5262 = vpop.f32.mrb[0].mxu0
        %v5263 = vadd.f32 %v4684, %v5262
        %v5264 = vpop.f32.mrb[0].mxu0
        %v5265 = vadd.f32 %v4686, %v5264
        %v5266 = vpop.f32.mrb[0].mxu0
        %v5267 = vadd.f32 %v4688, %v5266
        %5268 = vmatprep.mubr.bf16.mxu0 %v3677
        %5269 = vmatmul.mubr.bf16.gmra.mrb[0].mxu0 %v3676
        %v5270 = vpop.f32.mrb[0].mxu0
        %v5271 = vadd.f32 %v4692, %v5270
        %v5272 = vpop.f32.mrb[0].mxu0
        %v5273 = vadd.f32 %v4694, %v5272
        %v5274 = vpop.f32.mrb[0].mxu0
        %v5275 = vadd.f32 %v4696, %v5274
        %v5276 = vpop.f32.mrb[0].mxu0
        %v5277 = vadd.f32 %v4698, %v5276
        %5278 = vmatprep.mubr.bf16.mxu0 %v3681
        %5279 = vmatmul.mubr.bf16.gmra.mrb[0].mxu0 %v3680
        %v5280 = vpop.f32.mrb[0].mxu0
        %v5281 = vadd.f32 %v4702, %v5280
        %v5282 = vpop.f32.mrb[0].mxu0
        %v5283 = vadd.f32 %v4704, %v5282
        %v5284 = vpop.f32.mrb[0].mxu0
        %v5285 = vadd.f32 %v4706, %v5284
        %v5286 = vpop.f32.mrb[0].mxu0
        %v5287 = vadd.f32 %v4708, %v5286
        %5288 = vdwg.mxu0
        %5289 = vmatprep.subr.bf16.mxu0 %v1539
        %5290 = vmatpush1.bf16.msra.mxu0 %v1538
        %5291 = vmatprep.subr.bf16.mxu0 %v1543
        %5292 = vmatpush1.bf16.msra.mxu0 %v1542
        %5293 = vmatprep.subr.bf16.mxu0 %v1547
        %5294 = vmatpush1.bf16.msra.mxu0 %v1546
        %5295 = vmatprep.subr.bf16.mxu0 %v1551
        %5296 = vmatpush1.bf16.msra.mxu0 %v1550
        %5297 = vmatprep.subr.bf16.mxu0 %v1555
        %5298 = vmatpush1.bf16.msra.mxu0 %v1554
        %5299 = vmatprep.subr.bf16.mxu0 %v1559
        %5300 = vmatpush1.bf16.msra.mxu0 %v1558
        %5301 = vmatprep.subr.bf16.mxu0 %v1563
        %5302 = vmatpush1.bf16.msra.mxu0 %v1562
        %5303 = vmatprep.subr.bf16.mxu0 %v1567
        %5304 = vmatpush1.bf16.msra.mxu0 %v1566
        %5305 = vmatprep.subr.bf16.mxu0 %v1571
        %5306 = vmatpush1.bf16.msra.mxu0 %v1570
        %5307 = vmatprep.subr.bf16.mxu0 %v1575
        %5308 = vmatpush1.bf16.msra.mxu0 %v1574
        %5309 = vmatprep.subr.bf16.mxu0 %v1579
        %5310 = vmatpush1.bf16.msra.mxu0 %v1578
        %5311 = vmatprep.subr.bf16.mxu0 %v1583
        %5312 = vmatpush1.bf16.msra.mxu0 %v1582
        %5313 = vmatprep.subr.bf16.mxu0 %v1587
        %5314 = vmatpush1.bf16.msra.mxu0 %v1586
        %5315 = vmatprep.subr.bf16.mxu0 %v1591
        %5316 = vmatpush1.bf16.msra.mxu0 %v1590
        %5317 = vmatprep.subr.bf16.mxu0 %v1595
        %5318 = vmatpush1.bf16.msra.mxu0 %v1594
        %5319 = vmatprep.subr.bf16.mxu0 %v1599
        %5320 = vmatpush1.bf16.msra.mxu0 %v1598
        %5321 = vmatprep.mubr.bf16.mxu0 %v3623
        %5322 = vmatmul.mubr.bf16.gmra.mrb[0].mxu0 %v3622
        %v5323 = vpop.f32.mrb[0].mxu0
        %v5324 = vadd.f32 %v5131, %v5323
        %v5325 = vpop.f32.mrb[0].mxu0
        %v5326 = vadd.f32 %v5133, %v5325
        %v5327 = vpop.f32.mrb[0].mxu0
        %v5328 = vadd.f32 %v5135, %v5327
        %v5329 = vpop.f32.mrb[0].mxu0
        %v5330 = vadd.f32 %v5137, %v5329
        %5331 = vmatprep.mubr.bf16.mxu0 %v3627
        %5332 = vmatmul.mubr.bf16.gmra.mrb[0].mxu0 %v3626
        %v5333 = vpop.f32.mrb[0].mxu0
        %v5334 = vadd.f32 %v5141, %v5333
        %v5335 = vpop.f32.mrb[0].mxu0
        %v5336 = vadd.f32 %v5143, %v5335
        %v5337 = vpop.f32.mrb[0].mxu0
        %v5338 = vadd.f32 %v5145, %v5337
        %v5339 = vpop.f32.mrb[0].mxu0
        %v5340 = vadd.f32 %v5147, %v5339
        %5341 = vmatprep.mubr.bf16.mxu0 %v3631
        %5342 = vmatmul.mubr.bf16.gmra.mrb[0].mxu0 %v3630
        %v5343 = vpop.f32.mrb[0].mxu0
        %v5344 = vadd.f32 %v5151, %v5343
        %v5345 = vpop.f32.mrb[0].mxu0
        %v5346 = vadd.f32 %v5153, %v5345
        %v5347 = vpop.f32.mrb[0].mxu0
        %v5348 = vadd.f32 %v5155, %v5347
        %v5349 = vpop.f32.mrb[0].mxu0
        %v5350 = vadd.f32 %v5157, %v5349
        %5351 = vmatprep.mubr.bf16.mxu0 %v3635
        %5352 = vmatmul.mubr.bf16.gmra.mrb[0].mxu0 %v3634
        %v5353 = vpop.f32.mrb[0].mxu0
        %v5354 = vadd.f32 %v5161, %v5353
        %v5355 = vpop.f32.mrb[0].mxu0
        %v5356 = vadd.f32 %v5163, %v5355
        %v5357 = vpop.f32.mrb[0].mxu0
        %v5358 = vadd.f32 %v5165, %v5357
        %v5359 = vpop.f32.mrb[0].mxu0
        %v5360 = vadd.f32 %v5167, %v5359
        %5361 = vmatprep.mubr.bf16.mxu0 %v3639
        %5362 = vmatmul.mubr.bf16.gmra.mrb[0].mxu0 %v3638
        %v5363 = vpop.f32.mrb[0].mxu0
        %v5364 = vadd.f32 %v5171, %v5363
        %v5365 = vpop.f32.mrb[0].mxu0
        %v5366 = vadd.f32 %v5173, %v5365
        %v5367 = vpop.f32.mrb[0].mxu0
        %v5368 = vadd.f32 %v5175, %v5367
        %v5369 = vpop.f32.mrb[0].mxu0
        %v5370 = vadd.f32 %v5177, %v5369
        %5371 = vmatprep.mubr.bf16.mxu0 %v3643
        %5372 = vmatmul.mubr.bf16.gmra.mrb[0].mxu0 %v3642
        %v5373 = vpop.f32.mrb[0].mxu0
        %v5374 = vadd.f32 %v5181, %v5373
        %v5375 = vpop.f32.mrb[0].mxu0
        %v5376 = vadd.f32 %v5183, %v5375
        %v5377 = vpop.f32.mrb[0].mxu0
        %v5378 = vadd.f32 %v5185, %v5377
        %v5379 = vpop.f32.mrb[0].mxu0
        %v5380 = vadd.f32 %v5187, %v5379
        %5381 = vmatprep.mubr.bf16.mxu0 %v3647
        %5382 = vmatmul.mubr.bf16.gmra.mrb[0].mxu0 %v3646
        %v5383 = vpop.f32.mrb[0].mxu0
        %v5384 = vadd.f32 %v5191, %v5383
        %v5385 = vpop.f32.mrb[0].mxu0
        %v5386 = vadd.f32 %v5193, %v5385
        %v5387 = vpop.f32.mrb[0].mxu0
        %v5388 = vadd.f32 %v5195, %v5387
        %v5389 = vpop.f32.mrb[0].mxu0
        %v5390 = vadd.f32 %v5197, %v5389
        %5391 = vmatprep.mubr.bf16.mxu0 %v3651
        %5392 = vmatmul.mubr.bf16.gmra.mrb[0].mxu0 %v3650
        %v5393 = vpop.f32.mrb[0].mxu0
        %v5394 = vadd.f32 %v5201, %v5393
        %v5395 = vpop.f32.mrb[0].mxu0
        %v5396 = vadd.f32 %v5203, %v5395
        %v5397 = vpop.f32.mrb[0].mxu0
        %v5398 = vadd.f32 %v5205, %v5397
        %v5399 = vpop.f32.mrb[0].mxu0
        %v5400 = vadd.f32 %v5207, %v5399
        %5401 = vmatprep.mubr.bf16.mxu0 %v3655
        %5402 = vmatmul.mubr.bf16.gmra.mrb[0].mxu0 %v3654
        %v5403 = vpop.f32.mrb[0].mxu0
        %v5404 = vadd.f32 %v5211, %v5403
        %v5405 = vpop.f32.mrb[0].mxu0
        %v5406 = vadd.f32 %v5213, %v5405
        %v5407 = vpop.f32.mrb[0].mxu0
        %v5408 = vadd.f32 %v5215, %v5407
        %v5409 = vpop.f32.mrb[0].mxu0
        %v5410 = vadd.f32 %v5217, %v5409
        %5411 = vmatprep.mubr.bf16.mxu0 %v3659
        %5412 = vmatmul.mubr.bf16.gmra.mrb[0].mxu0 %v3658
        %v5413 = vpop.f32.mrb[0].mxu0
        %v5414 = vadd.f32 %v5221, %v5413
        %v5415 = vpop.f32.mrb[0].mxu0
        %v5416 = vadd.f32 %v5223, %v5415
        %v5417 = vpop.f32.mrb[0].mxu0
        %v5418 = vadd.f32 %v5225, %v5417
        %v5419 = vpop.f32.mrb[0].mxu0
        %v5420 = vadd.f32 %v5227, %v5419
        %5421 = vmatprep.mubr.bf16.mxu0 %v3663
        %5422 = vmatmul.mubr.bf16.gmra.mrb[0].mxu0 %v3662
        %v5423 = vpop.f32.mrb[0].mxu0
        %v5424 = vadd.f32 %v5231, %v5423
        %v5425 = vpop.f32.mrb[0].mxu0
        %v5426 = vadd.f32 %v5233, %v5425
        %v5427 = vpop.f32.mrb[0].mxu0
        %v5428 = vadd.f32 %v5235, %v5427
        %v5429 = vpop.f32.mrb[0].mxu0
        %v5430 = vadd.f32 %v5237, %v5429
        %5431 = vmatprep.mubr.bf16.mxu0 %v3667
        %5432 = vmatmul.mubr.bf16.gmra.mrb[0].mxu0 %v3666
        %v5433 = vpop.f32.mrb[0].mxu0
        %v5434 = vadd.f32 %v5241, %v5433
        %v5435 = vpop.f32.mrb[0].mxu0
        %v5436 = vadd.f32 %v5243, %v5435
        %v5437 = vpop.f32.mrb[0].mxu0
        %v5438 = vadd.f32 %v5245, %v5437
        %v5439 = vpop.f32.mrb[0].mxu0
        %v5440 = vadd.f32 %v5247, %v5439
        %5441 = vmatprep.mubr.bf16.mxu0 %v3671
        %5442 = vmatmul.mubr.bf16.gmra.mrb[0].mxu0 %v3670
        %v5443 = vpop.f32.mrb[0].mxu0
        %v5444 = vadd.f32 %v5251, %v5443
        %v5445 = vpop.f32.mrb[0].mxu0
        %v5446 = vadd.f32 %v5253, %v5445
        %v5447 = vpop.f32.mrb[0].mxu0
        %v5448 = vadd.f32 %v5255, %v5447
        %v5449 = vpop.f32.mrb[0].mxu0
        %v5450 = vadd.f32 %v5257, %v5449
        %5451 = vmatprep.mubr.bf16.mxu0 %v3675
        %5452 = vmatmul.mubr.bf16.gmra.mrb[0].mxu0 %v3674
        %v5453 = vpop.f32.mrb[0].mxu0
        %v5454 = vadd.f32 %v5261, %v5453
        %v5455 = vpop.f32.mrb[0].mxu0
        %v5456 = vadd.f32 %v5263, %v5455
        %v5457 = vpop.f32.mrb[0].mxu0
        %v5458 = vadd.f32 %v5265, %v5457
        %v5459 = vpop.f32.mrb[0].mxu0
        %v5460 = vadd.f32 %v5267, %v5459
        %5461 = vmatprep.mubr.bf16.mxu0 %v3679
        %5462 = vmatmul.mubr.bf16.gmra.mrb[0].mxu0 %v3678
        %v5463 = vpop.f32.mrb[0].mxu0
        %v5464 = vadd.f32 %v5271, %v5463
        %v5465 = vpop.f32.mrb[0].mxu0
        %v5466 = vadd.f32 %v5273, %v5465
        %v5467 = vpop.f32.mrb[0].mxu0
        %v5468 = vadd.f32 %v5275, %v5467
        %v5469 = vpop.f32.mrb[0].mxu0
        %v5470 = vadd.f32 %v5277, %v5469
        %5471 = vmatprep.mubr.bf16.mxu0 %v3683
        %5472 = vmatmul.mubr.bf16.gmra.mrb[0].mxu0 %v3682
        %v5473 = vpop.f32.mrb[0].mxu0
        %v5474 = vadd.f32 %v5281, %v5473
        %v5475 = vpop.f32.mrb[0].mxu0
        %v5476 = vadd.f32 %v5283, %v5475
        %v5477 = vpop.f32.mrb[0].mxu0
        %v5478 = vadd.f32 %v5285, %v5477
        %v5479 = vpop.f32.mrb[0].mxu0
        %v5480 = vadd.f32 %v5287, %v5479
        %5481 = vdwg.mxu0
        %5482 = vmatprep.subr.bf16.mxu0 %v1477
        %5483 = vmatpush1.bf16.msra.mxu0 %v1476
        %5484 = vmatprep.subr.bf16.mxu0 %v1481
        %5485 = vmatpush1.bf16.msra.mxu0 %v1480
        %5486 = vmatprep.subr.bf16.mxu0 %v1485
        %5487 = vmatpush1.bf16.msra.mxu0 %v1484
        %5488 = vmatprep.subr.bf16.mxu0 %v1489
        %5489 = vmatpush1.bf16.msra.mxu0 %v1488
        %5490 = vmatprep.subr.bf16.mxu0 %v1493
        %5491 = vmatpush1.bf16.msra.mxu0 %v1492
        %5492 = vmatprep.subr.bf16.mxu0 %v1497
        %5493 = vmatpush1.bf16.msra.mxu0 %v1496
        %5494 = vmatprep.subr.bf16.mxu0 %v1501
        %5495 = vmatpush1.bf16.msra.mxu0 %v1500
        %5496 = vmatprep.subr.bf16.mxu0 %v1505
        %5497 = vmatpush1.bf16.msra.mxu0 %v1504
        %5498 = vmatprep.subr.bf16.mxu0 %v1509
        %5499 = vmatpush1.bf16.msra.mxu0 %v1508
        %5500 = vmatprep.subr.bf16.mxu0 %v1513
        %5501 = vmatpush1.bf16.msra.mxu0 %v1512
        %5502 = vmatprep.subr.bf16.mxu0 %v1517
        %5503 = vmatpush1.bf16.msra.mxu0 %v1516
        %5504 = vmatprep.subr.bf16.mxu0 %v1521
        %5505 = vmatpush1.bf16.msra.mxu0 %v1520
        %5506 = vmatprep.subr.bf16.mxu0 %v1525
        %5507 = vmatpush1.bf16.msra.mxu0 %v1524
        %5508 = vmatprep.subr.bf16.mxu0 %v1529
        %5509 = vmatpush1.bf16.msra.mxu0 %v1528
        %5510 = vmatprep.subr.bf16.mxu0 %v1533
        %5511 = vmatpush1.bf16.msra.mxu0 %v1532
        %5512 = vmatprep.subr.bf16.mxu0 %v1537
        %5513 = vmatpush1.bf16.msra.mxu0 %v1536
        %5514 = vmatprep.mubr.bf16.mxu0 %v3621
        %5515 = vmatmul.mubr.bf16.gmra.mrb[0].mxu0 %v3620
        %v5516 = vpop.f32.mrb[0].mxu0
        %v5517 = vadd.f32 %v4938, %v5516
        %v5518 = vpop.f32.mrb[0].mxu0
        %v5519 = vadd.f32 %v4940, %v5518
        %v5520 = vpop.f32.mrb[0].mxu0
        %v5521 = vadd.f32 %v4942, %v5520
        %v5522 = vpop.f32.mrb[0].mxu0
        %v5523 = vadd.f32 %v4944, %v5522
        %5524 = vmatprep.mubr.bf16.mxu0 %v3625
        %5525 = vmatmul.mubr.bf16.gmra.mrb[0].mxu0 %v3624
        %v5526 = vpop.f32.mrb[0].mxu0
        %v5527 = vadd.f32 %v4948, %v5526
        %v5528 = vpop.f32.mrb[0].mxu0
        %v5529 = vadd.f32 %v4950, %v5528
        %v5530 = vpop.f32.mrb[0].mxu0
        %v5531 = vadd.f32 %v4952, %v5530
        %v5532 = vpop.f32.mrb[0].mxu0
        %v5533 = vadd.f32 %v4954, %v5532
        %5534 = vmatprep.mubr.bf16.mxu0 %v3629
        %5535 = vmatmul.mubr.bf16.gmra.mrb[0].mxu0 %v3628
        %v5536 = vpop.f32.mrb[0].mxu0
        %v5537 = vadd.f32 %v4958, %v5536
        %v5538 = vpop.f32.mrb[0].mxu0
        %v5539 = vadd.f32 %v4960, %v5538
        %v5540 = vpop.f32.mrb[0].mxu0
        %v5541 = vadd.f32 %v4962, %v5540
        %v5542 = vpop.f32.mrb[0].mxu0
        %v5543 = vadd.f32 %v4964, %v5542
        %5544 = vmatprep.mubr.bf16.mxu0 %v3633
        %5545 = vmatmul.mubr.bf16.gmra.mrb[0].mxu0 %v3632
        %v5546 = vpop.f32.mrb[0].mxu0
        %v5547 = vadd.f32 %v4968, %v5546
        %v5548 = vpop.f32.mrb[0].mxu0
        %v5549 = vadd.f32 %v4970, %v5548
        %v5550 = vpop.f32.mrb[0].mxu0
        %v5551 = vadd.f32 %v4972, %v5550
        %v5552 = vpop.f32.mrb[0].mxu0
        %v5553 = vadd.f32 %v4974, %v5552
        %5554 = vmatprep.mubr.bf16.mxu0 %v3637
        %5555 = vmatmul.mubr.bf16.gmra.mrb[0].mxu0 %v3636
        %v5556 = vpop.f32.mrb[0].mxu0
        %v5557 = vadd.f32 %v4978, %v5556
        %v5558 = vpop.f32.mrb[0].mxu0
        %v5559 = vadd.f32 %v4980, %v5558
        %v5560 = vpop.f32.mrb[0].mxu0
        %v5561 = vadd.f32 %v4982, %v5560
        %v5562 = vpop.f32.mrb[0].mxu0
        %v5563 = vadd.f32 %v4984, %v5562
        %5564 = vmatprep.mubr.bf16.mxu0 %v3641
        %5565 = vmatmul.mubr.bf16.gmra.mrb[0].mxu0 %v3640
        %v5566 = vpop.f32.mrb[0].mxu0
        %v5567 = vadd.f32 %v4988, %v5566
        %v5568 = vpop.f32.mrb[0].mxu0
        %v5569 = vadd.f32 %v4990, %v5568
        %v5570 = vpop.f32.mrb[0].mxu0
        %v5571 = vadd.f32 %v4992, %v5570
        %v5572 = vpop.f32.mrb[0].mxu0
        %v5573 = vadd.f32 %v4994, %v5572
        %5574 = vmatprep.mubr.bf16.mxu0 %v3645
        %5575 = vmatmul.mubr.bf16.gmra.mrb[0].mxu0 %v3644
        %v5576 = vpop.f32.mrb[0].mxu0
        %v5577 = vadd.f32 %v4998, %v5576
        %v5578 = vpop.f32.mrb[0].mxu0
        %v5579 = vadd.f32 %v5000, %v5578
        %v5580 = vpop.f32.mrb[0].mxu0
        %v5581 = vadd.f32 %v5002, %v5580
        %v5582 = vpop.f32.mrb[0].mxu0
        %v5583 = vadd.f32 %v5004, %v5582
        %5584 = vmatprep.mubr.bf16.mxu0 %v3649
        %5585 = vmatmul.mubr.bf16.gmra.mrb[0].mxu0 %v3648
        %v5586 = vpop.f32.mrb[0].mxu0
        %v5587 = vadd.f32 %v5008, %v5586
        %v5588 = vpop.f32.mrb[0].mxu0
        %v5589 = vadd.f32 %v5010, %v5588
        %v5590 = vpop.f32.mrb[0].mxu0
        %v5591 = vadd.f32 %v5012, %v5590
        %v5592 = vpop.f32.mrb[0].mxu0
        %v5593 = vadd.f32 %v5014, %v5592
        %5594 = vmatprep.mubr.bf16.mxu0 %v3653
        %5595 = vmatmul.mubr.bf16.gmra.mrb[0].mxu0 %v3652
        %v5596 = vpop.f32.mrb[0].mxu0
        %v5597 = vadd.f32 %v5018, %v5596
        %v5598 = vpop.f32.mrb[0].mxu0
        %v5599 = vadd.f32 %v5020, %v5598
        %v5600 = vpop.f32.mrb[0].mxu0
        %v5601 = vadd.f32 %v5022, %v5600
        %v5602 = vpop.f32.mrb[0].mxu0
        %v5603 = vadd.f32 %v5024, %v5602
        %5604 = vmatprep.mubr.bf16.mxu0 %v3657
        %5605 = vmatmul.mubr.bf16.gmra.mrb[0].mxu0 %v3656
        %v5606 = vpop.f32.mrb[0].mxu0
        %v5607 = vadd.f32 %v5028, %v5606
        %v5608 = vpop.f32.mrb[0].mxu0
        %v5609 = vadd.f32 %v5030, %v5608
        %v5610 = vpop.f32.mrb[0].mxu0
        %v5611 = vadd.f32 %v5032, %v5610
        %v5612 = vpop.f32.mrb[0].mxu0
        %v5613 = vadd.f32 %v5034, %v5612
        %5614 = vmatprep.mubr.bf16.mxu0 %v3661
        %5615 = vmatmul.mubr.bf16.gmra.mrb[0].mxu0 %v3660
        %v5616 = vpop.f32.mrb[0].mxu0
        %v5617 = vadd.f32 %v5038, %v5616
        %v5618 = vpop.f32.mrb[0].mxu0
        %v5619 = vadd.f32 %v5040, %v5618
        %v5620 = vpop.f32.mrb[0].mxu0
        %v5621 = vadd.f32 %v5042, %v5620
        %v5622 = vpop.f32.mrb[0].mxu0
        %v5623 = vadd.f32 %v5044, %v5622
        %5624 = vmatprep.mubr.bf16.mxu0 %v3665
        %5625 = vmatmul.mubr.bf16.gmra.mrb[0].mxu0 %v3664
        %v5626 = vpop.f32.mrb[0].mxu0
        %v5627 = vadd.f32 %v5048, %v5626
        %v5628 = vpop.f32.mrb[0].mxu0
        %v5629 = vadd.f32 %v5050, %v5628
        %v5630 = vpop.f32.mrb[0].mxu0
        %v5631 = vadd.f32 %v5052, %v5630
        %v5632 = vpop.f32.mrb[0].mxu0
        %v5633 = vadd.f32 %v5054, %v5632
        %5634 = vmatprep.mubr.bf16.mxu0 %v3669
        %5635 = vmatmul.mubr.bf16.gmra.mrb[0].mxu0 %v3668
        %v5636 = vpop.f32.mrb[0].mxu0
        %v5637 = vadd.f32 %v5058, %v5636
        %v5638 = vpop.f32.mrb[0].mxu0
        %v5639 = vadd.f32 %v5060, %v5638
        %v5640 = vpop.f32.mrb[0].mxu0
        %v5641 = vadd.f32 %v5062, %v5640
        %v5642 = vpop.f32.mrb[0].mxu0
        %v5643 = vadd.f32 %v5064, %v5642
        %5644 = vmatprep.mubr.bf16.mxu0 %v3673
        %5645 = vmatmul.mubr.bf16.gmra.mrb[0].mxu0 %v3672
        %v5646 = vpop.f32.mrb[0].mxu0
        %v5647 = vadd.f32 %v5068, %v5646
        %v5648 = vpop.f32.mrb[0].mxu0
        %v5649 = vadd.f32 %v5070, %v5648
        %v5650 = vpop.f32.mrb[0].mxu0
        %v5651 = vadd.f32 %v5072, %v5650
        %v5652 = vpop.f32.mrb[0].mxu0
        %v5653 = vadd.f32 %v5074, %v5652
        %5654 = vmatprep.mubr.bf16.mxu0 %v3677
        %5655 = vmatmul.mubr.bf16.gmra.mrb[0].mxu0 %v3676
        %v5656 = vpop.f32.mrb[0].mxu0
        %v5657 = vadd.f32 %v5078, %v5656
        %v5658 = vpop.f32.mrb[0].mxu0
        %v5659 = vadd.f32 %v5080, %v5658
        %v5660 = vpop.f32.mrb[0].mxu0
        %v5661 = vadd.f32 %v5082, %v5660
        %v5662 = vpop.f32.mrb[0].mxu0
        %v5663 = vadd.f32 %v5084, %v5662
        %5664 = vmatprep.mubr.bf16.mxu0 %v3681
        %5665 = vmatmul.mubr.bf16.gmra.mrb[0].mxu0 %v3680
        %v5666 = vpop.f32.mrb[0].mxu0
        %v5667 = vadd.f32 %v5088, %v5666
        %v5668 = vpop.f32.mrb[0].mxu0
        %v5669 = vadd.f32 %v5090, %v5668
        %v5670 = vpop.f32.mrb[0].mxu0
        %v5671 = vadd.f32 %v5092, %v5670
        %v5672 = vpop.f32.mrb[0].mxu0
        %v5673 = vadd.f32 %v5094, %v5672
        %5674 = vdwg.mxu0
        %5675 = vmatprep.subr.bf16.mxu0 %v1541
        %5676 = vmatpush1.bf16.msra.mxu0 %v1540
        %5677 = vmatprep.subr.bf16.mxu0 %v1545
        %5678 = vmatpush1.bf16.msra.mxu0 %v1544
        %5679 = vmatprep.subr.bf16.mxu0 %v1549
        %5680 = vmatpush1.bf16.msra.mxu0 %v1548
        %5681 = vmatprep.subr.bf16.mxu0 %v1553
        %5682 = vmatpush1.bf16.msra.mxu0 %v1552
        %5683 = vmatprep.subr.bf16.mxu0 %v1557
        %5684 = vmatpush1.bf16.msra.mxu0 %v1556
        %5685 = vmatprep.subr.bf16.mxu0 %v1561
        %5686 = vmatpush1.bf16.msra.mxu0 %v1560
        %5687 = vmatprep.subr.bf16.mxu0 %v1565
        %5688 = vmatpush1.bf16.msra.mxu0 %v1564
        %5689 = vmatprep.subr.bf16.mxu0 %v1569
        %5690 = vmatpush1.bf16.msra.mxu0 %v1568
        %5691 = vmatprep.subr.bf16.mxu0 %v1573
        %5692 = vmatpush1.bf16.msra.mxu0 %v1572
        %5693 = vmatprep.subr.bf16.mxu0 %v1577
        %5694 = vmatpush1.bf16.msra.mxu0 %v1576
        %5695 = vmatprep.subr.bf16.mxu0 %v1581
        %5696 = vmatpush1.bf16.msra.mxu0 %v1580
        %5697 = vmatprep.subr.bf16.mxu0 %v1585
        %5698 = vmatpush1.bf16.msra.mxu0 %v1584
        %5699 = vmatprep.subr.bf16.mxu0 %v1589
        %5700 = vmatpush1.bf16.msra.mxu0 %v1588
        %5701 = vmatprep.subr.bf16.mxu0 %v1593
        %5702 = vmatpush1.bf16.msra.mxu0 %v1592
        %5703 = vmatprep.subr.bf16.mxu0 %v1597
        %5704 = vmatpush1.bf16.msra.mxu0 %v1596
        %5705 = vmatprep.subr.bf16.mxu0 %v1601
        %5706 = vmatpush1.bf16.msra.mxu0 %v1600
        %5707 = vmatprep.mubr.bf16.mxu0 %v3623
        %5708 = vmatmul.mubr.bf16.gmra.mrb[0].mxu0 %v3622
        %v5709 = vpop.f32.mrb[0].mxu0
        %v5710 = vadd.f32 %v5517, %v5709
        %v5711 = vpop.f32.mrb[0].mxu0
        %v5712 = vadd.f32 %v5519, %v5711
        %v5713 = vpop.f32.mrb[0].mxu0
        %v5714 = vadd.f32 %v5521, %v5713
        %v5715 = vpop.f32.mrb[0].mxu0
        %v5716 = vadd.f32 %v5523, %v5715
        %5717 = vmatprep.mubr.bf16.mxu0 %v3627
        %5718 = vmatmul.mubr.bf16.gmra.mrb[0].mxu0 %v3626
        %v5719 = vpop.f32.mrb[0].mxu0
        %v5720 = vadd.f32 %v5527, %v5719
        %v5721 = vpop.f32.mrb[0].mxu0
        %v5722 = vadd.f32 %v5529, %v5721
        %v5723 = vpop.f32.mrb[0].mxu0
        %v5724 = vadd.f32 %v5531, %v5723
        %v5725 = vpop.f32.mrb[0].mxu0
        %v5726 = vadd.f32 %v5533, %v5725
        %5727 = vmatprep.mubr.bf16.mxu0 %v3631
        %5728 = vmatmul.mubr.bf16.gmra.mrb[0].mxu0 %v3630
        %v5729 = vpop.f32.mrb[0].mxu0
        %v5730 = vadd.f32 %v5537, %v5729
        %v5731 = vpop.f32.mrb[0].mxu0
        %v5732 = vadd.f32 %v5539, %v5731
        %v5733 = vpop.f32.mrb[0].mxu0
        %v5734 = vadd.f32 %v5541, %v5733
        %v5735 = vpop.f32.mrb[0].mxu0
        %v5736 = vadd.f32 %v5543, %v5735
        %5737 = vmatprep.mubr.bf16.mxu0 %v3635
        %5738 = vmatmul.mubr.bf16.gmra.mrb[0].mxu0 %v3634
        %v5739 = vpop.f32.mrb[0].mxu0
        %v5740 = vadd.f32 %v5547, %v5739
        %v5741 = vpop.f32.mrb[0].mxu0
        %v5742 = vadd.f32 %v5549, %v5741
        %v5743 = vpop.f32.mrb[0].mxu0
        %v5744 = vadd.f32 %v5551, %v5743
        %v5745 = vpop.f32.mrb[0].mxu0
        %v5746 = vadd.f32 %v5553, %v5745
        %5747 = vmatprep.mubr.bf16.mxu0 %v3639
        %5748 = vmatmul.mubr.bf16.gmra.mrb[0].mxu0 %v3638
        %v5749 = vpop.f32.mrb[0].mxu0
        %v5750 = vadd.f32 %v5557, %v5749
        %v5751 = vpop.f32.mrb[0].mxu0
        %v5752 = vadd.f32 %v5559, %v5751
        %v5753 = vpop.f32.mrb[0].mxu0
        %v5754 = vadd.f32 %v5561, %v5753
        %v5755 = vpop.f32.mrb[0].mxu0
        %v5756 = vadd.f32 %v5563, %v5755
        %5757 = vmatprep.mubr.bf16.mxu0 %v3643
        %5758 = vmatmul.mubr.bf16.gmra.mrb[0].mxu0 %v3642
        %v5759 = vpop.f32.mrb[0].mxu0
        %v5760 = vadd.f32 %v5567, %v5759
        %v5761 = vpop.f32.mrb[0].mxu0
        %v5762 = vadd.f32 %v5569, %v5761
        %v5763 = vpop.f32.mrb[0].mxu0
        %v5764 = vadd.f32 %v5571, %v5763
        %v5765 = vpop.f32.mrb[0].mxu0
        %v5766 = vadd.f32 %v5573, %v5765
        %5767 = vmatprep.mubr.bf16.mxu0 %v3647
        %5768 = vmatmul.mubr.bf16.gmra.mrb[0].mxu0 %v3646
        %v5769 = vpop.f32.mrb[0].mxu0
        %v5770 = vadd.f32 %v5577, %v5769
        %v5771 = vpop.f32.mrb[0].mxu0
        %v5772 = vadd.f32 %v5579, %v5771
        %v5773 = vpop.f32.mrb[0].mxu0
        %v5774 = vadd.f32 %v5581, %v5773
        %v5775 = vpop.f32.mrb[0].mxu0
        %v5776 = vadd.f32 %v5583, %v5775
        %5777 = vmatprep.mubr.bf16.mxu0 %v3651
        %5778 = vmatmul.mubr.bf16.gmra.mrb[0].mxu0 %v3650
        %v5779 = vpop.f32.mrb[0].mxu0
        %v5780 = vadd.f32 %v5587, %v5779
        %v5781 = vpop.f32.mrb[0].mxu0
        %v5782 = vadd.f32 %v5589, %v5781
        %v5783 = vpop.f32.mrb[0].mxu0
        %v5784 = vadd.f32 %v5591, %v5783
        %v5785 = vpop.f32.mrb[0].mxu0
        %v5786 = vadd.f32 %v5593, %v5785
        %5787 = vmatprep.mubr.bf16.mxu0 %v3655
        %5788 = vmatmul.mubr.bf16.gmra.mrb[0].mxu0 %v3654
        %v5789 = vpop.f32.mrb[0].mxu0
        %v5790 = vadd.f32 %v5597, %v5789
        %v5791 = vpop.f32.mrb[0].mxu0
        %v5792 = vadd.f32 %v5599, %v5791
        %v5793 = vpop.f32.mrb[0].mxu0
        %v5794 = vadd.f32 %v5601, %v5793
        %v5795 = vpop.f32.mrb[0].mxu0
        %v5796 = vadd.f32 %v5603, %v5795
        %5797 = vmatprep.mubr.bf16.mxu0 %v3659
        %5798 = vmatmul.mubr.bf16.gmra.mrb[0].mxu0 %v3658
        %v5799 = vpop.f32.mrb[0].mxu0
        %v5800 = vadd.f32 %v5607, %v5799
        %v5801 = vpop.f32.mrb[0].mxu0
        %v5802 = vadd.f32 %v5609, %v5801
        %v5803 = vpop.f32.mrb[0].mxu0
        %v5804 = vadd.f32 %v5611, %v5803
        %v5805 = vpop.f32.mrb[0].mxu0
        %v5806 = vadd.f32 %v5613, %v5805
        %5807 = vmatprep.mubr.bf16.mxu0 %v3663
        %5808 = vmatmul.mubr.bf16.gmra.mrb[0].mxu0 %v3662
        %v5809 = vpop.f32.mrb[0].mxu0
        %v5810 = vadd.f32 %v5617, %v5809
        %v5811 = vpop.f32.mrb[0].mxu0
        %v5812 = vadd.f32 %v5619, %v5811
        %v5813 = vpop.f32.mrb[0].mxu0
        %v5814 = vadd.f32 %v5621, %v5813
        %v5815 = vpop.f32.mrb[0].mxu0
        %v5816 = vadd.f32 %v5623, %v5815
        %5817 = vmatprep.mubr.bf16.mxu0 %v3667
        %5818 = vmatmul.mubr.bf16.gmra.mrb[0].mxu0 %v3666
        %v5819 = vpop.f32.mrb[0].mxu0
        %v5820 = vadd.f32 %v5627, %v5819
        %v5821 = vpop.f32.mrb[0].mxu0
        %v5822 = vadd.f32 %v5629, %v5821
        %v5823 = vpop.f32.mrb[0].mxu0
        %v5824 = vadd.f32 %v5631, %v5823
        %v5825 = vpop.f32.mrb[0].mxu0
        %v5826 = vadd.f32 %v5633, %v5825
        %5827 = vmatprep.mubr.bf16.mxu0 %v3671
        %5828 = vmatmul.mubr.bf16.gmra.mrb[0].mxu0 %v3670
        %v5829 = vpop.f32.mrb[0].mxu0
        %v5830 = vadd.f32 %v5637, %v5829
        %v5831 = vpop.f32.mrb[0].mxu0
        %v5832 = vadd.f32 %v5639, %v5831
        %v5833 = vpop.f32.mrb[0].mxu0
        %v5834 = vadd.f32 %v5641, %v5833
        %v5835 = vpop.f32.mrb[0].mxu0
        %v5836 = vadd.f32 %v5643, %v5835
        %5837 = vmatprep.mubr.bf16.mxu0 %v3675
        %5838 = vmatmul.mubr.bf16.gmra.mrb[0].mxu0 %v3674
        %v5839 = vpop.f32.mrb[0].mxu0
        %v5840 = vadd.f32 %v5647, %v5839
        %v5841 = vpop.f32.mrb[0].mxu0
        %v5842 = vadd.f32 %v5649, %v5841
        %v5843 = vpop.f32.mrb[0].mxu0
        %v5844 = vadd.f32 %v5651, %v5843
        %v5845 = vpop.f32.mrb[0].mxu0
        %v5846 = vadd.f32 %v5653, %v5845
        %5847 = vmatprep.mubr.bf16.mxu0 %v3679
        %5848 = vmatmul.mubr.bf16.gmra.mrb[0].mxu0 %v3678
        %v5849 = vpop.f32.mrb[0].mxu0
        %v5850 = vadd.f32 %v5657, %v5849
        %v5851 = vpop.f32.mrb[0].mxu0
        %v5852 = vadd.f32 %v5659, %v5851
        %v5853 = vpop.f32.mrb[0].mxu0
        %v5854 = vadd.f32 %v5661, %v5853
        %v5855 = vpop.f32.mrb[0].mxu0
        %v5856 = vadd.f32 %v5663, %v5855
        %5857 = vmatprep.mubr.bf16.mxu0 %v3683
        %5858 = vmatmul.mubr.bf16.gmra.mrb[0].mxu0 %v3682
        %v5859 = vpop.f32.mrb[0].mxu0
        %v5860 = vadd.f32 %v5667, %v5859
        %v5861 = vpop.f32.mrb[0].mxu0
        %v5862 = vadd.f32 %v5669, %v5861
        %v5863 = vpop.f32.mrb[0].mxu0
        %v5864 = vadd.f32 %v5671, %v5863
        %v5865 = vpop.f32.mrb[0].mxu0
        %v5866 = vadd.f32 %v5673, %v5865
        %5867 = vdwg.mxu0
        %5868 = vst [vmem:[%s323] sm:$0xff] %v5324
        %5869 = vst [vmem:[%s323 + $0x8] sm:$0xff] %v5326
        %5870 = vst [vmem:[%s323 + $0x10] sm:$0xff] %v5710
        %5871 = vst [vmem:[%s323 + $0x18] sm:$0xff] %v5712
        %5872 = vst [vmem:[%s323 + $0x20] sm:$0xff] %v5328
        %5873 = vst [vmem:[%s323 + $0x28] sm:$0xff] %v5330
        %5874 = vst [vmem:[%s323 + $0x30] sm:$0xff] %v5714
        %5875 = vst [vmem:[%s323 + $0x38] sm:$0xff] %v5716
        %5876 = vst [vmem:[%s323 + $0x40] sm:$0xff] %v5334
        %5877 = vst [vmem:[%s323 + $0x48] sm:$0xff] %v5336
        %5878 = vst [vmem:[%s323 + $0x50] sm:$0xff] %v5720
        %5879 = vst [vmem:[%s323 + $0x58] sm:$0xff] %v5722
        %5880 = vst [vmem:[%s323 + $0x60] sm:$0xff] %v5338
        %5881 = vst [vmem:[%s323 + $0x68] sm:$0xff] %v5340
        %5882 = vst [vmem:[%s323 + $0x70] sm:$0xff] %v5724
        %5883 = vst [vmem:[%s323 + $0x78] sm:$0xff] %v5726
        %5884 = vst [vmem:[%s323 + $0x80] sm:$0xff] %v5344
        %5885 = vst [vmem:[%s323 + $0x88] sm:$0xff] %v5346
        %5886 = vst [vmem:[%s323 + $0x90] sm:$0xff] %v5730
        %5887 = vst [vmem:[%s323 + $0x98] sm:$0xff] %v5732
        %5888 = vst [vmem:[%s323 + $0xa0] sm:$0xff] %v5348
        %5889 = vst [vmem:[%s323 + $0xa8] sm:$0xff] %v5350
        %5890 = vst [vmem:[%s323 + $0xb0] sm:$0xff] %v5734
        %5891 = vst [vmem:[%s323 + $0xb8] sm:$0xff] %v5736
        %5892 = vst [vmem:[%s323 + $0xc0] sm:$0xff] %v5354
        %5893 = vst [vmem:[%s323 + $0xc8] sm:$0xff] %v5356
        %5894 = vst [vmem:[%s323 + $0xd0] sm:$0xff] %v5740
        %5895 = vst [vmem:[%s323 + $0xd8] sm:$0xff] %v5742
        %5896 = vst [vmem:[%s323 + $0xe0] sm:$0xff] %v5358
        %5897 = vst [vmem:[%s323 + $0xe8] sm:$0xff] %v5360
        %5898 = vst [vmem:[%s323 + $0xf0] sm:$0xff] %v5744
        %5899 = vst [vmem:[%s323 + $0xf8] sm:$0xff] %v5746
        %5900 = vst [vmem:[%s323 + $0x100] sm:$0xff] %v5364
        %5901 = vst [vmem:[%s323 + $0x108] sm:$0xff] %v5366
        %5902 = vst [vmem:[%s323 + $0x110] sm:$0xff] %v5750
        %5903 = vst [vmem:[%s323 + $0x118] sm:$0xff] %v5752
        %5904 = vst [vmem:[%s323 + $0x120] sm:$0xff] %v5368
        %5905 = vst [vmem:[%s323 + $0x128] sm:$0xff] %v5370
        %5906 = vst [vmem:[%s323 + $0x130] sm:$0xff] %v5754
        %5907 = vst [vmem:[%s323 + $0x138] sm:$0xff] %v5756
        %5908 = vst [vmem:[%s323 + $0x140] sm:$0xff] %v5374
        %5909 = vst [vmem:[%s323 + $0x148] sm:$0xff] %v5376
        %5910 = vst [vmem:[%s323 + $0x150] sm:$0xff] %v5760
        %5911 = vst [vmem:[%s323 + $0x158] sm:$0xff] %v5762
        %5912 = vst [vmem:[%s323 + $0x160] sm:$0xff] %v5378
        %5913 = vst [vmem:[%s323 + $0x168] sm:$0xff] %v5380
        %5914 = vst [vmem:[%s323 + $0x170] sm:$0xff] %v5764
        %5915 = vst [vmem:[%s323 + $0x178] sm:$0xff] %v5766
        %5916 = vst [vmem:[%s323 + $0x180] sm:$0xff] %v5384
        %5917 = vst [vmem:[%s323 + $0x188] sm:$0xff] %v5386
        %5918 = vst [vmem:[%s323 + $0x190] sm:$0xff] %v5770
        %5919 = vst [vmem:[%s323 + $0x198] sm:$0xff] %v5772
        %5920 = vst [vmem:[%s323 + $0x1a0] sm:$0xff] %v5388
        %5921 = vst [vmem:[%s323 + $0x1a8] sm:$0xff] %v5390
        %5922 = vst [vmem:[%s323 + $0x1b0] sm:$0xff] %v5774
        %5923 = vst [vmem:[%s323 + $0x1b8] sm:$0xff] %v5776
        %5924 = vst [vmem:[%s323 + $0x1c0] sm:$0xff] %v5394
        %5925 = vst [vmem:[%s323 + $0x1c8] sm:$0xff] %v5396
        %5926 = vst [vmem:[%s323 + $0x1d0] sm:$0xff] %v5780
        %5927 = vst [vmem:[%s323 + $0x1d8] sm:$0xff] %v5782
        %5928 = vst [vmem:[%s323 + $0x1e0] sm:$0xff] %v5398
        %5929 = vst [vmem:[%s323 + $0x1e8] sm:$0xff] %v5400
        %5930 = vst [vmem:[%s323 + $0x1f0] sm:$0xff] %v5784
        %5931 = vst [vmem:[%s323 + $0x1f8] sm:$0xff] %v5786
        %5932 = vst [vmem:[%s323 + $0x200] sm:$0xff] %v5404
        %5933 = vst [vmem:[%s323 + $0x208] sm:$0xff] %v5406
        %5934 = vst [vmem:[%s323 + $0x210] sm:$0xff] %v5790
        %5935 = vst [vmem:[%s323 + $0x218] sm:$0xff] %v5792
        %5936 = vst [vmem:[%s323 + $0x220] sm:$0xff] %v5408
        %5937 = vst [vmem:[%s323 + $0x228] sm:$0xff] %v5410
        %5938 = vst [vmem:[%s323 + $0x230] sm:$0xff] %v5794
        %5939 = vst [vmem:[%s323 + $0x238] sm:$0xff] %v5796
        %5940 = vst [vmem:[%s323 + $0x240] sm:$0xff] %v5414
        %5941 = vst [vmem:[%s323 + $0x248] sm:$0xff] %v5416
        %5942 = vst [vmem:[%s323 + $0x250] sm:$0xff] %v5800
        %5943 = vst [vmem:[%s323 + $0x258] sm:$0xff] %v5802
        %5944 = vst [vmem:[%s323 + $0x260] sm:$0xff] %v5418
        %5945 = vst [vmem:[%s323 + $0x268] sm:$0xff] %v5420
        %5946 = vst [vmem:[%s323 + $0x270] sm:$0xff] %v5804
        %5947 = vst [vmem:[%s323 + $0x278] sm:$0xff] %v5806
        %5948 = vst [vmem:[%s323 + $0x280] sm:$0xff] %v5424
        %5949 = vst [vmem:[%s323 + $0x288] sm:$0xff] %v5426
        %5950 = vst [vmem:[%s323 + $0x290] sm:$0xff] %v5810
        %5951 = vst [vmem:[%s323 + $0x298] sm:$0xff] %v5812
        %5952 = vst [vmem:[%s323 + $0x2a0] sm:$0xff] %v5428
        %5953 = vst [vmem:[%s323 + $0x2a8] sm:$0xff] %v5430
        %5954 = vst [vmem:[%s323 + $0x2b0] sm:$0xff] %v5814
        %5955 = vst [vmem:[%s323 + $0x2b8] sm:$0xff] %v5816
        %5956 = vst [vmem:[%s323 + $0x2c0] sm:$0xff] %v5434
        %5957 = vst [vmem:[%s323 + $0x2c8] sm:$0xff] %v5436
        %5958 = vst [vmem:[%s323 + $0x2d0] sm:$0xff] %v5820
        %5959 = vst [vmem:[%s323 + $0x2d8] sm:$0xff] %v5822
        %5960 = vst [vmem:[%s323 + $0x2e0] sm:$0xff] %v5438
        %5961 = vst [vmem:[%s323 + $0x2e8] sm:$0xff] %v5440
        %5962 = vst [vmem:[%s323 + $0x2f0] sm:$0xff] %v5824
        %5963 = vst [vmem:[%s323 + $0x2f8] sm:$0xff] %v5826
        %5964 = vst [vmem:[%s323 + $0x300] sm:$0xff] %v5444
        %5965 = vst [vmem:[%s323 + $0x308] sm:$0xff] %v5446
        %5966 = vst [vmem:[%s323 + $0x310] sm:$0xff] %v5830
        %5967 = vst [vmem:[%s323 + $0x318] sm:$0xff] %v5832
        %5968 = vst [vmem:[%s323 + $0x320] sm:$0xff] %v5448
        %5969 = vst [vmem:[%s323 + $0x328] sm:$0xff] %v5450
        %5970 = vst [vmem:[%s323 + $0x330] sm:$0xff] %v5834
        %5971 = vst [vmem:[%s323 + $0x338] sm:$0xff] %v5836
        %5972 = vst [vmem:[%s323 + $0x340] sm:$0xff] %v5454
        %5973 = vst [vmem:[%s323 + $0x348] sm:$0xff] %v5456
        %5974 = vst [vmem:[%s323 + $0x350] sm:$0xff] %v5840
        %5975 = vst [vmem:[%s323 + $0x358] sm:$0xff] %v5842
        %5976 = vst [vmem:[%s323 + $0x360] sm:$0xff] %v5458
        %5977 = vst [vmem:[%s323 + $0x368] sm:$0xff] %v5460
        %5978 = vst [vmem:[%s323 + $0x370] sm:$0xff] %v5844
        %5979 = vst [vmem:[%s323 + $0x378] sm:$0xff] %v5846
        %5980 = vst [vmem:[%s323 + $0x380] sm:$0xff] %v5464
        %5981 = vst [vmem:[%s323 + $0x388] sm:$0xff] %v5466
        %5982 = vst [vmem:[%s323 + $0x390] sm:$0xff] %v5850
        %5983 = vst [vmem:[%s323 + $0x398] sm:$0xff] %v5852
        %5984 = vst [vmem:[%s323 + $0x3a0] sm:$0xff] %v5468
        %5985 = vst [vmem:[%s323 + $0x3a8] sm:$0xff] %v5470
        %5986 = vst [vmem:[%s323 + $0x3b0] sm:$0xff] %v5854
        %5987 = vst [vmem:[%s323 + $0x3b8] sm:$0xff] %v5856
        %5988 = vst [vmem:[%s323 + $0x3c0] sm:$0xff] %v5474
        %5989 = vst [vmem:[%s323 + $0x3c8] sm:$0xff] %v5476
        %5990 = vst [vmem:[%s323 + $0x3d0] sm:$0xff] %v5860
        %5991 = vst [vmem:[%s323 + $0x3d8] sm:$0xff] %v5862
        %5992 = vst [vmem:[%s323 + $0x3e0] sm:$0xff] %v5478
        %5993 = vst [vmem:[%s323 + $0x3e8] sm:$0xff] %v5480
        %5994 = vst [vmem:[%s323 + $0x3f0] sm:$0xff] %v5864
        %5995 = vst [vmem:[%s323 + $0x3f8] sm:$0xff] %v5866
        %vm5996 = vmand %vm3236, %vm609
        %vm5997 = vmand %vm3237, %vm609
        %vm5998 = vmand %vm3238, %vm609
        %vm5999 = vmand %vm3239, %vm609
        %vm6000 = vmand %vm3240, %vm610
        %vm6001 = vmand %vm3241, %vm610
        %vm6002 = vmand %vm3242, %vm610
        %vm6003 = vmand %vm3243, %vm610
        %vm6004 = vmand %vm3244, %vm611
        %vm6005 = vmand %vm3245, %vm611
        %vm6006 = vmand %vm3246, %vm611
        %vm6007 = vmand %vm3247, %vm611
        %vm6008 = vmand %vm3248, %vm612
        %vm6009 = vmand %vm3249, %vm612
        %vm6010 = vmand %vm3250, %vm612
        %vm6011 = vmand %vm3251, %vm612
        %vm6012 = vmand %vm3252, %vm613
        %vm6013 = vmand %vm3253, %vm613
        %vm6014 = vmand %vm3254, %vm613
        %vm6015 = vmand %vm3255, %vm613
        %vm6016 = vmand %vm3256, %vm614
        %vm6017 = vmand %vm3257, %vm614
        %vm6018 = vmand %vm3258, %vm614
        %vm6019 = vmand %vm3259, %vm614
        %vm6020 = vmand %vm3260, %vm615
        %vm6021 = vmand %vm3261, %vm615
        %vm6022 = vmand %vm3262, %vm615
        %vm6023 = vmand %vm3263, %vm615
        %vm6024 = vmand %vm3264, %vm616
        %vm6025 = vmand %vm3265, %vm616
        %vm6026 = vmand %vm3266, %vm616
        %vm6027 = vmand %vm3267, %vm616
        %vm6028 = vmand %vm3268, %vm617
        %vm6029 = vmand %vm3269, %vm617
        %vm6030 = vmand %vm3270, %vm617
        %vm6031 = vmand %vm3271, %vm617
        %vm6032 = vmand %vm3272, %vm618
        %vm6033 = vmand %vm3273, %vm618
        %vm6034 = vmand %vm3274, %vm618
        %vm6035 = vmand %vm3275, %vm618
        %vm6036 = vmand %vm3276, %vm619
        %vm6037 = vmand %vm3277, %vm619
        %vm6038 = vmand %vm3278, %vm619
        %vm6039 = vmand %vm3279, %vm619
        %vm6040 = vmand %vm3280, %vm620
        %vm6041 = vmand %vm3281, %vm620
        %vm6042 = vmand %vm3282, %vm620
        %vm6043 = vmand %vm3283, %vm620
        %vm6044 = vmand %vm3284, %vm621
        %vm6045 = vmand %vm3285, %vm621
        %vm6046 = vmand %vm3286, %vm621
        %vm6047 = vmand %vm3287, %vm621
        %vm6048 = vmand %vm3288, %vm622
        %vm6049 = vmand %vm3289, %vm622
        %vm6050 = vmand %vm3290, %vm622
        %vm6051 = vmand %vm3291, %vm622
        %vm6052 = vmand %vm3292, %vm623
        %vm6053 = vmand %vm3293, %vm623
        %vm6054 = vmand %vm3294, %vm623
        %vm6055 = vmand %vm3295, %vm623
        %vm6056 = vmand %vm3296, %vm624
        %vm6057 = vmand %vm3297, %vm624
        %vm6058 = vmand %vm3298, %vm624
        %vm6059 = vmand %vm3299, %vm624
        %vm6060 = vmand %vm3300, %vm625
        %vm6061 = vmand %vm3301, %vm625
        %vm6062 = vmand %vm3302, %vm625
        %vm6063 = vmand %vm3303, %vm625
        %vm6064 = vmand %vm3304, %vm626
        %vm6065 = vmand %vm3305, %vm626
        %vm6066 = vmand %vm3306, %vm626
        %vm6067 = vmand %vm3307, %vm626
        %vm6068 = vmand %vm3308, %vm627
        %vm6069 = vmand %vm3309, %vm627
        %vm6070 = vmand %vm3310, %vm627
        %vm6071 = vmand %vm3311, %vm627
        %vm6072 = vmand %vm3312, %vm628
        %vm6073 = vmand %vm3313, %vm628
        %vm6074 = vmand %vm3314, %vm628
        %vm6075 = vmand %vm3315, %vm628
        %vm6076 = vmand %vm3316, %vm629
        %vm6077 = vmand %vm3317, %vm629
        %vm6078 = vmand %vm3318, %vm629
        %vm6079 = vmand %vm3319, %vm629
        %vm6080 = vmand %vm3320, %vm630
        %vm6081 = vmand %vm3321, %vm630
        %vm6082 = vmand %vm3322, %vm630
        %vm6083 = vmand %vm3323, %vm630
        %vm6084 = vmand %vm3324, %vm631
        %vm6085 = vmand %vm3325, %vm631
        %vm6086 = vmand %vm3326, %vm631
        %vm6087 = vmand %vm3327, %vm631
        %vm6088 = vmand %vm3328, %vm632
        %vm6089 = vmand %vm3329, %vm632
        %vm6090 = vmand %vm3330, %vm632
        %vm6091 = vmand %vm3331, %vm632
        %vm6092 = vmand %vm3332, %vm633
        %vm6093 = vmand %vm3333, %vm633
        %vm6094 = vmand %vm3334, %vm633
        %vm6095 = vmand %vm3335, %vm633
        %vm6096 = vmand %vm3336, %vm634
        %vm6097 = vmand %vm3337, %vm634
        %vm6098 = vmand %vm3338, %vm634
        %vm6099 = vmand %vm3339, %vm634
        %vm6100 = vmand %vm3340, %vm635
        %vm6101 = vmand %vm3341, %vm635
        %vm6102 = vmand %vm3342, %vm635
        %vm6103 = vmand %vm3343, %vm635
        %vm6104 = vmand %vm3344, %vm636
        %vm6105 = vmand %vm3345, %vm636
        %vm6106 = vmand %vm3346, %vm636
        %vm6107 = vmand %vm3347, %vm636
        %vm6108 = vmand %vm3348, %vm637
        %vm6109 = vmand %vm3349, %vm637
        %vm6110 = vmand %vm3350, %vm637
        %vm6111 = vmand %vm3351, %vm637
        %vm6112 = vmand %vm3352, %vm638
        %vm6113 = vmand %vm3353, %vm638
        %vm6114 = vmand %vm3354, %vm638
        %vm6115 = vmand %vm3355, %vm638
        %vm6116 = vmand %vm3356, %vm639
        %vm6117 = vmand %vm3357, %vm639
        %vm6118 = vmand %vm3358, %vm639
        %vm6119 = vmand %vm3359, %vm639
        %vm6120 = vmand %vm3360, %vm640
        %vm6121 = vmand %vm3361, %vm640
        %vm6122 = vmand %vm3362, %vm640
        %vm6123 = vmand %vm3363, %vm640
        %v6124 = vsel %vm5996, 1.0, 0.0
        %v6125 = vsel %vm5997, 1.0, 0.0
        %v6126 = vsel %vm5998, 1.0, 0.0
        %v6127 = vsel %vm5999, 1.0, 0.0
        %v6128 = vsel %vm6000, 1.0, 0.0
        %v6129 = vsel %vm6001, 1.0, 0.0
        %v6130 = vsel %vm6002, 1.0, 0.0
        %v6131 = vsel %vm6003, 1.0, 0.0
        %v6132 = vsel %vm6004, 1.0, 0.0
        %v6133 = vsel %vm6005, 1.0, 0.0
        %v6134 = vsel %vm6006, 1.0, 0.0
        %v6135 = vsel %vm6007, 1.0, 0.0
        %v6136 = vsel %vm6008, 1.0, 0.0
        %v6137 = vsel %vm6009, 1.0, 0.0
        %v6138 = vsel %vm6010, 1.0, 0.0
        %v6139 = vsel %vm6011, 1.0, 0.0
        %v6140 = vsel %vm6012, 1.0, 0.0
        %v6141 = vsel %vm6013, 1.0, 0.0
        %v6142 = vsel %vm6014, 1.0, 0.0
        %v6143 = vsel %vm6015, 1.0, 0.0
        %v6144 = vsel %vm6016, 1.0, 0.0
        %v6145 = vsel %vm6017, 1.0, 0.0
        %v6146 = vsel %vm6018, 1.0, 0.0
        %v6147 = vsel %vm6019, 1.0, 0.0
        %v6148 = vsel %vm6020, 1.0, 0.0
        %v6149 = vsel %vm6021, 1.0, 0.0
        %v6150 = vsel %vm6022, 1.0, 0.0
        %v6151 = vsel %vm6023, 1.0, 0.0
        %v6152 = vsel %vm6024, 1.0, 0.0
        %v6153 = vsel %vm6025, 1.0, 0.0
        %v6154 = vsel %vm6026, 1.0, 0.0
        %v6155 = vsel %vm6027, 1.0, 0.0
        %v6156 = vsel %vm6028, 1.0, 0.0
        %v6157 = vsel %vm6029, 1.0, 0.0
        %v6158 = vsel %vm6030, 1.0, 0.0
        %v6159 = vsel %vm6031, 1.0, 0.0
        %v6160 = vsel %vm6032, 1.0, 0.0
        %v6161 = vsel %vm6033, 1.0, 0.0
        %v6162 = vsel %vm6034, 1.0, 0.0
        %v6163 = vsel %vm6035, 1.0, 0.0
        %v6164 = vsel %vm6036, 1.0, 0.0
        %v6165 = vsel %vm6037, 1.0, 0.0
        %v6166 = vsel %vm6038, 1.0, 0.0
        %v6167 = vsel %vm6039, 1.0, 0.0
        %v6168 = vsel %vm6040, 1.0, 0.0
        %v6169 = vsel %vm6041, 1.0, 0.0
        %v6170 = vsel %vm6042, 1.0, 0.0
        %v6171 = vsel %vm6043, 1.0, 0.0
        %v6172 = vsel %vm6044, 1.0, 0.0
        %v6173 = vsel %vm6045, 1.0, 0.0
        %v6174 = vsel %vm6046, 1.0, 0.0
        %v6175 = vsel %vm6047, 1.0, 0.0
        %v6176 = vsel %vm6048, 1.0, 0.0
        %v6177 = vsel %vm6049, 1.0, 0.0
        %v6178 = vsel %vm6050, 1.0, 0.0
        %v6179 = vsel %vm6051, 1.0, 0.0
        %v6180 = vsel %vm6052, 1.0, 0.0
        %v6181 = vsel %vm6053, 1.0, 0.0
        %v6182 = vsel %vm6054, 1.0, 0.0
        %v6183 = vsel %vm6055, 1.0, 0.0
        %v6184 = vsel %vm6056, 1.0, 0.0
        %v6185 = vsel %vm6057, 1.0, 0.0
        %v6186 = vsel %vm6058, 1.0, 0.0
        %v6187 = vsel %vm6059, 1.0, 0.0
        %v6188 = vsel %vm6060, 1.0, 0.0
        %v6189 = vsel %vm6061, 1.0, 0.0
        %v6190 = vsel %vm6062, 1.0, 0.0
        %v6191 = vsel %vm6063, 1.0, 0.0
        %v6192 = vsel %vm6064, 1.0, 0.0
        %v6193 = vsel %vm6065, 1.0, 0.0
        %v6194 = vsel %vm6066, 1.0, 0.0
        %v6195 = vsel %vm6067, 1.0, 0.0
        %v6196 = vsel %vm6068, 1.0, 0.0
        %v6197 = vsel %vm6069, 1.0, 0.0
        %v6198 = vsel %vm6070, 1.0, 0.0
        %v6199 = vsel %vm6071, 1.0, 0.0
        %v6200 = vsel %vm6072, 1.0, 0.0
        %v6201 = vsel %vm6073, 1.0, 0.0
        %v6202 = vsel %vm6074, 1.0, 0.0
        %v6203 = vsel %vm6075, 1.0, 0.0
        %v6204 = vsel %vm6076, 1.0, 0.0
        %v6205 = vsel %vm6077, 1.0, 0.0
        %v6206 = vsel %vm6078, 1.0, 0.0
        %v6207 = vsel %vm6079, 1.0, 0.0
        %v6208 = vsel %vm6080, 1.0, 0.0
        %v6209 = vsel %vm6081, 1.0, 0.0
        %v6210 = vsel %vm6082, 1.0, 0.0
        %v6211 = vsel %vm6083, 1.0, 0.0
        %v6212 = vsel %vm6084, 1.0, 0.0
        %v6213 = vsel %vm6085, 1.0, 0.0
        %v6214 = vsel %vm6086, 1.0, 0.0
        %v6215 = vsel %vm6087, 1.0, 0.0
        %v6216 = vsel %vm6088, 1.0, 0.0
        %v6217 = vsel %vm6089, 1.0, 0.0
        %v6218 = vsel %vm6090, 1.0, 0.0
        %v6219 = vsel %vm6091, 1.0, 0.0
        %v6220 = vsel %vm6092, 1.0, 0.0
        %v6221 = vsel %vm6093, 1.0, 0.0
        %v6222 = vsel %vm6094, 1.0, 0.0
        %v6223 = vsel %vm6095, 1.0, 0.0
        %v6224 = vsel %vm6096, 1.0, 0.0
        %v6225 = vsel %vm6097, 1.0, 0.0
        %v6226 = vsel %vm6098, 1.0, 0.0
        %v6227 = vsel %vm6099, 1.0, 0.0
        %v6228 = vsel %vm6100, 1.0, 0.0
        %v6229 = vsel %vm6101, 1.0, 0.0
        %v6230 = vsel %vm6102, 1.0, 0.0
        %v6231 = vsel %vm6103, 1.0, 0.0
        %v6232 = vsel %vm6104, 1.0, 0.0
        %v6233 = vsel %vm6105, 1.0, 0.0
        %v6234 = vsel %vm6106, 1.0, 0.0
        %v6235 = vsel %vm6107, 1.0, 0.0
        %v6236 = vsel %vm6108, 1.0, 0.0
        %v6237 = vsel %vm6109, 1.0, 0.0
        %v6238 = vsel %vm6110, 1.0, 0.0
        %v6239 = vsel %vm6111, 1.0, 0.0
        %v6240 = vsel %vm6112, 1.0, 0.0
        %v6241 = vsel %vm6113, 1.0, 0.0
        %v6242 = vsel %vm6114, 1.0, 0.0
        %v6243 = vsel %vm6115, 1.0, 0.0
        %v6244 = vsel %vm6116, 1.0, 0.0
        %v6245 = vsel %vm6117, 1.0, 0.0
        %v6246 = vsel %vm6118, 1.0, 0.0
        %v6247 = vsel %vm6119, 1.0, 0.0
        %v6248 = vsel %vm6120, 1.0, 0.0
        %v6249 = vsel %vm6121, 1.0, 0.0
        %v6250 = vsel %vm6122, 1.0, 0.0
        %v6251 = vsel %vm6123, 1.0, 0.0
        %v6252 = vadd.f32 %v6124, %v6128
        %v6253 = vadd.f32 %v6252, %v6132
        %v6254 = vadd.f32 %v6253, %v6136
        %v6255 = vadd.f32 %v6254, %v6140
        %v6256 = vadd.f32 %v6255, %v6144
        %v6257 = vadd.f32 %v6256, %v6148
        %v6258 = vadd.f32 %v6257, %v6152
        %v6259 = vadd.f32 %v6258, %v6156
        %v6260 = vadd.f32 %v6259, %v6160
        %v6261 = vadd.f32 %v6260, %v6164
        %v6262 = vadd.f32 %v6261, %v6168
        %v6263 = vadd.f32 %v6262, %v6172
        %v6264 = vadd.f32 %v6263, %v6176
        %v6265 = vadd.f32 %v6264, %v6180
        %v6266 = vadd.f32 %v6265, %v6184
        %v6267 = vadd.f32 %v6266, %v6188
        %v6268 = vadd.f32 %v6267, %v6192
        %v6269 = vadd.f32 %v6268, %v6196
        %v6270 = vadd.f32 %v6269, %v6200
        %v6271 = vadd.f32 %v6270, %v6204
        %v6272 = vadd.f32 %v6271, %v6208
        %v6273 = vadd.f32 %v6272, %v6212
        %v6274 = vadd.f32 %v6273, %v6216
        %v6275 = vadd.f32 %v6274, %v6220
        %v6276 = vadd.f32 %v6275, %v6224
        %v6277 = vadd.f32 %v6276, %v6228
        %v6278 = vadd.f32 %v6277, %v6232
        %v6279 = vadd.f32 %v6278, %v6236
        %v6280 = vadd.f32 %v6279, %v6240
        %v6281 = vadd.f32 %v6280, %v6244
        %v6282 = vadd.f32 %v6281, %v6248
        %v6283 = vrot.slane %v6282, 4
        %v6284 = vadd.f32 %v6282, %v6283
        %v6285 = vrot.slane %v6284, 2
        %v6286 = vadd.f32 %v6284, %v6285
        %v6287 = vrot.slane %v6286, 1
        %v6288 = vadd.f32 %v6286, %v6287
        %v6289 = vadd.f32 %v6125, %v6129
        %v6290 = vadd.f32 %v6289, %v6133
        %v6291 = vadd.f32 %v6290, %v6137
        %v6292 = vadd.f32 %v6291, %v6141
        %v6293 = vadd.f32 %v6292, %v6145
        %v6294 = vadd.f32 %v6293, %v6149
        %v6295 = vadd.f32 %v6294, %v6153
        %v6296 = vadd.f32 %v6295, %v6157
        %v6297 = vadd.f32 %v6296, %v6161
        %v6298 = vadd.f32 %v6297, %v6165
        %v6299 = vadd.f32 %v6298, %v6169
        %v6300 = vadd.f32 %v6299, %v6173
        %v6301 = vadd.f32 %v6300, %v6177
        %v6302 = vadd.f32 %v6301, %v6181
        %v6303 = vadd.f32 %v6302, %v6185
        %v6304 = vadd.f32 %v6303, %v6189
        %v6305 = vadd.f32 %v6304, %v6193
        %v6306 = vadd.f32 %v6305, %v6197
        %v6307 = vadd.f32 %v6306, %v6201
        %v6308 = vadd.f32 %v6307, %v6205
        %v6309 = vadd.f32 %v6308, %v6209
        %v6310 = vadd.f32 %v6309, %v6213
        %v6311 = vadd.f32 %v6310, %v6217
        %v6312 = vadd.f32 %v6311, %v6221
        %v6313 = vadd.f32 %v6312, %v6225
        %v6314 = vadd.f32 %v6313, %v6229
        %v6315 = vadd.f32 %v6314, %v6233
        %v6316 = vadd.f32 %v6315, %v6237
        %v6317 = vadd.f32 %v6316, %v6241
        %v6318 = vadd.f32 %v6317, %v6245
        %v6319 = vadd.f32 %v6318, %v6249
        %v6320 = vrot.slane %v6319, 4
        %v6321 = vadd.f32 %v6319, %v6320
        %v6322 = vrot.slane %v6321, 2
        %v6323 = vadd.f32 %v6321, %v6322
        %v6324 = vrot.slane %v6323, 1
        %v6325 = vadd.f32 %v6323, %v6324
        %v6326 = vadd.f32 %v6126, %v6130
        %v6327 = vadd.f32 %v6326, %v6134
        %v6328 = vadd.f32 %v6327, %v6138
        %v6329 = vadd.f32 %v6328, %v6142
        %v6330 = vadd.f32 %v6329, %v6146
        %v6331 = vadd.f32 %v6330, %v6150
        %v6332 = vadd.f32 %v6331, %v6154
        %v6333 = vadd.f32 %v6332, %v6158
        %v6334 = vadd.f32 %v6333, %v6162
        %v6335 = vadd.f32 %v6334, %v6166
        %v6336 = vadd.f32 %v6335, %v6170
        %v6337 = vadd.f32 %v6336, %v6174
        %v6338 = vadd.f32 %v6337, %v6178
        %v6339 = vadd.f32 %v6338, %v6182
        %v6340 = vadd.f32 %v6339, %v6186
        %v6341 = vadd.f32 %v6340, %v6190
        %v6342 = vadd.f32 %v6341, %v6194
        %v6343 = vadd.f32 %v6342, %v6198
        %v6344 = vadd.f32 %v6343, %v6202
        %v6345 = vadd.f32 %v6344, %v6206
        %v6346 = vadd.f32 %v6345, %v6210
        %v6347 = vadd.f32 %v6346, %v6214
        %v6348 = vadd.f32 %v6347, %v6218
        %v6349 = vadd.f32 %v6348, %v6222
        %v6350 = vadd.f32 %v6349, %v6226
        %v6351 = vadd.f32 %v6350, %v6230
        %v6352 = vadd.f32 %v6351, %v6234
        %v6353 = vadd.f32 %v6352, %v6238
        %v6354 = vadd.f32 %v6353, %v6242
        %v6355 = vadd.f32 %v6354, %v6246
        %v6356 = vadd.f32 %v6355, %v6250
        %v6357 = vrot.slane %v6356, 4
        %v6358 = vadd.f32 %v6356, %v6357
        %v6359 = vrot.slane %v6358, 2
        %v6360 = vadd.f32 %v6358, %v6359
        %v6361 = vrot.slane %v6360, 1
        %v6362 = vadd.f32 %v6360, %v6361
        %v6363 = vadd.f32 %v6127, %v6131
        %v6364 = vadd.f32 %v6363, %v6135
        %v6365 = vadd.f32 %v6364, %v6139
        %v6366 = vadd.f32 %v6365, %v6143
        %v6367 = vadd.f32 %v6366, %v6147
        %v6368 = vadd.f32 %v6367, %v6151
        %v6369 = vadd.f32 %v6368, %v6155
        %v6370 = vadd.f32 %v6369, %v6159
        %v6371 = vadd.f32 %v6370, %v6163
        %v6372 = vadd.f32 %v6371, %v6167
        %v6373 = vadd.f32 %v6372, %v6171
        %v6374 = vadd.f32 %v6373, %v6175
        %v6375 = vadd.f32 %v6374, %v6179
        %v6376 = vadd.f32 %v6375, %v6183
        %v6377 = vadd.f32 %v6376, %v6187
        %v6378 = vadd.f32 %v6377, %v6191
        %v6379 = vadd.f32 %v6378, %v6195
        %v6380 = vadd.f32 %v6379, %v6199
        %v6381 = vadd.f32 %v6380, %v6203
        %v6382 = vadd.f32 %v6381, %v6207
        %v6383 = vadd.f32 %v6382, %v6211
        %v6384 = vadd.f32 %v6383, %v6215
        %v6385 = vadd.f32 %v6384, %v6219
        %v6386 = vadd.f32 %v6385, %v6223
        %v6387 = vadd.f32 %v6386, %v6227
        %v6388 = vadd.f32 %v6387, %v6231
        %v6389 = vadd.f32 %v6388, %v6235
        %v6390 = vadd.f32 %v6389, %v6239
        %v6391 = vadd.f32 %v6390, %v6243
        %v6392 = vadd.f32 %v6391, %v6247
        %v6393 = vadd.f32 %v6392, %v6251
        %v6394 = vrot.slane %v6393, 4
        %v6395 = vadd.f32 %v6393, %v6394
        %v6396 = vrot.slane %v6395, 2
        %v6397 = vadd.f32 %v6395, %v6396
        %v6398 = vrot.slane %v6397, 1
        %v6399 = vadd.f32 %v6397, %v6398
        %v6404 = vcombine.low %v6288, %v6325
        %v6405 = vcombine.low %v6362, %v6399
        %v6407 = vunpack.c.l.s4 1966171168
        %v6408 = vunpack.c.0.s8 %v6407
        %v6409 = vlaneseq
        %v6410 = vshrl.u32 %v6409, 7
        %v6411 = vsub.s32 %v6408, %v6410
        %v6412 = vrot.slane %v6404, %v6411
        %v6414 = vunpack.c.l.s4 1966171168
        %v6415 = vunpack.c.0.s8 %v6414
        %v6416 = vlaneseq
        %v6417 = vshrl.u32 %v6416, 7
        %v6418 = vsub.s32 %v6415, %v6417
        %v6419 = vrot.slane %v6405, %v6418
        %v6420 = vcombine.low %v6412, %v6419
        %v6422 = vunpack.c.l.s4 1966171168
        %v6423 = vunpack.c.0.s8 %v6422
        %v6424 = vlaneseq
        %v6425 = vshrl.u32 %v6424, 7
        %v6426 = vsub.s32 %v6423, %v6425
        %v6427 = vrot.slane %v6420, %v6426
        %v6429 = vlaneseq
        %vm6430 = vcmp.ge.s32.totalorder %v6429, 0
        %vm6431 = vcmp.lt.s32.totalorder %v6429, 512
        %vm6432 = vmand %vm6430, %vm6431
        %6433 = vst.msk [vmem:[%s330] sm:$0xf] %vm6432, %v6427
        %v6434 = vsub.f32 %v641, %v5324
        %v6435 = vsub.f32 %v642, %v5326
        %v6436 = vsub.f32 %v643, %v5710
        %v6437 = vsub.f32 %v644, %v5712
        %v6438 = vsub.f32 %v645, %v5328
        %v6439 = vsub.f32 %v646, %v5330
        %v6440 = vsub.f32 %v647, %v5714
        %v6441 = vsub.f32 %v648, %v5716
        %v6442 = vsub.f32 %v649, %v5334
        %v6443 = vsub.f32 %v650, %v5336
        %v6444 = vsub.f32 %v651, %v5720
        %v6445 = vsub.f32 %v652, %v5722
        %v6446 = vsub.f32 %v653, %v5338
        %v6447 = vsub.f32 %v654, %v5340
        %v6448 = vsub.f32 %v655, %v5724
        %v6449 = vsub.f32 %v656, %v5726
        %v6450 = vsub.f32 %v657, %v5344
        %v6451 = vsub.f32 %v658, %v5346
        %v6452 = vsub.f32 %v659, %v5730
        %v6453 = vsub.f32 %v660, %v5732
        %v6454 = vsub.f32 %v661, %v5348
        %v6455 = vsub.f32 %v662, %v5350
        %v6456 = vsub.f32 %v663, %v5734
        %v6457 = vsub.f32 %v664, %v5736
        %v6458 = vsub.f32 %v665, %v5354
        %v6459 = vsub.f32 %v666, %v5356
        %v6460 = vsub.f32 %v667, %v5740
        %v6461 = vsub.f32 %v668, %v5742
        %v6462 = vsub.f32 %v669, %v5358
        %v6463 = vsub.f32 %v670, %v5360
        %v6464 = vsub.f32 %v671, %v5744
        %v6465 = vsub.f32 %v672, %v5746
        %v6466 = vsub.f32 %v673, %v5364
        %v6467 = vsub.f32 %v674, %v5366
        %v6468 = vsub.f32 %v675, %v5750
        %v6469 = vsub.f32 %v676, %v5752
        %v6470 = vsub.f32 %v677, %v5368
        %v6471 = vsub.f32 %v678, %v5370
        %v6472 = vsub.f32 %v679, %v5754
        %v6473 = vsub.f32 %v680, %v5756
        %v6474 = vsub.f32 %v681, %v5374
        %v6475 = vsub.f32 %v682, %v5376
        %v6476 = vsub.f32 %v683, %v5760
        %v6477 = vsub.f32 %v684, %v5762
        %v6478 = vsub.f32 %v685, %v5378
        %v6479 = vsub.f32 %v686, %v5380
        %v6480 = vsub.f32 %v687, %v5764
        %v6481 = vsub.f32 %v688, %v5766
        %v6482 = vsub.f32 %v689, %v5384
        %v6483 = vsub.f32 %v690, %v5386
        %v6484 = vsub.f32 %v691, %v5770
        %v6485 = vsub.f32 %v692, %v5772
        %v6486 = vsub.f32 %v693, %v5388
        %v6487 = vsub.f32 %v694, %v5390
        %v6488 = vsub.f32 %v695, %v5774
        %v6489 = vsub.f32 %v696, %v5776
        %v6490 = vsub.f32 %v697, %v5394
        %v6491 = vsub.f32 %v698, %v5396
        %v6492 = vsub.f32 %v699, %v5780
        %v6493 = vsub.f32 %v700, %v5782
        %v6494 = vsub.f32 %v701, %v5398
        %v6495 = vsub.f32 %v702, %v5400
        %v6496 = vsub.f32 %v703, %v5784
        %v6497 = vsub.f32 %v704, %v5786
        %v6498 = vsub.f32 %v705, %v5404
        %v6499 = vsub.f32 %v706, %v5406
        %v6500 = vsub.f32 %v707, %v5790
        %v6501 = vsub.f32 %v708, %v5792
        %v6502 = vsub.f32 %v709, %v5408
        %v6503 = vsub.f32 %v710, %v5410
        %v6504 = vsub.f32 %v711, %v5794
        %v6505 = vsub.f32 %v712, %v5796
        %v6506 = vsub.f32 %v713, %v5414
        %v6507 = vsub.f32 %v714, %v5416
        %v6508 = vsub.f32 %v715, %v5800
        %v6509 = vsub.f32 %v716, %v5802
        %v6510 = vsub.f32 %v717, %v5418
        %v6511 = vsub.f32 %v718, %v5420
        %v6512 = vsub.f32 %v719, %v5804
        %v6513 = vsub.f32 %v720, %v5806
        %v6514 = vsub.f32 %v721, %v5424
        %v6515 = vsub.f32 %v722, %v5426
        %v6516 = vsub.f32 %v723, %v5810
        %v6517 = vsub.f32 %v724, %v5812
        %v6518 = vsub.f32 %v725, %v5428
        %v6519 = vsub.f32 %v726, %v5430
        %v6520 = vsub.f32 %v727, %v5814
        %v6521 = vsub.f32 %v728, %v5816
        %v6522 = vsub.f32 %v729, %v5434
        %v6523 = vsub.f32 %v730, %v5436
        %v6524 = vsub.f32 %v731, %v5820
        %v6525 = vsub.f32 %v732, %v5822
        %v6526 = vsub.f32 %v733, %v5438
        %v6527 = vsub.f32 %v734, %v5440
        %v6528 = vsub.f32 %v735, %v5824
        %v6529 = vsub.f32 %v736, %v5826
        %v6530 = vsub.f32 %v737, %v5444
        %v6531 = vsub.f32 %v738, %v5446
        %v6532 = vsub.f32 %v739, %v5830
        %v6533 = vsub.f32 %v740, %v5832
        %v6534 = vsub.f32 %v741, %v5448
        %v6535 = vsub.f32 %v742, %v5450
        %v6536 = vsub.f32 %v743, %v5834
        %v6537 = vsub.f32 %v744, %v5836
        %v6538 = vsub.f32 %v745, %v5454
        %v6539 = vsub.f32 %v746, %v5456
        %v6540 = vsub.f32 %v747, %v5840
        %v6541 = vsub.f32 %v748, %v5842
        %v6542 = vsub.f32 %v749, %v5458
        %v6543 = vsub.f32 %v750, %v5460
        %v6544 = vsub.f32 %v751, %v5844
        %v6545 = vsub.f32 %v752, %v5846
        %v6546 = vsub.f32 %v753, %v5464
        %v6547 = vsub.f32 %v754, %v5466
        %v6548 = vsub.f32 %v755, %v5850
        %v6549 = vsub.f32 %v756, %v5852
        %v6550 = vsub.f32 %v757, %v5468
        %v6551 = vsub.f32 %v758, %v5470
        %v6552 = vsub.f32 %v759, %v5854
        %v6553 = vsub.f32 %v760, %v5856
        %v6554 = vsub.f32 %v761, %v5474
        %v6555 = vsub.f32 %v762, %v5476
        %v6556 = vsub.f32 %v763, %v5860
        %v6557 = vsub.f32 %v764, %v5862
        %v6558 = vsub.f32 %v765, %v5478
        %v6559 = vsub.f32 %v766, %v5480
        %v6560 = vsub.f32 %v767, %v5864
        %v6561 = vsub.f32 %v768, %v5866
        %v6562 = vsel %vm609, %v6434, 0.0
        %v6563 = vsel %vm609, %v6435, 0.0
        %v6564 = vsel %vm609, %v6436, 0.0
        %v6565 = vsel %vm609, %v6437, 0.0
        %v6566 = vsel %vm610, %v6438, 0.0
        %v6567 = vsel %vm610, %v6439, 0.0
        %v6568 = vsel %vm610, %v6440, 0.0
        %v6569 = vsel %vm610, %v6441, 0.0
        %v6570 = vsel %vm611, %v6442, 0.0
        %v6571 = vsel %vm611, %v6443, 0.0
        %v6572 = vsel %vm611, %v6444, 0.0
        %v6573 = vsel %vm611, %v6445, 0.0
        %v6574 = vsel %vm612, %v6446, 0.0
        %v6575 = vsel %vm612, %v6447, 0.0
        %v6576 = vsel %vm612, %v6448, 0.0
        %v6577 = vsel %vm612, %v6449, 0.0
        %v6578 = vsel %vm613, %v6450, 0.0
        %v6579 = vsel %vm613, %v6451, 0.0
        %v6580 = vsel %vm613, %v6452, 0.0
        %v6581 = vsel %vm613, %v6453, 0.0
        %v6582 = vsel %vm614, %v6454, 0.0
        %v6583 = vsel %vm614, %v6455, 0.0
        %v6584 = vsel %vm614, %v6456, 0.0
        %v6585 = vsel %vm614, %v6457, 0.0
        %v6586 = vsel %vm615, %v6458, 0.0
        %v6587 = vsel %vm615, %v6459, 0.0
        %v6588 = vsel %vm615, %v6460, 0.0
        %v6589 = vsel %vm615, %v6461, 0.0
        %v6590 = vsel %vm616, %v6462, 0.0
        %v6591 = vsel %vm616, %v6463, 0.0
        %v6592 = vsel %vm616, %v6464, 0.0
        %v6593 = vsel %vm616, %v6465, 0.0
        %v6594 = vsel %vm617, %v6466, 0.0
        %v6595 = vsel %vm617, %v6467, 0.0
        %v6596 = vsel %vm617, %v6468, 0.0
        %v6597 = vsel %vm617, %v6469, 0.0
        %v6598 = vsel %vm618, %v6470, 0.0
        %v6599 = vsel %vm618, %v6471, 0.0
        %v6600 = vsel %vm618, %v6472, 0.0
        %v6601 = vsel %vm618, %v6473, 0.0
        %v6602 = vsel %vm619, %v6474, 0.0
        %v6603 = vsel %vm619, %v6475, 0.0
        %v6604 = vsel %vm619, %v6476, 0.0
        %v6605 = vsel %vm619, %v6477, 0.0
        %v6606 = vsel %vm620, %v6478, 0.0
        %v6607 = vsel %vm620, %v6479, 0.0
        %v6608 = vsel %vm620, %v6480, 0.0
        %v6609 = vsel %vm620, %v6481, 0.0
        %v6610 = vsel %vm621, %v6482, 0.0
        %v6611 = vsel %vm621, %v6483, 0.0
        %v6612 = vsel %vm621, %v6484, 0.0
        %v6613 = vsel %vm621, %v6485, 0.0
        %v6614 = vsel %vm622, %v6486, 0.0
        %v6615 = vsel %vm622, %v6487, 0.0
        %v6616 = vsel %vm622, %v6488, 0.0
        %v6617 = vsel %vm622, %v6489, 0.0
        %v6618 = vsel %vm623, %v6490, 0.0
        %v6619 = vsel %vm623, %v6491, 0.0
        %v6620 = vsel %vm623, %v6492, 0.0
        %v6621 = vsel %vm623, %v6493, 0.0
        %v6622 = vsel %vm624, %v6494, 0.0
        %v6623 = vsel %vm624, %v6495, 0.0
        %v6624 = vsel %vm624, %v6496, 0.0
        %v6625 = vsel %vm624, %v6497, 0.0
        %v6626 = vsel %vm625, %v6498, 0.0
        %v6627 = vsel %vm625, %v6499, 0.0
        %v6628 = vsel %vm625, %v6500, 0.0
        %v6629 = vsel %vm625, %v6501, 0.0
        %v6630 = vsel %vm626, %v6502, 0.0
        %v6631 = vsel %vm626, %v6503, 0.0
        %v6632 = vsel %vm626, %v6504, 0.0
        %v6633 = vsel %vm626, %v6505, 0.0
        %v6634 = vsel %vm627, %v6506, 0.0
        %v6635 = vsel %vm627, %v6507, 0.0
        %v6636 = vsel %vm627, %v6508, 0.0
        %v6637 = vsel %vm627, %v6509, 0.0
        %v6638 = vsel %vm628, %v6510, 0.0
        %v6639 = vsel %vm628, %v6511, 0.0
        %v6640 = vsel %vm628, %v6512, 0.0
        %v6641 = vsel %vm628, %v6513, 0.0
        %v6642 = vsel %vm629, %v6514, 0.0
        %v6643 = vsel %vm629, %v6515, 0.0
        %v6644 = vsel %vm629, %v6516, 0.0
        %v6645 = vsel %vm629, %v6517, 0.0
        %v6646 = vsel %vm630, %v6518, 0.0
        %v6647 = vsel %vm630, %v6519, 0.0
        %v6648 = vsel %vm630, %v6520, 0.0
        %v6649 = vsel %vm630, %v6521, 0.0
        %v6650 = vsel %vm631, %v6522, 0.0
        %v6651 = vsel %vm631, %v6523, 0.0
        %v6652 = vsel %vm631, %v6524, 0.0
        %v6653 = vsel %vm631, %v6525, 0.0
        %v6654 = vsel %vm632, %v6526, 0.0
        %v6655 = vsel %vm632, %v6527, 0.0
        %v6656 = vsel %vm632, %v6528, 0.0
        %v6657 = vsel %vm632, %v6529, 0.0
        %v6658 = vsel %vm633, %v6530, 0.0
        %v6659 = vsel %vm633, %v6531, 0.0
        %v6660 = vsel %vm633, %v6532, 0.0
        %v6661 = vsel %vm633, %v6533, 0.0
        %v6662 = vsel %vm634, %v6534, 0.0
        %v6663 = vsel %vm634, %v6535, 0.0
        %v6664 = vsel %vm634, %v6536, 0.0
        %v6665 = vsel %vm634, %v6537, 0.0
        %v6666 = vsel %vm635, %v6538, 0.0
        %v6667 = vsel %vm635, %v6539, 0.0
        %v6668 = vsel %vm635, %v6540, 0.0
        %v6669 = vsel %vm635, %v6541, 0.0
        %v6670 = vsel %vm636, %v6542, 0.0
        %v6671 = vsel %vm636, %v6543, 0.0
        %v6672 = vsel %vm636, %v6544, 0.0
        %v6673 = vsel %vm636, %v6545, 0.0
        %v6674 = vsel %vm637, %v6546, 0.0
        %v6675 = vsel %vm637, %v6547, 0.0
        %v6676 = vsel %vm637, %v6548, 0.0
        %v6677 = vsel %vm637, %v6549, 0.0
        %v6678 = vsel %vm638, %v6550, 0.0
        %v6679 = vsel %vm638, %v6551, 0.0
        %v6680 = vsel %vm638, %v6552, 0.0
        %v6681 = vsel %vm638, %v6553, 0.0
        %v6682 = vsel %vm639, %v6554, 0.0
        %v6683 = vsel %vm639, %v6555, 0.0
        %v6684 = vsel %vm639, %v6556, 0.0
        %v6685 = vsel %vm639, %v6557, 0.0
        %v6686 = vsel %vm640, %v6558, 0.0
        %v6687 = vsel %vm640, %v6559, 0.0
        %v6688 = vsel %vm640, %v6560, 0.0
        %v6689 = vsel %vm640, %v6561, 0.0
        %v6690 = vmul.f32 %v6562, %v6562
        %v6691 = vmul.f32 %v6563, %v6563
        %v6692 = vmul.f32 %v6564, %v6564
        %v6693 = vmul.f32 %v6565, %v6565
        %v6694 = vmul.f32 %v6566, %v6566
        %v6695 = vmul.f32 %v6567, %v6567
        %v6696 = vmul.f32 %v6568, %v6568
        %v6697 = vmul.f32 %v6569, %v6569
        %v6698 = vmul.f32 %v6570, %v6570
        %v6699 = vmul.f32 %v6571, %v6571
        %v6700 = vmul.f32 %v6572, %v6572
        %v6701 = vmul.f32 %v6573, %v6573
        %v6702 = vmul.f32 %v6574, %v6574
        %v6703 = vmul.f32 %v6575, %v6575
        %v6704 = vmul.f32 %v6576, %v6576
        %v6705 = vmul.f32 %v6577, %v6577
        %v6706 = vmul.f32 %v6578, %v6578
        %v6707 = vmul.f32 %v6579, %v6579
        %v6708 = vmul.f32 %v6580, %v6580
        %v6709 = vmul.f32 %v6581, %v6581
        %v6710 = vmul.f32 %v6582, %v6582
        %v6711 = vmul.f32 %v6583, %v6583
        %v6712 = vmul.f32 %v6584, %v6584
        %v6713 = vmul.f32 %v6585, %v6585
        %v6714 = vmul.f32 %v6586, %v6586
        %v6715 = vmul.f32 %v6587, %v6587
        %v6716 = vmul.f32 %v6588, %v6588
        %v6717 = vmul.f32 %v6589, %v6589
        %v6718 = vmul.f32 %v6590, %v6590
        %v6719 = vmul.f32 %v6591, %v6591
        %v6720 = vmul.f32 %v6592, %v6592
        %v6721 = vmul.f32 %v6593, %v6593
        %v6722 = vmul.f32 %v6594, %v6594
        %v6723 = vmul.f32 %v6595, %v6595
        %v6724 = vmul.f32 %v6596, %v6596
        %v6725 = vmul.f32 %v6597, %v6597
        %v6726 = vmul.f32 %v6598, %v6598
        %v6727 = vmul.f32 %v6599, %v6599
        %v6728 = vmul.f32 %v6600, %v6600
        %v6729 = vmul.f32 %v6601, %v6601
        %v6730 = vmul.f32 %v6602, %v6602
        %v6731 = vmul.f32 %v6603, %v6603
        %v6732 = vmul.f32 %v6604, %v6604
        %v6733 = vmul.f32 %v6605, %v6605
        %v6734 = vmul.f32 %v6606, %v6606
        %v6735 = vmul.f32 %v6607, %v6607
        %v6736 = vmul.f32 %v6608, %v6608
        %v6737 = vmul.f32 %v6609, %v6609
        %v6738 = vmul.f32 %v6610, %v6610
        %v6739 = vmul.f32 %v6611, %v6611
        %v6740 = vmul.f32 %v6612, %v6612
        %v6741 = vmul.f32 %v6613, %v6613
        %v6742 = vmul.f32 %v6614, %v6614
        %v6743 = vmul.f32 %v6615, %v6615
        %v6744 = vmul.f32 %v6616, %v6616
        %v6745 = vmul.f32 %v6617, %v6617
        %v6746 = vmul.f32 %v6618, %v6618
        %v6747 = vmul.f32 %v6619, %v6619
        %v6748 = vmul.f32 %v6620, %v6620
        %v6749 = vmul.f32 %v6621, %v6621
        %v6750 = vmul.f32 %v6622, %v6622
        %v6751 = vmul.f32 %v6623, %v6623
        %v6752 = vmul.f32 %v6624, %v6624
        %v6753 = vmul.f32 %v6625, %v6625
        %v6754 = vmul.f32 %v6626, %v6626
        %v6755 = vmul.f32 %v6627, %v6627
        %v6756 = vmul.f32 %v6628, %v6628
        %v6757 = vmul.f32 %v6629, %v6629
        %v6758 = vmul.f32 %v6630, %v6630
        %v6759 = vmul.f32 %v6631, %v6631
        %v6760 = vmul.f32 %v6632, %v6632
        %v6761 = vmul.f32 %v6633, %v6633
        %v6762 = vmul.f32 %v6634, %v6634
        %v6763 = vmul.f32 %v6635, %v6635
        %v6764 = vmul.f32 %v6636, %v6636
        %v6765 = vmul.f32 %v6637, %v6637
        %v6766 = vmul.f32 %v6638, %v6638
        %v6767 = vmul.f32 %v6639, %v6639
        %v6768 = vmul.f32 %v6640, %v6640
        %v6769 = vmul.f32 %v6641, %v6641
        %v6770 = vmul.f32 %v6642, %v6642
        %v6771 = vmul.f32 %v6643, %v6643
        %v6772 = vmul.f32 %v6644, %v6644
        %v6773 = vmul.f32 %v6645, %v6645
        %v6774 = vmul.f32 %v6646, %v6646
        %v6775 = vmul.f32 %v6647, %v6647
        %v6776 = vmul.f32 %v6648, %v6648
        %v6777 = vmul.f32 %v6649, %v6649
        %v6778 = vmul.f32 %v6650, %v6650
        %v6779 = vmul.f32 %v6651, %v6651
        %v6780 = vmul.f32 %v6652, %v6652
        %v6781 = vmul.f32 %v6653, %v6653
        %v6782 = vmul.f32 %v6654, %v6654
        %v6783 = vmul.f32 %v6655, %v6655
        %v6784 = vmul.f32 %v6656, %v6656
        %v6785 = vmul.f32 %v6657, %v6657
        %v6786 = vmul.f32 %v6658, %v6658
        %v6787 = vmul.f32 %v6659, %v6659
        %v6788 = vmul.f32 %v6660, %v6660
        %v6789 = vmul.f32 %v6661, %v6661
        %v6790 = vmul.f32 %v6662, %v6662
        %v6791 = vmul.f32 %v6663, %v6663
        %v6792 = vmul.f32 %v6664, %v6664
        %v6793 = vmul.f32 %v6665, %v6665
        %v6794 = vmul.f32 %v6666, %v6666
        %v6795 = vmul.f32 %v6667, %v6667
        %v6796 = vmul.f32 %v6668, %v6668
        %v6797 = vmul.f32 %v6669, %v6669
        %v6798 = vmul.f32 %v6670, %v6670
        %v6799 = vmul.f32 %v6671, %v6671
        %v6800 = vmul.f32 %v6672, %v6672
        %v6801 = vmul.f32 %v6673, %v6673
        %v6802 = vmul.f32 %v6674, %v6674
        %v6803 = vmul.f32 %v6675, %v6675
        %v6804 = vmul.f32 %v6676, %v6676
        %v6805 = vmul.f32 %v6677, %v6677
        %v6806 = vmul.f32 %v6678, %v6678
        %v6807 = vmul.f32 %v6679, %v6679
        %v6808 = vmul.f32 %v6680, %v6680
        %v6809 = vmul.f32 %v6681, %v6681
        %v6810 = vmul.f32 %v6682, %v6682
        %v6811 = vmul.f32 %v6683, %v6683
        %v6812 = vmul.f32 %v6684, %v6684
        %v6813 = vmul.f32 %v6685, %v6685
        %v6814 = vmul.f32 %v6686, %v6686
        %v6815 = vmul.f32 %v6687, %v6687
        %v6816 = vmul.f32 %v6688, %v6688
        %v6817 = vmul.f32 %v6689, %v6689
        %v6818 = vadd.f32 %v6690, %v6694
        %v6819 = vadd.f32 %v6818, %v6698
        %v6820 = vadd.f32 %v6819, %v6702
        %v6821 = vadd.f32 %v6820, %v6706
        %v6822 = vadd.f32 %v6821, %v6710
        %v6823 = vadd.f32 %v6822, %v6714
        %v6824 = vadd.f32 %v6823, %v6718
        %v6825 = vadd.f32 %v6824, %v6722
        %v6826 = vadd.f32 %v6825, %v6726
        %v6827 = vadd.f32 %v6826, %v6730
        %v6828 = vadd.f32 %v6827, %v6734
        %v6829 = vadd.f32 %v6828, %v6738
        %v6830 = vadd.f32 %v6829, %v6742
        %v6831 = vadd.f32 %v6830, %v6746
        %v6832 = vadd.f32 %v6831, %v6750
        %v6833 = vadd.f32 %v6832, %v6754
        %v6834 = vadd.f32 %v6833, %v6758
        %v6835 = vadd.f32 %v6834, %v6762
        %v6836 = vadd.f32 %v6835, %v6766
        %v6837 = vadd.f32 %v6836, %v6770
        %v6838 = vadd.f32 %v6837, %v6774
        %v6839 = vadd.f32 %v6838, %v6778
        %v6840 = vadd.f32 %v6839, %v6782
        %v6841 = vadd.f32 %v6840, %v6786
        %v6842 = vadd.f32 %v6841, %v6790
        %v6843 = vadd.f32 %v6842, %v6794
        %v6844 = vadd.f32 %v6843, %v6798
        %v6845 = vadd.f32 %v6844, %v6802
        %v6846 = vadd.f32 %v6845, %v6806
        %v6847 = vadd.f32 %v6846, %v6810
        %v6848 = vadd.f32 %v6847, %v6814
        %v6849 = vrot.slane %v6848, 4
        %v6850 = vadd.f32 %v6848, %v6849
        %v6851 = vrot.slane %v6850, 2
        %v6852 = vadd.f32 %v6850, %v6851
        %v6853 = vrot.slane %v6852, 1
        %v6854 = vadd.f32 %v6852, %v6853
        %v6855 = vadd.f32 %v6691, %v6695
        %v6856 = vadd.f32 %v6855, %v6699
        %v6857 = vadd.f32 %v6856, %v6703
        %v6858 = vadd.f32 %v6857, %v6707
        %v6859 = vadd.f32 %v6858, %v6711
        %v6860 = vadd.f32 %v6859, %v6715
        %v6861 = vadd.f32 %v6860, %v6719
        %v6862 = vadd.f32 %v6861, %v6723
        %v6863 = vadd.f32 %v6862, %v6727
        %v6864 = vadd.f32 %v6863, %v6731
        %v6865 = vadd.f32 %v6864, %v6735
        %v6866 = vadd.f32 %v6865, %v6739
        %v6867 = vadd.f32 %v6866, %v6743
        %v6868 = vadd.f32 %v6867, %v6747
        %v6869 = vadd.f32 %v6868, %v6751
        %v6870 = vadd.f32 %v6869, %v6755
        %v6871 = vadd.f32 %v6870, %v6759
        %v6872 = vadd.f32 %v6871, %v6763
        %v6873 = vadd.f32 %v6872, %v6767
        %v6874 = vadd.f32 %v6873, %v6771
        %v6875 = vadd.f32 %v6874, %v6775
        %v6876 = vadd.f32 %v6875, %v6779
        %v6877 = vadd.f32 %v6876, %v6783
        %v6878 = vadd.f32 %v6877, %v6787
        %v6879 = vadd.f32 %v6878, %v6791
        %v6880 = vadd.f32 %v6879, %v6795
        %v6881 = vadd.f32 %v6880, %v6799
        %v6882 = vadd.f32 %v6881, %v6803
        %v6883 = vadd.f32 %v6882, %v6807
        %v6884 = vadd.f32 %v6883, %v6811
        %v6885 = vadd.f32 %v6884, %v6815
        %v6886 = vrot.slane %v6885, 4
        %v6887 = vadd.f32 %v6885, %v6886
        %v6888 = vrot.slane %v6887, 2
        %v6889 = vadd.f32 %v6887, %v6888
        %v6890 = vrot.slane %v6889, 1
        %v6891 = vadd.f32 %v6889, %v6890
        %v6892 = vadd.f32 %v6692, %v6696
        %v6893 = vadd.f32 %v6892, %v6700
        %v6894 = vadd.f32 %v6893, %v6704
        %v6895 = vadd.f32 %v6894, %v6708
        %v6896 = vadd.f32 %v6895, %v6712
        %v6897 = vadd.f32 %v6896, %v6716
        %v6898 = vadd.f32 %v6897, %v6720
        %v6899 = vadd.f32 %v6898, %v6724
        %v6900 = vadd.f32 %v6899, %v6728
        %v6901 = vadd.f32 %v6900, %v6732
        %v6902 = vadd.f32 %v6901, %v6736
        %v6903 = vadd.f32 %v6902, %v6740
        %v6904 = vadd.f32 %v6903, %v6744
        %v6905 = vadd.f32 %v6904, %v6748
        %v6906 = vadd.f32 %v6905, %v6752
        %v6907 = vadd.f32 %v6906, %v6756
        %v6908 = vadd.f32 %v6907, %v6760
        %v6909 = vadd.f32 %v6908, %v6764
        %v6910 = vadd.f32 %v6909, %v6768
        %v6911 = vadd.f32 %v6910, %v6772
        %v6912 = vadd.f32 %v6911, %v6776
        %v6913 = vadd.f32 %v6912, %v6780
        %v6914 = vadd.f32 %v6913, %v6784
        %v6915 = vadd.f32 %v6914, %v6788
        %v6916 = vadd.f32 %v6915, %v6792
        %v6917 = vadd.f32 %v6916, %v6796
        %v6918 = vadd.f32 %v6917, %v6800
        %v6919 = vadd.f32 %v6918, %v6804
        %v6920 = vadd.f32 %v6919, %v6808
        %v6921 = vadd.f32 %v6920, %v6812
        %v6922 = vadd.f32 %v6921, %v6816
        %v6923 = vrot.slane %v6922, 4
        %v6924 = vadd.f32 %v6922, %v6923
        %v6925 = vrot.slane %v6924, 2
        %v6926 = vadd.f32 %v6924, %v6925
        %v6927 = vrot.slane %v6926, 1
        %v6928 = vadd.f32 %v6926, %v6927
        %v6929 = vadd.f32 %v6693, %v6697
        %v6930 = vadd.f32 %v6929, %v6701
        %v6931 = vadd.f32 %v6930, %v6705
        %v6932 = vadd.f32 %v6931, %v6709
        %v6933 = vadd.f32 %v6932, %v6713
        %v6934 = vadd.f32 %v6933, %v6717
        %v6935 = vadd.f32 %v6934, %v6721
        %v6936 = vadd.f32 %v6935, %v6725
        %v6937 = vadd.f32 %v6936, %v6729
        %v6938 = vadd.f32 %v6937, %v6733
        %v6939 = vadd.f32 %v6938, %v6737
        %v6940 = vadd.f32 %v6939, %v6741
        %v6941 = vadd.f32 %v6940, %v6745
        %v6942 = vadd.f32 %v6941, %v6749
        %v6943 = vadd.f32 %v6942, %v6753
        %v6944 = vadd.f32 %v6943, %v6757
        %v6945 = vadd.f32 %v6944, %v6761
        %v6946 = vadd.f32 %v6945, %v6765
        %v6947 = vadd.f32 %v6946, %v6769
        %v6948 = vadd.f32 %v6947, %v6773
        %v6949 = vadd.f32 %v6948, %v6777
        %v6950 = vadd.f32 %v6949, %v6781
        %v6951 = vadd.f32 %v6950, %v6785
        %v6952 = vadd.f32 %v6951, %v6789
        %v6953 = vadd.f32 %v6952, %v6793
        %v6954 = vadd.f32 %v6953, %v6797
        %v6955 = vadd.f32 %v6954, %v6801
        %v6956 = vadd.f32 %v6955, %v6805
        %v6957 = vadd.f32 %v6956, %v6809
        %v6958 = vadd.f32 %v6957, %v6813
        %v6959 = vadd.f32 %v6958, %v6817
        %v6960 = vrot.slane %v6959, 4
        %v6961 = vadd.f32 %v6959, %v6960
        %v6962 = vrot.slane %v6961, 2
        %v6963 = vadd.f32 %v6961, %v6962
        %v6964 = vrot.slane %v6963, 1
        %v6965 = vadd.f32 %v6963, %v6964
        %v6970 = vcombine.low %v6854, %v6891
        %v6971 = vcombine.low %v6928, %v6965
        %v6973 = vunpack.c.l.s4 1966171168
        %v6974 = vunpack.c.0.s8 %v6973
        %v6975 = vlaneseq
        %v6976 = vshrl.u32 %v6975, 7
        %v6977 = vsub.s32 %v6974, %v6976
        %v6978 = vrot.slane %v6970, %v6977
        %v6980 = vunpack.c.l.s4 1966171168
        %v6981 = vunpack.c.0.s8 %v6980
        %v6982 = vlaneseq
        %v6983 = vshrl.u32 %v6982, 7
        %v6984 = vsub.s32 %v6981, %v6983
        %v6985 = vrot.slane %v6971, %v6984
        %v6986 = vcombine.low %v6978, %v6985
        %v6988 = vunpack.c.l.s4 1966171168
        %v6989 = vunpack.c.0.s8 %v6988
        %v6990 = vlaneseq
        %v6991 = vshrl.u32 %v6990, 7
        %v6992 = vsub.s32 %v6989, %v6991
        %v6993 = vrot.slane %v6986, %v6992
        %6995 = vst.msk [vmem:[%s337] sm:$0xf] %vm6432, %v6993
        %s6996 = sand.u32 %s126, 1
        %s6997 = scalar_lea.sflag [#allocation4], %s6996
        %s6998 = sand.u32 %s126, 1
        %s6999 = smul.addr %s6998, 1024
        %s7000 = scalar_lea.vmem [#allocation10], %s6999
        %s7001 = sand.u32 %s29, 1
        %s7002 = scalar_lea.sflag [#allocation12], %s7001
        %s7003 = sand.u32 %s152, 1
        %s7004 = smul.addr %s7003, 4
        %s7005 = scalar_lea.vmem [#allocation11], %s7004
        %s7006 = sand.u32 %s29, 1
        %s7007 = scalar_lea.sflag [#allocation12], %s7006
        %s7008 = sand.u32 %s178, 1
        %s7009 = smul.addr %s7008, 4
        %s7010 = scalar_lea.vmem [#allocation13], %s7009
        // Predicated region
        $region53: #{tpu_custom_call.1} parent=35 // pred_check
          %p7011 = pneg %p136
        $region54: #{tpu_custom_call.1} parent=35 // pred_check_branch
          %7013 = sbr.rel (%p7011) target = $region56
        $region55: #{tpu_custom_call.1} parent=35 // pred_region
          %s7014 = smul.u32 32, %s29
          %s7015 = ssub.s32 80, %s7014
          %p7016 = scmp.lt.s32.totalorder %s7015, 32
          %s7017 = scalar_select %p7016, %s7015, 32
          %s7018 = smul.u32 128, %s7017
          %s7019 = smul.u32 %s7018, 4
          %s7021 = ssub.s32 16384, %s7019
          %7022 = vsyncadd %s6997, %s7021
          %p7023 = scmp.ne.s32.totalorder 0, %s7019
          %s7024 = smul.addr %s7014, 4
          %s7025 = smul.addr %s7024, 128
          %s7026 = scalar_lea.hbm %s4, %s7025
          %s7027 = smul.u32 32, %s7017
          %s7028 = sshll.u32 %s7000, 4
          %s7029 = int_to_ptr.vmem [resolvable:$true] %s7028
          %s7030 = sshll.u32 %s7027, 4
          %7034 = dma.vmem_to_hbm [thread:$0]  (%p7023), %s7029, %s7030, %s7026, %s6997, 512, 512, 32
        $region56: #{tpu_custom_call.1} parent=35 // pred_fallthru
          _
        // Predicated region
        $region57: #{tpu_custom_call.1} parent=35 // pred_check
          %p7035 = pneg %p162
        $region58: #{tpu_custom_call.1} parent=35 // pred_check_branch
          %7037 = sbr.rel (%p7035) target = $region60
        $region59: #{tpu_custom_call.1} parent=35 // pred_region
          %s7039 = ssub.s32 64, 64
          %7040 = vsyncadd %s7002, %s7039
          %s7041 = smul.addr %s29, 4
          %s7042 = smul.addr %s7041, 16
          %s7043 = scalar_lea.hbm %s5, %s7042
          %s7045 = sshll.u32 %s7005, 4
          %s7046 = int_to_ptr.vmem [resolvable:$true] %s7045
          %7048 = dma.vmem_to_hbm [thread:$0]  %s7046, 64, %s7043, %s7002
        $region60: #{tpu_custom_call.1} parent=35 // pred_fallthru
          _
        // Predicated region
        $region61: #{tpu_custom_call.1} parent=35 // pred_check
          %p7049 = pneg %p188
        $region62: #{tpu_custom_call.1} parent=35 // pred_check_branch
          %7051 = sbr.rel (%p7049) target = $region64
        $region63: #{tpu_custom_call.1} parent=35 // pred_region
          %s7053 = ssub.s32 64, 64
          %7054 = vsyncadd %s7007, %s7053
          %s7055 = smul.addr %s29, 4
          %s7056 = smul.addr %s7055, 16
          %s7057 = scalar_lea.hbm %s6, %s7056
          %s7059 = sshll.u32 %s7010, 4
          %s7060 = int_to_ptr.vmem [resolvable:$true] %s7059
          %7062 = dma.vmem_to_hbm [thread:$0]  %s7060, 64, %s7057, %s7007
        $region64: #{tpu_custom_call.1} parent=35 // pred_fallthru
          _
      $region36: #{tpu_custom_call.1} parent=5 // pred_fallthru
        _
      %p7063 = scmp.le.s32.totalorder 2, %s24
      // Predicated region
      $region65: #{tpu_custom_call.1} parent=5 // pred_check
        %p7064 = pneg %p7063
      $region66: #{tpu_custom_call.1} parent=5 // pred_check_branch
        %7066 = sbr.rel (%p7064) target = $region68
      $region67: #{tpu_custom_call.1} parent=5 // pred_region
        %s7067 = ssub.s32 %s24, 2
        // Predicated region
        $region69: #{tpu_custom_call.1} parent=67 // pred_check
          %p7068 = pneg %p142
        $region70: #{tpu_custom_call.1} parent=67 // pred_check_branch
          %7070 = sbr.rel (%p7068) target = $region72
        $region71: #{tpu_custom_call.1} parent=67 // pred_region
          %s7071 = sand.u32 %s127, 1
          %s7072 = scalar_lea.sflag [#allocation4], %s7071
          %s7073 = sand.u32 %s127, 1
          %s7074 = smul.addr %s7073, 1024
          %s7075 = scalar_lea.vmem [#allocation10], %s7074
          %7076 = dma.done %s7072, 16384
        $region72: #{tpu_custom_call.1} parent=67 // pred_fallthru
          _
        // Predicated region
        $region73: #{tpu_custom_call.1} parent=67 // pred_check
          %p7077 = pneg %p168
        $region74: #{tpu_custom_call.1} parent=67 // pred_check_branch
          %7079 = sbr.rel (%p7077) target = $region76
        $region75: #{tpu_custom_call.1} parent=67 // pred_region
          %s7080 = sand.u32 %s30, 1
          %s7081 = scalar_lea.sflag [#allocation12], %s7080
          %s7082 = sand.u32 %s153, 1
          %s7083 = smul.addr %s7082, 4
          %s7084 = scalar_lea.vmem [#allocation11], %s7083
          %7085 = dma.done %s7081, 64
        $region76: #{tpu_custom_call.1} parent=67 // pred_fallthru
          _
        // Predicated region
        $region77: #{tpu_custom_call.1} parent=67 // pred_check
          %p7086 = pneg %p194
        $region78: #{tpu_custom_call.1} parent=67 // pred_check_branch
          %7088 = sbr.rel (%p7086) target = $region80
        $region79: #{tpu_custom_call.1} parent=67 // pred_region
          %s7089 = sand.u32 %s30, 1
          %s7090 = scalar_lea.sflag [#allocation12], %s7089
          %s7091 = sand.u32 %s179, 1
          %s7092 = smul.addr %s7091, 4
          %s7093 = scalar_lea.vmem [#allocation13], %s7092
          %7094 = dma.done %s7090, 64
        $region80: #{tpu_custom_call.1} parent=67 // pred_fallthru
          _
      $region68: #{tpu_custom_call.1} parent=5 // pred_fallthru
        _
    $region6: #{tpu_custom_call.1} parent=1 // loop_footer
      %s28 = sadd.s32 1, %s24
    $region7: #{tpu_custom_call.1} parent=1 // loop_footer_branch
      %23 = sbr.rel target = $region3
    $region8: #{tpu_custom_call.1} parent=1 // loop_exit
      _
    %7095 = vsyncpa [#allocation3], 1
    %s7096 = scalar_lea.sflag [#allocation3], 1
    %7097 = vsyncpa %s7096, 1
    %7098 = vsyncpa [#allocation6], 1
    %7099 = vsyncpa [#allocation9], 1
    %7100 = vsyncpa [#allocation4], 1
    %s7101 = scalar_lea.sflag [#allocation4], 1
    %7102 = vsyncpa %s7101, 1
    %7103 = vsyncpa [#allocation12], 1
    %s7104 = scalar_lea.sflag [#allocation12], 1
    %7105 = vsyncpa %s7104, 1

</llo_original>
